<compile_context>
chip_gen: v7x
topology: tpu7x:2x2x1
jax: 0.10.0
libtpu: 0.0.40
codegen_flags: <defaults>
</compile_context>

<pallas_src>
import math

import numpy as np
import jax
import jax.numpy as jnp
from jax import lax
from jax.experimental import pallas as pl
from jax.experimental.pallas import tpu as pltpu


def _round_up(x, m):
    return ((x + m - 1) // m) * m


# ----------------------------------------------------------------------------
# Parameter / plan construction
# ----------------------------------------------------------------------------
def build_snail(key, in_dim, feat_dim, n_way, n_support, architecture):
    seq_len = n_way * n_support + 1
    num_filters = int(math.ceil(math.log(seq_len, 2)))

    # ---- channel plan (mirrors SnailModel.__init__) ----
    layers = []
    ch = feat_dim + n_way
    for blk in architecture:
        if blk['module'] == 'attention':
            layers.append(dict(kind='attention', in_ch=ch, out_off=ch,
                               key_size=blk['att_key_size'],
                               value_size=blk['att_value_size'],
                               k_pad=_round_up(ch, 128)))
            ch += blk['att_value_size']
        elif blk['module'] == 'tc':
            F = blk['tc_filters']
            for l in range(num_filters):
                layers.append(dict(kind='dense', in_ch=ch, out_off=ch,
                                   filters=F, dilation=2 ** l,
                                   k_pad=_round_up(ch, 128)))
                ch += F
        else:
            raise ValueError(f"Unrecognized module: {blk['module']}")
    final_ch = ch

    T_pad = _round_up(seq_len, 8)
    C_pad = _round_up(final_ch, 128)
    N_pad = _round_up(n_way, 128)
    in_dim_pad = _round_up(in_dim, 128)

    def lin_init(k, fi, fo):
        kw, kb = jax.random.split(k)
        s = 1.0 / math.sqrt(fi)
        return (jax.random.uniform(kw, (fi, fo), jnp.float32, -s, s),
                jax.random.uniform(kb, (1, fo), jnp.float32, -s, s))

    def conv_init(k, cin, fo):
        ka, kb, kc = jax.random.split(k, 3)
        s = 1.0 / math.sqrt(cin * 2)          # kernel_size = 2
        wp = jax.random.uniform(ka, (cin, fo), jnp.float32, -s, s)   # prev tap
        wc = jax.random.uniform(kb, (cin, fo), jnp.float32, -s, s)   # current tap
        b = jax.random.uniform(kc, (1, fo), jnp.float32, -s, s)
        return wp, wc, b

    def pad_k(w, kp):
        return jnp.pad(w, ((0, kp - w.shape[0]), (0, 0)))

    raw = {'layers': []}
    packed = []                                 # kernel weight list

    key, k = jax.random.split(key)
    feat_w, feat_b = lin_init(k, in_dim, feat_dim)
    raw['feat'] = (feat_w, feat_b)
    packed += [pad_k(feat_w, in_dim_pad).astype(jnp.bfloat16), feat_b]

    for layer in layers:
        c, kp = layer['in_ch'], layer['k_pad']
        if layer['kind'] == 'attention':
            ks, vs = layer['key_size'], layer['value_size']
            key, k1, k2, k3 = jax.random.split(key, 4)
            wq, bq = lin_init(k1, c, ks)
            wk, bk = lin_init(k2, c, ks)
            wv, bv = lin_init(k3, c, vs)
            raw['layers'].append(dict(wq=wq, bq=bq, wk=wk, bk=bk, wv=wv, bv=bv))
            wqkv = pad_k(jnp.concatenate([wq, wk, wv], axis=1), kp)   # (k_pad, 2ks+vs)
            bqkv = jnp.concatenate([bq, bk, bv], axis=1)
            packed += [wqkv.astype(jnp.bfloat16), bqkv]
        else:
            F = layer['filters']
            key, k1, k2 = jax.random.split(key, 3)
            w1p, w1c, b1 = conv_init(k1, c, F)
            w2p, w2c, b2 = conv_init(k2, c, F)
            raw['layers'].append(dict(w1p=w1p, w1c=w1c, b1=b1,
                                      w2p=w2p, w2c=w2c, b2=b2))
            wcur = pad_k(jnp.concatenate([w1c, w2c], axis=1), kp)     # (k_pad, 2F)
            wprev = pad_k(jnp.concatenate([w1p, w2p], axis=1), kp)
            bias = jnp.concatenate([b1, b2], axis=1)
            packed += [wcur.astype(jnp.bfloat16), wprev.astype(jnp.bfloat16), bias]

    key, k = jax.random.split(key)
    fc_w, fc_b = lin_init(k, final_ch, n_way)
    raw['fc'] = (fc_w, fc_b)
    fc_w_p = jnp.pad(fc_w, ((0, C_pad - final_ch), (0, N_pad - n_way)))
    fc_b_p = jnp.pad(fc_b, ((0, 0), (0, N_pad - n_way)))
    packed += [fc_w_p.astype(jnp.bfloat16), fc_b_p]

    cfg = dict(seq_len=seq_len, feat_dim=feat_dim, n_way=n_way, in_dim=in_dim,
               in_dim_pad=in_dim_pad, T_pad=T_pad, C_pad=C_pad, N_pad=N_pad,
               final_ch=final_ch)
    return layers, raw, tuple(packed), cfg


# ----------------------------------------------------------------------------
# Fused Pallas kernel (E episodes per grid step)
# ----------------------------------------------------------------------------
def make_snail_kernel(layers, cfg, n_weight_args, E):
    seq_len = cfg['seq_len']
    feat_dim = cfg['feat_dim']
    n_way = cfg['n_way']
    T_pad = cfg['T_pad']
    M = E * T_pad
    pow2 = (T_pad & (T_pad - 1)) == 0          # T_pad is 8-aligned; often a pow2

    def kernel(x_ref, lab_ref, *args):
        w = args[:n_weight_args]
        o_ref = args[n_weight_args]
        resid = args[n_weight_args + 1]          # (M, C_pad) bf16 VMEM scratch

        # Load-bearing zero: lanes read (against zero weight rows) before being
        # written this step, and lanes >= final_ch, must never hold NaN garbage
        # from uninitialized VMEM on any core's first step.  bf16 halves the cost.
        resid[...] = jnp.zeros_like(resid)

        # per-row "time within episode" (M, 1)
        r1 = lax.broadcasted_iota(jnp.int32, (M, 1), 0)
        row_t = (r1 & (T_pad - 1)) if pow2 else (r1 % T_pad)

        # ---- feature extractor: (M, in_dim_pad) @ (in_dim_pad, feat_dim) ----
        feats = (jnp.dot(x_ref[...], w[0][...],
                         preferred_element_type=jnp.float32) + w[1][...])
        resid[:, 0:feat_dim] = feats.astype(jnp.bfloat16)

        # ---- labels, with each episode's query row (t == seq_len-1) zeroed ----
        lab = lab_ref[...]
        resid[:, feat_dim:feat_dim + n_way] = jnp.where(
            row_t == seq_len - 1, jnp.zeros_like(lab), lab)

        # ---- block-diagonal causal attention mask over the E stacked episodes ----
        rr = lax.broadcasted_iota(jnp.int32, (M, M), 0)   # query row
        cc = lax.broadcasted_iota(jnp.int32, (M, M), 1)   # key row
        if pow2:
            same_ep = (rr ^ cc) < T_pad                   # same episode block
            key_t = cc & (T_pad - 1)
        else:
            same_ep = (rr // T_pad) == (cc // T_pad)
            key_t = cc % T_pad
        att_mask = jnp.logical_not(same_ep) | (cc > rr) | (key_t >= seq_len)

        wi = 2
        for layer in layers:
            off, kp = layer['out_off'], layer['k_pad']
            xb = resid[:, 0:kp]                  # bf16, per-layer K (no re-cast)
            if layer['kind'] == 'attention':
                ks, vs = layer['key_size'], layer['value_size']
                qkv = (jnp.dot(xb, w[wi][...],
                               preferred_element_type=jnp.float32) + w[wi + 1][...])
                wi += 2
                q = qkv[:, :ks]
                k = qkv[:, ks:2 * ks]
                v = qkv[:, 2 * ks:2 * ks + vs]
                logits = lax.dot_general(
                    q, k, (((1,), (1,)), ((), ())),
                    preferred_element_type=jnp.float32) * (1.0 / math.sqrt(ks))
                logits = jnp.where(att_mask, -1e30, logits)
                logits = logits - jnp.max(logits, axis=-1, keepdims=True)
                p = jnp.exp(logits)
                probs = p * pl.reciprocal(jnp.sum(p, axis=-1, keepdims=True),
                                          approx=True)
                read = jnp.dot(probs, v, preferred_element_type=jnp.float32)
                resid[:, off:off + vs] = read.astype(jnp.bfloat16)
            else:
                F, d = layer['filters'], layer['dilation']
                hc = jnp.dot(xb, w[wi][...], preferred_element_type=jnp.float32)
                hp = jnp.dot(xb, w[wi + 1][...], preferred_element_type=jnp.float32)
                # Causal shift of the *projected* prev tap (shift(x)@W == shift(x@W)):
                # XLU roll + mask replaces the old (M,M) f32 shift matmul.
                if d < T_pad:
                    hp = pltpu.roll(hp, shift=d, axis=0)
                    hp = jnp.where(row_t < d, 0.0, hp)
                else:
                    hp = jnp.zeros_like(hp)      # dilation reaches past the episode
                h = hc + hp + w[wi + 2][...]
                wi += 3
                resid[:, off:off + F] = (jnp.tanh(h[:, :F])
                                         * jax.nn.sigmoid(h[:, F:2 * F])
                                         ).astype(jnp.bfloat16)

        # ---- final fc over the full lane-padded residual (lane-dense store) ----
        out = (jnp.dot(resid[...], w[wi][...],
                       preferred_element_type=jnp.float32) + w[wi + 1][...])
        o_ref[...] = out

    return kernel


def _episode_batching(B, T_pad, target_rows=256, min_rows=128):
    """Episodes per grid step so M = E*T_pad fills a 256-wide MXU pass."""
    e_cap = max(1, target_rows // T_pad)
    steps = -(-B // e_cap)                       # ceil
    if steps == 1 and B * T_pad >= 2 * min_rows:
        steps = 2                                # keep both v7x cores busy when free
    E = -(-B // steps)                           # balance episodes across steps
    return E, steps, steps * E


def make_snail_forward(layers, cfg, n_weight_args):
    seq_len, n_way, in_dim = cfg['seq_len'], cfg['n_way'], cfg['in_dim']
    in_dim_pad = cfg['in_dim_pad']
    T_pad, C_pad, N_pad = cfg['T_pad'], cfg['C_pad'], cfg['N_pad']

    def forward(x_images, labels, weights):
        T_total = labels.shape[0]
        B = T_total // seq_len
        E, steps, B_pad = _episode_batching(B, T_pad)
        M = E * T_pad
        kernel = make_snail_kernel(layers, cfg, n_weight_args, E)

        # host-side layout: (B_pad*T_pad, in_dim_pad) bf16, lane-padded & zero rows
        x = x_images.reshape(B, seq_len, -1)
        x = jnp.pad(x, ((0, B_pad - B), (0, T_pad - seq_len),
                        (0, in_dim_pad - in_dim)))
        x = x.reshape(B_pad * T_pad, in_dim_pad).astype(jnp.bfloat16)
        lab = labels.reshape(B, seq_len, n_way)
        lab = jnp.pad(lab, ((0, B_pad - B), (0, T_pad - seq_len), (0, 0)))
        lab = lab.reshape(B_pad * T_pad, n_way).astype(jnp.bfloat16)

        in_specs = [pl.BlockSpec((M, in_dim_pad), lambda i: (i, 0)),
                    pl.BlockSpec((M, n_way), lambda i: (i, 0))]
        # TODO(synk): weights could be single-buffered (pipeline_mode=pl.Buffered(1))
        # since their block never changes; left at default for lowering compatibility.
        in_specs += [pl.BlockSpec(wt.shape, lambda i: (0, 0)) for wt in weights]

        out = pl.pallas_call(
            kernel,
            grid=(steps,),
            in_specs=in_specs,
            out_specs=pl.BlockSpec((M, N_pad), lambda i: (i, 0)),
            out_shape=jax.ShapeDtypeStruct((B_pad * T_pad, N_pad), jnp.float32),
            scratch_shapes=[pltpu.VMEM((M, C_pad), jnp.bfloat16)],
            compiler_params=pltpu.CompilerParams(
                dimension_semantics=("parallel",),       # episode batches are independent
                vmem_limit_bytes=32 * 1024 * 1024),
        )(x, lab, *weights)
        out = out.reshape(B_pad, T_pad, N_pad)
        return out[:B, :seq_len, :n_way]

    return jax.jit(forward)


# ----------------------------------------------------------------------------
# Pure-JAX reference (f32, unfused) for a loose numerical check
# ----------------------------------------------------------------------------
def snail_reference(x_images, labels, raw, layers, cfg):
    seq_len, n_way = cfg['seq_len'], cfg['n_way']
    T_total = labels.shape[0]
    B = T_total // seq_len

    feat_w, feat_b = raw['feat']
    feats = x_images.reshape(T_total, -1).astype(jnp.float32) @ feat_w + feat_b
    lab = labels.astype(jnp.float32)
    last = jnp.array([(i + 1) * seq_len - 1 for i in range(B)], dtype=jnp.int32)
    lab = lab.at[last].set(0.0)
    x = jnp.concatenate([feats, lab], axis=1).reshape(B, seq_len, -1)

    for layer, p in zip(layers, raw['layers']):
        if layer['kind'] == 'attention':
            ks = layer['key_size']
            q = x @ p['wq'] + p['bq']
            k = x @ p['wk'] + p['bk']
            v = x @ p['wv'] + p['bv']
            logits = jnp.einsum('btk,bsk->bts', q, k) / math.sqrt(ks)
            r = jnp.arange(seq_len)
            mask = r[None, :, None] < r[None, None, :]
            logits = jnp.where(mask, -1e30, logits)
            probs = jax.nn.softmax(logits, axis=-1)
            read = jnp.einsum('bts,bsv->btv', probs, v)
            x = jnp.concatenate([x, read], axis=-1)
        else:
            d = layer['dilation']
            C = x.shape[-1]
            if d < seq_len:
                x_shift = jnp.concatenate(
                    [jnp.zeros((B, d, C), x.dtype), x[:, :seq_len - d]], axis=1)
            else:
                x_shift = jnp.zeros_like(x)
            h1 = x @ p['w1c'] + x_shift @ p['w1p'] + p['b1']
            h2 = x @ p['w2c'] + x_shift @ p['w2p'] + p['b2']
            x = jnp.concatenate([x, jnp.tanh(h1) * jax.nn.sigmoid(h2)], axis=-1)

    fc_w, fc_b = raw['fc']
    return x @ fc_w + fc_b


# ----------------------------------------------------------------------------
if __name__ == "__main__":
    N_WAY, N_SUPPORT = 4, 1
    SEQ_LEN = N_WAY * N_SUPPORT + 1          # 5
    BATCH = 33                               # exercises >1 grid step + episode padding
    T_TOTAL = BATCH * SEQ_LEN                # 165
    IMG_C, IMG_H, IMG_W = 3, 8, 8
    FEAT_DIM = 32

    ARCHITECTURE = [
        {'module': 'attention', 'att_key_size': 16, 'att_value_size': 16},
        {'module': 'tc', 'tc_filters': 8},
        {'module': 'attention', 'att_key_size': 32, 'att_value_size': 32},
    ]

    root = jax.random.PRNGKey(0)
    k_params, k_x, k_lab = jax.random.split(root, 3)

    in_dim = IMG_C * IMG_H * IMG_W
    layers, raw, packed, cfg = build_snail(
        k_params, in_dim, FEAT_DIM, N_WAY, N_SUPPORT, ARCHITECTURE)

    x_images = jax.random.normal(k_x, (T_TOTAL, IMG_C, IMG_H, IMG_W), jnp.float32)
    label_ids = jax.random.randint(k_lab, (T_TOTAL,), 0, N_WAY)
    labels = jax.nn.one_hot(label_ids, N_WAY, dtype=jnp.float32)

    forward = make_snail_forward(layers, cfg, n_weight_args=len(packed))
    out = forward(x_images, labels, packed)
    out = jax.block_until_ready(out)

    assert out.shape == (BATCH, SEQ_LEN, N_WAY), out.shape
    assert bool(jnp.all(jnp.isfinite(out)))

    ref = snail_reference(x_images, labels, raw, layers, cfg)
    np.testing.assert_allclose(np.asarray(out), np.asarray(ref),
                               rtol=0.1, atol=0.1)   # bf16 matmuls vs f32 reference

    print("KERNEL_OK")
</pallas_src>

<mosaic_0001>
module attributes {stable_mosaic.version = 11 : i64} {
  func.func @kernel(%arg0: i32, %arg1: memref<136x256xbf16, #tpu.memory_space<vmem>>, %arg2: memref<136x4xbf16, #tpu.memory_space<vmem>>, %arg3: memref<256x32xbf16, #tpu.memory_space<vmem>>, %arg4: memref<1x32xf32, #tpu.memory_space<vmem>>, %arg5: memref<128x48xbf16, #tpu.memory_space<vmem>>, %arg6: memref<1x48xf32, #tpu.memory_space<vmem>>, %arg7: memref<128x16xbf16, #tpu.memory_space<vmem>>, %arg8: memref<128x16xbf16, #tpu.memory_space<vmem>>, %arg9: memref<1x16xf32, #tpu.memory_space<vmem>>, %arg10: memref<128x16xbf16, #tpu.memory_space<vmem>>, %arg11: memref<128x16xbf16, #tpu.memory_space<vmem>>, %arg12: memref<1x16xf32, #tpu.memory_space<vmem>>, %arg13: memref<128x16xbf16, #tpu.memory_space<vmem>>, %arg14: memref<128x16xbf16, #tpu.memory_space<vmem>>, %arg15: memref<1x16xf32, #tpu.memory_space<vmem>>, %arg16: memref<128x96xbf16, #tpu.memory_space<vmem>>, %arg17: memref<1x96xf32, #tpu.memory_space<vmem>>, %arg18: memref<128x128xbf16, #tpu.memory_space<vmem>>, %arg19: memref<1x128xf32, #tpu.memory_space<vmem>>, %arg20: memref<136x128xf32, #tpu.memory_space<vmem>>, %arg21: memref<136x128xbf16, #tpu.memory_space<vmem>>) attributes {dimension_semantics = [#tpu.dimension_semantics<parallel>], iteration_bounds = array<i64: 2>, scalar_prefetch = 0 : i64, scratch_operands = 1 : i64, tpu.core_type = #tpu.core_type<tc>, window_params = [{transform_indices = @transform_0, window_bounds = array<i64: 136, 256>}, {transform_indices = @transform_1, window_bounds = array<i64: 136, 4>}, {pipeline_mode = #tpu.pipeline_mode<synchronous>, transform_indices = @transform_2, window_bounds = array<i64: 256, 32>}, {pipeline_mode = #tpu.pipeline_mode<synchronous>, transform_indices = @transform_3, window_bounds = array<i64: 1, 32>}, {pipeline_mode = #tpu.pipeline_mode<synchronous>, transform_indices = @transform_4, window_bounds = array<i64: 128, 48>}, {pipeline_mode = #tpu.pipeline_mode<synchronous>, transform_indices = @transform_5, window_bounds = array<i64: 1, 48>}, {pipeline_mode = #tpu.pipeline_mode<synchronous>, transform_indices = @transform_6, window_bounds = array<i64: 128, 16>}, {pipeline_mode = #tpu.pipeline_mode<synchronous>, transform_indices = @transform_7, window_bounds = array<i64: 128, 16>}, {pipeline_mode = #tpu.pipeline_mode<synchronous>, transform_indices = @transform_8, window_bounds = array<i64: 1, 16>}, {pipeline_mode = #tpu.pipeline_mode<synchronous>, transform_indices = @transform_9, window_bounds = array<i64: 128, 16>}, {pipeline_mode = #tpu.pipeline_mode<synchronous>, transform_indices = @transform_10, window_bounds = array<i64: 128, 16>}, {pipeline_mode = #tpu.pipeline_mode<synchronous>, transform_indices = @transform_11, window_bounds = array<i64: 1, 16>}, {pipeline_mode = #tpu.pipeline_mode<synchronous>, transform_indices = @transform_12, window_bounds = array<i64: 128, 16>}, {pipeline_mode = #tpu.pipeline_mode<synchronous>, transform_indices = @transform_13, window_bounds = array<i64: 128, 16>}, {pipeline_mode = #tpu.pipeline_mode<synchronous>, transform_indices = @transform_14, window_bounds = array<i64: 1, 16>}, {pipeline_mode = #tpu.pipeline_mode<synchronous>, transform_indices = @transform_15, window_bounds = array<i64: 128, 96>}, {pipeline_mode = #tpu.pipeline_mode<synchronous>, transform_indices = @transform_16, window_bounds = array<i64: 1, 96>}, {pipeline_mode = #tpu.pipeline_mode<synchronous>, transform_indices = @transform_17, window_bounds = array<i64: 128, 128>}, {pipeline_mode = #tpu.pipeline_mode<synchronous>, transform_indices = @transform_18, window_bounds = array<i64: 1, 128>}, {transform_indices = @transform_19, window_bounds = array<i64: 136, 128>}]} {
    %cst = arith.constant 0.000000e+00 : bf16
    %0 = vector.broadcast %cst : bf16 to vector<136x128xbf16>
    %c0 = arith.constant 0 : index
    %c0_0 = arith.constant 0 : index
    %1 = vector.load %arg21[%c0, %c0_0] : memref<136x128xbf16, #tpu.memory_space<vmem>>, vector<136x128xbf16>
    tpu.vector_store %arg21[%c0, %c0_0], %0 {strides = array<i32>} : memref<136x128xbf16, #tpu.memory_space<vmem>>, vector<136x128xbf16>,
    %2 = tpu.iota {dimensions = array<i32: 0>} : vector<136x1xi32>
    %c7_i32 = arith.constant 7 : i32
    %3 = vector.broadcast %c7_i32 : i32 to vector<136x1xi32>
    %4 = arith.andi %2, %3 : vector<136x1xi32>
    %c0_1 = arith.constant 0 : index
    %c0_2 = arith.constant 0 : index
    %5 = vector.load %arg1[%c0_1, %c0_2] : memref<136x256xbf16, #tpu.memory_space<vmem>>, vector<136x256xbf16>
    %c0_3 = arith.constant 0 : index
    %c0_4 = arith.constant 0 : index
    %6 = vector.load %arg3[%c0_3, %c0_4] : memref<256x32xbf16, #tpu.memory_space<vmem>>, vector<256x32xbf16>
    %cst_5 = arith.constant dense<0.000000e+00> : vector<136x32xf32>
    %7 = tpu.matmul %5, %6, %cst_5 {dimension_numbers = #tpu.dot_dimension_numbers<[1], [0], [0], [1], [0, 0, 1, 1], [], []>} : vector<136x256xbf16>, vector<256x32xbf16>, vector<136x32xf32> -> vector<136x32xf32>
    %c0_6 = arith.constant 0 : index
    %c0_7 = arith.constant 0 : index
    %8 = vector.load %arg4[%c0_6, %c0_7] : memref<1x32xf32, #tpu.memory_space<vmem>>, vector<1x32xf32>
    %9 = vector.broadcast %8 : vector<1x32xf32> to vector<136x32xf32>
    %10 = arith.addf %7, %9 : vector<136x32xf32>
    %11 = arith.truncf %10 : vector<136x32xf32> to vector<136x32xbf16>
    %c0_8 = arith.constant 0 : index
    %c0_9 = arith.constant 0 : index
    %12 = vector.load %arg21[%c0_8, %c0_9] : memref<136x128xbf16, #tpu.memory_space<vmem>>, vector<136x32xbf16>
    tpu.vector_store %arg21[%c0_8, %c0_9], %11 {strides = array<i32>} : memref<136x128xbf16, #tpu.memory_space<vmem>>, vector<136x32xbf16>,
    %c0_10 = arith.constant 0 : index
    %c0_11 = arith.constant 0 : index
    %13 = vector.load %arg2[%c0_10, %c0_11] : memref<136x4xbf16, #tpu.memory_space<vmem>>, vector<136x4xbf16>
    %c4_i32 = arith.constant 4 : i32
    %14 = vector.broadcast %c4_i32 : i32 to vector<136x1xi32>
    %15 = arith.cmpi eq, %4, %14 : vector<136x1xi32>
    %cst_12 = arith.constant 0.000000e+00 : bf16
    %16 = vector.broadcast %cst_12 : bf16 to vector<136x4xbf16>
    %17 = vector.shape_cast %15 : vector<136x1xi1> to vector<136x1xi1>
    %18 = vector.broadcast %17 : vector<136x1xi1> to vector<136x4xi1>
    %19 = arith.select %18, %16, %13 : vector<136x4xi1>, vector<136x4xbf16>
    %c0_13 = arith.constant 0 : index
    %c32 = arith.constant 32 : index
    %20 = vector.load %arg21[%c0_13, %c32] : memref<136x128xbf16, #tpu.memory_space<vmem>>, vector<136x4xbf16>
    tpu.vector_store %arg21[%c0_13, %c32], %19 {strides = array<i32>} : memref<136x128xbf16, #tpu.memory_space<vmem>>, vector<136x4xbf16>,
    %21 = tpu.iota {dimensions = array<i32: 0>} : vector<136x136xi32>
    %22 = tpu.iota {dimensions = array<i32: 1>} : vector<136x136xi32>
    %23 = arith.xori %21, %22 : vector<136x136xi32>
    %c8_i32 = arith.constant 8 : i32
    %24 = vector.broadcast %c8_i32 : i32 to vector<136x136xi32>
    %25 = arith.cmpi slt, %23, %24 : vector<136x136xi32>
    %c7_i32_14 = arith.constant 7 : i32
    %26 = vector.broadcast %c7_i32_14 : i32 to vector<136x136xi32>
    %27 = arith.andi %22, %26 : vector<136x136xi32>
    %cst_15 = arith.constant dense<true> : vector<136x136xi1>
    %28 = arith.xori %25, %cst_15 : vector<136x136xi1>
    %29 = arith.cmpi sgt, %22, %21 : vector<136x136xi32>
    %30 = arith.ori %28, %29 : vector<136x136xi1>
    %c5_i32 = arith.constant 5 : i32
    %31 = vector.broadcast %c5_i32 : i32 to vector<136x136xi32>
    %32 = arith.cmpi sge, %27, %31 : vector<136x136xi32>
    %33 = arith.ori %30, %32 : vector<136x136xi1>
    %c0_16 = arith.constant 0 : index
    %c0_17 = arith.constant 0 : index
    %34 = vector.load %arg21[%c0_16, %c0_17] : memref<136x128xbf16, #tpu.memory_space<vmem>>, vector<136x128xbf16>
    %c0_18 = arith.constant 0 : index
    %c0_19 = arith.constant 0 : index
    %35 = vector.load %arg5[%c0_18, %c0_19] : memref<128x48xbf16, #tpu.memory_space<vmem>>, vector<128x48xbf16>
    %cst_20 = arith.constant dense<0.000000e+00> : vector<136x48xf32>
    %36 = tpu.matmul %34, %35, %cst_20 {dimension_numbers = #tpu.dot_dimension_numbers<[1], [0], [0], [1], [0, 0, 1, 1], [], []>} : vector<136x128xbf16>, vector<128x48xbf16>, vector<136x48xf32> -> vector<136x48xf32>
    %c0_21 = arith.constant 0 : index
    %c0_22 = arith.constant 0 : index
    %37 = vector.load %arg6[%c0_21, %c0_22] : memref<1x48xf32, #tpu.memory_space<vmem>>, vector<1x48xf32>
    %38 = vector.broadcast %37 : vector<1x48xf32> to vector<136x48xf32>
    %39 = arith.addf %36, %38 : vector<136x48xf32>
    %40 = vector.extract_strided_slice %39 {offsets = [0, 0], sizes = [136, 16], strides = [1, 1]} : vector<136x48xf32> to vector<136x16xf32>
    %41 = vector.extract_strided_slice %39 {offsets = [0, 16], sizes = [136, 16], strides = [1, 1]} : vector<136x48xf32> to vector<136x16xf32>
    %42 = vector.extract_strided_slice %39 {offsets = [0, 32], sizes = [136, 16], strides = [1, 1]} : vector<136x48xf32> to vector<136x16xf32>
    %cst_23 = arith.constant dense<0.000000e+00> : vector<136x136xf32>
    %43 = tpu.matmul %40, %41, %cst_23 {dimension_numbers = #tpu.dot_dimension_numbers<[1], [1], [0], [0], [0, 0, 1, 0], [], []>} : vector<136x16xf32>, vector<136x16xf32>, vector<136x136xf32> -> vector<136x136xf32>
    %cst_24 = arith.constant 2.500000e-01 : f32
    %44 = vector.broadcast %cst_24 : f32 to vector<136x136xf32>
    %45 = arith.mulf %43, %44 : vector<136x136xf32>
    %cst_25 = arith.constant -1.000000e+30 : f32
    %46 = vector.broadcast %cst_25 : f32 to vector<136x136xf32>
    %47 = arith.select %33, %46, %45 : vector<136x136xi1>, vector<136x136xf32>
    %cst_26 = arith.constant dense<0xFF800000> : vector<136xf32>
    %48 = vector.multi_reduction <maximumf>, %47, %cst_26 [1] : vector<136x136xf32> to vector<136xf32>
    %49 = vector.shape_cast %48 : vector<136xf32> to vector<136x1xf32>
    %50 = vector.broadcast %49 : vector<136x1xf32> to vector<136x136xf32>
    %51 = arith.subf %47, %50 : vector<136x136xf32>
    %52 = math.exp %51 : vector<136x136xf32>
    %cst_27 = arith.constant dense<0.000000e+00> : vector<136xf32>
    %53 = vector.multi_reduction <add>, %52, %cst_27 [1] : vector<136x136xf32> to vector<136xf32>
    %54 = vector.shape_cast %53 : vector<136xf32> to vector<136x1xf32>
    %55 = tpu.reciprocal %54 {approx = true} : vector<136x1xf32> -> vector<136x1xf32>
    %56 = vector.broadcast %55 : vector<136x1xf32> to vector<136x136xf32>
    %57 = arith.mulf %52, %56 : vector<136x136xf32>
    %cst_28 = arith.constant dense<0.000000e+00> : vector<136x16xf32>
    %58 = tpu.matmul %57, %42, %cst_28 {dimension_numbers = #tpu.dot_dimension_numbers<[1], [0], [0], [1], [0, 0, 1, 1], [], []>} : vector<136x136xf32>, vector<136x16xf32>, vector<136x16xf32> -> vector<136x16xf32>
    %59 = arith.truncf %58 : vector<136x16xf32> to vector<136x16xbf16>
    %c0_29 = arith.constant 0 : index
    %c36 = arith.constant 36 : index
    %60 = vector.load %arg21[%c0_29, %c36] : memref<136x128xbf16, #tpu.memory_space<vmem>>, vector<136x16xbf16>
    tpu.vector_store %arg21[%c0_29, %c36], %59 {strides = array<i32>} : memref<136x128xbf16, #tpu.memory_space<vmem>>, vector<136x16xbf16>,
    %c0_30 = arith.constant 0 : index
    %c0_31 = arith.constant 0 : index
    %61 = vector.load %arg21[%c0_30, %c0_31] : memref<136x128xbf16, #tpu.memory_space<vmem>>, vector<136x128xbf16>
    %c0_32 = arith.constant 0 : index
    %c0_33 = arith.constant 0 : index
    %62 = vector.load %arg7[%c0_32, %c0_33] : memref<128x16xbf16, #tpu.memory_space<vmem>>, vector<128x16xbf16>
    %cst_34 = arith.constant dense<0.000000e+00> : vector<136x16xf32>
    %63 = tpu.matmul %61, %62, %cst_34 {dimension_numbers = #tpu.dot_dimension_numbers<[1], [0], [0], [1], [0, 0, 1, 1], [], []>} : vector<136x128xbf16>, vector<128x16xbf16>, vector<136x16xf32> -> vector<136x16xf32>
    %c0_35 = arith.constant 0 : index
    %c0_36 = arith.constant 0 : index
    %64 = vector.load %arg8[%c0_35, %c0_36] : memref<128x16xbf16, #tpu.memory_space<vmem>>, vector<128x16xbf16>
    %cst_37 = arith.constant dense<0.000000e+00> : vector<136x16xf32>
    %65 = tpu.matmul %61, %64, %cst_37 {dimension_numbers = #tpu.dot_dimension_numbers<[1], [0], [0], [1], [0, 0, 1, 1], [], []>} : vector<136x128xbf16>, vector<128x16xbf16>, vector<136x16xf32> -> vector<136x16xf32>
    %c1_i32 = arith.constant 1 : i32
    %66 = tpu.dynamic_rotate %65 by %c1_i32 dim 0 : vector<136x16xf32>, i32 -> vector<136x16xf32>
    %c1_i32_38 = arith.constant 1 : i32
    %67 = vector.broadcast %c1_i32_38 : i32 to vector<136x1xi32>
    %68 = arith.cmpi slt, %4, %67 : vector<136x1xi32>
    %cst_39 = arith.constant 0.000000e+00 : f32
    %69 = vector.shape_cast %68 : vector<136x1xi1> to vector<136x1xi1>
    %70 = vector.broadcast %69 : vector<136x1xi1> to vector<136x16xi1>
    %71 = vector.broadcast %cst_39 : f32 to vector<136x16xf32>
    %72 = arith.select %70, %71, %66 : vector<136x16xi1>, vector<136x16xf32>
    %73 = arith.addf %63, %72 : vector<136x16xf32>
    %c0_40 = arith.constant 0 : index
    %c0_41 = arith.constant 0 : index
    %74 = vector.load %arg9[%c0_40, %c0_41] : memref<1x16xf32, #tpu.memory_space<vmem>>, vector<1x16xf32>
    %75 = vector.broadcast %74 : vector<1x16xf32> to vector<136x16xf32>
    %76 = arith.addf %73, %75 : vector<136x16xf32>
    %77 = vector.extract_strided_slice %76 {offsets = [0, 0], sizes = [136, 8], strides = [1, 1]} : vector<136x16xf32> to vector<136x8xf32>
    %78 = math.tanh %77 : vector<136x8xf32>
    %79 = vector.extract_strided_slice %76 {offsets = [0, 8], sizes = [136, 8], strides = [1, 1]} : vector<136x16xf32> to vector<136x8xf32>
    %80 = arith.negf %79 : vector<136x8xf32>
    %81 = math.exp %80 : vector<136x8xf32>
    %cst_42 = arith.constant 1.000000e+00 : f32
    %82 = vector.broadcast %cst_42 : f32 to vector<136x8xf32>
    %83 = arith.addf %82, %81 : vector<136x8xf32>
    %84 = arith.divf %82, %83 : vector<136x8xf32>
    %85 = arith.mulf %78, %84 : vector<136x8xf32>
    %86 = arith.truncf %85 : vector<136x8xf32> to vector<136x8xbf16>
    %c0_43 = arith.constant 0 : index
    %c52 = arith.constant 52 : index
    %87 = vector.load %arg21[%c0_43, %c52] : memref<136x128xbf16, #tpu.memory_space<vmem>>, vector<136x8xbf16>
    tpu.vector_store %arg21[%c0_43, %c52], %86 {strides = array<i32>} : memref<136x128xbf16, #tpu.memory_space<vmem>>, vector<136x8xbf16>,
    %c0_44 = arith.constant 0 : index
    %c0_45 = arith.constant 0 : index
    %88 = vector.load %arg21[%c0_44, %c0_45] : memref<136x128xbf16, #tpu.memory_space<vmem>>, vector<136x128xbf16>
    %c0_46 = arith.constant 0 : index
    %c0_47 = arith.constant 0 : index
    %89 = vector.load %arg10[%c0_46, %c0_47] : memref<128x16xbf16, #tpu.memory_space<vmem>>, vector<128x16xbf16>
    %cst_48 = arith.constant dense<0.000000e+00> : vector<136x16xf32>
    %90 = tpu.matmul %88, %89, %cst_48 {dimension_numbers = #tpu.dot_dimension_numbers<[1], [0], [0], [1], [0, 0, 1, 1], [], []>} : vector<136x128xbf16>, vector<128x16xbf16>, vector<136x16xf32> -> vector<136x16xf32>
    %c0_49 = arith.constant 0 : index
    %c0_50 = arith.constant 0 : index
    %91 = vector.load %arg11[%c0_49, %c0_50] : memref<128x16xbf16, #tpu.memory_space<vmem>>, vector<128x16xbf16>
    %cst_51 = arith.constant dense<0.000000e+00> : vector<136x16xf32>
    %92 = tpu.matmul %88, %91, %cst_51 {dimension_numbers = #tpu.dot_dimension_numbers<[1], [0], [0], [1], [0, 0, 1, 1], [], []>} : vector<136x128xbf16>, vector<128x16xbf16>, vector<136x16xf32> -> vector<136x16xf32>
    %c2_i32 = arith.constant 2 : i32
    %93 = tpu.dynamic_rotate %92 by %c2_i32 dim 0 : vector<136x16xf32>, i32 -> vector<136x16xf32>
    %c2_i32_52 = arith.constant 2 : i32
    %94 = vector.broadcast %c2_i32_52 : i32 to vector<136x1xi32>
    %95 = arith.cmpi slt, %4, %94 : vector<136x1xi32>
    %cst_53 = arith.constant 0.000000e+00 : f32
    %96 = vector.shape_cast %95 : vector<136x1xi1> to vector<136x1xi1>
    %97 = vector.broadcast %96 : vector<136x1xi1> to vector<136x16xi1>
    %98 = vector.broadcast %cst_53 : f32 to vector<136x16xf32>
    %99 = arith.select %97, %98, %93 : vector<136x16xi1>, vector<136x16xf32>
    %100 = arith.addf %90, %99 : vector<136x16xf32>
    %c0_54 = arith.constant 0 : index
    %c0_55 = arith.constant 0 : index
    %101 = vector.load %arg12[%c0_54, %c0_55] : memref<1x16xf32, #tpu.memory_space<vmem>>, vector<1x16xf32>
    %102 = vector.broadcast %101 : vector<1x16xf32> to vector<136x16xf32>
    %103 = arith.addf %100, %102 : vector<136x16xf32>
    %104 = vector.extract_strided_slice %103 {offsets = [0, 0], sizes = [136, 8], strides = [1, 1]} : vector<136x16xf32> to vector<136x8xf32>
    %105 = math.tanh %104 : vector<136x8xf32>
    %106 = vector.extract_strided_slice %103 {offsets = [0, 8], sizes = [136, 8], strides = [1, 1]} : vector<136x16xf32> to vector<136x8xf32>
    %107 = arith.negf %106 : vector<136x8xf32>
    %108 = math.exp %107 : vector<136x8xf32>
    %cst_56 = arith.constant 1.000000e+00 : f32
    %109 = vector.broadcast %cst_56 : f32 to vector<136x8xf32>
    %110 = arith.addf %109, %108 : vector<136x8xf32>
    %111 = arith.divf %109, %110 : vector<136x8xf32>
    %112 = arith.mulf %105, %111 : vector<136x8xf32>
    %113 = arith.truncf %112 : vector<136x8xf32> to vector<136x8xbf16>
    %c0_57 = arith.constant 0 : index
    %c60 = arith.constant 60 : index
    %114 = vector.load %arg21[%c0_57, %c60] : memref<136x128xbf16, #tpu.memory_space<vmem>>, vector<136x8xbf16>
    tpu.vector_store %arg21[%c0_57, %c60], %113 {strides = array<i32>} : memref<136x128xbf16, #tpu.memory_space<vmem>>, vector<136x8xbf16>,
    %c0_58 = arith.constant 0 : index
    %c0_59 = arith.constant 0 : index
    %115 = vector.load %arg21[%c0_58, %c0_59] : memref<136x128xbf16, #tpu.memory_space<vmem>>, vector<136x128xbf16>
    %c0_60 = arith.constant 0 : index
    %c0_61 = arith.constant 0 : index
    %116 = vector.load %arg13[%c0_60, %c0_61] : memref<128x16xbf16, #tpu.memory_space<vmem>>, vector<128x16xbf16>
    %cst_62 = arith.constant dense<0.000000e+00> : vector<136x16xf32>
    %117 = tpu.matmul %115, %116, %cst_62 {dimension_numbers = #tpu.dot_dimension_numbers<[1], [0], [0], [1], [0, 0, 1, 1], [], []>} : vector<136x128xbf16>, vector<128x16xbf16>, vector<136x16xf32> -> vector<136x16xf32>
    %c0_63 = arith.constant 0 : index
    %c0_64 = arith.constant 0 : index
    %118 = vector.load %arg14[%c0_63, %c0_64] : memref<128x16xbf16, #tpu.memory_space<vmem>>, vector<128x16xbf16>
    %cst_65 = arith.constant dense<0.000000e+00> : vector<136x16xf32>
    %119 = tpu.matmul %115, %118, %cst_65 {dimension_numbers = #tpu.dot_dimension_numbers<[1], [0], [0], [1], [0, 0, 1, 1], [], []>} : vector<136x128xbf16>, vector<128x16xbf16>, vector<136x16xf32> -> vector<136x16xf32>
    %c4_i32_66 = arith.constant 4 : i32
    %120 = tpu.dynamic_rotate %119 by %c4_i32_66 dim 0 : vector<136x16xf32>, i32 -> vector<136x16xf32>
    %c4_i32_67 = arith.constant 4 : i32
    %121 = vector.broadcast %c4_i32_67 : i32 to vector<136x1xi32>
    %122 = arith.cmpi slt, %4, %121 : vector<136x1xi32>
    %cst_68 = arith.constant 0.000000e+00 : f32
    %123 = vector.shape_cast %122 : vector<136x1xi1> to vector<136x1xi1>
    %124 = vector.broadcast %123 : vector<136x1xi1> to vector<136x16xi1>
    %125 = vector.broadcast %cst_68 : f32 to vector<136x16xf32>
    %126 = arith.select %124, %125, %120 : vector<136x16xi1>, vector<136x16xf32>
    %127 = arith.addf %117, %126 : vector<136x16xf32>
    %c0_69 = arith.constant 0 : index
    %c0_70 = arith.constant 0 : index
    %128 = vector.load %arg15[%c0_69, %c0_70] : memref<1x16xf32, #tpu.memory_space<vmem>>, vector<1x16xf32>
    %129 = vector.broadcast %128 : vector<1x16xf32> to vector<136x16xf32>
    %130 = arith.addf %127, %129 : vector<136x16xf32>
    %131 = vector.extract_strided_slice %130 {offsets = [0, 0], sizes = [136, 8], strides = [1, 1]} : vector<136x16xf32> to vector<136x8xf32>
    %132 = math.tanh %131 : vector<136x8xf32>
    %133 = vector.extract_strided_slice %130 {offsets = [0, 8], sizes = [136, 8], strides = [1, 1]} : vector<136x16xf32> to vector<136x8xf32>
    %134 = arith.negf %133 : vector<136x8xf32>
    %135 = math.exp %134 : vector<136x8xf32>
    %cst_71 = arith.constant 1.000000e+00 : f32
    %136 = vector.broadcast %cst_71 : f32 to vector<136x8xf32>
    %137 = arith.addf %136, %135 : vector<136x8xf32>
    %138 = arith.divf %136, %137 : vector<136x8xf32>
    %139 = arith.mulf %132, %138 : vector<136x8xf32>
    %140 = arith.truncf %139 : vector<136x8xf32> to vector<136x8xbf16>
    %c0_72 = arith.constant 0 : index
    %c68 = arith.constant 68 : index
    %141 = vector.load %arg21[%c0_72, %c68] : memref<136x128xbf16, #tpu.memory_space<vmem>>, vector<136x8xbf16>
    tpu.vector_store %arg21[%c0_72, %c68], %140 {strides = array<i32>} : memref<136x128xbf16, #tpu.memory_space<vmem>>, vector<136x8xbf16>,
    %c0_73 = arith.constant 0 : index
    %c0_74 = arith.constant 0 : index
    %142 = vector.load %arg21[%c0_73, %c0_74] : memref<136x128xbf16, #tpu.memory_space<vmem>>, vector<136x128xbf16>
    %c0_75 = arith.constant 0 : index
    %c0_76 = arith.constant 0 : index
    %143 = vector.load %arg16[%c0_75, %c0_76] : memref<128x96xbf16, #tpu.memory_space<vmem>>, vector<128x96xbf16>
    %cst_77 = arith.constant dense<0.000000e+00> : vector<136x96xf32>
    %144 = tpu.matmul %142, %143, %cst_77 {dimension_numbers = #tpu.dot_dimension_numbers<[1], [0], [0], [1], [0, 0, 1, 1], [], []>} : vector<136x128xbf16>, vector<128x96xbf16>, vector<136x96xf32> -> vector<136x96xf32>
    %c0_78 = arith.constant 0 : index
    %c0_79 = arith.constant 0 : index
    %145 = vector.load %arg17[%c0_78, %c0_79] : memref<1x96xf32, #tpu.memory_space<vmem>>, vector<1x96xf32>
    %146 = vector.broadcast %145 : vector<1x96xf32> to vector<136x96xf32>
    %147 = arith.addf %144, %146 : vector<136x96xf32>
    %148 = vector.extract_strided_slice %147 {offsets = [0, 0], sizes = [136, 32], strides = [1, 1]} : vector<136x96xf32> to vector<136x32xf32>
    %149 = vector.extract_strided_slice %147 {offsets = [0, 32], sizes = [136, 32], strides = [1, 1]} : vector<136x96xf32> to vector<136x32xf32>
    %150 = vector.extract_strided_slice %147 {offsets = [0, 64], sizes = [136, 32], strides = [1, 1]} : vector<136x96xf32> to vector<136x32xf32>
    %cst_80 = arith.constant dense<0.000000e+00> : vector<136x136xf32>
    %151 = tpu.matmul %148, %149, %cst_80 {dimension_numbers = #tpu.dot_dimension_numbers<[1], [1], [0], [0], [0, 0, 1, 0], [], []>} : vector<136x32xf32>, vector<136x32xf32>, vector<136x136xf32> -> vector<136x136xf32>
    %cst_81 = arith.constant 0.176776692 : f32
    %152 = vector.broadcast %cst_81 : f32 to vector<136x136xf32>
    %153 = arith.mulf %151, %152 : vector<136x136xf32>
    %cst_82 = arith.constant -1.000000e+30 : f32
    %154 = vector.broadcast %cst_82 : f32 to vector<136x136xf32>
    %155 = arith.select %33, %154, %153 : vector<136x136xi1>, vector<136x136xf32>
    %cst_83 = arith.constant dense<0xFF800000> : vector<136xf32>
    %156 = vector.multi_reduction <maximumf>, %155, %cst_83 [1] : vector<136x136xf32> to vector<136xf32>
    %157 = vector.shape_cast %156 : vector<136xf32> to vector<136x1xf32>
    %158 = vector.broadcast %157 : vector<136x1xf32> to vector<136x136xf32>
    %159 = arith.subf %155, %158 : vector<136x136xf32>
    %160 = math.exp %159 : vector<136x136xf32>
    %cst_84 = arith.constant dense<0.000000e+00> : vector<136xf32>
    %161 = vector.multi_reduction <add>, %160, %cst_84 [1] : vector<136x136xf32> to vector<136xf32>
    %162 = vector.shape_cast %161 : vector<136xf32> to vector<136x1xf32>
    %163 = tpu.reciprocal %162 {approx = true} : vector<136x1xf32> -> vector<136x1xf32>
    %164 = vector.broadcast %163 : vector<136x1xf32> to vector<136x136xf32>
    %165 = arith.mulf %160, %164 : vector<136x136xf32>
    %cst_85 = arith.constant dense<0.000000e+00> : vector<136x32xf32>
    %166 = tpu.matmul %165, %150, %cst_85 {dimension_numbers = #tpu.dot_dimension_numbers<[1], [0], [0], [1], [0, 0, 1, 1], [], []>} : vector<136x136xf32>, vector<136x32xf32>, vector<136x32xf32> -> vector<136x32xf32>
    %167 = arith.truncf %166 : vector<136x32xf32> to vector<136x32xbf16>
    %c0_86 = arith.constant 0 : index
    %c76 = arith.constant 76 : index
    %168 = vector.load %arg21[%c0_86, %c76] : memref<136x128xbf16, #tpu.memory_space<vmem>>, vector<136x32xbf16>
    tpu.vector_store %arg21[%c0_86, %c76], %167 {strides = array<i32>} : memref<136x128xbf16, #tpu.memory_space<vmem>>, vector<136x32xbf16>,
    %c0_87 = arith.constant 0 : index
    %c0_88 = arith.constant 0 : index
    %169 = vector.load %arg21[%c0_87, %c0_88] : memref<136x128xbf16, #tpu.memory_space<vmem>>, vector<136x128xbf16>
    %c0_89 = arith.constant 0 : index
    %c0_90 = arith.constant 0 : index
    %170 = vector.load %arg18[%c0_89, %c0_90] : memref<128x128xbf16, #tpu.memory_space<vmem>>, vector<128x128xbf16>
    %cst_91 = arith.constant dense<0.000000e+00> : vector<136x128xf32>
    %171 = tpu.matmul %169, %170, %cst_91 {dimension_numbers = #tpu.dot_dimension_numbers<[1], [0], [0], [1], [0, 0, 1, 1], [], []>} : vector<136x128xbf16>, vector<128x128xbf16>, vector<136x128xf32> -> vector<136x128xf32>
    %c0_92 = arith.constant 0 : index
    %c0_93 = arith.constant 0 : index
    %172 = vector.load %arg19[%c0_92, %c0_93] : memref<1x128xf32, #tpu.memory_space<vmem>>, vector<1x128xf32>
    %173 = vector.broadcast %172 : vector<1x128xf32> to vector<136x128xf32>
    %174 = arith.addf %171, %173 : vector<136x128xf32>
    %c0_94 = arith.constant 0 : index
    %c0_95 = arith.constant 0 : index
    %175 = vector.load %arg20[%c0_94, %c0_95] : memref<136x128xf32, #tpu.memory_space<vmem>>, vector<136x128xf32>
    tpu.vector_store %arg20[%c0_94, %c0_95], %174 {strides = array<i32>} : memref<136x128xf32, #tpu.memory_space<vmem>>, vector<136x128xf32>,
    return
  }
  func.func @transform_0(%arg0: i32) -> (i32, i32) {
    %c0_i32 = arith.constant 0 : i32
    %c0_i32_0 = arith.constant 0 : i32
    return %arg0, %c0_i32 : i32, i32
  }
  func.func @transform_1(%arg0: i32) -> (i32, i32) {
    %c0_i32 = arith.constant 0 : i32
    %c0_i32_0 = arith.constant 0 : i32
    return %arg0, %c0_i32 : i32, i32
  }
  func.func @transform_2(%arg0: i32) -> (i32, i32) {
    %c0_i32 = arith.constant 0 : i32
    %c0_i32_0 = arith.constant 0 : i32
    %c0_i32_1 = arith.constant 0 : i32
    return %c0_i32, %c0_i32_0 : i32, i32
  }
  func.func @transform_3(%arg0: i32) -> (i32, i32) {
    %c0_i32 = arith.constant 0 : i32
    %c0_i32_0 = arith.constant 0 : i32
    %c0_i32_1 = arith.constant 0 : i32
    return %c0_i32, %c0_i32_0 : i32, i32
  }
  func.func @transform_4(%arg0: i32) -> (i32, i32) {
    %c0_i32 = arith.constant 0 : i32
    %c0_i32_0 = arith.constant 0 : i32
    %c0_i32_1 = arith.constant 0 : i32
    return %c0_i32, %c0_i32_0 : i32, i32
  }
  func.func @transform_5(%arg0: i32) -> (i32, i32) {
    %c0_i32 = arith.constant 0 : i32
    %c0_i32_0 = arith.constant 0 : i32
    %c0_i32_1 = arith.constant 0 : i32
    return %c0_i32, %c0_i32_0 : i32, i32
  }
  func.func @transform_6(%arg0: i32) -> (i32, i32) {
    %c0_i32 = arith.constant 0 : i32
    %c0_i32_0 = arith.constant 0 : i32
    %c0_i32_1 = arith.constant 0 : i32
    return %c0_i32, %c0_i32_0 : i32, i32
  }
  func.func @transform_7(%arg0: i32) -> (i32, i32) {
    %c0_i32 = arith.constant 0 : i32
    %c0_i32_0 = arith.constant 0 : i32
    %c0_i32_1 = arith.constant 0 : i32
    return %c0_i32, %c0_i32_0 : i32, i32
  }
  func.func @transform_8(%arg0: i32) -> (i32, i32) {
    %c0_i32 = arith.constant 0 : i32
    %c0_i32_0 = arith.constant 0 : i32
    %c0_i32_1 = arith.constant 0 : i32
    return %c0_i32, %c0_i32_0 : i32, i32
  }
  func.func @transform_9(%arg0: i32) -> (i32, i32) {
    %c0_i32 = arith.constant 0 : i32
    %c0_i32_0 = arith.constant 0 : i32
    %c0_i32_1 = arith.constant 0 : i32
    return %c0_i32, %c0_i32_0 : i32, i32
  }
  func.func @transform_10(%arg0: i32) -> (i32, i32) {
    %c0_i32 = arith.constant 0 : i32
    %c0_i32_0 = arith.constant 0 : i32
    %c0_i32_1 = arith.constant 0 : i32
    return %c0_i32, %c0_i32_0 : i32, i32
  }
  func.func @transform_11(%arg0: i32) -> (i32, i32) {
    %c0_i32 = arith.constant 0 : i32
    %c0_i32_0 = arith.constant 0 : i32
    %c0_i32_1 = arith.constant 0 : i32
    return %c0_i32, %c0_i32_0 : i32, i32
  }
  func.func @transform_12(%arg0: i32) -> (i32, i32) {
    %c0_i32 = arith.constant 0 : i32
    %c0_i32_0 = arith.constant 0 : i32
    %c0_i32_1 = arith.constant 0 : i32
    return %c0_i32, %c0_i32_0 : i32, i32
  }
  func.func @transform_13(%arg0: i32) -> (i32, i32) {
    %c0_i32 = arith.constant 0 : i32
    %c0_i32_0 = arith.constant 0 : i32
    %c0_i32_1 = arith.constant 0 : i32
    return %c0_i32, %c0_i32_0 : i32, i32
  }
  func.func @transform_14(%arg0: i32) -> (i32, i32) {
    %c0_i32 = arith.constant 0 : i32
    %c0_i32_0 = arith.constant 0 : i32
    %c0_i32_1 = arith.constant 0 : i32
    return %c0_i32, %c0_i32_0 : i32, i32
  }
  func.func @transform_15(%arg0: i32) -> (i32, i32) {
    %c0_i32 = arith.constant 0 : i32
    %c0_i32_0 = arith.constant 0 : i32
    %c0_i32_1 = arith.constant 0 : i32
    return %c0_i32, %c0_i32_0 : i32, i32
  }
  func.func @transform_16(%arg0: i32) -> (i32, i32) {
    %c0_i32 = arith.constant 0 : i32
    %c0_i32_0 = arith.constant 0 : i32
    %c0_i32_1 = arith.constant 0 : i32
    return %c0_i32, %c0_i32_0 : i32, i32
  }
  func.func @transform_17(%arg0: i32) -> (i32, i32) {
    %c0_i32 = arith.constant 0 : i32
    %c0_i32_0 = arith.constant 0 : i32
    %c0_i32_1 = arith.constant 0 : i32
    return %c0_i32, %c0_i32_0 : i32, i32
  }
  func.func @transform_18(%arg0: i32) -> (i32, i32) {
    %c0_i32 = arith.constant 0 : i32
    %c0_i32_0 = arith.constant 0 : i32
    %c0_i32_1 = arith.constant 0 : i32
    return %c0_i32, %c0_i32_0 : i32, i32
  }
  func.func @transform_19(%arg0: i32) -> (i32, i32) {
    %c0_i32 = arith.constant 0 : i32
    %c0_i32_0 = arith.constant 0 : i32
    return %arg0, %c0_i32 : i32, i32
  }
}

</mosaic_0001>

<llo_original>
// kernel: forward.1
$region0: #{forward.1}
  #allocation0 [shape = 'u32[]', space=smem, size = 0x4, offset = 0x4, fixed_abs, tag = 'smem constant byte address 0x4 - core index']
  #allocation1 [shape = 'u32[144,128]{1,0:T(1,128)}', space=vmem, size = 0x12000, scoped, tag = 'internal scratch']
  #allocation2 [shape = 'bf16[136,128]{1,0:T(8,128)(2,1)}', space=vmem, size = 0x8800, scoped, tag = 'scratch operand']
  %s0 = inlined_call_operand.vmem [shape: bf16[272,256], index: 0, kind: input, shape index: {}]
  %s1 = inlined_call_operand.vmem [shape: bf16[272,4], index: 1, kind: input, shape index: {}]
  %s2 = inlined_call_operand.vmem [shape: bf16[256,32], index: 2, kind: input, shape index: {}]
  %s3 = inlined_call_operand.vmem [shape: f32[1,32], index: 3, kind: input, shape index: {}]
  %s4 = inlined_call_operand.vmem [shape: bf16[128,48], index: 4, kind: input, shape index: {}]
  %s5 = inlined_call_operand.vmem [shape: f32[1,48], index: 5, kind: input, shape index: {}]
  %s6 = inlined_call_operand.vmem [shape: bf16[128,16], index: 6, kind: input, shape index: {}]
  %s7 = inlined_call_operand.vmem [shape: bf16[128,16], index: 7, kind: input, shape index: {}]
  %s8 = inlined_call_operand.vmem [shape: f32[1,16], index: 8, kind: input, shape index: {}]
  %s9 = inlined_call_operand.vmem [shape: bf16[128,16], index: 9, kind: input, shape index: {}]
  %s10 = inlined_call_operand.vmem [shape: bf16[128,16], index: 10, kind: input, shape index: {}]
  %s11 = inlined_call_operand.vmem [shape: f32[1,16], index: 11, kind: input, shape index: {}]
  %s12 = inlined_call_operand.vmem [shape: bf16[128,16], index: 12, kind: input, shape index: {}]
  %s13 = inlined_call_operand.vmem [shape: bf16[128,16], index: 13, kind: input, shape index: {}]
  %s14 = inlined_call_operand.vmem [shape: f32[1,16], index: 14, kind: input, shape index: {}]
  %s15 = inlined_call_operand.vmem [shape: bf16[128,96], index: 15, kind: input, shape index: {}]
  %s16 = inlined_call_operand.vmem [shape: f32[1,96], index: 16, kind: input, shape index: {}]
  %s17 = inlined_call_operand.vmem [shape: bf16[128,128], index: 17, kind: input, shape index: {}]
  %s18 = inlined_call_operand.vmem [shape: f32[1,128], index: 18, kind: input, shape index: {}]
  %s19 = inlined_call_operand.vmem [shape: f32[272,128], index: 19, kind: output, shape index: {}]
  %s20 = sld [smem:[#allocation0]]
  $region109: #{forward.1} parent=0
    _
  %s22 = ssub.s32 1, %s20
  %s23 = scalar_select 0, %s22, %s20
  loop: start=0, step=1, limit=4
  $region2: #{forward.1} parent=0 // loop_pre_header
    _
  $region3: #{forward.1} parent=0 // loop_header
    %s25 = sphi 0, %s29
    %p26 = scmp.ge.s32.totalorder %s25, 4
    %s35 = sphi 0, %s37
    %s38 = sphi 0, %s35
    %s39 = sphi 0, %s38
    %s55 = sphi 0, %s39
    %s61 = sphi 0, %s63
    %s64 = sphi 0, %s61
    %s65 = sphi 0, %s64
    %s81 = sphi 0, %s65
    %s85 = sphi 0, %s85
    %s87 = sphi 0, %s85
    %s88 = sphi 0, %s87
    %s102 = sphi 0, %s88
    %s106 = sphi 0, %s106
    %s108 = sphi 0, %s106
    %s109 = sphi 0, %s108
    %s123 = sphi 0, %s109
    %s127 = sphi 0, %s127
    %s129 = sphi 0, %s127
    %s130 = sphi 0, %s129
    %s144 = sphi 0, %s130
    %s148 = sphi 0, %s148
    %s150 = sphi 0, %s148
    %s151 = sphi 0, %s150
    %s165 = sphi 0, %s151
    %s169 = sphi 0, %s169
    %s171 = sphi 0, %s169
    %s172 = sphi 0, %s171
    %s186 = sphi 0, %s172
    %s190 = sphi 0, %s190
    %s192 = sphi 0, %s190
    %s193 = sphi 0, %s192
    %s207 = sphi 0, %s193
    %s211 = sphi 0, %s211
    %s213 = sphi 0, %s211
    %s214 = sphi 0, %s213
    %s228 = sphi 0, %s214
    %s232 = sphi 0, %s232
    %s234 = sphi 0, %s232
    %s235 = sphi 0, %s234
    %s249 = sphi 0, %s235
    %s253 = sphi 0, %s253
    %s255 = sphi 0, %s253
    %s256 = sphi 0, %s255
    %s270 = sphi 0, %s256
    %s274 = sphi 0, %s274
    %s276 = sphi 0, %s274
    %s277 = sphi 0, %s276
    %s291 = sphi 0, %s277
    %s295 = sphi 0, %s295
    %s297 = sphi 0, %s295
    %s298 = sphi 0, %s297
    %s312 = sphi 0, %s298
    %s316 = sphi 0, %s316
    %s318 = sphi 0, %s316
    %s319 = sphi 0, %s318
    %s333 = sphi 0, %s319
    %s337 = sphi 0, %s337
    %s339 = sphi 0, %s337
    %s340 = sphi 0, %s339
    %s354 = sphi 0, %s340
    %s358 = sphi 0, %s358
    %s360 = sphi 0, %s358
    %s361 = sphi 0, %s360
    %s375 = sphi 0, %s361
    %s379 = sphi 0, %s379
    %s381 = sphi 0, %s379
    %s382 = sphi 0, %s381
    %s396 = sphi 0, %s382
    %s400 = sphi 0, %s400
    %s402 = sphi 0, %s400
    %s403 = sphi 0, %s402
    %s417 = sphi 0, %s403
    %s421 = sphi 0, %s421
    %s423 = sphi 0, %s421
    %s424 = sphi 0, %s423
    %s438 = sphi 0, %s424
    %s444 = sphi 0, %s446
    %s447 = sphi 0, %s444
    %s448 = sphi 0, %s447
    %s464 = sphi 0, %s448
  $region4: #{forward.1} parent=0 // loop_header_branch
    %28 = sbr.rel (%p26) target = $region8
  $region5: #{forward.1} parent=0 // loop_body
    %s30 = ssub.s32 %s25, 1
    %s31 = ssub.s32 %s25, 2
    %s32 = sadd.s32 %s25, 1
    %s33 = ssub.s32 %s25, %s32
    %p34 = scmp.eq.s32.totalorder %s33, 0
    %s36 = sadd.s32 %s35, 1
    %s37 = scalar_select %p34, %s35, %s36
    %p40 = pneg %p34
    %p41 = scmp.eq.s32.totalorder %s25, 1
    %p42 = por %p40, %p41
    %p43 = scmp.ne.s32.totalorder %s35, %s38
    %p44 = scmp.eq.s32.totalorder %s25, 0
    %p45 = por %p43, %p44
    %p46 = scmp.ne.s32.totalorder %s35, %s38
    %p47 = scmp.eq.s32.totalorder %s30, 1
    %p48 = por %p46, %p47
    %p49 = scmp.ne.s32.totalorder %s38, %s39
    %p50 = scmp.eq.s32.totalorder %s30, 0
    %p51 = por %p49, %p50
    %p52 = scmp.ne.s32.totalorder %s38, %s39
    %p53 = scmp.eq.s32.totalorder %s31, 1
    %p54 = por %p52, %p53
    %p56 = scmp.ne.s32.totalorder %s39, %s55
    %p57 = scmp.eq.s32.totalorder %s31, 0
    %p58 = por %p56, %p57
    %s59 = ssub.s32 %s25, %s32
    %p60 = scmp.eq.s32.totalorder %s59, 0
    %s62 = sadd.s32 %s61, 1
    %s63 = scalar_select %p60, %s61, %s62
    %p66 = pneg %p60
    %p67 = scmp.eq.s32.totalorder %s25, 1
    %p68 = por %p66, %p67
    %p69 = scmp.ne.s32.totalorder %s61, %s64
    %p70 = scmp.eq.s32.totalorder %s25, 0
    %p71 = por %p69, %p70
    %p72 = scmp.ne.s32.totalorder %s61, %s64
    %p73 = scmp.eq.s32.totalorder %s30, 1
    %p74 = por %p72, %p73
    %p75 = scmp.ne.s32.totalorder %s64, %s65
    %p76 = scmp.eq.s32.totalorder %s30, 0
    %p77 = por %p75, %p76
    %p78 = scmp.ne.s32.totalorder %s64, %s65
    %p79 = scmp.eq.s32.totalorder %s31, 1
    %p80 = por %p78, %p79
    %p82 = scmp.ne.s32.totalorder %s65, %s81
    %p83 = scmp.eq.s32.totalorder %s31, 0
    %p84 = por %p82, %p83
    %s86 = sadd.s32 %s85, 1
    %p89 = scmp.eq.s32.totalorder %s25, 1
    %p90 = scmp.ne.s32.totalorder %s85, %s87
    %p91 = scmp.eq.s32.totalorder %s25, 0
    %p92 = por %p90, %p91
    %p93 = scmp.ne.s32.totalorder %s85, %s87
    %p94 = scmp.eq.s32.totalorder %s30, 1
    %p95 = por %p93, %p94
    %p96 = scmp.ne.s32.totalorder %s87, %s88
    %p97 = scmp.eq.s32.totalorder %s30, 0
    %p98 = por %p96, %p97
    %p99 = scmp.ne.s32.totalorder %s87, %s88
    %p100 = scmp.eq.s32.totalorder %s31, 1
    %p101 = por %p99, %p100
    %p103 = scmp.ne.s32.totalorder %s88, %s102
    %p104 = scmp.eq.s32.totalorder %s31, 0
    %p105 = por %p103, %p104
    %s107 = sadd.s32 %s106, 1
    %p110 = scmp.eq.s32.totalorder %s25, 1
    %p111 = scmp.ne.s32.totalorder %s106, %s108
    %p112 = scmp.eq.s32.totalorder %s25, 0
    %p113 = por %p111, %p112
    %p114 = scmp.ne.s32.totalorder %s106, %s108
    %p115 = scmp.eq.s32.totalorder %s30, 1
    %p116 = por %p114, %p115
    %p117 = scmp.ne.s32.totalorder %s108, %s109
    %p118 = scmp.eq.s32.totalorder %s30, 0
    %p119 = por %p117, %p118
    %p120 = scmp.ne.s32.totalorder %s108, %s109
    %p121 = scmp.eq.s32.totalorder %s31, 1
    %p122 = por %p120, %p121
    %p124 = scmp.ne.s32.totalorder %s109, %s123
    %p125 = scmp.eq.s32.totalorder %s31, 0
    %p126 = por %p124, %p125
    %s128 = sadd.s32 %s127, 1
    %p131 = scmp.eq.s32.totalorder %s25, 1
    %p132 = scmp.ne.s32.totalorder %s127, %s129
    %p133 = scmp.eq.s32.totalorder %s25, 0
    %p134 = por %p132, %p133
    %p135 = scmp.ne.s32.totalorder %s127, %s129
    %p136 = scmp.eq.s32.totalorder %s30, 1
    %p137 = por %p135, %p136
    %p138 = scmp.ne.s32.totalorder %s129, %s130
    %p139 = scmp.eq.s32.totalorder %s30, 0
    %p140 = por %p138, %p139
    %p141 = scmp.ne.s32.totalorder %s129, %s130
    %p142 = scmp.eq.s32.totalorder %s31, 1
    %p143 = por %p141, %p142
    %p145 = scmp.ne.s32.totalorder %s130, %s144
    %p146 = scmp.eq.s32.totalorder %s31, 0
    %p147 = por %p145, %p146
    %s149 = sadd.s32 %s148, 1
    %p152 = scmp.eq.s32.totalorder %s25, 1
    %p153 = scmp.ne.s32.totalorder %s148, %s150
    %p154 = scmp.eq.s32.totalorder %s25, 0
    %p155 = por %p153, %p154
    %p156 = scmp.ne.s32.totalorder %s148, %s150
    %p157 = scmp.eq.s32.totalorder %s30, 1
    %p158 = por %p156, %p157
    %p159 = scmp.ne.s32.totalorder %s150, %s151
    %p160 = scmp.eq.s32.totalorder %s30, 0
    %p161 = por %p159, %p160
    %p162 = scmp.ne.s32.totalorder %s150, %s151
    %p163 = scmp.eq.s32.totalorder %s31, 1
    %p164 = por %p162, %p163
    %p166 = scmp.ne.s32.totalorder %s151, %s165
    %p167 = scmp.eq.s32.totalorder %s31, 0
    %p168 = por %p166, %p167
    %s170 = sadd.s32 %s169, 1
    %p173 = scmp.eq.s32.totalorder %s25, 1
    %p174 = scmp.ne.s32.totalorder %s169, %s171
    %p175 = scmp.eq.s32.totalorder %s25, 0
    %p176 = por %p174, %p175
    %p177 = scmp.ne.s32.totalorder %s169, %s171
    %p178 = scmp.eq.s32.totalorder %s30, 1
    %p179 = por %p177, %p178
    %p180 = scmp.ne.s32.totalorder %s171, %s172
    %p181 = scmp.eq.s32.totalorder %s30, 0
    %p182 = por %p180, %p181
    %p183 = scmp.ne.s32.totalorder %s171, %s172
    %p184 = scmp.eq.s32.totalorder %s31, 1
    %p185 = por %p183, %p184
    %p187 = scmp.ne.s32.totalorder %s172, %s186
    %p188 = scmp.eq.s32.totalorder %s31, 0
    %p189 = por %p187, %p188
    %s191 = sadd.s32 %s190, 1
    %p194 = scmp.eq.s32.totalorder %s25, 1
    %p195 = scmp.ne.s32.totalorder %s190, %s192
    %p196 = scmp.eq.s32.totalorder %s25, 0
    %p197 = por %p195, %p196
    %p198 = scmp.ne.s32.totalorder %s190, %s192
    %p199 = scmp.eq.s32.totalorder %s30, 1
    %p200 = por %p198, %p199
    %p201 = scmp.ne.s32.totalorder %s192, %s193
    %p202 = scmp.eq.s32.totalorder %s30, 0
    %p203 = por %p201, %p202
    %p204 = scmp.ne.s32.totalorder %s192, %s193
    %p205 = scmp.eq.s32.totalorder %s31, 1
    %p206 = por %p204, %p205
    %p208 = scmp.ne.s32.totalorder %s193, %s207
    %p209 = scmp.eq.s32.totalorder %s31, 0
    %p210 = por %p208, %p209
    %s212 = sadd.s32 %s211, 1
    %p215 = scmp.eq.s32.totalorder %s25, 1
    %p216 = scmp.ne.s32.totalorder %s211, %s213
    %p217 = scmp.eq.s32.totalorder %s25, 0
    %p218 = por %p216, %p217
    %p219 = scmp.ne.s32.totalorder %s211, %s213
    %p220 = scmp.eq.s32.totalorder %s30, 1
    %p221 = por %p219, %p220
    %p222 = scmp.ne.s32.totalorder %s213, %s214
    %p223 = scmp.eq.s32.totalorder %s30, 0
    %p224 = por %p222, %p223
    %p225 = scmp.ne.s32.totalorder %s213, %s214
    %p226 = scmp.eq.s32.totalorder %s31, 1
    %p227 = por %p225, %p226
    %p229 = scmp.ne.s32.totalorder %s214, %s228
    %p230 = scmp.eq.s32.totalorder %s31, 0
    %p231 = por %p229, %p230
    %s233 = sadd.s32 %s232, 1
    %p236 = scmp.eq.s32.totalorder %s25, 1
    %p237 = scmp.ne.s32.totalorder %s232, %s234
    %p238 = scmp.eq.s32.totalorder %s25, 0
    %p239 = por %p237, %p238
    %p240 = scmp.ne.s32.totalorder %s232, %s234
    %p241 = scmp.eq.s32.totalorder %s30, 1
    %p242 = por %p240, %p241
    %p243 = scmp.ne.s32.totalorder %s234, %s235
    %p244 = scmp.eq.s32.totalorder %s30, 0
    %p245 = por %p243, %p244
    %p246 = scmp.ne.s32.totalorder %s234, %s235
    %p247 = scmp.eq.s32.totalorder %s31, 1
    %p248 = por %p246, %p247
    %p250 = scmp.ne.s32.totalorder %s235, %s249
    %p251 = scmp.eq.s32.totalorder %s31, 0
    %p252 = por %p250, %p251
    %s254 = sadd.s32 %s253, 1
    %p257 = scmp.eq.s32.totalorder %s25, 1
    %p258 = scmp.ne.s32.totalorder %s253, %s255
    %p259 = scmp.eq.s32.totalorder %s25, 0
    %p260 = por %p258, %p259
    %p261 = scmp.ne.s32.totalorder %s253, %s255
    %p262 = scmp.eq.s32.totalorder %s30, 1
    %p263 = por %p261, %p262
    %p264 = scmp.ne.s32.totalorder %s255, %s256
    %p265 = scmp.eq.s32.totalorder %s30, 0
    %p266 = por %p264, %p265
    %p267 = scmp.ne.s32.totalorder %s255, %s256
    %p268 = scmp.eq.s32.totalorder %s31, 1
    %p269 = por %p267, %p268
    %p271 = scmp.ne.s32.totalorder %s256, %s270
    %p272 = scmp.eq.s32.totalorder %s31, 0
    %p273 = por %p271, %p272
    %s275 = sadd.s32 %s274, 1
    %p278 = scmp.eq.s32.totalorder %s25, 1
    %p279 = scmp.ne.s32.totalorder %s274, %s276
    %p280 = scmp.eq.s32.totalorder %s25, 0
    %p281 = por %p279, %p280
    %p282 = scmp.ne.s32.totalorder %s274, %s276
    %p283 = scmp.eq.s32.totalorder %s30, 1
    %p284 = por %p282, %p283
    %p285 = scmp.ne.s32.totalorder %s276, %s277
    %p286 = scmp.eq.s32.totalorder %s30, 0
    %p287 = por %p285, %p286
    %p288 = scmp.ne.s32.totalorder %s276, %s277
    %p289 = scmp.eq.s32.totalorder %s31, 1
    %p290 = por %p288, %p289
    %p292 = scmp.ne.s32.totalorder %s277, %s291
    %p293 = scmp.eq.s32.totalorder %s31, 0
    %p294 = por %p292, %p293
    %s296 = sadd.s32 %s295, 1
    %p299 = scmp.eq.s32.totalorder %s25, 1
    %p300 = scmp.ne.s32.totalorder %s295, %s297
    %p301 = scmp.eq.s32.totalorder %s25, 0
    %p302 = por %p300, %p301
    %p303 = scmp.ne.s32.totalorder %s295, %s297
    %p304 = scmp.eq.s32.totalorder %s30, 1
    %p305 = por %p303, %p304
    %p306 = scmp.ne.s32.totalorder %s297, %s298
    %p307 = scmp.eq.s32.totalorder %s30, 0
    %p308 = por %p306, %p307
    %p309 = scmp.ne.s32.totalorder %s297, %s298
    %p310 = scmp.eq.s32.totalorder %s31, 1
    %p311 = por %p309, %p310
    %p313 = scmp.ne.s32.totalorder %s298, %s312
    %p314 = scmp.eq.s32.totalorder %s31, 0
    %p315 = por %p313, %p314
    %s317 = sadd.s32 %s316, 1
    %p320 = scmp.eq.s32.totalorder %s25, 1
    %p321 = scmp.ne.s32.totalorder %s316, %s318
    %p322 = scmp.eq.s32.totalorder %s25, 0
    %p323 = por %p321, %p322
    %p324 = scmp.ne.s32.totalorder %s316, %s318
    %p325 = scmp.eq.s32.totalorder %s30, 1
    %p326 = por %p324, %p325
    %p327 = scmp.ne.s32.totalorder %s318, %s319
    %p328 = scmp.eq.s32.totalorder %s30, 0
    %p329 = por %p327, %p328
    %p330 = scmp.ne.s32.totalorder %s318, %s319
    %p331 = scmp.eq.s32.totalorder %s31, 1
    %p332 = por %p330, %p331
    %p334 = scmp.ne.s32.totalorder %s319, %s333
    %p335 = scmp.eq.s32.totalorder %s31, 0
    %p336 = por %p334, %p335
    %s338 = sadd.s32 %s337, 1
    %p341 = scmp.eq.s32.totalorder %s25, 1
    %p342 = scmp.ne.s32.totalorder %s337, %s339
    %p343 = scmp.eq.s32.totalorder %s25, 0
    %p344 = por %p342, %p343
    %p345 = scmp.ne.s32.totalorder %s337, %s339
    %p346 = scmp.eq.s32.totalorder %s30, 1
    %p347 = por %p345, %p346
    %p348 = scmp.ne.s32.totalorder %s339, %s340
    %p349 = scmp.eq.s32.totalorder %s30, 0
    %p350 = por %p348, %p349
    %p351 = scmp.ne.s32.totalorder %s339, %s340
    %p352 = scmp.eq.s32.totalorder %s31, 1
    %p353 = por %p351, %p352
    %p355 = scmp.ne.s32.totalorder %s340, %s354
    %p356 = scmp.eq.s32.totalorder %s31, 0
    %p357 = por %p355, %p356
    %s359 = sadd.s32 %s358, 1
    %p362 = scmp.eq.s32.totalorder %s25, 1
    %p363 = scmp.ne.s32.totalorder %s358, %s360
    %p364 = scmp.eq.s32.totalorder %s25, 0
    %p365 = por %p363, %p364
    %p366 = scmp.ne.s32.totalorder %s358, %s360
    %p367 = scmp.eq.s32.totalorder %s30, 1
    %p368 = por %p366, %p367
    %p369 = scmp.ne.s32.totalorder %s360, %s361
    %p370 = scmp.eq.s32.totalorder %s30, 0
    %p371 = por %p369, %p370
    %p372 = scmp.ne.s32.totalorder %s360, %s361
    %p373 = scmp.eq.s32.totalorder %s31, 1
    %p374 = por %p372, %p373
    %p376 = scmp.ne.s32.totalorder %s361, %s375
    %p377 = scmp.eq.s32.totalorder %s31, 0
    %p378 = por %p376, %p377
    %s380 = sadd.s32 %s379, 1
    %p383 = scmp.eq.s32.totalorder %s25, 1
    %p384 = scmp.ne.s32.totalorder %s379, %s381
    %p385 = scmp.eq.s32.totalorder %s25, 0
    %p386 = por %p384, %p385
    %p387 = scmp.ne.s32.totalorder %s379, %s381
    %p388 = scmp.eq.s32.totalorder %s30, 1
    %p389 = por %p387, %p388
    %p390 = scmp.ne.s32.totalorder %s381, %s382
    %p391 = scmp.eq.s32.totalorder %s30, 0
    %p392 = por %p390, %p391
    %p393 = scmp.ne.s32.totalorder %s381, %s382
    %p394 = scmp.eq.s32.totalorder %s31, 1
    %p395 = por %p393, %p394
    %p397 = scmp.ne.s32.totalorder %s382, %s396
    %p398 = scmp.eq.s32.totalorder %s31, 0
    %p399 = por %p397, %p398
    %s401 = sadd.s32 %s400, 1
    %p404 = scmp.eq.s32.totalorder %s25, 1
    %p405 = scmp.ne.s32.totalorder %s400, %s402
    %p406 = scmp.eq.s32.totalorder %s25, 0
    %p407 = por %p405, %p406
    %p408 = scmp.ne.s32.totalorder %s400, %s402
    %p409 = scmp.eq.s32.totalorder %s30, 1
    %p410 = por %p408, %p409
    %p411 = scmp.ne.s32.totalorder %s402, %s403
    %p412 = scmp.eq.s32.totalorder %s30, 0
    %p413 = por %p411, %p412
    %p414 = scmp.ne.s32.totalorder %s402, %s403
    %p415 = scmp.eq.s32.totalorder %s31, 1
    %p416 = por %p414, %p415
    %p418 = scmp.ne.s32.totalorder %s403, %s417
    %p419 = scmp.eq.s32.totalorder %s31, 0
    %p420 = por %p418, %p419
    %s422 = sadd.s32 %s421, 1
    %p425 = scmp.eq.s32.totalorder %s25, 1
    %p426 = scmp.ne.s32.totalorder %s421, %s423
    %p427 = scmp.eq.s32.totalorder %s25, 0
    %p428 = por %p426, %p427
    %p429 = scmp.ne.s32.totalorder %s421, %s423
    %p430 = scmp.eq.s32.totalorder %s30, 1
    %p431 = por %p429, %p430
    %p432 = scmp.ne.s32.totalorder %s423, %s424
    %p433 = scmp.eq.s32.totalorder %s30, 0
    %p434 = por %p432, %p433
    %p435 = scmp.ne.s32.totalorder %s423, %s424
    %p436 = scmp.eq.s32.totalorder %s31, 1
    %p437 = por %p435, %p436
    %p439 = scmp.ne.s32.totalorder %s424, %s438
    %p440 = scmp.eq.s32.totalorder %s31, 0
    %p441 = por %p439, %p440
    %s442 = ssub.s32 %s25, %s32
    %p443 = scmp.eq.s32.totalorder %s442, 0
    %s445 = sadd.s32 %s444, 1
    %s446 = scalar_select %p443, %s444, %s445
    %p449 = pneg %p443
    %p450 = scmp.eq.s32.totalorder %s25, 1
    %p451 = por %p449, %p450
    %p452 = scmp.ne.s32.totalorder %s444, %s447
    %p453 = scmp.eq.s32.totalorder %s25, 0
    %p454 = por %p452, %p453
    %p455 = scmp.ne.s32.totalorder %s444, %s447
    %p456 = scmp.eq.s32.totalorder %s30, 1
    %p457 = por %p455, %p456
    %p458 = scmp.ne.s32.totalorder %s447, %s448
    %p459 = scmp.eq.s32.totalorder %s30, 0
    %p460 = por %p458, %p459
    %p461 = scmp.ne.s32.totalorder %s447, %s448
    %p462 = scmp.eq.s32.totalorder %s31, 1
    %p463 = por %p461, %p462
    %p465 = scmp.ne.s32.totalorder %s448, %s464
    %p466 = scmp.eq.s32.totalorder %s31, 0
    %p467 = por %p465, %p466
    %p468 = scmp.le.s32.totalorder 1, %s25
    %p469 = scmp.lt.s32.totalorder %s25, 3
    %p470 = pnand %p468, %p469
    %p471 = pneg %p470
    // Predicated region
    $region9: #{forward.1} parent=5 // pred_check
      _
    $region10: #{forward.1} parent=5 // pred_check_branch
      %473 = sbr.rel (%p470) target = $region12
    $region11: #{forward.1} parent=5 // pred_region
      %s474 = ssub.s32 %s25, 1
      // Predicated region
      $region13: #{forward.1} parent=11 // pred_check
        %p475 = pneg %p98
      $region14: #{forward.1} parent=11 // pred_check_branch
        %477 = sbr.rel (%p475) target = $region16
      $region15: #{forward.1} parent=11 // pred_region
        _
      $region16: #{forward.1} parent=11 // pred_fallthru
        _
      // Predicated region
      $region17: #{forward.1} parent=11 // pred_check
        %p478 = pneg %p119
      $region18: #{forward.1} parent=11 // pred_check_branch
        %480 = sbr.rel (%p478) target = $region20
      $region19: #{forward.1} parent=11 // pred_region
        _
      $region20: #{forward.1} parent=11 // pred_fallthru
        _
      // Predicated region
      $region21: #{forward.1} parent=11 // pred_check
        %p481 = pneg %p140
      $region22: #{forward.1} parent=11 // pred_check_branch
        %483 = sbr.rel (%p481) target = $region24
      $region23: #{forward.1} parent=11 // pred_region
        _
      $region24: #{forward.1} parent=11 // pred_fallthru
        _
      // Predicated region
      $region25: #{forward.1} parent=11 // pred_check
        %p484 = pneg %p161
      $region26: #{forward.1} parent=11 // pred_check_branch
        %486 = sbr.rel (%p484) target = $region28
      $region27: #{forward.1} parent=11 // pred_region
        _
      $region28: #{forward.1} parent=11 // pred_fallthru
        _
      // Predicated region
      $region29: #{forward.1} parent=11 // pred_check
        %p487 = pneg %p182
      $region30: #{forward.1} parent=11 // pred_check_branch
        %489 = sbr.rel (%p487) target = $region32
      $region31: #{forward.1} parent=11 // pred_region
        _
      $region32: #{forward.1} parent=11 // pred_fallthru
        _
      // Predicated region
      $region33: #{forward.1} parent=11 // pred_check
        %p490 = pneg %p203
      $region34: #{forward.1} parent=11 // pred_check_branch
        %492 = sbr.rel (%p490) target = $region36
      $region35: #{forward.1} parent=11 // pred_region
        _
      $region36: #{forward.1} parent=11 // pred_fallthru
        _
      // Predicated region
      $region37: #{forward.1} parent=11 // pred_check
        %p493 = pneg %p224
      $region38: #{forward.1} parent=11 // pred_check_branch
        %495 = sbr.rel (%p493) target = $region40
      $region39: #{forward.1} parent=11 // pred_region
        _
      $region40: #{forward.1} parent=11 // pred_fallthru
        _
      // Predicated region
      $region41: #{forward.1} parent=11 // pred_check
        %p496 = pneg %p245
      $region42: #{forward.1} parent=11 // pred_check_branch
        %498 = sbr.rel (%p496) target = $region44
      $region43: #{forward.1} parent=11 // pred_region
        _
      $region44: #{forward.1} parent=11 // pred_fallthru
        _
      // Predicated region
      $region45: #{forward.1} parent=11 // pred_check
        %p499 = pneg %p266
      $region46: #{forward.1} parent=11 // pred_check_branch
        %501 = sbr.rel (%p499) target = $region48
      $region47: #{forward.1} parent=11 // pred_region
        _
      $region48: #{forward.1} parent=11 // pred_fallthru
        _
      // Predicated region
      $region49: #{forward.1} parent=11 // pred_check
        %p502 = pneg %p287
      $region50: #{forward.1} parent=11 // pred_check_branch
        %504 = sbr.rel (%p502) target = $region52
      $region51: #{forward.1} parent=11 // pred_region
        _
      $region52: #{forward.1} parent=11 // pred_fallthru
        _
      // Predicated region
      $region53: #{forward.1} parent=11 // pred_check
        %p505 = pneg %p308
      $region54: #{forward.1} parent=11 // pred_check_branch
        %507 = sbr.rel (%p505) target = $region56
      $region55: #{forward.1} parent=11 // pred_region
        _
      $region56: #{forward.1} parent=11 // pred_fallthru
        _
      // Predicated region
      $region57: #{forward.1} parent=11 // pred_check
        %p508 = pneg %p329
      $region58: #{forward.1} parent=11 // pred_check_branch
        %510 = sbr.rel (%p508) target = $region60
      $region59: #{forward.1} parent=11 // pred_region
        _
      $region60: #{forward.1} parent=11 // pred_fallthru
        _
      // Predicated region
      $region61: #{forward.1} parent=11 // pred_check
        %p511 = pneg %p350
      $region62: #{forward.1} parent=11 // pred_check_branch
        %513 = sbr.rel (%p511) target = $region64
      $region63: #{forward.1} parent=11 // pred_region
        _
      $region64: #{forward.1} parent=11 // pred_fallthru
        _
      // Predicated region
      $region65: #{forward.1} parent=11 // pred_check
        %p514 = pneg %p371
      $region66: #{forward.1} parent=11 // pred_check_branch
        %516 = sbr.rel (%p514) target = $region68
      $region67: #{forward.1} parent=11 // pred_region
        _
      $region68: #{forward.1} parent=11 // pred_fallthru
        _
      // Predicated region
      $region69: #{forward.1} parent=11 // pred_check
        %p517 = pneg %p392
      $region70: #{forward.1} parent=11 // pred_check_branch
        %519 = sbr.rel (%p517) target = $region72
      $region71: #{forward.1} parent=11 // pred_region
        _
      $region72: #{forward.1} parent=11 // pred_fallthru
        _
      // Predicated region
      $region73: #{forward.1} parent=11 // pred_check
        %p520 = pneg %p413
      $region74: #{forward.1} parent=11 // pred_check_branch
        %522 = sbr.rel (%p520) target = $region76
      $region75: #{forward.1} parent=11 // pred_region
        _
      $region76: #{forward.1} parent=11 // pred_fallthru
        _
      // Predicated region
      $region77: #{forward.1} parent=11 // pred_check
        %p523 = pneg %p434
      $region78: #{forward.1} parent=11 // pred_check_branch
        %525 = sbr.rel (%p523) target = $region80
      $region79: #{forward.1} parent=11 // pred_region
        _
      $region80: #{forward.1} parent=11 // pred_fallthru
        _
    $region12: #{forward.1} parent=5 // pred_fallthru
      _
    %p526 = scmp.lt.s32.totalorder %s25, 2
    // Predicated region
    $region81: #{forward.1} parent=5 // pred_check
      %p527 = pneg %p526
    $region82: #{forward.1} parent=5 // pred_check_branch
      %529 = sbr.rel (%p527) target = $region84
    $region83: #{forward.1} parent=5 // pred_region
      // Predicated region
      $region85: #{forward.1} parent=83 // pred_check
        %p530 = pneg %p45
      $region86: #{forward.1} parent=83 // pred_check_branch
        %532 = sbr.rel (%p530) target = $region88
      $region87: #{forward.1} parent=83 // pred_region
        %s533 = smul.u32 17, %s25
        %p534 = scmp.lt.s32.totalorder %s533, 33
        %s535 = scalar_select %p534, %s533, 33
        %s536 = smul.addr %s535, 2
        %s537 = smul.addr %s536, 4
        %s538 = scalar_lea.vmem %s0, %s537
        %s539 = smul.u32 17, %s25
      $region88: #{forward.1} parent=83 // pred_fallthru
        _
      // Predicated region
      $region89: #{forward.1} parent=83 // pred_check
        %p540 = pneg %p71
      $region90: #{forward.1} parent=83 // pred_check_branch
        %542 = sbr.rel (%p540) target = $region92
      $region91: #{forward.1} parent=83 // pred_region
        %s543 = smul.u32 17, %s25
        %p544 = scmp.lt.s32.totalorder %s543, 33
        %s545 = scalar_select %p544, %s543, 33
        %s546 = smul.addr %s545, 4
        %s547 = scalar_lea.vmem %s1, %s546
        %s548 = smul.u32 17, %s25
      $region92: #{forward.1} parent=83 // pred_fallthru
        _
    $region84: #{forward.1} parent=5 // pred_fallthru
      _
    %p549 = scmp.le.s32.totalorder 1, %s25
    %p550 = scmp.lt.s32.totalorder %s25, 3
    %p551 = pnand %p549, %p550
    %p552 = pneg %p551
    // Predicated region
    $region93: #{forward.1} parent=5 // pred_check
      _
    $region94: #{forward.1} parent=5 // pred_check_branch
      %554 = sbr.rel (%p551) target = $region96
    $region95: #{forward.1} parent=5 // pred_region
      %s555 = ssub.s32 %s25, 1
      %s556 = smul.u32 17, %s30
      %p557 = scmp.lt.s32.totalorder %s556, 33
      %s558 = scalar_select %p557, %s556, 33
      %s559 = smul.addr %s558, 2
      %s560 = smul.addr %s559, 4
      %s561 = scalar_lea.vmem %s0, %s560
      %p562 = pneg %p51
      %p563 = pneg %p48
      %s564 = smul.u32 17, %s30
      %p565 = scmp.lt.s32.totalorder %s564, 33
      %s566 = scalar_select %p565, %s564, 33
      %s567 = smul.addr %s566, 4
      %s568 = scalar_lea.vmem %s1, %s567
      %p569 = pneg %p77
      %p570 = pneg %p74
      %p571 = pneg %p98
      %p572 = pneg %p95
      %p573 = pneg %p119
      %p574 = pneg %p116
      %p575 = pneg %p140
      %p576 = pneg %p137
      %p577 = pneg %p161
      %p578 = pneg %p158
      %p579 = pneg %p182
      %p580 = pneg %p179
      %p581 = pneg %p203
      %p582 = pneg %p200
      %p583 = pneg %p224
      %p584 = pneg %p221
      %p585 = pneg %p245
      %p586 = pneg %p242
      %p587 = pneg %p266
      %p588 = pneg %p263
      %p589 = pneg %p287
      %p590 = pneg %p284
      %p591 = pneg %p308
      %p592 = pneg %p305
      %p593 = pneg %p329
      %p594 = pneg %p326
      %p595 = pneg %p350
      %p596 = pneg %p347
      %p597 = pneg %p371
      %p598 = pneg %p368
      %p599 = pneg %p392
      %p600 = pneg %p389
      %p601 = pneg %p413
      %p602 = pneg %p410
      %p603 = pneg %p434
      %p604 = pneg %p431
      %p605 = pneg %p460
      %p606 = pneg %p457
      %s607 = smul.u32 17, %s30
      %p608 = scmp.lt.s32.totalorder %s607, 33
      %s609 = scalar_select %p608, %s607, 33
      %s610 = smul.addr %s609, 8
      %s611 = scalar_lea.vmem %s19, %s610
      %s612 = smul.u32 17, %s30
      %p613 = scmp.lt.s32.totalorder %s612, 33
      %s614 = scalar_select %p613, %s612, 33
      %s615 = smul.addr %s614, 2
      %s616 = smul.addr %s615, 4
      %s617 = scalar_lea.vmem %s0, %s616
      %s618 = smul.u32 17, %s30
      %s619 = smul.u32 17, %s30
      %p620 = scmp.lt.s32.totalorder %s619, 33
      %s621 = scalar_select %p620, %s619, 33
      %s622 = smul.addr %s621, 4
      %s623 = scalar_lea.vmem %s1, %s622
      %s624 = smul.u32 17, %s30
      %s625 = smul.u32 17, %s30
      %p626 = scmp.lt.s32.totalorder %s625, 33
      %s627 = scalar_select %p626, %s625, 33
      %s628 = smul.addr %s627, 8
      %s629 = scalar_lea.vmem %s19, %s628
      %s630 = smul.u32 17, %s30
      %632 = vst [vmem:[#allocation2] sm:$0xf] 0
      %633 = vst [vmem:[#allocation2 + $0x4] sm:$0xf] 0
      %634 = vst [vmem:[#allocation2 + $0x8] sm:$0xf] 0
      %635 = vst [vmem:[#allocation2 + $0xc] sm:$0xf] 0
      %636 = vst [vmem:[#allocation2 + $0x10] sm:$0xf] 0
      %637 = vst [vmem:[#allocation2 + $0x14] sm:$0xf] 0
      %638 = vst [vmem:[#allocation2 + $0x18] sm:$0xf] 0
      %639 = vst [vmem:[#allocation2 + $0x1c] sm:$0xf] 0
      %640 = vst [vmem:[#allocation2 + $0x20] sm:$0xf] 0
      %641 = vst [vmem:[#allocation2 + $0x24] sm:$0xf] 0
      %642 = vst [vmem:[#allocation2 + $0x28] sm:$0xf] 0
      %643 = vst [vmem:[#allocation2 + $0x2c] sm:$0xf] 0
      %644 = vst [vmem:[#allocation2 + $0x30] sm:$0xf] 0
      %645 = vst [vmem:[#allocation2 + $0x34] sm:$0xf] 0
      %646 = vst [vmem:[#allocation2 + $0x38] sm:$0xf] 0
      %647 = vst [vmem:[#allocation2 + $0x3c] sm:$0xf] 0
      %648 = vst [vmem:[#allocation2 + $0x40] sm:$0xf] 0
      %v649 = vlaneseq
      %v650 = vshrl.u32 %v649, 7
      %v651 = vadd.s32 %v650, 8
      %v652 = vadd.s32 %v650, 16
      %v653 = vadd.s32 %v650, 24
      %v654 = vadd.s32 %v650, 32
      %v655 = vadd.s32 %v650, 40
      %v656 = vadd.s32 %v650, 48
      %v657 = vadd.s32 %v650, 56
      %v658 = vadd.s32 %v650, 64
      %v659 = vadd.s32 %v650, 72
      %v660 = vadd.s32 %v650, 80
      %v661 = vadd.s32 %v650, 88
      %v662 = vadd.s32 %v650, 96
      %v663 = vadd.s32 %v650, 104
      %v664 = vadd.s32 %v650, 112
      %v665 = vadd.s32 %v650, 120
      %v666 = vadd.s32 %v650, 128
      %v667 = vand.u32 %v650, 7
      %v668 = vand.u32 %v651, 7
      %v669 = vand.u32 %v652, 7
      %v670 = vand.u32 %v653, 7
      %v671 = vand.u32 %v654, 7
      %v672 = vand.u32 %v655, 7
      %v673 = vand.u32 %v656, 7
      %v674 = vand.u32 %v657, 7
      %v675 = vand.u32 %v658, 7
      %v676 = vand.u32 %v659, 7
      %v677 = vand.u32 %v660, 7
      %v678 = vand.u32 %v661, 7
      %v679 = vand.u32 %v662, 7
      %v680 = vand.u32 %v663, 7
      %v681 = vand.u32 %v664, 7
      %v682 = vand.u32 %v665, 7
      %v683 = vand.u32 %v666, 7
      %v684 = vld [vmem:[%s617] sm:$0xff]
      %v685 = vld [vmem:[%s617 + $0x8] sm:$0xff]
      %v686 = vld [vmem:[%s617 + $0x10] sm:$0xff]
      %v687 = vld [vmem:[%s617 + $0x18] sm:$0xff]
      %v688 = vld [vmem:[%s617 + $0x20] sm:$0xff]
      %v689 = vld [vmem:[%s617 + $0x28] sm:$0xff]
      %v690 = vld [vmem:[%s617 + $0x30] sm:$0xff]
      %v691 = vld [vmem:[%s617 + $0x38] sm:$0xff]
      %v692 = vld [vmem:[%s617 + $0x40] sm:$0xff]
      %v693 = vld [vmem:[%s617 + $0x48] sm:$0xff]
      %v694 = vld [vmem:[%s617 + $0x50] sm:$0xff]
      %v695 = vld [vmem:[%s617 + $0x58] sm:$0xff]
      %v696 = vld [vmem:[%s617 + $0x60] sm:$0xff]
      %v697 = vld [vmem:[%s617 + $0x68] sm:$0xff]
      %v698 = vld [vmem:[%s617 + $0x70] sm:$0xff]
      %v699 = vld [vmem:[%s617 + $0x78] sm:$0xff]
      %v700 = vld [vmem:[%s617 + $0x80] sm:$0xff]
      %v701 = vld [vmem:[%s2] sm:$0xf]
      %v702 = vld [vmem:[%s2 + $0x4] sm:$0xf]
      %v703 = vld [vmem:[%s2 + $0x8] sm:$0xf]
      %v704 = vld [vmem:[%s2 + $0xc] sm:$0xf]
      %v705 = vld [vmem:[%s2 + $0x10] sm:$0xf]
      %v706 = vld [vmem:[%s2 + $0x14] sm:$0xf]
      %v707 = vld [vmem:[%s2 + $0x18] sm:$0xf]
      %v708 = vld [vmem:[%s2 + $0x1c] sm:$0xf]
      %v709 = vld [vmem:[%s2 + $0x20] sm:$0xf]
      %v710 = vld [vmem:[%s2 + $0x24] sm:$0xf]
      %v711 = vld [vmem:[%s2 + $0x28] sm:$0xf]
      %v712 = vld [vmem:[%s2 + $0x2c] sm:$0xf]
      %v713 = vld [vmem:[%s2 + $0x30] sm:$0xf]
      %v714 = vld [vmem:[%s2 + $0x34] sm:$0xf]
      %v715 = vld [vmem:[%s2 + $0x38] sm:$0xf]
      %v716 = vld [vmem:[%s2 + $0x3c] sm:$0xf]
      %v717 = vld [vmem:[%s2 + $0x40] sm:$0xf]
      %v718 = vld [vmem:[%s2 + $0x44] sm:$0xf]
      %v719 = vld [vmem:[%s2 + $0x48] sm:$0xf]
      %v720 = vld [vmem:[%s2 + $0x4c] sm:$0xf]
      %v721 = vld [vmem:[%s2 + $0x50] sm:$0xf]
      %v722 = vld [vmem:[%s2 + $0x54] sm:$0xf]
      %v723 = vld [vmem:[%s2 + $0x58] sm:$0xf]
      %v724 = vld [vmem:[%s2 + $0x5c] sm:$0xf]
      %v725 = vld [vmem:[%s2 + $0x60] sm:$0xf]
      %v726 = vld [vmem:[%s2 + $0x64] sm:$0xf]
      %v727 = vld [vmem:[%s2 + $0x68] sm:$0xf]
      %v728 = vld [vmem:[%s2 + $0x6c] sm:$0xf]
      %v729 = vld [vmem:[%s2 + $0x70] sm:$0xf]
      %v730 = vld [vmem:[%s2 + $0x74] sm:$0xf]
      %v731 = vld [vmem:[%s2 + $0x78] sm:$0xf]
      %v732 = vld [vmem:[%s2 + $0x7c] sm:$0xf]
      %v733 = vld [vmem:[%s3] sm:$0x1]
      %v735 = vlaneseq
      %v736 = vshrl.u32 %v735, 7
      %v737 = vsub.s32 0, %v736
      %v738 = vrot.slane %v733, %v737
      %v757 = vunpack.c.l.b16 %v684
      %v758 = vunpack.c.h.b16 %v684
      %v759 = vunpack.c.l.b16 %v685
      %v760 = vunpack.c.h.b16 %v685
      %v761 = vunpack.c.l.b16 %v686
      %v762 = vunpack.c.h.b16 %v686
      %v763 = vunpack.c.l.b16 %v687
      %v764 = vunpack.c.h.b16 %v687
      %v765 = vunpack.c.l.b16 %v688
      %v766 = vunpack.c.h.b16 %v688
      %v767 = vunpack.c.l.b16 %v689
      %v768 = vunpack.c.h.b16 %v689
      %v769 = vunpack.c.l.b16 %v690
      %v770 = vunpack.c.h.b16 %v690
      %v771 = vunpack.c.l.b16 %v691
      %v772 = vunpack.c.h.b16 %v691
      %v773 = vunpack.c.l.b16 %v692
      %v774 = vunpack.c.h.b16 %v692
      %v775 = vunpack.c.l.b16 %v693
      %v776 = vunpack.c.h.b16 %v693
      %v777 = vunpack.c.l.b16 %v694
      %v778 = vunpack.c.h.b16 %v694
      %v779 = vunpack.c.l.b16 %v695
      %v780 = vunpack.c.h.b16 %v695
      %v781 = vunpack.c.l.b16 %v696
      %v782 = vunpack.c.h.b16 %v696
      %v783 = vunpack.c.l.b16 %v697
      %v784 = vunpack.c.h.b16 %v697
      %v785 = vunpack.c.l.b16 %v698
      %v786 = vunpack.c.h.b16 %v698
      %v787 = vunpack.c.l.b16 %v699
      %v788 = vunpack.c.h.b16 %v699
      %v789 = vunpack.c.l.b16 %v700
      %v790 = vunpack.c.h.b16 %v700
      %v791 = vpack.c.b16 %v759, %v757
      %v792 = vpack.c.b16 %v760, %v758
      %v793 = vpack.c.b16 %v763, %v761
      %v794 = vpack.c.b16 %v764, %v762
      %v795 = vpack.c.b16 %v767, %v765
      %v796 = vpack.c.b16 %v768, %v766
      %v797 = vpack.c.b16 %v771, %v769
      %v798 = vpack.c.b16 %v772, %v770
      %v799 = vpack.c.b16 %v775, %v773
      %v800 = vpack.c.b16 %v776, %v774
      %v801 = vpack.c.b16 %v779, %v777
      %v802 = vpack.c.b16 %v780, %v778
      %v803 = vpack.c.b16 %v783, %v781
      %v804 = vpack.c.b16 %v784, %v782
      %v805 = vpack.c.b16 %v787, %v785
      %v806 = vpack.c.b16 %v788, %v786
      %v807 = vpack.c.b16 %v789, %v789
      %v808 = vpack.c.b16 %v790, %v790
      %v859 = vunpack.c.l.b16 %v701
      %v860 = vunpack.c.l.b16 %v702
      %v861 = vunpack.c.l.b16 %v703
      %v862 = vunpack.c.l.b16 %v704
      %v863 = vunpack.c.l.b16 %v705
      %v864 = vunpack.c.l.b16 %v706
      %v865 = vunpack.c.l.b16 %v707
      %v866 = vunpack.c.l.b16 %v708
      %v867 = vunpack.c.l.b16 %v709
      %v868 = vunpack.c.l.b16 %v710
      %v869 = vunpack.c.l.b16 %v711
      %v870 = vunpack.c.l.b16 %v712
      %v871 = vunpack.c.l.b16 %v713
      %v872 = vunpack.c.l.b16 %v714
      %v873 = vunpack.c.l.b16 %v715
      %v874 = vunpack.c.l.b16 %v716
      %v875 = vunpack.c.l.b16 %v717
      %v876 = vunpack.c.l.b16 %v718
      %v877 = vunpack.c.l.b16 %v719
      %v878 = vunpack.c.l.b16 %v720
      %v879 = vunpack.c.l.b16 %v721
      %v880 = vunpack.c.l.b16 %v722
      %v881 = vunpack.c.l.b16 %v723
      %v882 = vunpack.c.l.b16 %v724
      %v883 = vunpack.c.l.b16 %v725
      %v884 = vunpack.c.l.b16 %v726
      %v885 = vunpack.c.l.b16 %v727
      %v886 = vunpack.c.l.b16 %v728
      %v887 = vunpack.c.l.b16 %v729
      %v888 = vunpack.c.l.b16 %v730
      %v889 = vunpack.c.l.b16 %v731
      %v890 = vunpack.c.l.b16 %v732
      %v891 = vpack.c.b16 %v860, %v859
      %v892 = vpack.c.b16 %v862, %v861
      %v893 = vpack.c.b16 %v864, %v863
      %v894 = vpack.c.b16 %v866, %v865
      %v895 = vpack.c.b16 %v868, %v867
      %v896 = vpack.c.b16 %v870, %v869
      %v897 = vpack.c.b16 %v872, %v871
      %v898 = vpack.c.b16 %v874, %v873
      %v899 = vpack.c.b16 %v876, %v875
      %v900 = vpack.c.b16 %v878, %v877
      %v901 = vpack.c.b16 %v880, %v879
      %v902 = vpack.c.b16 %v882, %v881
      %v903 = vpack.c.b16 %v884, %v883
      %v904 = vpack.c.b16 %v886, %v885
      %v905 = vpack.c.b16 %v888, %v887
      %v906 = vpack.c.b16 %v890, %v889
      %923 = vmatprep.subr.bf16.mxu0 0
      %924 = vmatpush1.bf16.msra.mxu0 %v891
      %925 = vmatprep.subr.bf16.mxu0 0
      %926 = vmatpush1.bf16.msra.mxu0 %v892
      %927 = vmatprep.subr.bf16.mxu0 0
      %928 = vmatpush1.bf16.msra.mxu0 %v893
      %929 = vmatprep.subr.bf16.mxu0 0
      %930 = vmatpush1.bf16.msra.mxu0 %v894
      %931 = vmatprep.subr.bf16.mxu0 0
      %932 = vmatpush1.bf16.msra.mxu0 %v895
      %933 = vmatprep.subr.bf16.mxu0 0
      %934 = vmatpush1.bf16.msra.mxu0 %v896
      %935 = vmatprep.subr.bf16.mxu0 0
      %936 = vmatpush1.bf16.msra.mxu0 %v897
      %937 = vmatprep.subr.bf16.mxu0 0
      %938 = vmatpush1.bf16.msra.mxu0 %v898
      %939 = vmatprep.subr.bf16.mxu0 0
      %940 = vmatpush1.bf16.msra.mxu0 %v899
      %941 = vmatprep.subr.bf16.mxu0 0
      %942 = vmatpush1.bf16.msra.mxu0 %v900
      %943 = vmatprep.subr.bf16.mxu0 0
      %944 = vmatpush1.bf16.msra.mxu0 %v901
      %945 = vmatprep.subr.bf16.mxu0 0
      %946 = vmatpush1.bf16.msra.mxu0 %v902
      %947 = vmatprep.subr.bf16.mxu0 0
      %948 = vmatpush1.bf16.msra.mxu0 %v903
      %949 = vmatprep.subr.bf16.mxu0 0
      %950 = vmatpush1.bf16.msra.mxu0 %v904
      %951 = vmatprep.subr.bf16.mxu0 0
      %952 = vmatpush1.bf16.msra.mxu0 %v905
      %953 = vmatprep.subr.bf16.mxu0 0
      %954 = vmatpush1.bf16.msra.mxu0 %v906
      %955 = vmatprep.mubr.bf16.mxu0 %v792
      %956 = vmatmul.mubr.bf16.gmra.mrb[0].mxu0 %v791
      %v957 = vpop.f32.mrb[0].mxu0
      %v958 = vadd.f32 %v738, %v957
      %v959 = vpop.f32.mrb[0].mxu0
      %v960 = vpop.f32.mrb[0].mxu0
      %v961 = vadd.f32 %v738, %v960
      %v962 = vpop.f32.mrb[0].mxu0
      %963 = vmatprep.mubr.bf16.mxu0 %v794
      %964 = vmatmul.mubr.bf16.gmra.mrb[0].mxu0 %v793
      %v965 = vpop.f32.mrb[0].mxu0
      %v966 = vadd.f32 %v738, %v965
      %v967 = vpop.f32.mrb[0].mxu0
      %v968 = vpop.f32.mrb[0].mxu0
      %v969 = vadd.f32 %v738, %v968
      %v970 = vpop.f32.mrb[0].mxu0
      %971 = vmatprep.mubr.bf16.mxu0 %v796
      %972 = vmatmul.mubr.bf16.gmra.mrb[0].mxu0 %v795
      %v973 = vpop.f32.mrb[0].mxu0
      %v974 = vadd.f32 %v738, %v973
      %v975 = vpop.f32.mrb[0].mxu0
      %v976 = vpop.f32.mrb[0].mxu0
      %v977 = vadd.f32 %v738, %v976
      %v978 = vpop.f32.mrb[0].mxu0
      %979 = vmatprep.mubr.bf16.mxu0 %v798
      %980 = vmatmul.mubr.bf16.gmra.mrb[0].mxu0 %v797
      %v981 = vpop.f32.mrb[0].mxu0
      %v982 = vadd.f32 %v738, %v981
      %v983 = vpop.f32.mrb[0].mxu0
      %v984 = vpop.f32.mrb[0].mxu0
      %v985 = vadd.f32 %v738, %v984
      %v986 = vpop.f32.mrb[0].mxu0
      %987 = vmatprep.mubr.bf16.mxu0 %v800
      %988 = vmatmul.mubr.bf16.gmra.mrb[0].mxu0 %v799
      %v989 = vpop.f32.mrb[0].mxu0
      %v990 = vadd.f32 %v738, %v989
      %v991 = vpop.f32.mrb[0].mxu0
      %v992 = vpop.f32.mrb[0].mxu0
      %v993 = vadd.f32 %v738, %v992
      %v994 = vpop.f32.mrb[0].mxu0
      %995 = vmatprep.mubr.bf16.mxu0 %v802
      %996 = vmatmul.mubr.bf16.gmra.mrb[0].mxu0 %v801
      %v997 = vpop.f32.mrb[0].mxu0
      %v998 = vadd.f32 %v738, %v997
      %v999 = vpop.f32.mrb[0].mxu0
      %v1000 = vpop.f32.mrb[0].mxu0
      %v1001 = vadd.f32 %v738, %v1000
      %v1002 = vpop.f32.mrb[0].mxu0
      %1003 = vmatprep.mubr.bf16.mxu0 %v804
      %1004 = vmatmul.mubr.bf16.gmra.mrb[0].mxu0 %v803
      %v1005 = vpop.f32.mrb[0].mxu0
      %v1006 = vadd.f32 %v738, %v1005
      %v1007 = vpop.f32.mrb[0].mxu0
      %v1008 = vpop.f32.mrb[0].mxu0
      %v1009 = vadd.f32 %v738, %v1008
      %v1010 = vpop.f32.mrb[0].mxu0
      %1011 = vmatprep.mubr.bf16.mxu0 %v806
      %1012 = vmatmul.mubr.bf16.gmra.mrb[0].mxu0 %v805
      %v1013 = vpop.f32.mrb[0].mxu0
      %v1014 = vadd.f32 %v738, %v1013
      %v1015 = vpop.f32.mrb[0].mxu0
      %v1016 = vpop.f32.mrb[0].mxu0
      %v1017 = vadd.f32 %v738, %v1016
      %v1018 = vpop.f32.mrb[0].mxu0
      %1019 = vmatprep.mubr.bf16.mxu0 %v808
      %1020 = vmatmul.mubr.bf16.gmra.mrb[0].mxu0 %v807
      %v1021 = vpop.f32.mrb[0].mxu0
      %v1022 = vadd.f32 %v738, %v1021
      %v1023 = vpop.f32.mrb[0].mxu0
      %v1024 = vpop.f32.mrb[0].mxu0
      %v1025 = vpop.f32.mrb[0].mxu0
      %1026 = vdwg.mxu0
      %v1027 = vpack.c.bf16 %v961, %v958
      %v1028 = vpack.c.bf16 %v969, %v966
      %v1029 = vpack.c.bf16 %v977, %v974
      %v1030 = vpack.c.bf16 %v985, %v982
      %v1031 = vpack.c.bf16 %v993, %v990
      %v1032 = vpack.c.bf16 %v1001, %v998
      %v1033 = vpack.c.bf16 %v1009, %v1006
      %v1034 = vpack.c.bf16 %v1017, %v1014
      %v1035 = vpack.c.bf16 %v1022, %v1022
      %v1045 = vunpack.c.l.b16 %v1027
      %v1046 = vunpack.c.h.b16 %v1027
      %v1047 = vunpack.c.l.b16 %v1028
      %v1048 = vunpack.c.h.b16 %v1028
      %v1049 = vunpack.c.l.b16 %v1029
      %v1050 = vunpack.c.h.b16 %v1029
      %v1051 = vunpack.c.l.b16 %v1030
      %v1052 = vunpack.c.h.b16 %v1030
      %v1053 = vunpack.c.l.b16 %v1031
      %v1054 = vunpack.c.h.b16 %v1031
      %v1055 = vunpack.c.l.b16 %v1032
      %v1056 = vunpack.c.h.b16 %v1032
      %v1057 = vunpack.c.l.b16 %v1033
      %v1058 = vunpack.c.h.b16 %v1033
      %v1059 = vunpack.c.l.b16 %v1034
      %v1060 = vunpack.c.h.b16 %v1034
      %v1061 = vunpack.c.l.b16 %v1035
      %v1062 = vpack.c.b16 %v1045, %v1045
      %v1063 = vpack.c.b16 %v1046, %v1046
      %v1064 = vpack.c.b16 %v1047, %v1047
      %v1065 = vpack.c.b16 %v1048, %v1048
      %v1066 = vpack.c.b16 %v1049, %v1049
      %v1067 = vpack.c.b16 %v1050, %v1050
      %v1068 = vpack.c.b16 %v1051, %v1051
      %v1069 = vpack.c.b16 %v1052, %v1052
      %v1070 = vpack.c.b16 %v1053, %v1053
      %v1071 = vpack.c.b16 %v1054, %v1054
      %v1072 = vpack.c.b16 %v1055, %v1055
      %v1073 = vpack.c.b16 %v1056, %v1056
      %v1074 = vpack.c.b16 %v1057, %v1057
      %v1075 = vpack.c.b16 %v1058, %v1058
      %v1076 = vpack.c.b16 %v1059, %v1059
      %v1077 = vpack.c.b16 %v1060, %v1060
      %v1078 = vpack.c.b16 %v1061, %v1061
      %vm1096 = vcmask 257024
      %1097 = vst.msk [vmem:[#allocation2] sm:$0xf] %vm1096, %v1062
      %1098 = vst.msk [vmem:[#allocation2 + $0x4] sm:$0xf] %vm1096, %v1063
      %1099 = vst.msk [vmem:[#allocation2 + $0x8] sm:$0xf] %vm1096, %v1064
      %1100 = vst.msk [vmem:[#allocation2 + $0xc] sm:$0xf] %vm1096, %v1065
      %1101 = vst.msk [vmem:[#allocation2 + $0x10] sm:$0xf] %vm1096, %v1066
      %1102 = vst.msk [vmem:[#allocation2 + $0x14] sm:$0xf] %vm1096, %v1067
      %1103 = vst.msk [vmem:[#allocation2 + $0x18] sm:$0xf] %vm1096, %v1068
      %1104 = vst.msk [vmem:[#allocation2 + $0x1c] sm:$0xf] %vm1096, %v1069
      %1105 = vst.msk [vmem:[#allocation2 + $0x20] sm:$0xf] %vm1096, %v1070
      %1106 = vst.msk [vmem:[#allocation2 + $0x24] sm:$0xf] %vm1096, %v1071
      %1107 = vst.msk [vmem:[#allocation2 + $0x28] sm:$0xf] %vm1096, %v1072
      %1108 = vst.msk [vmem:[#allocation2 + $0x2c] sm:$0xf] %vm1096, %v1073
      %1109 = vst.msk [vmem:[#allocation2 + $0x30] sm:$0xf] %vm1096, %v1074
      %1110 = vst.msk [vmem:[#allocation2 + $0x34] sm:$0xf] %vm1096, %v1075
      %1111 = vst.msk [vmem:[#allocation2 + $0x38] sm:$0xf] %vm1096, %v1076
      %1112 = vst.msk [vmem:[#allocation2 + $0x3c] sm:$0xf] %vm1096, %v1077
      %1113 = vst.msk [vmem:[#allocation2 + $0x40] sm:$0xf] %vm1096, %v1078
      %v1114 = vld [vmem:[%s623] sm:$0xf]
      %v1115 = vld [vmem:[%s623 + $0x4] sm:$0xf]
      %v1116 = vld [vmem:[%s623 + $0x8] sm:$0xf]
      %v1117 = vld [vmem:[%s623 + $0xc] sm:$0xf]
      %v1118 = vld [vmem:[%s623 + $0x10] sm:$0xf]
      %v1119 = vld [vmem:[%s623 + $0x14] sm:$0xf]
      %v1120 = vld [vmem:[%s623 + $0x18] sm:$0xf]
      %v1121 = vld [vmem:[%s623 + $0x1c] sm:$0xf]
      %v1122 = vld [vmem:[%s623 + $0x20] sm:$0xf]
      %v1123 = vld [vmem:[%s623 + $0x24] sm:$0xf]
      %v1124 = vld [vmem:[%s623 + $0x28] sm:$0xf]
      %v1125 = vld [vmem:[%s623 + $0x2c] sm:$0xf]
      %v1126 = vld [vmem:[%s623 + $0x30] sm:$0xf]
      %v1127 = vld [vmem:[%s623 + $0x34] sm:$0xf]
      %v1128 = vld [vmem:[%s623 + $0x38] sm:$0xf]
      %v1129 = vld [vmem:[%s623 + $0x3c] sm:$0xf]
      %v1130 = vld [vmem:[%s623 + $0x40] sm:$0xf]
      %vm1131 = vcmp.eq.s32.totalorder %v667, 4
      %vm1132 = vcmp.eq.s32.totalorder %v668, 4
      %vm1133 = vcmp.eq.s32.totalorder %v669, 4
      %vm1134 = vcmp.eq.s32.totalorder %v670, 4
      %vm1135 = vcmp.eq.s32.totalorder %v671, 4
      %vm1136 = vcmp.eq.s32.totalorder %v672, 4
      %vm1137 = vcmp.eq.s32.totalorder %v673, 4
      %vm1138 = vcmp.eq.s32.totalorder %v674, 4
      %vm1139 = vcmp.eq.s32.totalorder %v675, 4
      %vm1140 = vcmp.eq.s32.totalorder %v676, 4
      %vm1141 = vcmp.eq.s32.totalorder %v677, 4
      %vm1142 = vcmp.eq.s32.totalorder %v678, 4
      %vm1143 = vcmp.eq.s32.totalorder %v679, 4
      %vm1144 = vcmp.eq.s32.totalorder %v680, 4
      %vm1145 = vcmp.eq.s32.totalorder %v681, 4
      %vm1146 = vcmp.eq.s32.totalorder %v682, 4
      %vm1147 = vcmp.eq.s32.totalorder %v683, 4
      %v1148 = vsel %vm1131, 1, 0
      %v1149 = vsel %vm1132, 1, 0
      %v1150 = vsel %vm1133, 1, 0
      %v1151 = vsel %vm1134, 1, 0
      %v1152 = vsel %vm1135, 1, 0
      %v1153 = vsel %vm1136, 1, 0
      %v1154 = vsel %vm1137, 1, 0
      %v1155 = vsel %vm1138, 1, 0
      %v1156 = vsel %vm1139, 1, 0
      %v1157 = vsel %vm1140, 1, 0
      %v1158 = vsel %vm1141, 1, 0
      %v1159 = vsel %vm1142, 1, 0
      %v1160 = vsel %vm1143, 1, 0
      %v1161 = vsel %vm1144, 1, 0
      %v1162 = vsel %vm1145, 1, 0
      %v1163 = vsel %vm1146, 1, 0
      %v1164 = vsel %vm1147, 1, 0
      %vm1165 = vcmp.eq.s32.totalorder %v1148, 1
      %vm1166 = vcmp.eq.s32.totalorder %v1149, 1
      %vm1167 = vcmp.eq.s32.totalorder %v1150, 1
      %vm1168 = vcmp.eq.s32.totalorder %v1151, 1
      %vm1169 = vcmp.eq.s32.totalorder %v1152, 1
      %vm1170 = vcmp.eq.s32.totalorder %v1153, 1
      %vm1171 = vcmp.eq.s32.totalorder %v1154, 1
      %vm1172 = vcmp.eq.s32.totalorder %v1155, 1
      %vm1173 = vcmp.eq.s32.totalorder %v1156, 1
      %vm1174 = vcmp.eq.s32.totalorder %v1157, 1
      %vm1175 = vcmp.eq.s32.totalorder %v1158, 1
      %vm1176 = vcmp.eq.s32.totalorder %v1159, 1
      %vm1177 = vcmp.eq.s32.totalorder %v1160, 1
      %vm1178 = vcmp.eq.s32.totalorder %v1161, 1
      %vm1179 = vcmp.eq.s32.totalorder %v1162, 1
      %vm1180 = vcmp.eq.s32.totalorder %v1163, 1
      %vm1181 = vcmp.eq.s32.totalorder %v1164, 1
      %vm1182 = vmpackc.low %vm1165, %vm1165
      %vm1183 = vmpackc.low %vm1166, %vm1166
      %vm1184 = vmpackc.low %vm1167, %vm1167
      %vm1185 = vmpackc.low %vm1168, %vm1168
      %vm1186 = vmpackc.low %vm1169, %vm1169
      %vm1187 = vmpackc.low %vm1170, %vm1170
      %vm1188 = vmpackc.low %vm1171, %vm1171
      %vm1189 = vmpackc.low %vm1172, %vm1172
      %vm1190 = vmpackc.low %vm1173, %vm1173
      %vm1191 = vmpackc.low %vm1174, %vm1174
      %vm1192 = vmpackc.low %vm1175, %vm1175
      %vm1193 = vmpackc.low %vm1176, %vm1176
      %vm1194 = vmpackc.low %vm1177, %vm1177
      %vm1195 = vmpackc.low %vm1178, %vm1178
      %vm1196 = vmpackc.low %vm1179, %vm1179
      %vm1197 = vmpackc.low %vm1180, %vm1180
      %vm1198 = vmpackc.low %vm1181, %vm1181
      %v1199 = vsel %vm1182, 0, %v1114
      %v1200 = vsel %vm1183, 0, %v1115
      %v1201 = vsel %vm1184, 0, %v1116
      %v1202 = vsel %vm1185, 0, %v1117
      %v1203 = vsel %vm1186, 0, %v1118
      %v1204 = vsel %vm1187, 0, %v1119
      %v1205 = vsel %vm1188, 0, %v1120
      %v1206 = vsel %vm1189, 0, %v1121
      %v1207 = vsel %vm1190, 0, %v1122
      %v1208 = vsel %vm1191, 0, %v1123
      %v1209 = vsel %vm1192, 0, %v1124
      %v1210 = vsel %vm1193, 0, %v1125
      %v1211 = vsel %vm1194, 0, %v1126
      %v1212 = vsel %vm1195, 0, %v1127
      %v1213 = vsel %vm1196, 0, %v1128
      %v1214 = vsel %vm1197, 0, %v1129
      %v1215 = vsel %vm1198, 0, %v1130
      %1233 = vrot.lane.b32.xlu0 %v1199, 32
      %v1234 = vpop.permute.xlu0 %1233
      %1235 = vrot.lane.b32.xlu0 %v1200, 32
      %v1236 = vpop.permute.xlu0 %1235
      %1237 = vrot.lane.b32.xlu0 %v1201, 32
      %v1238 = vpop.permute.xlu0 %1237
      %1239 = vrot.lane.b32.xlu0 %v1202, 32
      %v1240 = vpop.permute.xlu0 %1239
      %1241 = vrot.lane.b32.xlu0 %v1203, 32
      %v1242 = vpop.permute.xlu0 %1241
      %1243 = vrot.lane.b32.xlu0 %v1204, 32
      %v1244 = vpop.permute.xlu0 %1243
      %1245 = vrot.lane.b32.xlu0 %v1205, 32
      %v1246 = vpop.permute.xlu0 %1245
      %1247 = vrot.lane.b32.xlu0 %v1206, 32
      %v1248 = vpop.permute.xlu0 %1247
      %1249 = vrot.lane.b32.xlu0 %v1207, 32
      %v1250 = vpop.permute.xlu0 %1249
      %1251 = vrot.lane.b32.xlu0 %v1208, 32
      %v1252 = vpop.permute.xlu0 %1251
      %1253 = vrot.lane.b32.xlu0 %v1209, 32
      %v1254 = vpop.permute.xlu0 %1253
      %1255 = vrot.lane.b32.xlu0 %v1210, 32
      %v1256 = vpop.permute.xlu0 %1255
      %1257 = vrot.lane.b32.xlu0 %v1211, 32
      %v1258 = vpop.permute.xlu0 %1257
      %1259 = vrot.lane.b32.xlu0 %v1212, 32
      %v1260 = vpop.permute.xlu0 %1259
      %1261 = vrot.lane.b32.xlu0 %v1213, 32
      %v1262 = vpop.permute.xlu0 %1261
      %1263 = vrot.lane.b32.xlu0 %v1214, 32
      %v1264 = vpop.permute.xlu0 %1263
      %1265 = vrot.lane.b32.xlu0 %v1215, 32
      %v1266 = vpop.permute.xlu0 %1265
      %vm1284 = vcmask 290048
      %1285 = vst.msk [vmem:[#allocation2] sm:$0xf] %vm1284, %v1234
      %1286 = vst.msk [vmem:[#allocation2 + $0x4] sm:$0xf] %vm1284, %v1236
      %1287 = vst.msk [vmem:[#allocation2 + $0x8] sm:$0xf] %vm1284, %v1238
      %1288 = vst.msk [vmem:[#allocation2 + $0xc] sm:$0xf] %vm1284, %v1240
      %1289 = vst.msk [vmem:[#allocation2 + $0x10] sm:$0xf] %vm1284, %v1242
      %1290 = vst.msk [vmem:[#allocation2 + $0x14] sm:$0xf] %vm1284, %v1244
      %1291 = vst.msk [vmem:[#allocation2 + $0x18] sm:$0xf] %vm1284, %v1246
      %1292 = vst.msk [vmem:[#allocation2 + $0x1c] sm:$0xf] %vm1284, %v1248
      %1293 = vst.msk [vmem:[#allocation2 + $0x20] sm:$0xf] %vm1284, %v1250
      %1294 = vst.msk [vmem:[#allocation2 + $0x24] sm:$0xf] %vm1284, %v1252
      %1295 = vst.msk [vmem:[#allocation2 + $0x28] sm:$0xf] %vm1284, %v1254
      %1296 = vst.msk [vmem:[#allocation2 + $0x2c] sm:$0xf] %vm1284, %v1256
      %1297 = vst.msk [vmem:[#allocation2 + $0x30] sm:$0xf] %vm1284, %v1258
      %1298 = vst.msk [vmem:[#allocation2 + $0x34] sm:$0xf] %vm1284, %v1260
      %1299 = vst.msk [vmem:[#allocation2 + $0x38] sm:$0xf] %vm1284, %v1262
      %1300 = vst.msk [vmem:[#allocation2 + $0x3c] sm:$0xf] %vm1284, %v1264
      %1301 = vst.msk [vmem:[#allocation2 + $0x40] sm:$0xf] %vm1284, %v1266
      %v1302 = vlaneseq
      %v1303 = vand.u32 %v1302, 127
      %v1304 = vadd.s32 %v1303, 128
      %v1305 = vxor.u32 %v650, %v1303
      %v1306 = vxor.u32 %v650, %v1304
      %v1307 = vxor.u32 %v651, %v1303
      %v1308 = vxor.u32 %v651, %v1304
      %v1309 = vxor.u32 %v652, %v1303
      %v1310 = vxor.u32 %v652, %v1304
      %v1311 = vxor.u32 %v653, %v1303
      %v1312 = vxor.u32 %v653, %v1304
      %v1313 = vxor.u32 %v654, %v1303
      %v1314 = vxor.u32 %v654, %v1304
      %v1315 = vxor.u32 %v655, %v1303
      %v1316 = vxor.u32 %v655, %v1304
      %v1317 = vxor.u32 %v656, %v1303
      %v1318 = vxor.u32 %v656, %v1304
      %v1319 = vxor.u32 %v657, %v1303
      %v1320 = vxor.u32 %v657, %v1304
      %v1321 = vxor.u32 %v658, %v1303
      %v1322 = vxor.u32 %v658, %v1304
      %v1323 = vxor.u32 %v659, %v1303
      %v1324 = vxor.u32 %v659, %v1304
      %v1325 = vxor.u32 %v660, %v1303
      %v1326 = vxor.u32 %v660, %v1304
      %v1327 = vxor.u32 %v661, %v1303
      %v1328 = vxor.u32 %v661, %v1304
      %v1329 = vxor.u32 %v662, %v1303
      %v1330 = vxor.u32 %v662, %v1304
      %v1331 = vxor.u32 %v663, %v1303
      %v1332 = vxor.u32 %v663, %v1304
      %v1333 = vxor.u32 %v664, %v1303
      %v1334 = vxor.u32 %v664, %v1304
      %v1335 = vxor.u32 %v665, %v1303
      %v1336 = vxor.u32 %v665, %v1304
      %v1337 = vxor.u32 %v666, %v1303
      %v1338 = vxor.u32 %v666, %v1304
      %vm1339 = vcmp.lt.s32.totalorder %v1305, 8
      %vm1340 = vcmp.lt.s32.totalorder %v1306, 8
      %vm1341 = vcmp.lt.s32.totalorder %v1307, 8
      %vm1342 = vcmp.lt.s32.totalorder %v1308, 8
      %vm1343 = vcmp.lt.s32.totalorder %v1309, 8
      %vm1344 = vcmp.lt.s32.totalorder %v1310, 8
      %vm1345 = vcmp.lt.s32.totalorder %v1311, 8
      %vm1346 = vcmp.lt.s32.totalorder %v1312, 8
      %vm1347 = vcmp.lt.s32.totalorder %v1313, 8
      %vm1348 = vcmp.lt.s32.totalorder %v1314, 8
      %vm1349 = vcmp.lt.s32.totalorder %v1315, 8
      %vm1350 = vcmp.lt.s32.totalorder %v1316, 8
      %vm1351 = vcmp.lt.s32.totalorder %v1317, 8
      %vm1352 = vcmp.lt.s32.totalorder %v1318, 8
      %vm1353 = vcmp.lt.s32.totalorder %v1319, 8
      %vm1354 = vcmp.lt.s32.totalorder %v1320, 8
      %vm1355 = vcmp.lt.s32.totalorder %v1321, 8
      %vm1356 = vcmp.lt.s32.totalorder %v1322, 8
      %vm1357 = vcmp.lt.s32.totalorder %v1323, 8
      %vm1358 = vcmp.lt.s32.totalorder %v1324, 8
      %vm1359 = vcmp.lt.s32.totalorder %v1325, 8
      %vm1360 = vcmp.lt.s32.totalorder %v1326, 8
      %vm1361 = vcmp.lt.s32.totalorder %v1327, 8
      %vm1362 = vcmp.lt.s32.totalorder %v1328, 8
      %vm1363 = vcmp.lt.s32.totalorder %v1329, 8
      %vm1364 = vcmp.lt.s32.totalorder %v1330, 8
      %vm1365 = vcmp.lt.s32.totalorder %v1331, 8
      %vm1366 = vcmp.lt.s32.totalorder %v1332, 8
      %vm1367 = vcmp.lt.s32.totalorder %v1333, 8
      %vm1368 = vcmp.lt.s32.totalorder %v1334, 8
      %vm1369 = vcmp.lt.s32.totalorder %v1335, 8
      %vm1370 = vcmp.lt.s32.totalorder %v1336, 8
      %vm1371 = vcmp.lt.s32.totalorder %v1337, 8
      %vm1372 = vcmp.lt.s32.totalorder %v1338, 8
      %v1373 = vand.u32 %v1303, 7
      %v1374 = vand.u32 %v1304, 7
      %vm1375 = vmxor %vm1339, 1
      %vm1376 = vmxor %vm1340, 1
      %vm1377 = vmxor %vm1341, 1
      %vm1378 = vmxor %vm1342, 1
      %vm1379 = vmxor %vm1343, 1
      %vm1380 = vmxor %vm1344, 1
      %vm1381 = vmxor %vm1345, 1
      %vm1382 = vmxor %vm1346, 1
      %vm1383 = vmxor %vm1347, 1
      %vm1384 = vmxor %vm1348, 1
      %vm1385 = vmxor %vm1349, 1
      %vm1386 = vmxor %vm1350, 1
      %vm1387 = vmxor %vm1351, 1
      %vm1388 = vmxor %vm1352, 1
      %vm1389 = vmxor %vm1353, 1
      %vm1390 = vmxor %vm1354, 1
      %vm1391 = vmxor %vm1355, 1
      %vm1392 = vmxor %vm1356, 1
      %vm1393 = vmxor %vm1357, 1
      %vm1394 = vmxor %vm1358, 1
      %vm1395 = vmxor %vm1359, 1
      %vm1396 = vmxor %vm1360, 1
      %vm1397 = vmxor %vm1361, 1
      %vm1398 = vmxor %vm1362, 1
      %vm1399 = vmxor %vm1363, 1
      %vm1400 = vmxor %vm1364, 1
      %vm1401 = vmxor %vm1365, 1
      %vm1402 = vmxor %vm1366, 1
      %vm1403 = vmxor %vm1367, 1
      %vm1404 = vmxor %vm1368, 1
      %vm1405 = vmxor %vm1369, 1
      %vm1406 = vmxor %vm1370, 1
      %vm1407 = vmxor %vm1371, 1
      %vm1408 = vmxor %vm1372, 1
      %vm1409 = vcmp.gt.s32.totalorder %v1303, %v650
      %vm1410 = vcmp.gt.s32.totalorder %v1304, %v650
      %vm1411 = vcmp.gt.s32.totalorder %v1303, %v651
      %vm1412 = vcmp.gt.s32.totalorder %v1304, %v651
      %vm1413 = vcmp.gt.s32.totalorder %v1303, %v652
      %vm1414 = vcmp.gt.s32.totalorder %v1304, %v652
      %vm1415 = vcmp.gt.s32.totalorder %v1303, %v653
      %vm1416 = vcmp.gt.s32.totalorder %v1304, %v653
      %vm1417 = vcmp.gt.s32.totalorder %v1303, %v654
      %vm1418 = vcmp.gt.s32.totalorder %v1304, %v654
      %vm1419 = vcmp.gt.s32.totalorder %v1303, %v655
      %vm1420 = vcmp.gt.s32.totalorder %v1304, %v655
      %vm1421 = vcmp.gt.s32.totalorder %v1303, %v656
      %vm1422 = vcmp.gt.s32.totalorder %v1304, %v656
      %vm1423 = vcmp.gt.s32.totalorder %v1303, %v657
      %vm1424 = vcmp.gt.s32.totalorder %v1304, %v657
      %vm1425 = vcmp.gt.s32.totalorder %v1303, %v658
      %vm1426 = vcmp.gt.s32.totalorder %v1304, %v658
      %vm1427 = vcmp.gt.s32.totalorder %v1303, %v659
      %vm1428 = vcmp.gt.s32.totalorder %v1304, %v659
      %vm1429 = vcmp.gt.s32.totalorder %v1303, %v660
      %vm1430 = vcmp.gt.s32.totalorder %v1304, %v660
      %vm1431 = vcmp.gt.s32.totalorder %v1303, %v661
      %vm1432 = vcmp.gt.s32.totalorder %v1304, %v661
      %vm1433 = vcmp.gt.s32.totalorder %v1303, %v662
      %vm1434 = vcmp.gt.s32.totalorder %v1304, %v662
      %vm1435 = vcmp.gt.s32.totalorder %v1303, %v663
      %vm1436 = vcmp.gt.s32.totalorder %v1304, %v663
      %vm1437 = vcmp.gt.s32.totalorder %v1303, %v664
      %vm1438 = vcmp.gt.s32.totalorder %v1304, %v664
      %vm1439 = vcmp.gt.s32.totalorder %v1303, %v665
      %vm1440 = vcmp.gt.s32.totalorder %v1304, %v665
      %vm1441 = vcmp.gt.s32.totalorder %v1303, %v666
      %vm1442 = vcmp.gt.s32.totalorder %v1304, %v666
      %vm1443 = vmor %vm1375, %vm1409
      %vm1444 = vmor %vm1376, %vm1410
      %vm1445 = vmor %vm1377, %vm1411
      %vm1446 = vmor %vm1378, %vm1412
      %vm1447 = vmor %vm1379, %vm1413
      %vm1448 = vmor %vm1380, %vm1414
      %vm1449 = vmor %vm1381, %vm1415
      %vm1450 = vmor %vm1382, %vm1416
      %vm1451 = vmor %vm1383, %vm1417
      %vm1452 = vmor %vm1384, %vm1418
      %vm1453 = vmor %vm1385, %vm1419
      %vm1454 = vmor %vm1386, %vm1420
      %vm1455 = vmor %vm1387, %vm1421
      %vm1456 = vmor %vm1388, %vm1422
      %vm1457 = vmor %vm1389, %vm1423
      %vm1458 = vmor %vm1390, %vm1424
      %vm1459 = vmor %vm1391, %vm1425
      %vm1460 = vmor %vm1392, %vm1426
      %vm1461 = vmor %vm1393, %vm1427
      %vm1462 = vmor %vm1394, %vm1428
      %vm1463 = vmor %vm1395, %vm1429
      %vm1464 = vmor %vm1396, %vm1430
      %vm1465 = vmor %vm1397, %vm1431
      %vm1466 = vmor %vm1398, %vm1432
      %vm1467 = vmor %vm1399, %vm1433
      %vm1468 = vmor %vm1400, %vm1434
      %vm1469 = vmor %vm1401, %vm1435
      %vm1470 = vmor %vm1402, %vm1436
      %vm1471 = vmor %vm1403, %vm1437
      %vm1472 = vmor %vm1404, %vm1438
      %vm1473 = vmor %vm1405, %vm1439
      %vm1474 = vmor %vm1406, %vm1440
      %vm1475 = vmor %vm1407, %vm1441
      %vm1476 = vmor %vm1408, %vm1442
      %vm1477 = vcmp.ge.s32.totalorder %v1373, 5
      %vm1478 = vcmp.ge.s32.totalorder %v1374, 5
      %vm1479 = vmor %vm1443, %vm1477
      %vm1480 = vmor %vm1444, %vm1478
      %vm1481 = vmor %vm1445, %vm1477
      %vm1482 = vmor %vm1446, %vm1478
      %vm1483 = vmor %vm1447, %vm1477
      %vm1484 = vmor %vm1448, %vm1478
      %vm1485 = vmor %vm1449, %vm1477
      %vm1486 = vmor %vm1450, %vm1478
      %vm1487 = vmor %vm1451, %vm1477
      %vm1488 = vmor %vm1452, %vm1478
      %vm1489 = vmor %vm1453, %vm1477
      %vm1490 = vmor %vm1454, %vm1478
      %vm1491 = vmor %vm1455, %vm1477
      %vm1492 = vmor %vm1456, %vm1478
      %vm1493 = vmor %vm1457, %vm1477
      %vm1494 = vmor %vm1458, %vm1478
      %vm1495 = vmor %vm1459, %vm1477
      %vm1496 = vmor %vm1460, %vm1478
      %vm1497 = vmor %vm1461, %vm1477
      %vm1498 = vmor %vm1462, %vm1478
      %vm1499 = vmor %vm1463, %vm1477
      %vm1500 = vmor %vm1464, %vm1478
      %vm1501 = vmor %vm1465, %vm1477
      %vm1502 = vmor %vm1466, %vm1478
      %vm1503 = vmor %vm1467, %vm1477
      %vm1504 = vmor %vm1468, %vm1478
      %vm1505 = vmor %vm1469, %vm1477
      %vm1506 = vmor %vm1470, %vm1478
      %vm1507 = vmor %vm1471, %vm1477
      %vm1508 = vmor %vm1472, %vm1478
      %vm1509 = vmor %vm1473, %vm1477
      %vm1510 = vmor %vm1474, %vm1478
      %vm1511 = vmor %vm1475, %vm1477
      %vm1512 = vmor %vm1476, %vm1478
      %v1513 = vld [vmem:[#allocation2] sm:$0xf]
      %v1514 = vld [vmem:[#allocation2 + $0x4] sm:$0xf]
      %v1515 = vld [vmem:[#allocation2 + $0x8] sm:$0xf]
      %v1516 = vld [vmem:[#allocation2 + $0xc] sm:$0xf]
      %v1517 = vld [vmem:[#allocation2 + $0x10] sm:$0xf]
      %v1518 = vld [vmem:[#allocation2 + $0x14] sm:$0xf]
      %v1519 = vld [vmem:[#allocation2 + $0x18] sm:$0xf]
      %v1520 = vld [vmem:[#allocation2 + $0x1c] sm:$0xf]
      %v1521 = vld [vmem:[#allocation2 + $0x20] sm:$0xf]
      %v1522 = vld [vmem:[#allocation2 + $0x24] sm:$0xf]
      %v1523 = vld [vmem:[#allocation2 + $0x28] sm:$0xf]
      %v1524 = vld [vmem:[#allocation2 + $0x2c] sm:$0xf]
      %v1525 = vld [vmem:[#allocation2 + $0x30] sm:$0xf]
      %v1526 = vld [vmem:[#allocation2 + $0x34] sm:$0xf]
      %v1527 = vld [vmem:[#allocation2 + $0x38] sm:$0xf]
      %v1528 = vld [vmem:[#allocation2 + $0x3c] sm:$0xf]
      %v1529 = vld [vmem:[#allocation2 + $0x40] sm:$0xf]
      %v1530 = vld [vmem:[%s4] sm:$0xf]
      %v1531 = vld [vmem:[%s4 + $0x4] sm:$0xf]
      %v1532 = vld [vmem:[%s4 + $0x8] sm:$0xf]
      %v1533 = vld [vmem:[%s4 + $0xc] sm:$0xf]
      %v1534 = vld [vmem:[%s4 + $0x10] sm:$0xf]
      %v1535 = vld [vmem:[%s4 + $0x14] sm:$0xf]
      %v1536 = vld [vmem:[%s4 + $0x18] sm:$0xf]
      %v1537 = vld [vmem:[%s4 + $0x1c] sm:$0xf]
      %v1538 = vld [vmem:[%s4 + $0x20] sm:$0xf]
      %v1539 = vld [vmem:[%s4 + $0x24] sm:$0xf]
      %v1540 = vld [vmem:[%s4 + $0x28] sm:$0xf]
      %v1541 = vld [vmem:[%s4 + $0x2c] sm:$0xf]
      %v1542 = vld [vmem:[%s4 + $0x30] sm:$0xf]
      %v1543 = vld [vmem:[%s4 + $0x34] sm:$0xf]
      %v1544 = vld [vmem:[%s4 + $0x38] sm:$0xf]
      %v1545 = vld [vmem:[%s4 + $0x3c] sm:$0xf]
      %v1546 = vld [vmem:[%s5] sm:$0x1]
      %v1548 = vlaneseq
      %v1549 = vshrl.u32 %v1548, 7
      %v1550 = vsub.s32 0, %v1549
      %v1551 = vrot.slane %v1546, %v1550
      %v1570 = vunpack.c.l.b16 %v1513
      %v1571 = vunpack.c.l.b16 %v1514
      %v1572 = vunpack.c.l.b16 %v1515
      %v1573 = vunpack.c.l.b16 %v1516
      %v1574 = vunpack.c.l.b16 %v1517
      %v1575 = vunpack.c.l.b16 %v1518
      %v1576 = vunpack.c.l.b16 %v1519
      %v1577 = vunpack.c.l.b16 %v1520
      %v1578 = vunpack.c.l.b16 %v1521
      %v1579 = vunpack.c.l.b16 %v1522
      %v1580 = vunpack.c.l.b16 %v1523
      %v1581 = vunpack.c.l.b16 %v1524
      %v1582 = vunpack.c.l.b16 %v1525
      %v1583 = vunpack.c.l.b16 %v1526
      %v1584 = vunpack.c.l.b16 %v1527
      %v1585 = vunpack.c.l.b16 %v1528
      %v1586 = vunpack.c.l.b16 %v1529
      %v1587 = vpack.c.b16 %v1571, %v1570
      %v1588 = vpack.c.b16 %v1573, %v1572
      %v1589 = vpack.c.b16 %v1575, %v1574
      %v1590 = vpack.c.b16 %v1577, %v1576
      %v1591 = vpack.c.b16 %v1579, %v1578
      %v1592 = vpack.c.b16 %v1581, %v1580
      %v1593 = vpack.c.b16 %v1583, %v1582
      %v1594 = vpack.c.b16 %v1585, %v1584
      %v1595 = vpack.c.b16 %v1586, %v1586
      %v1621 = vunpack.c.l.b16 %v1530
      %v1622 = vunpack.c.l.b16 %v1531
      %v1623 = vunpack.c.l.b16 %v1532
      %v1624 = vunpack.c.l.b16 %v1533
      %v1625 = vunpack.c.l.b16 %v1534
      %v1626 = vunpack.c.l.b16 %v1535
      %v1627 = vunpack.c.l.b16 %v1536
      %v1628 = vunpack.c.l.b16 %v1537
      %v1629 = vunpack.c.l.b16 %v1538
      %v1630 = vunpack.c.l.b16 %v1539
      %v1631 = vunpack.c.l.b16 %v1540
      %v1632 = vunpack.c.l.b16 %v1541
      %v1633 = vunpack.c.l.b16 %v1542
      %v1634 = vunpack.c.l.b16 %v1543
      %v1635 = vunpack.c.l.b16 %v1544
      %v1636 = vunpack.c.l.b16 %v1545
      %v1637 = vpack.c.b16 %v1622, %v1621
      %v1638 = vpack.c.b16 %v1624, %v1623
      %v1639 = vpack.c.b16 %v1626, %v1625
      %v1640 = vpack.c.b16 %v1628, %v1627
      %v1641 = vpack.c.b16 %v1630, %v1629
      %v1642 = vpack.c.b16 %v1632, %v1631
      %v1643 = vpack.c.b16 %v1634, %v1633
      %v1644 = vpack.c.b16 %v1636, %v1635
      %1653 = vmatprep.subr.bf16.mxu0 0
      %1654 = vmatpush1.bf16.msra.mxu0 %v1637
      %1655 = vmatprep.subr.bf16.mxu0 0
      %1656 = vmatpush1.bf16.msra.mxu0 %v1638
      %1657 = vmatprep.subr.bf16.mxu0 0
      %1658 = vmatpush1.bf16.msra.mxu0 %v1639
      %1659 = vmatprep.subr.bf16.mxu0 0
      %1660 = vmatpush1.bf16.msra.mxu0 %v1640
      %1661 = vmatprep.subr.bf16.mxu0 0
      %1662 = vmatpush1.bf16.msra.mxu0 %v1641
      %1663 = vmatprep.subr.bf16.mxu0 0
      %1664 = vmatpush1.bf16.msra.mxu0 %v1642
      %1665 = vmatprep.subr.bf16.mxu0 0
      %1666 = vmatpush1.bf16.msra.mxu0 %v1643
      %1667 = vmatprep.subr.bf16.mxu0 0
      %1668 = vmatpush1.bf16.msra.mxu0 %v1644
      %1669 = vmatprep.subr.bf16.mxu0 0
      %1670 = vmatpush1.bf16.msra.mxu0 0
      %1671 = vmatprep.subr.bf16.mxu0 0
      %1672 = vmatpush1.bf16.msra.mxu0 0
      %1673 = vmatprep.subr.bf16.mxu0 0
      %1674 = vmatpush1.bf16.msra.mxu0 0
      %1675 = vmatprep.subr.bf16.mxu0 0
      %1676 = vmatpush1.bf16.msra.mxu0 0
      %1677 = vmatprep.subr.bf16.mxu0 0
      %1678 = vmatpush1.bf16.msra.mxu0 0
      %1679 = vmatprep.subr.bf16.mxu0 0
      %1680 = vmatpush1.bf16.msra.mxu0 0
      %1681 = vmatprep.subr.bf16.mxu0 0
      %1682 = vmatpush1.bf16.msra.mxu0 0
      %1683 = vmatprep.subr.bf16.mxu0 0
      %1684 = vmatpush1.bf16.msra.mxu0 0
      %1685 = vmatprep.mubr.bf16.mxu0 0
      %1686 = vmatmul.mubr.bf16.gmra.mrb[0].mxu0 %v1587
      %v1687 = vpop.f32.mrb[0].mxu0
      %v1688 = vadd.f32 %v1551, %v1687
      %v1689 = vpop.f32.mrb[0].mxu0
      %v1690 = vpop.f32.mrb[0].mxu0
      %v1691 = vadd.f32 %v1551, %v1690
      %v1692 = vpop.f32.mrb[0].mxu0
      %1693 = vmatprep.mubr.bf16.mxu0 0
      %1694 = vmatmul.mubr.bf16.gmra.mrb[0].mxu0 %v1588
      %v1695 = vpop.f32.mrb[0].mxu0
      %v1696 = vadd.f32 %v1551, %v1695
      %v1697 = vpop.f32.mrb[0].mxu0
      %v1698 = vpop.f32.mrb[0].mxu0
      %v1699 = vadd.f32 %v1551, %v1698
      %v1700 = vpop.f32.mrb[0].mxu0
      %1701 = vmatprep.mubr.bf16.mxu0 0
      %1702 = vmatmul.mubr.bf16.gmra.mrb[0].mxu0 %v1589
      %v1703 = vpop.f32.mrb[0].mxu0
      %v1704 = vadd.f32 %v1551, %v1703
      %v1705 = vpop.f32.mrb[0].mxu0
      %v1706 = vpop.f32.mrb[0].mxu0
      %v1707 = vadd.f32 %v1551, %v1706
      %v1708 = vpop.f32.mrb[0].mxu0
      %1709 = vmatprep.mubr.bf16.mxu0 0
      %1710 = vmatmul.mubr.bf16.gmra.mrb[0].mxu0 %v1590
      %v1711 = vpop.f32.mrb[0].mxu0
      %v1712 = vadd.f32 %v1551, %v1711
      %v1713 = vpop.f32.mrb[0].mxu0
      %v1714 = vpop.f32.mrb[0].mxu0
      %v1715 = vadd.f32 %v1551, %v1714
      %v1716 = vpop.f32.mrb[0].mxu0
      %1717 = vmatprep.mubr.bf16.mxu0 0
      %1718 = vmatmul.mubr.bf16.gmra.mrb[0].mxu0 %v1591
      %v1719 = vpop.f32.mrb[0].mxu0
      %v1720 = vadd.f32 %v1551, %v1719
      %v1721 = vpop.f32.mrb[0].mxu0
      %v1722 = vpop.f32.mrb[0].mxu0
      %v1723 = vadd.f32 %v1551, %v1722
      %v1724 = vpop.f32.mrb[0].mxu0
      %1725 = vmatprep.mubr.bf16.mxu0 0
      %1726 = vmatmul.mubr.bf16.gmra.mrb[0].mxu0 %v1592
      %v1727 = vpop.f32.mrb[0].mxu0
      %v1728 = vadd.f32 %v1551, %v1727
      %v1729 = vpop.f32.mrb[0].mxu0
      %v1730 = vpop.f32.mrb[0].mxu0
      %v1731 = vadd.f32 %v1551, %v1730
      %v1732 = vpop.f32.mrb[0].mxu0
      %1733 = vmatprep.mubr.bf16.mxu0 0
      %1734 = vmatmul.mubr.bf16.gmra.mrb[0].mxu0 %v1593
      %v1735 = vpop.f32.mrb[0].mxu0
      %v1736 = vadd.f32 %v1551, %v1735
      %v1737 = vpop.f32.mrb[0].mxu0
      %v1738 = vpop.f32.mrb[0].mxu0
      %v1739 = vadd.f32 %v1551, %v1738
      %v1740 = vpop.f32.mrb[0].mxu0
      %1741 = vmatprep.mubr.bf16.mxu0 0
      %1742 = vmatmul.mubr.bf16.gmra.mrb[0].mxu0 %v1594
      %v1743 = vpop.f32.mrb[0].mxu0
      %v1744 = vadd.f32 %v1551, %v1743
      %v1745 = vpop.f32.mrb[0].mxu0
      %v1746 = vpop.f32.mrb[0].mxu0
      %v1747 = vadd.f32 %v1551, %v1746
      %v1748 = vpop.f32.mrb[0].mxu0
      %1749 = vmatprep.mubr.bf16.mxu0 0
      %1750 = vmatmul.mubr.bf16.gmra.mrb[0].mxu0 %v1595
      %v1751 = vpop.f32.mrb[0].mxu0
      %v1752 = vadd.f32 %v1551, %v1751
      %v1753 = vpop.f32.mrb[0].mxu0
      %v1754 = vpop.f32.mrb[0].mxu0
      %v1755 = vpop.f32.mrb[0].mxu0
      %1756 = vdwg.mxu0
      %1774 = vrot.lane.b32.xlu0 %v1688, 112
      %v1775 = vpop.permute.xlu0 %1774
      %1776 = vrot.lane.b32.xlu0 %v1691, 112
      %v1777 = vpop.permute.xlu0 %1776
      %1778 = vrot.lane.b32.xlu0 %v1696, 112
      %v1779 = vpop.permute.xlu0 %1778
      %1780 = vrot.lane.b32.xlu0 %v1699, 112
      %v1781 = vpop.permute.xlu0 %1780
      %1782 = vrot.lane.b32.xlu0 %v1704, 112
      %v1783 = vpop.permute.xlu0 %1782
      %1784 = vrot.lane.b32.xlu0 %v1707, 112
      %v1785 = vpop.permute.xlu0 %1784
      %1786 = vrot.lane.b32.xlu0 %v1712, 112
      %v1787 = vpop.permute.xlu0 %1786
      %1788 = vrot.lane.b32.xlu0 %v1715, 112
      %v1789 = vpop.permute.xlu0 %1788
      %1790 = vrot.lane.b32.xlu0 %v1720, 112
      %v1791 = vpop.permute.xlu0 %1790
      %1792 = vrot.lane.b32.xlu0 %v1723, 112
      %v1793 = vpop.permute.xlu0 %1792
      %1794 = vrot.lane.b32.xlu0 %v1728, 112
      %v1795 = vpop.permute.xlu0 %1794
      %1796 = vrot.lane.b32.xlu0 %v1731, 112
      %v1797 = vpop.permute.xlu0 %1796
      %1798 = vrot.lane.b32.xlu0 %v1736, 112
      %v1799 = vpop.permute.xlu0 %1798
      %1800 = vrot.lane.b32.xlu0 %v1739, 112
      %v1801 = vpop.permute.xlu0 %1800
      %1802 = vrot.lane.b32.xlu0 %v1744, 112
      %v1803 = vpop.permute.xlu0 %1802
      %1804 = vrot.lane.b32.xlu0 %v1747, 112
      %v1805 = vpop.permute.xlu0 %1804
      %1806 = vrot.lane.b32.xlu0 %v1752, 112
      %v1807 = vpop.permute.xlu0 %1806
      %vm1808 = vcmask 130048
      %v1809 = vsel %vm1808, %v1688, 0
      %v1811 = vsel %vm1808, %v1691, 0
      %v1813 = vsel %vm1808, %v1696, 0
      %v1815 = vsel %vm1808, %v1699, 0
      %v1817 = vsel %vm1808, %v1704, 0
      %v1819 = vsel %vm1808, %v1707, 0
      %v1821 = vsel %vm1808, %v1712, 0
      %v1823 = vsel %vm1808, %v1715, 0
      %v1825 = vsel %vm1808, %v1720, 0
      %v1827 = vsel %vm1808, %v1723, 0
      %v1829 = vsel %vm1808, %v1728, 0
      %v1831 = vsel %vm1808, %v1731, 0
      %v1833 = vsel %vm1808, %v1736, 0
      %v1835 = vsel %vm1808, %v1739, 0
      %v1837 = vsel %vm1808, %v1744, 0
      %v1839 = vsel %vm1808, %v1747, 0
      %v1841 = vsel %vm1808, %v1752, 0
      %v1843 = vsel %vm1808, %v1775, 0
      %v1845 = vsel %vm1808, %v1777, 0
      %v1847 = vsel %vm1808, %v1779, 0
      %v1849 = vsel %vm1808, %v1781, 0
      %v1851 = vsel %vm1808, %v1783, 0
      %v1853 = vsel %vm1808, %v1785, 0
      %v1855 = vsel %vm1808, %v1787, 0
      %v1857 = vsel %vm1808, %v1789, 0
      %v1859 = vsel %vm1808, %v1791, 0
      %v1861 = vsel %vm1808, %v1793, 0
      %v1863 = vsel %vm1808, %v1795, 0
      %v1865 = vsel %vm1808, %v1797, 0
      %v1867 = vsel %vm1808, %v1799, 0
      %v1869 = vsel %vm1808, %v1801, 0
      %v1871 = vsel %vm1808, %v1803, 0
      %v1873 = vsel %vm1808, %v1805, 0
      %v1875 = vsel %vm1808, %v1807, 0
      %1877 = vmatprep.subr.mxu0 0.0
      %1878 = vmatpush1.xpose.msra.mxu0 %v1843
      %1879 = vmatprep.subr.mxu0 0.0
      %1880 = vmatpush1.xpose.msra.mxu0 %v1845
      %1881 = vmatprep.subr.mxu0 0.0
      %1882 = vmatpush1.xpose.msra.mxu0 %v1847
      %1883 = vmatprep.subr.mxu0 0.0
      %1884 = vmatpush1.xpose.msra.mxu0 %v1849
      %1885 = vmatprep.subr.mxu0 0.0
      %1886 = vmatpush1.xpose.msra.mxu0 %v1851
      %1887 = vmatprep.subr.mxu0 0.0
      %1888 = vmatpush1.xpose.msra.mxu0 %v1853
      %1889 = vmatprep.subr.mxu0 0.0
      %1890 = vmatpush1.xpose.msra.mxu0 %v1855
      %1891 = vmatprep.subr.mxu0 0.0
      %1892 = vmatpush1.xpose.msra.mxu0 %v1857
      %1893 = vmatprep.subr.mxu0 0.0
      %1894 = vmatpush1.xpose.msra.mxu0 %v1859
      %1895 = vmatprep.subr.mxu0 0.0
      %1896 = vmatpush1.xpose.msra.mxu0 %v1861
      %1897 = vmatprep.subr.mxu0 0.0
      %1898 = vmatpush1.xpose.msra.mxu0 %v1863
      %1899 = vmatprep.subr.mxu0 0.0
      %1900 = vmatpush1.xpose.msra.mxu0 %v1865
      %1901 = vmatprep.subr.mxu0 0.0
      %1902 = vmatpush1.xpose.msra.mxu0 %v1867
      %1903 = vmatprep.subr.mxu0 0.0
      %1904 = vmatpush1.xpose.msra.mxu0 %v1869
      %1905 = vmatprep.subr.mxu0 0.0
      %1906 = vmatpush1.xpose.msra.mxu0 %v1871
      %1907 = vmatprep.subr.mxu0 0.0
      %1908 = vmatpush1.xpose.msra.mxu0 %v1873
      %1909 = vmatprep.subr.mxu0 0.0
      %1910 = vmatpush1.xpose.msra.mxu0 %v1875
      %1911 = vmatprep.subr.mxu0 0.0
      %1912 = vmatpush1.xpose.msra.mxu0 0.0
      %1913 = vmatprep.subr.mxu0 0.0
      %1914 = vmatpush1.xpose.msra.mxu0 0.0
      %1915 = vmatprep.subr.mxu0 0.0
      %1916 = vmatpush1.xpose.msra.mxu0 0.0
      %1917 = vmatprep.subr.mxu0 0.0
      %1918 = vmatpush1.xpose.msra.mxu0 0.0
      %1919 = vmatprep.subr.mxu0 0.0
      %1920 = vmatpush1.xpose.msra.mxu0 0.0
      %1921 = vmatprep.subr.mxu0 0.0
      %1922 = vmatpush1.xpose.msra.mxu0 0.0
      %1923 = vmatprep.subr.mxu0 0.0
      %1924 = vmatpush1.xpose.msra.mxu0 0.0
      %1925 = vmatprep.subr.mxu0 0.0
      %1926 = vmatpush1.xpose.msra.mxu0 0.0
      %1927 = vmatprep.subr.mxu0 0.0
      %1928 = vmatpush1.xpose.msra.mxu0 0.0
      %1929 = vmatprep.subr.mxu0 0.0
      %1930 = vmatpush1.xpose.msra.mxu0 0.0
      %1931 = vmatprep.subr.mxu0 0.0
      %1932 = vmatpush1.xpose.msra.mxu0 0.0
      %1933 = vmatprep.subr.mxu0 0.0
      %1934 = vmatpush1.xpose.msra.mxu0 0.0
      %1935 = vmatprep.subr.mxu0 0.0
      %1936 = vmatpush1.xpose.msra.mxu0 0.0
      %1937 = vmatprep.subr.mxu0 0.0
      %1938 = vmatpush1.xpose.msra.mxu0 0.0
      %1939 = vmatprep.subr.mxu0 0.0
      %1940 = vmatpush1.xpose.msra.mxu0 0.0
      %1941 = vmatprep.mubr.f32.mxu0 0.0
      %1942 = vmatmul.mubr.f32.gmra.mrb[0].mxu0 %v1809
      %v1943 = vpop.f32.mrb[0].mxu0
      %v1944 = vadd.f32 0.0, %v1943
      %v1945 = vpop.f32.mrb[0].mxu0
      %v1946 = vadd.f32 0.0, %v1945
      %1947 = vmatprep.mubr.f32.mxu0 0.0
      %1948 = vmatmul.mubr.f32.gmra.mrb[0].mxu0 %v1811
      %v1949 = vpop.f32.mrb[0].mxu0
      %v1950 = vadd.f32 0.0, %v1949
      %v1951 = vpop.f32.mrb[0].mxu0
      %v1952 = vadd.f32 0.0, %v1951
      %1953 = vmatprep.mubr.f32.mxu0 0.0
      %1954 = vmatmul.mubr.f32.gmra.mrb[0].mxu0 %v1813
      %v1955 = vpop.f32.mrb[0].mxu0
      %v1956 = vadd.f32 0.0, %v1955
      %v1957 = vpop.f32.mrb[0].mxu0
      %v1958 = vadd.f32 0.0, %v1957
      %1959 = vmatprep.mubr.f32.mxu0 0.0
      %1960 = vmatmul.mubr.f32.gmra.mrb[0].mxu0 %v1815
      %v1961 = vpop.f32.mrb[0].mxu0
      %v1962 = vadd.f32 0.0, %v1961
      %v1963 = vpop.f32.mrb[0].mxu0
      %v1964 = vadd.f32 0.0, %v1963
      %1965 = vmatprep.mubr.f32.mxu0 0.0
      %1966 = vmatmul.mubr.f32.gmra.mrb[0].mxu0 %v1817
      %v1967 = vpop.f32.mrb[0].mxu0
      %v1968 = vadd.f32 0.0, %v1967
      %v1969 = vpop.f32.mrb[0].mxu0
      %v1970 = vadd.f32 0.0, %v1969
      %1971 = vmatprep.mubr.f32.mxu0 0.0
      %1972 = vmatmul.mubr.f32.gmra.mrb[0].mxu0 %v1819
      %v1973 = vpop.f32.mrb[0].mxu0
      %v1974 = vadd.f32 0.0, %v1973
      %v1975 = vpop.f32.mrb[0].mxu0
      %v1976 = vadd.f32 0.0, %v1975
      %1977 = vmatprep.mubr.f32.mxu0 0.0
      %1978 = vmatmul.mubr.f32.gmra.mrb[0].mxu0 %v1821
      %v1979 = vpop.f32.mrb[0].mxu0
      %v1980 = vadd.f32 0.0, %v1979
      %v1981 = vpop.f32.mrb[0].mxu0
      %v1982 = vadd.f32 0.0, %v1981
      %1983 = vmatprep.mubr.f32.mxu0 0.0
      %1984 = vmatmul.mubr.f32.gmra.mrb[0].mxu0 %v1823
      %v1985 = vpop.f32.mrb[0].mxu0
      %v1986 = vadd.f32 0.0, %v1985
      %v1987 = vpop.f32.mrb[0].mxu0
      %v1988 = vadd.f32 0.0, %v1987
      %1989 = vmatprep.mubr.f32.mxu0 0.0
      %1990 = vmatmul.mubr.f32.gmra.mrb[0].mxu0 %v1825
      %v1991 = vpop.f32.mrb[0].mxu0
      %v1992 = vadd.f32 0.0, %v1991
      %v1993 = vpop.f32.mrb[0].mxu0
      %v1994 = vadd.f32 0.0, %v1993
      %1995 = vmatprep.mubr.f32.mxu0 0.0
      %1996 = vmatmul.mubr.f32.gmra.mrb[0].mxu0 %v1827
      %v1997 = vpop.f32.mrb[0].mxu0
      %v1998 = vadd.f32 0.0, %v1997
      %v1999 = vpop.f32.mrb[0].mxu0
      %v2000 = vadd.f32 0.0, %v1999
      %2001 = vmatprep.mubr.f32.mxu0 0.0
      %2002 = vmatmul.mubr.f32.gmra.mrb[0].mxu0 %v1829
      %v2003 = vpop.f32.mrb[0].mxu0
      %v2004 = vadd.f32 0.0, %v2003
      %v2005 = vpop.f32.mrb[0].mxu0
      %v2006 = vadd.f32 0.0, %v2005
      %2007 = vmatprep.mubr.f32.mxu0 0.0
      %2008 = vmatmul.mubr.f32.gmra.mrb[0].mxu0 %v1831
      %v2009 = vpop.f32.mrb[0].mxu0
      %v2010 = vadd.f32 0.0, %v2009
      %v2011 = vpop.f32.mrb[0].mxu0
      %v2012 = vadd.f32 0.0, %v2011
      %2013 = vmatprep.mubr.f32.mxu0 0.0
      %2014 = vmatmul.mubr.f32.gmra.mrb[0].mxu0 %v1833
      %v2015 = vpop.f32.mrb[0].mxu0
      %v2016 = vadd.f32 0.0, %v2015
      %v2017 = vpop.f32.mrb[0].mxu0
      %v2018 = vadd.f32 0.0, %v2017
      %2019 = vmatprep.mubr.f32.mxu0 0.0
      %2020 = vmatmul.mubr.f32.gmra.mrb[0].mxu0 %v1835
      %v2021 = vpop.f32.mrb[0].mxu0
      %v2022 = vadd.f32 0.0, %v2021
      %v2023 = vpop.f32.mrb[0].mxu0
      %v2024 = vadd.f32 0.0, %v2023
      %2025 = vmatprep.mubr.f32.mxu0 0.0
      %2026 = vmatmul.mubr.f32.gmra.mrb[0].mxu0 %v1837
      %v2027 = vpop.f32.mrb[0].mxu0
      %v2028 = vadd.f32 0.0, %v2027
      %v2029 = vpop.f32.mrb[0].mxu0
      %v2030 = vadd.f32 0.0, %v2029
      %2031 = vmatprep.mubr.f32.mxu0 0.0
      %2032 = vmatmul.mubr.f32.gmra.mrb[0].mxu0 %v1839
      %v2033 = vpop.f32.mrb[0].mxu0
      %v2034 = vadd.f32 0.0, %v2033
      %v2035 = vpop.f32.mrb[0].mxu0
      %v2036 = vadd.f32 0.0, %v2035
      %2037 = vmatprep.mubr.f32.mxu0 0.0
      %2038 = vmatmul.mubr.f32.gmra.mrb[0].mxu0 %v1841
      %v2039 = vpop.f32.mrb[0].mxu0
      %v2040 = vadd.f32 0.0, %v2039
      %v2041 = vpop.f32.mrb[0].mxu0
      %v2042 = vadd.f32 0.0, %v2041
      %2043 = vdwg.mxu0
      %v2044 = vmul.f32 %v1944, 0.25
      %v2045 = vmul.f32 %v1946, 0.25
      %v2046 = vmul.f32 %v1950, 0.25
      %v2047 = vmul.f32 %v1952, 0.25
      %v2048 = vmul.f32 %v1956, 0.25
      %v2049 = vmul.f32 %v1958, 0.25
      %v2050 = vmul.f32 %v1962, 0.25
      %v2051 = vmul.f32 %v1964, 0.25
      %v2052 = vmul.f32 %v1968, 0.25
      %v2053 = vmul.f32 %v1970, 0.25
      %v2054 = vmul.f32 %v1974, 0.25
      %v2055 = vmul.f32 %v1976, 0.25
      %v2056 = vmul.f32 %v1980, 0.25
      %v2057 = vmul.f32 %v1982, 0.25
      %v2058 = vmul.f32 %v1986, 0.25
      %v2059 = vmul.f32 %v1988, 0.25
      %v2060 = vmul.f32 %v1992, 0.25
      %v2061 = vmul.f32 %v1994, 0.25
      %v2062 = vmul.f32 %v1998, 0.25
      %v2063 = vmul.f32 %v2000, 0.25
      %v2064 = vmul.f32 %v2004, 0.25
      %v2065 = vmul.f32 %v2006, 0.25
      %v2066 = vmul.f32 %v2010, 0.25
      %v2067 = vmul.f32 %v2012, 0.25
      %v2068 = vmul.f32 %v2016, 0.25
      %v2069 = vmul.f32 %v2018, 0.25
      %v2070 = vmul.f32 %v2022, 0.25
      %v2071 = vmul.f32 %v2024, 0.25
      %v2072 = vmul.f32 %v2028, 0.25
      %v2073 = vmul.f32 %v2030, 0.25
      %v2074 = vmul.f32 %v2034, 0.25
      %v2075 = vmul.f32 %v2036, 0.25
      %v2076 = vmul.f32 %v2040, 0.25
      %v2077 = vmul.f32 %v2042, 0.25
      %v2078 = vsel %vm1479, -1e+30, %v2044
      %v2079 = vsel %vm1480, -1e+30, %v2045
      %v2080 = vsel %vm1481, -1e+30, %v2046
      %v2081 = vsel %vm1482, -1e+30, %v2047
      %v2082 = vsel %vm1483, -1e+30, %v2048
      %v2083 = vsel %vm1484, -1e+30, %v2049
      %v2084 = vsel %vm1485, -1e+30, %v2050
      %v2085 = vsel %vm1486, -1e+30, %v2051
      %v2086 = vsel %vm1487, -1e+30, %v2052
      %v2087 = vsel %vm1488, -1e+30, %v2053
      %v2088 = vsel %vm1489, -1e+30, %v2054
      %v2089 = vsel %vm1490, -1e+30, %v2055
      %v2090 = vsel %vm1491, -1e+30, %v2056
      %v2091 = vsel %vm1492, -1e+30, %v2057
      %v2092 = vsel %vm1493, -1e+30, %v2058
      %v2093 = vsel %vm1494, -1e+30, %v2059
      %v2094 = vsel %vm1495, -1e+30, %v2060
      %v2095 = vsel %vm1496, -1e+30, %v2061
      %v2096 = vsel %vm1497, -1e+30, %v2062
      %v2097 = vsel %vm1498, -1e+30, %v2063
      %v2098 = vsel %vm1499, -1e+30, %v2064
      %v2099 = vsel %vm1500, -1e+30, %v2065
      %v2100 = vsel %vm1501, -1e+30, %v2066
      %v2101 = vsel %vm1502, -1e+30, %v2067
      %v2102 = vsel %vm1503, -1e+30, %v2068
      %v2103 = vsel %vm1504, -1e+30, %v2069
      %v2104 = vsel %vm1505, -1e+30, %v2070
      %v2105 = vsel %vm1506, -1e+30, %v2071
      %v2106 = vsel %vm1507, -1e+30, %v2072
      %v2107 = vsel %vm1508, -1e+30, %v2073
      %v2108 = vsel %vm1509, -1e+30, %v2074
      %v2109 = vsel %vm1510, -1e+30, %v2075
      %v2110 = vsel %vm1511, -1e+30, %v2076
      %v2111 = vsel %vm1512, -1e+30, %v2077
      %vm2112 = vcmask 64512
      %v2113 = vsel %vm2112, %v2079, -inf
      %v2114 = vmax.f32 %v2078, %v2113
      %2115 = vmax.xlane.f32.xlu0 %v2114
      %v2116 = vpop.xlane.xlu0 %2115
      %v2117 = vsel %vm2112, %v2081, -inf
      %v2118 = vmax.f32 %v2080, %v2117
      %2119 = vmax.xlane.f32.xlu0 %v2118
      %v2120 = vpop.xlane.xlu0 %2119
      %v2121 = vsel %vm2112, %v2083, -inf
      %v2122 = vmax.f32 %v2082, %v2121
      %2123 = vmax.xlane.f32.xlu0 %v2122
      %v2124 = vpop.xlane.xlu0 %2123
      %v2125 = vsel %vm2112, %v2085, -inf
      %v2126 = vmax.f32 %v2084, %v2125
      %2127 = vmax.xlane.f32.xlu0 %v2126
      %v2128 = vpop.xlane.xlu0 %2127
      %v2129 = vsel %vm2112, %v2087, -inf
      %v2130 = vmax.f32 %v2086, %v2129
      %2131 = vmax.xlane.f32.xlu0 %v2130
      %v2132 = vpop.xlane.xlu0 %2131
      %v2133 = vsel %vm2112, %v2089, -inf
      %v2134 = vmax.f32 %v2088, %v2133
      %2135 = vmax.xlane.f32.xlu0 %v2134
      %v2136 = vpop.xlane.xlu0 %2135
      %v2137 = vsel %vm2112, %v2091, -inf
      %v2138 = vmax.f32 %v2090, %v2137
      %2139 = vmax.xlane.f32.xlu0 %v2138
      %v2140 = vpop.xlane.xlu0 %2139
      %v2141 = vsel %vm2112, %v2093, -inf
      %v2142 = vmax.f32 %v2092, %v2141
      %2143 = vmax.xlane.f32.xlu0 %v2142
      %v2144 = vpop.xlane.xlu0 %2143
      %v2145 = vsel %vm2112, %v2095, -inf
      %v2146 = vmax.f32 %v2094, %v2145
      %2147 = vmax.xlane.f32.xlu0 %v2146
      %v2148 = vpop.xlane.xlu0 %2147
      %v2149 = vsel %vm2112, %v2097, -inf
      %v2150 = vmax.f32 %v2096, %v2149
      %2151 = vmax.xlane.f32.xlu0 %v2150
      %v2152 = vpop.xlane.xlu0 %2151
      %v2153 = vsel %vm2112, %v2099, -inf
      %v2154 = vmax.f32 %v2098, %v2153
      %2155 = vmax.xlane.f32.xlu0 %v2154
      %v2156 = vpop.xlane.xlu0 %2155
      %v2157 = vsel %vm2112, %v2101, -inf
      %v2158 = vmax.f32 %v2100, %v2157
      %2159 = vmax.xlane.f32.xlu0 %v2158
      %v2160 = vpop.xlane.xlu0 %2159
      %v2161 = vsel %vm2112, %v2103, -inf
      %v2162 = vmax.f32 %v2102, %v2161
      %2163 = vmax.xlane.f32.xlu0 %v2162
      %v2164 = vpop.xlane.xlu0 %2163
      %v2165 = vsel %vm2112, %v2105, -inf
      %v2166 = vmax.f32 %v2104, %v2165
      %2167 = vmax.xlane.f32.xlu0 %v2166
      %v2168 = vpop.xlane.xlu0 %2167
      %v2169 = vsel %vm2112, %v2107, -inf
      %v2170 = vmax.f32 %v2106, %v2169
      %2171 = vmax.xlane.f32.xlu0 %v2170
      %v2172 = vpop.xlane.xlu0 %2171
      %v2173 = vsel %vm2112, %v2109, -inf
      %v2174 = vmax.f32 %v2108, %v2173
      %2175 = vmax.xlane.f32.xlu0 %v2174
      %v2176 = vpop.xlane.xlu0 %2175
      %v2177 = vsel %vm2112, %v2111, -inf
      %v2178 = vmax.f32 %v2110, %v2177
      %2179 = vmax.xlane.f32.xlu0 %v2178
      %v2180 = vpop.xlane.xlu0 %2179
      %v2181 = vsub.f32 %v2078, %v2116
      %v2182 = vsub.f32 %v2079, %v2116
      %v2183 = vsub.f32 %v2080, %v2120
      %v2184 = vsub.f32 %v2081, %v2120
      %v2185 = vsub.f32 %v2082, %v2124
      %v2186 = vsub.f32 %v2083, %v2124
      %v2187 = vsub.f32 %v2084, %v2128
      %v2188 = vsub.f32 %v2085, %v2128
      %v2189 = vsub.f32 %v2086, %v2132
      %v2190 = vsub.f32 %v2087, %v2132
      %v2191 = vsub.f32 %v2088, %v2136
      %v2192 = vsub.f32 %v2089, %v2136
      %v2193 = vsub.f32 %v2090, %v2140
      %v2194 = vsub.f32 %v2091, %v2140
      %v2195 = vsub.f32 %v2092, %v2144
      %v2196 = vsub.f32 %v2093, %v2144
      %v2197 = vsub.f32 %v2094, %v2148
      %v2198 = vsub.f32 %v2095, %v2148
      %v2199 = vsub.f32 %v2096, %v2152
      %v2200 = vsub.f32 %v2097, %v2152
      %v2201 = vsub.f32 %v2098, %v2156
      %v2202 = vsub.f32 %v2099, %v2156
      %v2203 = vsub.f32 %v2100, %v2160
      %v2204 = vsub.f32 %v2101, %v2160
      %v2205 = vsub.f32 %v2102, %v2164
      %v2206 = vsub.f32 %v2103, %v2164
      %v2207 = vsub.f32 %v2104, %v2168
      %v2208 = vsub.f32 %v2105, %v2168
      %v2209 = vsub.f32 %v2106, %v2172
      %v2210 = vsub.f32 %v2107, %v2172
      %v2211 = vsub.f32 %v2108, %v2176
      %v2212 = vsub.f32 %v2109, %v2176
      %v2213 = vsub.f32 %v2110, %v2180
      %v2214 = vsub.f32 %v2111, %v2180
      %v2215 = vmul.f32 %v2181, 1.442695
      %v2216 = vpow.pop %v2215
      %v2217 = vmul.f32 %v2182, 1.442695
      %v2218 = vpow.pop %v2217
      %v2219 = vmul.f32 %v2183, 1.442695
      %v2220 = vpow.pop %v2219
      %v2221 = vmul.f32 %v2184, 1.442695
      %v2222 = vpow.pop %v2221
      %v2223 = vmul.f32 %v2185, 1.442695
      %v2224 = vpow.pop %v2223
      %v2225 = vmul.f32 %v2186, 1.442695
      %v2226 = vpow.pop %v2225
      %v2227 = vmul.f32 %v2187, 1.442695
      %v2228 = vpow.pop %v2227
      %v2229 = vmul.f32 %v2188, 1.442695
      %v2230 = vpow.pop %v2229
      %v2231 = vmul.f32 %v2189, 1.442695
      %v2232 = vpow.pop %v2231
      %v2233 = vmul.f32 %v2190, 1.442695
      %v2234 = vpow.pop %v2233
      %v2235 = vmul.f32 %v2191, 1.442695
      %v2236 = vpow.pop %v2235
      %v2237 = vmul.f32 %v2192, 1.442695
      %v2238 = vpow.pop %v2237
      %v2239 = vmul.f32 %v2193, 1.442695
      %v2240 = vpow.pop %v2239
      %v2241 = vmul.f32 %v2194, 1.442695
      %v2242 = vpow.pop %v2241
      %v2243 = vmul.f32 %v2195, 1.442695
      %v2244 = vpow.pop %v2243
      %v2245 = vmul.f32 %v2196, 1.442695
      %v2246 = vpow.pop %v2245
      %v2247 = vmul.f32 %v2197, 1.442695
      %v2248 = vpow.pop %v2247
      %v2249 = vmul.f32 %v2198, 1.442695
      %v2250 = vpow.pop %v2249
      %v2251 = vmul.f32 %v2199, 1.442695
      %v2252 = vpow.pop %v2251
      %v2253 = vmul.f32 %v2200, 1.442695
      %v2254 = vpow.pop %v2253
      %v2255 = vmul.f32 %v2201, 1.442695
      %v2256 = vpow.pop %v2255
      %v2257 = vmul.f32 %v2202, 1.442695
      %v2258 = vpow.pop %v2257
      %v2259 = vmul.f32 %v2203, 1.442695
      %v2260 = vpow.pop %v2259
      %v2261 = vmul.f32 %v2204, 1.442695
      %v2262 = vpow.pop %v2261
      %v2263 = vmul.f32 %v2205, 1.442695
      %v2264 = vpow.pop %v2263
      %v2265 = vmul.f32 %v2206, 1.442695
      %v2266 = vpow.pop %v2265
      %v2267 = vmul.f32 %v2207, 1.442695
      %v2268 = vpow.pop %v2267
      %v2269 = vmul.f32 %v2208, 1.442695
      %v2270 = vpow.pop %v2269
      %v2271 = vmul.f32 %v2209, 1.442695
      %v2272 = vpow.pop %v2271
      %v2273 = vmul.f32 %v2210, 1.442695
      %v2274 = vpow.pop %v2273
      %v2275 = vmul.f32 %v2211, 1.442695
      %v2276 = vpow.pop %v2275
      %v2277 = vmul.f32 %v2212, 1.442695
      %v2278 = vpow.pop %v2277
      %v2279 = vmul.f32 %v2213, 1.442695
      %v2280 = vpow.pop %v2279
      %v2281 = vmul.f32 %v2214, 1.442695
      %v2282 = vpow.pop %v2281
      %v2283 = vsel %vm2112, %v2218, 0.0
      %v2284 = vadd.f32 %v2216, %v2283
      %2285 = vadd.xlane.f32.xlu0 %v2284
      %v2286 = vpop.xlane.xlu0 %2285
      %v2287 = vsel %vm2112, %v2222, 0.0
      %v2288 = vadd.f32 %v2220, %v2287
      %2289 = vadd.xlane.f32.xlu0 %v2288
      %v2290 = vpop.xlane.xlu0 %2289
      %v2291 = vsel %vm2112, %v2226, 0.0
      %v2292 = vadd.f32 %v2224, %v2291
      %2293 = vadd.xlane.f32.xlu0 %v2292
      %v2294 = vpop.xlane.xlu0 %2293
      %v2295 = vsel %vm2112, %v2230, 0.0
      %v2296 = vadd.f32 %v2228, %v2295
      %2297 = vadd.xlane.f32.xlu0 %v2296
      %v2298 = vpop.xlane.xlu0 %2297
      %v2299 = vsel %vm2112, %v2234, 0.0
      %v2300 = vadd.f32 %v2232, %v2299
      %2301 = vadd.xlane.f32.xlu0 %v2300
      %v2302 = vpop.xlane.xlu0 %2301
      %v2303 = vsel %vm2112, %v2238, 0.0
      %v2304 = vadd.f32 %v2236, %v2303
      %2305 = vadd.xlane.f32.xlu0 %v2304
      %v2306 = vpop.xlane.xlu0 %2305
      %v2307 = vsel %vm2112, %v2242, 0.0
      %v2308 = vadd.f32 %v2240, %v2307
      %2309 = vadd.xlane.f32.xlu0 %v2308
      %v2310 = vpop.xlane.xlu0 %2309
      %v2311 = vsel %vm2112, %v2246, 0.0
      %v2312 = vadd.f32 %v2244, %v2311
      %2313 = vadd.xlane.f32.xlu0 %v2312
      %v2314 = vpop.xlane.xlu0 %2313
      %v2315 = vsel %vm2112, %v2250, 0.0
      %v2316 = vadd.f32 %v2248, %v2315
      %2317 = vadd.xlane.f32.xlu0 %v2316
      %v2318 = vpop.xlane.xlu0 %2317
      %v2319 = vsel %vm2112, %v2254, 0.0
      %v2320 = vadd.f32 %v2252, %v2319
      %2321 = vadd.xlane.f32.xlu0 %v2320
      %v2322 = vpop.xlane.xlu0 %2321
      %v2323 = vsel %vm2112, %v2258, 0.0
      %v2324 = vadd.f32 %v2256, %v2323
      %2325 = vadd.xlane.f32.xlu0 %v2324
      %v2326 = vpop.xlane.xlu0 %2325
      %v2327 = vsel %vm2112, %v2262, 0.0
      %v2328 = vadd.f32 %v2260, %v2327
      %2329 = vadd.xlane.f32.xlu0 %v2328
      %v2330 = vpop.xlane.xlu0 %2329
      %v2331 = vsel %vm2112, %v2266, 0.0
      %v2332 = vadd.f32 %v2264, %v2331
      %2333 = vadd.xlane.f32.xlu0 %v2332
      %v2334 = vpop.xlane.xlu0 %2333
      %v2335 = vsel %vm2112, %v2270, 0.0
      %v2336 = vadd.f32 %v2268, %v2335
      %2337 = vadd.xlane.f32.xlu0 %v2336
      %v2338 = vpop.xlane.xlu0 %2337
      %v2339 = vsel %vm2112, %v2274, 0.0
      %v2340 = vadd.f32 %v2272, %v2339
      %2341 = vadd.xlane.f32.xlu0 %v2340
      %v2342 = vpop.xlane.xlu0 %2341
      %v2343 = vsel %vm2112, %v2278, 0.0
      %v2344 = vadd.f32 %v2276, %v2343
      %2345 = vadd.xlane.f32.xlu0 %v2344
      %v2346 = vpop.xlane.xlu0 %2345
      %v2347 = vsel %vm2112, %v2282, 0.0
      %v2348 = vadd.f32 %v2280, %v2347
      %2349 = vadd.xlane.f32.xlu0 %v2348
      %v2350 = vpop.xlane.xlu0 %2349
      %v2351 = vrcp.pop %v2286
      %v2352 = vrcp.pop %v2290
      %v2353 = vrcp.pop %v2294
      %v2354 = vrcp.pop %v2298
      %v2355 = vrcp.pop %v2302
      %v2356 = vrcp.pop %v2306
      %v2357 = vrcp.pop %v2310
      %v2358 = vrcp.pop %v2314
      %v2359 = vrcp.pop %v2318
      %v2360 = vrcp.pop %v2322
      %v2361 = vrcp.pop %v2326
      %v2362 = vrcp.pop %v2330
      %v2363 = vrcp.pop %v2334
      %v2364 = vrcp.pop %v2338
      %v2365 = vrcp.pop %v2342
      %v2366 = vrcp.pop %v2346
      %v2367 = vrcp.pop %v2350
      %v2368 = vmul.f32 %v2216, %v2351
      %v2369 = vmul.f32 %v2218, %v2351
      %v2370 = vmul.f32 %v2220, %v2352
      %v2371 = vmul.f32 %v2222, %v2352
      %v2372 = vmul.f32 %v2224, %v2353
      %v2373 = vmul.f32 %v2226, %v2353
      %v2374 = vmul.f32 %v2228, %v2354
      %v2375 = vmul.f32 %v2230, %v2354
      %v2376 = vmul.f32 %v2232, %v2355
      %v2377 = vmul.f32 %v2234, %v2355
      %v2378 = vmul.f32 %v2236, %v2356
      %v2379 = vmul.f32 %v2238, %v2356
      %v2380 = vmul.f32 %v2240, %v2357
      %v2381 = vmul.f32 %v2242, %v2357
      %v2382 = vmul.f32 %v2244, %v2358
      %v2383 = vmul.f32 %v2246, %v2358
      %v2384 = vmul.f32 %v2248, %v2359
      %v2385 = vmul.f32 %v2250, %v2359
      %v2386 = vmul.f32 %v2252, %v2360
      %v2387 = vmul.f32 %v2254, %v2360
      %v2388 = vmul.f32 %v2256, %v2361
      %v2389 = vmul.f32 %v2258, %v2361
      %v2390 = vmul.f32 %v2260, %v2362
      %v2391 = vmul.f32 %v2262, %v2362
      %v2392 = vmul.f32 %v2264, %v2363
      %v2393 = vmul.f32 %v2266, %v2363
      %v2394 = vmul.f32 %v2268, %v2364
      %v2395 = vmul.f32 %v2270, %v2364
      %v2396 = vmul.f32 %v2272, %v2365
      %v2397 = vmul.f32 %v2274, %v2365
      %v2398 = vmul.f32 %v2276, %v2366
      %v2399 = vmul.f32 %v2278, %v2366
      %v2400 = vmul.f32 %v2280, %v2367
      %v2401 = vmul.f32 %v2282, %v2367
      %2402 = vrot.lane.b32.xlu0 %v1688, 96
      %v2403 = vpop.permute.xlu0 %2402
      %2404 = vrot.lane.b32.xlu0 %v1691, 96
      %v2405 = vpop.permute.xlu0 %2404
      %2406 = vrot.lane.b32.xlu0 %v1696, 96
      %v2407 = vpop.permute.xlu0 %2406
      %2408 = vrot.lane.b32.xlu0 %v1699, 96
      %v2409 = vpop.permute.xlu0 %2408
      %2410 = vrot.lane.b32.xlu0 %v1704, 96
      %v2411 = vpop.permute.xlu0 %2410
      %2412 = vrot.lane.b32.xlu0 %v1707, 96
      %v2413 = vpop.permute.xlu0 %2412
      %2414 = vrot.lane.b32.xlu0 %v1712, 96
      %v2415 = vpop.permute.xlu0 %2414
      %2416 = vrot.lane.b32.xlu0 %v1715, 96
      %v2417 = vpop.permute.xlu0 %2416
      %2418 = vrot.lane.b32.xlu0 %v1720, 96
      %v2419 = vpop.permute.xlu0 %2418
      %2420 = vrot.lane.b32.xlu0 %v1723, 96
      %v2421 = vpop.permute.xlu0 %2420
      %2422 = vrot.lane.b32.xlu0 %v1728, 96
      %v2423 = vpop.permute.xlu0 %2422
      %2424 = vrot.lane.b32.xlu0 %v1731, 96
      %v2425 = vpop.permute.xlu0 %2424
      %2426 = vrot.lane.b32.xlu0 %v1736, 96
      %v2427 = vpop.permute.xlu0 %2426
      %2428 = vrot.lane.b32.xlu0 %v1739, 96
      %v2429 = vpop.permute.xlu0 %2428
      %2430 = vrot.lane.b32.xlu0 %v1744, 96
      %v2431 = vpop.permute.xlu0 %2430
      %2432 = vrot.lane.b32.xlu0 %v1747, 96
      %v2433 = vpop.permute.xlu0 %2432
      %2434 = vrot.lane.b32.xlu0 %v1752, 96
      %v2435 = vpop.permute.xlu0 %2434
      %v2454 = vsel %vm2112, %v2369, 0
      %v2457 = vsel %vm2112, %v2371, 0
      %v2460 = vsel %vm2112, %v2373, 0
      %v2463 = vsel %vm2112, %v2375, 0
      %v2466 = vsel %vm2112, %v2377, 0
      %v2469 = vsel %vm2112, %v2379, 0
      %v2472 = vsel %vm2112, %v2381, 0
      %v2475 = vsel %vm2112, %v2383, 0
      %v2478 = vsel %vm2112, %v2385, 0
      %v2481 = vsel %vm2112, %v2387, 0
      %v2484 = vsel %vm2112, %v2389, 0
      %v2487 = vsel %vm2112, %v2391, 0
      %v2490 = vsel %vm2112, %v2393, 0
      %v2493 = vsel %vm2112, %v2395, 0
      %v2496 = vsel %vm2112, %v2397, 0
      %v2499 = vsel %vm2112, %v2399, 0
      %v2502 = vsel %vm2112, %v2401, 0
      %2504 = vmatprep.subr.mxu0 0.0
      %2505 = vmatpush1.msra.mxu0 %v2403
      %2506 = vmatprep.subr.mxu0 0.0
      %2507 = vmatpush1.msra.mxu0 %v2405
      %2508 = vmatprep.subr.mxu0 0.0
      %2509 = vmatpush1.msra.mxu0 %v2407
      %2510 = vmatprep.subr.mxu0 0.0
      %2511 = vmatpush1.msra.mxu0 %v2409
      %2512 = vmatprep.subr.mxu0 0.0
      %2513 = vmatpush1.msra.mxu0 %v2411
      %2514 = vmatprep.subr.mxu0 0.0
      %2515 = vmatpush1.msra.mxu0 %v2413
      %2516 = vmatprep.subr.mxu0 0.0
      %2517 = vmatpush1.msra.mxu0 %v2415
      %2518 = vmatprep.subr.mxu0 0.0
      %2519 = vmatpush1.msra.mxu0 %v2417
      %2520 = vmatprep.subr.mxu0 0.0
      %2521 = vmatpush1.msra.mxu0 %v2419
      %2522 = vmatprep.subr.mxu0 0.0
      %2523 = vmatpush1.msra.mxu0 %v2421
      %2524 = vmatprep.subr.mxu0 0.0
      %2525 = vmatpush1.msra.mxu0 %v2423
      %2526 = vmatprep.subr.mxu0 0.0
      %2527 = vmatpush1.msra.mxu0 %v2425
      %2528 = vmatprep.subr.mxu0 0.0
      %2529 = vmatpush1.msra.mxu0 %v2427
      %2530 = vmatprep.subr.mxu0 0.0
      %2531 = vmatpush1.msra.mxu0 %v2429
      %2532 = vmatprep.subr.mxu0 0.0
      %2533 = vmatpush1.msra.mxu0 %v2431
      %2534 = vmatprep.subr.mxu0 0.0
      %2535 = vmatpush1.msra.mxu0 %v2433
      %2536 = vmatprep.subr.mxu0 0.0
      %2537 = vmatpush1.msra.mxu0 %v2435
      %2538 = vmatprep.subr.mxu0 0.0
      %2539 = vmatpush1.msra.mxu0 0.0
      %2540 = vmatprep.subr.mxu0 0.0
      %2541 = vmatpush1.msra.mxu0 0.0
      %2542 = vmatprep.subr.mxu0 0.0
      %2543 = vmatpush1.msra.mxu0 0.0
      %2544 = vmatprep.subr.mxu0 0.0
      %2545 = vmatpush1.msra.mxu0 0.0
      %2546 = vmatprep.subr.mxu0 0.0
      %2547 = vmatpush1.msra.mxu0 0.0
      %2548 = vmatprep.subr.mxu0 0.0
      %2549 = vmatpush1.msra.mxu0 0.0
      %2550 = vmatprep.subr.mxu0 0.0
      %2551 = vmatpush1.msra.mxu0 0.0
      %2552 = vmatprep.subr.mxu0 0.0
      %2553 = vmatpush1.msra.mxu0 0.0
      %2554 = vmatprep.subr.mxu0 0.0
      %2555 = vmatpush1.msra.mxu0 0.0
      %2556 = vmatprep.subr.mxu0 0.0
      %2557 = vmatpush1.msra.mxu0 0.0
      %2558 = vmatprep.subr.mxu0 0.0
      %2559 = vmatpush1.msra.mxu0 0.0
      %2560 = vmatprep.subr.mxu0 0.0
      %2561 = vmatpush1.msra.mxu0 0.0
      %2562 = vmatprep.subr.mxu0 0.0
      %2563 = vmatpush1.msra.mxu0 0.0
      %2564 = vmatprep.subr.mxu0 0.0
      %2565 = vmatpush1.msra.mxu0 0.0
      %2566 = vmatprep.subr.mxu0 0.0
      %2567 = vmatpush1.msra.mxu0 0.0
      %2568 = vmatprep.mubr.f32.mxu0 %v2454
      %2569 = vmatmul.mubr.f32.gmra.mrb[0].mxu0 %v2368
      %v2570 = vpop.f32.mrb[0].mxu0
      %v2571 = vadd.f32 0.0, %v2570
      %v2572 = vpop.f32.mrb[0].mxu0
      %2573 = vmatprep.mubr.f32.mxu0 %v2457
      %2574 = vmatmul.mubr.f32.gmra.mrb[0].mxu0 %v2370
      %v2575 = vpop.f32.mrb[0].mxu0
      %v2576 = vadd.f32 0.0, %v2575
      %v2577 = vpop.f32.mrb[0].mxu0
      %2578 = vmatprep.mubr.f32.mxu0 %v2460
      %2579 = vmatmul.mubr.f32.gmra.mrb[0].mxu0 %v2372
      %v2580 = vpop.f32.mrb[0].mxu0
      %v2581 = vadd.f32 0.0, %v2580
      %v2582 = vpop.f32.mrb[0].mxu0
      %2583 = vmatprep.mubr.f32.mxu0 %v2463
      %2584 = vmatmul.mubr.f32.gmra.mrb[0].mxu0 %v2374
      %v2585 = vpop.f32.mrb[0].mxu0
      %v2586 = vadd.f32 0.0, %v2585
      %v2587 = vpop.f32.mrb[0].mxu0
      %2588 = vmatprep.mubr.f32.mxu0 %v2466
      %2589 = vmatmul.mubr.f32.gmra.mrb[0].mxu0 %v2376
      %v2590 = vpop.f32.mrb[0].mxu0
      %v2591 = vadd.f32 0.0, %v2590
      %v2592 = vpop.f32.mrb[0].mxu0
      %2593 = vmatprep.mubr.f32.mxu0 %v2469
      %2594 = vmatmul.mubr.f32.gmra.mrb[0].mxu0 %v2378
      %v2595 = vpop.f32.mrb[0].mxu0
      %v2596 = vadd.f32 0.0, %v2595
      %v2597 = vpop.f32.mrb[0].mxu0
      %2598 = vmatprep.mubr.f32.mxu0 %v2472
      %2599 = vmatmul.mubr.f32.gmra.mrb[0].mxu0 %v2380
      %v2600 = vpop.f32.mrb[0].mxu0
      %v2601 = vadd.f32 0.0, %v2600
      %v2602 = vpop.f32.mrb[0].mxu0
      %2603 = vmatprep.mubr.f32.mxu0 %v2475
      %2604 = vmatmul.mubr.f32.gmra.mrb[0].mxu0 %v2382
      %v2605 = vpop.f32.mrb[0].mxu0
      %v2606 = vadd.f32 0.0, %v2605
      %v2607 = vpop.f32.mrb[0].mxu0
      %2608 = vmatprep.mubr.f32.mxu0 %v2478
      %2609 = vmatmul.mubr.f32.gmra.mrb[0].mxu0 %v2384
      %v2610 = vpop.f32.mrb[0].mxu0
      %v2611 = vadd.f32 0.0, %v2610
      %v2612 = vpop.f32.mrb[0].mxu0
      %2613 = vmatprep.mubr.f32.mxu0 %v2481
      %2614 = vmatmul.mubr.f32.gmra.mrb[0].mxu0 %v2386
      %v2615 = vpop.f32.mrb[0].mxu0
      %v2616 = vadd.f32 0.0, %v2615
      %v2617 = vpop.f32.mrb[0].mxu0
      %2618 = vmatprep.mubr.f32.mxu0 %v2484
      %2619 = vmatmul.mubr.f32.gmra.mrb[0].mxu0 %v2388
      %v2620 = vpop.f32.mrb[0].mxu0
      %v2621 = vadd.f32 0.0, %v2620
      %v2622 = vpop.f32.mrb[0].mxu0
      %2623 = vmatprep.mubr.f32.mxu0 %v2487
      %2624 = vmatmul.mubr.f32.gmra.mrb[0].mxu0 %v2390
      %v2625 = vpop.f32.mrb[0].mxu0
      %v2626 = vadd.f32 0.0, %v2625
      %v2627 = vpop.f32.mrb[0].mxu0
      %2628 = vmatprep.mubr.f32.mxu0 %v2490
      %2629 = vmatmul.mubr.f32.gmra.mrb[0].mxu0 %v2392
      %v2630 = vpop.f32.mrb[0].mxu0
      %v2631 = vadd.f32 0.0, %v2630
      %v2632 = vpop.f32.mrb[0].mxu0
      %2633 = vmatprep.mubr.f32.mxu0 %v2493
      %2634 = vmatmul.mubr.f32.gmra.mrb[0].mxu0 %v2394
      %v2635 = vpop.f32.mrb[0].mxu0
      %v2636 = vadd.f32 0.0, %v2635
      %v2637 = vpop.f32.mrb[0].mxu0
      %2638 = vmatprep.mubr.f32.mxu0 %v2496
      %2639 = vmatmul.mubr.f32.gmra.mrb[0].mxu0 %v2396
      %v2640 = vpop.f32.mrb[0].mxu0
      %v2641 = vadd.f32 0.0, %v2640
      %v2642 = vpop.f32.mrb[0].mxu0
      %2643 = vmatprep.mubr.f32.mxu0 %v2499
      %2644 = vmatmul.mubr.f32.gmra.mrb[0].mxu0 %v2398
      %v2645 = vpop.f32.mrb[0].mxu0
      %v2646 = vadd.f32 0.0, %v2645
      %v2647 = vpop.f32.mrb[0].mxu0
      %2648 = vmatprep.mubr.f32.mxu0 %v2502
      %2649 = vmatmul.mubr.f32.gmra.mrb[0].mxu0 %v2400
      %v2650 = vpop.f32.mrb[0].mxu0
      %v2651 = vadd.f32 0.0, %v2650
      %v2652 = vpop.f32.mrb[0].mxu0
      %2653 = vdwg.mxu0
      %v2654 = vpack.c.bf16 %v2576, %v2571
      %v2655 = vpack.c.bf16 %v2586, %v2581
      %v2656 = vpack.c.bf16 %v2596, %v2591
      %v2657 = vpack.c.bf16 %v2606, %v2601
      %v2658 = vpack.c.bf16 %v2616, %v2611
      %v2659 = vpack.c.bf16 %v2626, %v2621
      %v2660 = vpack.c.bf16 %v2636, %v2631
      %v2661 = vpack.c.bf16 %v2646, %v2641
      %v2662 = vpack.c.bf16 %v2651, %v2651
      %v2672 = vunpack.c.l.b16 %v2654
      %v2673 = vunpack.c.h.b16 %v2654
      %v2674 = vunpack.c.l.b16 %v2655
      %v2675 = vunpack.c.h.b16 %v2655
      %v2676 = vunpack.c.l.b16 %v2656
      %v2677 = vunpack.c.h.b16 %v2656
      %v2678 = vunpack.c.l.b16 %v2657
      %v2679 = vunpack.c.h.b16 %v2657
      %v2680 = vunpack.c.l.b16 %v2658
      %v2681 = vunpack.c.h.b16 %v2658
      %v2682 = vunpack.c.l.b16 %v2659
      %v2683 = vunpack.c.h.b16 %v2659
      %v2684 = vunpack.c.l.b16 %v2660
      %v2685 = vunpack.c.h.b16 %v2660
      %v2686 = vunpack.c.l.b16 %v2661
      %v2687 = vunpack.c.h.b16 %v2661
      %v2688 = vunpack.c.l.b16 %v2662
      %v2689 = vpack.c.b16 %v2672, %v2672
      %v2690 = vpack.c.b16 %v2673, %v2673
      %v2691 = vpack.c.b16 %v2674, %v2674
      %v2692 = vpack.c.b16 %v2675, %v2675
      %v2693 = vpack.c.b16 %v2676, %v2676
      %v2694 = vpack.c.b16 %v2677, %v2677
      %v2695 = vpack.c.b16 %v2678, %v2678
      %v2696 = vpack.c.b16 %v2679, %v2679
      %v2697 = vpack.c.b16 %v2680, %v2680
      %v2698 = vpack.c.b16 %v2681, %v2681
      %v2699 = vpack.c.b16 %v2682, %v2682
      %v2700 = vpack.c.b16 %v2683, %v2683
      %v2701 = vpack.c.b16 %v2684, %v2684
      %v2702 = vpack.c.b16 %v2685, %v2685
      %v2703 = vpack.c.b16 %v2686, %v2686
      %v2704 = vpack.c.b16 %v2687, %v2687
      %v2705 = vpack.c.b16 %v2688, %v2688
      %2706 = vrot.lane.b32.xlu0 %v2689, 36
      %v2707 = vpop.permute.xlu0 %2706
      %2708 = vrot.lane.b32.xlu0 %v2690, 36
      %v2709 = vpop.permute.xlu0 %2708
      %2710 = vrot.lane.b32.xlu0 %v2691, 36
      %v2711 = vpop.permute.xlu0 %2710
      %2712 = vrot.lane.b32.xlu0 %v2692, 36
      %v2713 = vpop.permute.xlu0 %2712
      %2714 = vrot.lane.b32.xlu0 %v2693, 36
      %v2715 = vpop.permute.xlu0 %2714
      %2716 = vrot.lane.b32.xlu0 %v2694, 36
      %v2717 = vpop.permute.xlu0 %2716
      %2718 = vrot.lane.b32.xlu0 %v2695, 36
      %v2719 = vpop.permute.xlu0 %2718
      %2720 = vrot.lane.b32.xlu0 %v2696, 36
      %v2721 = vpop.permute.xlu0 %2720
      %2722 = vrot.lane.b32.xlu0 %v2697, 36
      %v2723 = vpop.permute.xlu0 %2722
      %2724 = vrot.lane.b32.xlu0 %v2698, 36
      %v2725 = vpop.permute.xlu0 %2724
      %2726 = vrot.lane.b32.xlu0 %v2699, 36
      %v2727 = vpop.permute.xlu0 %2726
      %2728 = vrot.lane.b32.xlu0 %v2700, 36
      %v2729 = vpop.permute.xlu0 %2728
      %2730 = vrot.lane.b32.xlu0 %v2701, 36
      %v2731 = vpop.permute.xlu0 %2730
      %2732 = vrot.lane.b32.xlu0 %v2702, 36
      %v2733 = vpop.permute.xlu0 %2732
      %2734 = vrot.lane.b32.xlu0 %v2703, 36
      %v2735 = vpop.permute.xlu0 %2734
      %2736 = vrot.lane.b32.xlu0 %v2704, 36
      %v2737 = vpop.permute.xlu0 %2736
      %2738 = vrot.lane.b32.xlu0 %v2705, 36
      %v2739 = vpop.permute.xlu0 %2738
      %vm2757 = vcmask 421152
      %2758 = vst.msk [vmem:[#allocation2] sm:$0xf] %vm2757, %v2707
      %2759 = vst.msk [vmem:[#allocation2 + $0x4] sm:$0xf] %vm2757, %v2709
      %2760 = vst.msk [vmem:[#allocation2 + $0x8] sm:$0xf] %vm2757, %v2711
      %2761 = vst.msk [vmem:[#allocation2 + $0xc] sm:$0xf] %vm2757, %v2713
      %2762 = vst.msk [vmem:[#allocation2 + $0x10] sm:$0xf] %vm2757, %v2715
      %2763 = vst.msk [vmem:[#allocation2 + $0x14] sm:$0xf] %vm2757, %v2717
      %2764 = vst.msk [vmem:[#allocation2 + $0x18] sm:$0xf] %vm2757, %v2719
      %2765 = vst.msk [vmem:[#allocation2 + $0x1c] sm:$0xf] %vm2757, %v2721
      %2766 = vst.msk [vmem:[#allocation2 + $0x20] sm:$0xf] %vm2757, %v2723
      %2767 = vst.msk [vmem:[#allocation2 + $0x24] sm:$0xf] %vm2757, %v2725
      %2768 = vst.msk [vmem:[#allocation2 + $0x28] sm:$0xf] %vm2757, %v2727
      %2769 = vst.msk [vmem:[#allocation2 + $0x2c] sm:$0xf] %vm2757, %v2729
      %2770 = vst.msk [vmem:[#allocation2 + $0x30] sm:$0xf] %vm2757, %v2731
      %2771 = vst.msk [vmem:[#allocation2 + $0x34] sm:$0xf] %vm2757, %v2733
      %2772 = vst.msk [vmem:[#allocation2 + $0x38] sm:$0xf] %vm2757, %v2735
      %2773 = vst.msk [vmem:[#allocation2 + $0x3c] sm:$0xf] %vm2757, %v2737
      %2774 = vst.msk [vmem:[#allocation2 + $0x40] sm:$0xf] %vm2757, %v2739
      %v2775 = vld [vmem:[#allocation2] sm:$0xf]
      %v2776 = vld [vmem:[#allocation2 + $0x4] sm:$0xf]
      %v2777 = vld [vmem:[#allocation2 + $0x8] sm:$0xf]
      %v2778 = vld [vmem:[#allocation2 + $0xc] sm:$0xf]
      %v2779 = vld [vmem:[#allocation2 + $0x10] sm:$0xf]
      %v2780 = vld [vmem:[#allocation2 + $0x14] sm:$0xf]
      %v2781 = vld [vmem:[#allocation2 + $0x18] sm:$0xf]
      %v2782 = vld [vmem:[#allocation2 + $0x1c] sm:$0xf]
      %v2783 = vld [vmem:[#allocation2 + $0x20] sm:$0xf]
      %v2784 = vld [vmem:[#allocation2 + $0x24] sm:$0xf]
      %v2785 = vld [vmem:[#allocation2 + $0x28] sm:$0xf]
      %v2786 = vld [vmem:[#allocation2 + $0x2c] sm:$0xf]
      %v2787 = vld [vmem:[#allocation2 + $0x30] sm:$0xf]
      %v2788 = vld [vmem:[#allocation2 + $0x34] sm:$0xf]
      %v2789 = vld [vmem:[#allocation2 + $0x38] sm:$0xf]
      %v2790 = vld [vmem:[#allocation2 + $0x3c] sm:$0xf]
      %v2791 = vld [vmem:[#allocation2 + $0x40] sm:$0xf]
      %v2792 = vld [vmem:[%s6] sm:$0xf]
      %v2793 = vld [vmem:[%s6 + $0x4] sm:$0xf]
      %v2794 = vld [vmem:[%s6 + $0x8] sm:$0xf]
      %v2795 = vld [vmem:[%s6 + $0xc] sm:$0xf]
      %v2796 = vld [vmem:[%s6 + $0x10] sm:$0xf]
      %v2797 = vld [vmem:[%s6 + $0x14] sm:$0xf]
      %v2798 = vld [vmem:[%s6 + $0x18] sm:$0xf]
      %v2799 = vld [vmem:[%s6 + $0x1c] sm:$0xf]
      %v2800 = vld [vmem:[%s6 + $0x20] sm:$0xf]
      %v2801 = vld [vmem:[%s6 + $0x24] sm:$0xf]
      %v2802 = vld [vmem:[%s6 + $0x28] sm:$0xf]
      %v2803 = vld [vmem:[%s6 + $0x2c] sm:$0xf]
      %v2804 = vld [vmem:[%s6 + $0x30] sm:$0xf]
      %v2805 = vld [vmem:[%s6 + $0x34] sm:$0xf]
      %v2806 = vld [vmem:[%s6 + $0x38] sm:$0xf]
      %v2807 = vld [vmem:[%s6 + $0x3c] sm:$0xf]
      %v2808 = vld [vmem:[%s7] sm:$0xf]
      %v2809 = vld [vmem:[%s7 + $0x4] sm:$0xf]
      %v2810 = vld [vmem:[%s7 + $0x8] sm:$0xf]
      %v2811 = vld [vmem:[%s7 + $0xc] sm:$0xf]
      %v2812 = vld [vmem:[%s7 + $0x10] sm:$0xf]
      %v2813 = vld [vmem:[%s7 + $0x14] sm:$0xf]
      %v2814 = vld [vmem:[%s7 + $0x18] sm:$0xf]
      %v2815 = vld [vmem:[%s7 + $0x1c] sm:$0xf]
      %v2816 = vld [vmem:[%s7 + $0x20] sm:$0xf]
      %v2817 = vld [vmem:[%s7 + $0x24] sm:$0xf]
      %v2818 = vld [vmem:[%s7 + $0x28] sm:$0xf]
      %v2819 = vld [vmem:[%s7 + $0x2c] sm:$0xf]
      %v2820 = vld [vmem:[%s7 + $0x30] sm:$0xf]
      %v2821 = vld [vmem:[%s7 + $0x34] sm:$0xf]
      %v2822 = vld [vmem:[%s7 + $0x38] sm:$0xf]
      %v2823 = vld [vmem:[%s7 + $0x3c] sm:$0xf]
      %v2841 = vunpack.c.l.b16 %v2775
      %v2842 = vunpack.c.l.b16 %v2776
      %v2843 = vunpack.c.l.b16 %v2777
      %v2844 = vunpack.c.l.b16 %v2778
      %v2845 = vunpack.c.l.b16 %v2779
      %v2846 = vunpack.c.l.b16 %v2780
      %v2847 = vunpack.c.l.b16 %v2781
      %v2848 = vunpack.c.l.b16 %v2782
      %v2849 = vunpack.c.l.b16 %v2783
      %v2850 = vunpack.c.l.b16 %v2784
      %v2851 = vunpack.c.l.b16 %v2785
      %v2852 = vunpack.c.l.b16 %v2786
      %v2853 = vunpack.c.l.b16 %v2787
      %v2854 = vunpack.c.l.b16 %v2788
      %v2855 = vunpack.c.l.b16 %v2789
      %v2856 = vunpack.c.l.b16 %v2790
      %v2857 = vunpack.c.l.b16 %v2791
      %v2858 = vpack.c.b16 %v2842, %v2841
      %v2859 = vpack.c.b16 %v2844, %v2843
      %v2860 = vpack.c.b16 %v2846, %v2845
      %v2861 = vpack.c.b16 %v2848, %v2847
      %v2862 = vpack.c.b16 %v2850, %v2849
      %v2863 = vpack.c.b16 %v2852, %v2851
      %v2864 = vpack.c.b16 %v2854, %v2853
      %v2865 = vpack.c.b16 %v2856, %v2855
      %v2866 = vpack.c.b16 %v2857, %v2857
      %v2892 = vunpack.c.l.b16 %v2808
      %v2893 = vunpack.c.l.b16 %v2809
      %v2894 = vunpack.c.l.b16 %v2810
      %v2895 = vunpack.c.l.b16 %v2811
      %v2896 = vunpack.c.l.b16 %v2812
      %v2897 = vunpack.c.l.b16 %v2813
      %v2898 = vunpack.c.l.b16 %v2814
      %v2899 = vunpack.c.l.b16 %v2815
      %v2900 = vunpack.c.l.b16 %v2816
      %v2901 = vunpack.c.l.b16 %v2817
      %v2902 = vunpack.c.l.b16 %v2818
      %v2903 = vunpack.c.l.b16 %v2819
      %v2904 = vunpack.c.l.b16 %v2820
      %v2905 = vunpack.c.l.b16 %v2821
      %v2906 = vunpack.c.l.b16 %v2822
      %v2907 = vunpack.c.l.b16 %v2823
      %v2908 = vpack.c.b16 %v2893, %v2892
      %v2909 = vpack.c.b16 %v2895, %v2894
      %v2910 = vpack.c.b16 %v2897, %v2896
      %v2911 = vpack.c.b16 %v2899, %v2898
      %v2912 = vpack.c.b16 %v2901, %v2900
      %v2913 = vpack.c.b16 %v2903, %v2902
      %v2914 = vpack.c.b16 %v2905, %v2904
      %v2915 = vpack.c.b16 %v2907, %v2906
      %2924 = vmatprep.subr.bf16.mxu0 0
      %2925 = vmatpush1.bf16.msra.mxu0 %v2908
      %2926 = vmatprep.subr.bf16.mxu0 0
      %2927 = vmatpush1.bf16.msra.mxu0 %v2909
      %2928 = vmatprep.subr.bf16.mxu0 0
      %2929 = vmatpush1.bf16.msra.mxu0 %v2910
      %2930 = vmatprep.subr.bf16.mxu0 0
      %2931 = vmatpush1.bf16.msra.mxu0 %v2911
      %2932 = vmatprep.subr.bf16.mxu0 0
      %2933 = vmatpush1.bf16.msra.mxu0 %v2912
      %2934 = vmatprep.subr.bf16.mxu0 0
      %2935 = vmatpush1.bf16.msra.mxu0 %v2913
      %2936 = vmatprep.subr.bf16.mxu0 0
      %2937 = vmatpush1.bf16.msra.mxu0 %v2914
      %2938 = vmatprep.subr.bf16.mxu0 0
      %2939 = vmatpush1.bf16.msra.mxu0 %v2915
      %2940 = vmatprep.subr.bf16.mxu0 0
      %2941 = vmatpush1.bf16.msra.mxu0 0
      %2942 = vmatprep.subr.bf16.mxu0 0
      %2943 = vmatpush1.bf16.msra.mxu0 0
      %2944 = vmatprep.subr.bf16.mxu0 0
      %2945 = vmatpush1.bf16.msra.mxu0 0
      %2946 = vmatprep.subr.bf16.mxu0 0
      %2947 = vmatpush1.bf16.msra.mxu0 0
      %2948 = vmatprep.subr.bf16.mxu0 0
      %2949 = vmatpush1.bf16.msra.mxu0 0
      %2950 = vmatprep.subr.bf16.mxu0 0
      %2951 = vmatpush1.bf16.msra.mxu0 0
      %2952 = vmatprep.subr.bf16.mxu0 0
      %2953 = vmatpush1.bf16.msra.mxu0 0
      %2954 = vmatprep.subr.bf16.mxu0 0
      %2955 = vmatpush1.bf16.msra.mxu0 0
      %2956 = vmatprep.mubr.bf16.mxu0 0
      %2957 = vmatmul.mubr.bf16.gmra.mrb[0].mxu0 %v2858
      %v2958 = vpop.f32.mrb[0].mxu0
      %v2959 = vadd.f32 0.0, %v2958
      %v2960 = vpop.f32.mrb[0].mxu0
      %v2961 = vpop.f32.mrb[0].mxu0
      %v2962 = vadd.f32 0.0, %v2961
      %v2963 = vpop.f32.mrb[0].mxu0
      %2964 = vmatprep.mubr.bf16.mxu0 0
      %2965 = vmatmul.mubr.bf16.gmra.mrb[0].mxu0 %v2859
      %v2966 = vpop.f32.mrb[0].mxu0
      %v2967 = vadd.f32 0.0, %v2966
      %v2968 = vpop.f32.mrb[0].mxu0
      %v2969 = vpop.f32.mrb[0].mxu0
      %v2970 = vadd.f32 0.0, %v2969
      %v2971 = vpop.f32.mrb[0].mxu0
      %2972 = vmatprep.mubr.bf16.mxu0 0
      %2973 = vmatmul.mubr.bf16.gmra.mrb[0].mxu0 %v2860
      %v2974 = vpop.f32.mrb[0].mxu0
      %v2975 = vadd.f32 0.0, %v2974
      %v2976 = vpop.f32.mrb[0].mxu0
      %v2977 = vpop.f32.mrb[0].mxu0
      %v2978 = vadd.f32 0.0, %v2977
      %v2979 = vpop.f32.mrb[0].mxu0
      %2980 = vmatprep.mubr.bf16.mxu0 0
      %2981 = vmatmul.mubr.bf16.gmra.mrb[0].mxu0 %v2861
      %v2982 = vpop.f32.mrb[0].mxu0
      %v2983 = vadd.f32 0.0, %v2982
      %v2984 = vpop.f32.mrb[0].mxu0
      %v2985 = vpop.f32.mrb[0].mxu0
      %v2986 = vadd.f32 0.0, %v2985
      %v2987 = vpop.f32.mrb[0].mxu0
      %2988 = vmatprep.mubr.bf16.mxu0 0
      %2989 = vmatmul.mubr.bf16.gmra.mrb[0].mxu0 %v2862
      %v2990 = vpop.f32.mrb[0].mxu0
      %v2991 = vadd.f32 0.0, %v2990
      %v2992 = vpop.f32.mrb[0].mxu0
      %v2993 = vpop.f32.mrb[0].mxu0
      %v2994 = vadd.f32 0.0, %v2993
      %v2995 = vpop.f32.mrb[0].mxu0
      %2996 = vmatprep.mubr.bf16.mxu0 0
      %2997 = vmatmul.mubr.bf16.gmra.mrb[0].mxu0 %v2863
      %v2998 = vpop.f32.mrb[0].mxu0
      %v2999 = vadd.f32 0.0, %v2998
      %v3000 = vpop.f32.mrb[0].mxu0
      %v3001 = vpop.f32.mrb[0].mxu0
      %v3002 = vadd.f32 0.0, %v3001
      %v3003 = vpop.f32.mrb[0].mxu0
      %3004 = vmatprep.mubr.bf16.mxu0 0
      %3005 = vmatmul.mubr.bf16.gmra.mrb[0].mxu0 %v2864
      %v3006 = vpop.f32.mrb[0].mxu0
      %v3007 = vadd.f32 0.0, %v3006
      %v3008 = vpop.f32.mrb[0].mxu0
      %v3009 = vpop.f32.mrb[0].mxu0
      %v3010 = vadd.f32 0.0, %v3009
      %v3011 = vpop.f32.mrb[0].mxu0
      %3012 = vmatprep.mubr.bf16.mxu0 0
      %3013 = vmatmul.mubr.bf16.gmra.mrb[0].mxu0 %v2865
      %v3014 = vpop.f32.mrb[0].mxu0
      %v3015 = vadd.f32 0.0, %v3014
      %v3016 = vpop.f32.mrb[0].mxu0
      %v3017 = vpop.f32.mrb[0].mxu0
      %v3018 = vadd.f32 0.0, %v3017
      %v3019 = vpop.f32.mrb[0].mxu0
      %3020 = vmatprep.mubr.bf16.mxu0 0
      %3021 = vmatmul.mubr.bf16.gmra.mrb[0].mxu0 %v2866
      %v3022 = vpop.f32.mrb[0].mxu0
      %v3023 = vadd.f32 0.0, %v3022
      %v3024 = vpop.f32.mrb[0].mxu0
      %v3025 = vpop.f32.mrb[0].mxu0
      %v3026 = vpop.f32.mrb[0].mxu0
      %3027 = vdwg.mxu0
      %v3028 = vrot.slane %v2959, 7
      %v3029 = vrot.slane %v2962, 7
      %v3030 = vrot.slane %v2967, 7
      %v3031 = vrot.slane %v2970, 7
      %v3032 = vrot.slane %v2975, 7
      %v3033 = vrot.slane %v2978, 7
      %v3034 = vrot.slane %v2983, 7
      %v3035 = vrot.slane %v2986, 7
      %v3036 = vrot.slane %v2991, 7
      %v3037 = vrot.slane %v2994, 7
      %v3038 = vrot.slane %v2999, 7
      %v3039 = vrot.slane %v3002, 7
      %v3040 = vrot.slane %v3007, 7
      %v3041 = vrot.slane %v3010, 7
      %v3042 = vrot.slane %v3015, 7
      %v3043 = vrot.slane %v3018, 7
      %v3044 = vrot.slane %v3023, 7
      %vm3045 = vcmp.lt.s32.totalorder %v650, 1
      %v3046 = vsel %vm3045, %v3043, %v3044
      %v3047 = vsel %vm3045, %v3042, %v3043
      %v3048 = vsel %vm3045, %v3041, %v3042
      %v3049 = vsel %vm3045, %v3040, %v3041
      %v3050 = vsel %vm3045, %v3039, %v3040
      %v3051 = vsel %vm3045, %v3038, %v3039
      %v3052 = vsel %vm3045, %v3037, %v3038
      %v3053 = vsel %vm3045, %v3036, %v3037
      %v3054 = vsel %vm3045, %v3035, %v3036
      %v3055 = vsel %vm3045, %v3034, %v3035
      %v3056 = vsel %vm3045, %v3033, %v3034
      %v3057 = vsel %vm3045, %v3032, %v3033
      %v3058 = vsel %vm3045, %v3031, %v3032
      %v3059 = vsel %vm3045, %v3030, %v3031
      %v3060 = vsel %vm3045, %v3029, %v3030
      %v3061 = vsel %vm3045, %v3028, %v3029
      %v3062 = vsel %vm3045, %v3044, %v3028
      %vm3063 = vcmp.lt.s32.totalorder %v667, 1
      %vm3064 = vcmp.lt.s32.totalorder %v668, 1
      %vm3065 = vcmp.lt.s32.totalorder %v669, 1
      %vm3066 = vcmp.lt.s32.totalorder %v670, 1
      %vm3067 = vcmp.lt.s32.totalorder %v671, 1
      %vm3068 = vcmp.lt.s32.totalorder %v672, 1
      %vm3069 = vcmp.lt.s32.totalorder %v673, 1
      %vm3070 = vcmp.lt.s32.totalorder %v674, 1
      %vm3071 = vcmp.lt.s32.totalorder %v675, 1
      %vm3072 = vcmp.lt.s32.totalorder %v676, 1
      %vm3073 = vcmp.lt.s32.totalorder %v677, 1
      %vm3074 = vcmp.lt.s32.totalorder %v678, 1
      %vm3075 = vcmp.lt.s32.totalorder %v679, 1
      %vm3076 = vcmp.lt.s32.totalorder %v680, 1
      %vm3077 = vcmp.lt.s32.totalorder %v681, 1
      %vm3078 = vcmp.lt.s32.totalorder %v682, 1
      %vm3079 = vcmp.lt.s32.totalorder %v683, 1
      %v3080 = vsel %vm3063, 1, 0
      %v3081 = vsel %vm3064, 1, 0
      %v3082 = vsel %vm3065, 1, 0
      %v3083 = vsel %vm3066, 1, 0
      %v3084 = vsel %vm3067, 1, 0
      %v3085 = vsel %vm3068, 1, 0
      %v3086 = vsel %vm3069, 1, 0
      %v3087 = vsel %vm3070, 1, 0
      %v3088 = vsel %vm3071, 1, 0
      %v3089 = vsel %vm3072, 1, 0
      %v3090 = vsel %vm3073, 1, 0
      %v3091 = vsel %vm3074, 1, 0
      %v3092 = vsel %vm3075, 1, 0
      %v3093 = vsel %vm3076, 1, 0
      %v3094 = vsel %vm3077, 1, 0
      %v3095 = vsel %vm3078, 1, 0
      %v3096 = vsel %vm3079, 1, 0
      %vm3097 = vcmp.eq.s32.totalorder %v3080, 1
      %vm3098 = vcmp.eq.s32.totalorder %v3081, 1
      %vm3099 = vcmp.eq.s32.totalorder %v3082, 1
      %vm3100 = vcmp.eq.s32.totalorder %v3083, 1
      %vm3101 = vcmp.eq.s32.totalorder %v3084, 1
      %vm3102 = vcmp.eq.s32.totalorder %v3085, 1
      %vm3103 = vcmp.eq.s32.totalorder %v3086, 1
      %vm3104 = vcmp.eq.s32.totalorder %v3087, 1
      %vm3105 = vcmp.eq.s32.totalorder %v3088, 1
      %vm3106 = vcmp.eq.s32.totalorder %v3089, 1
      %vm3107 = vcmp.eq.s32.totalorder %v3090, 1
      %vm3108 = vcmp.eq.s32.totalorder %v3091, 1
      %vm3109 = vcmp.eq.s32.totalorder %v3092, 1
      %vm3110 = vcmp.eq.s32.totalorder %v3093, 1
      %vm3111 = vcmp.eq.s32.totalorder %v3094, 1
      %vm3112 = vcmp.eq.s32.totalorder %v3095, 1
      %vm3113 = vcmp.eq.s32.totalorder %v3096, 1
      %v3114 = vsel %vm3097, 0.0, %v3062
      %v3115 = vsel %vm3098, 0.0, %v3061
      %v3116 = vsel %vm3099, 0.0, %v3060
      %v3117 = vsel %vm3100, 0.0, %v3059
      %v3118 = vsel %vm3101, 0.0, %v3058
      %v3119 = vsel %vm3102, 0.0, %v3057
      %v3120 = vsel %vm3103, 0.0, %v3056
      %v3121 = vsel %vm3104, 0.0, %v3055
      %v3122 = vsel %vm3105, 0.0, %v3054
      %v3123 = vsel %vm3106, 0.0, %v3053
      %v3124 = vsel %vm3107, 0.0, %v3052
      %v3125 = vsel %vm3108, 0.0, %v3051
      %v3126 = vsel %vm3109, 0.0, %v3050
      %v3127 = vsel %vm3110, 0.0, %v3049
      %v3128 = vsel %vm3111, 0.0, %v3048
      %v3129 = vsel %vm3112, 0.0, %v3047
      %v3130 = vsel %vm3113, 0.0, %v3046
      %v3147 = vunpack.c.l.b16 %v2792
      %v3148 = vunpack.c.l.b16 %v2793
      %v3149 = vunpack.c.l.b16 %v2794
      %v3150 = vunpack.c.l.b16 %v2795
      %v3151 = vunpack.c.l.b16 %v2796
      %v3152 = vunpack.c.l.b16 %v2797
      %v3153 = vunpack.c.l.b16 %v2798
      %v3154 = vunpack.c.l.b16 %v2799
      %v3155 = vunpack.c.l.b16 %v2800
      %v3156 = vunpack.c.l.b16 %v2801
      %v3157 = vunpack.c.l.b16 %v2802
      %v3158 = vunpack.c.l.b16 %v2803
      %v3159 = vunpack.c.l.b16 %v2804
      %v3160 = vunpack.c.l.b16 %v2805
      %v3161 = vunpack.c.l.b16 %v2806
      %v3162 = vunpack.c.l.b16 %v2807
      %v3163 = vpack.c.b16 %v3148, %v3147
      %v3164 = vpack.c.b16 %v3150, %v3149
      %v3165 = vpack.c.b16 %v3152, %v3151
      %v3166 = vpack.c.b16 %v3154, %v3153
      %v3167 = vpack.c.b16 %v3156, %v3155
      %v3168 = vpack.c.b16 %v3158, %v3157
      %v3169 = vpack.c.b16 %v3160, %v3159
      %v3170 = vpack.c.b16 %v3162, %v3161
      %3179 = vmatprep.subr.bf16.mxu0 0
      %3180 = vmatpush1.bf16.msra.mxu0 %v3163
      %3181 = vmatprep.subr.bf16.mxu0 0
      %3182 = vmatpush1.bf16.msra.mxu0 %v3164
      %3183 = vmatprep.subr.bf16.mxu0 0
      %3184 = vmatpush1.bf16.msra.mxu0 %v3165
      %3185 = vmatprep.subr.bf16.mxu0 0
      %3186 = vmatpush1.bf16.msra.mxu0 %v3166
      %3187 = vmatprep.subr.bf16.mxu0 0
      %3188 = vmatpush1.bf16.msra.mxu0 %v3167
      %3189 = vmatprep.subr.bf16.mxu0 0
      %3190 = vmatpush1.bf16.msra.mxu0 %v3168
      %3191 = vmatprep.subr.bf16.mxu0 0
      %3192 = vmatpush1.bf16.msra.mxu0 %v3169
      %3193 = vmatprep.subr.bf16.mxu0 0
      %3194 = vmatpush1.bf16.msra.mxu0 %v3170
      %3195 = vmatprep.subr.bf16.mxu0 0
      %3196 = vmatpush1.bf16.msra.mxu0 0
      %3197 = vmatprep.subr.bf16.mxu0 0
      %3198 = vmatpush1.bf16.msra.mxu0 0
      %3199 = vmatprep.subr.bf16.mxu0 0
      %3200 = vmatpush1.bf16.msra.mxu0 0
      %3201 = vmatprep.subr.bf16.mxu0 0
      %3202 = vmatpush1.bf16.msra.mxu0 0
      %3203 = vmatprep.subr.bf16.mxu0 0
      %3204 = vmatpush1.bf16.msra.mxu0 0
      %3205 = vmatprep.subr.bf16.mxu0 0
      %3206 = vmatpush1.bf16.msra.mxu0 0
      %3207 = vmatprep.subr.bf16.mxu0 0
      %3208 = vmatpush1.bf16.msra.mxu0 0
      %3209 = vmatprep.subr.bf16.mxu0 0
      %3210 = vmatpush1.bf16.msra.mxu0 0
      %3211 = vmatprep.mubr.bf16.mxu0 0
      %3212 = vmatmul.mubr.bf16.gmra.mrb[0].mxu0 %v2858
      %v3213 = vpop.f32.mrb[0].mxu0
      %v3214 = vadd.f32 %v3114, %v3213
      %v3215 = vpop.f32.mrb[0].mxu0
      %v3216 = vpop.f32.mrb[0].mxu0
      %v3217 = vadd.f32 %v3115, %v3216
      %v3218 = vpop.f32.mrb[0].mxu0
      %3219 = vmatprep.mubr.bf16.mxu0 0
      %3220 = vmatmul.mubr.bf16.gmra.mrb[0].mxu0 %v2859
      %v3221 = vpop.f32.mrb[0].mxu0
      %v3222 = vadd.f32 %v3116, %v3221
      %v3223 = vpop.f32.mrb[0].mxu0
      %v3224 = vpop.f32.mrb[0].mxu0
      %v3225 = vadd.f32 %v3117, %v3224
      %v3226 = vpop.f32.mrb[0].mxu0
      %3227 = vmatprep.mubr.bf16.mxu0 0
      %3228 = vmatmul.mubr.bf16.gmra.mrb[0].mxu0 %v2860
      %v3229 = vpop.f32.mrb[0].mxu0
      %v3230 = vadd.f32 %v3118, %v3229
      %v3231 = vpop.f32.mrb[0].mxu0
      %v3232 = vpop.f32.mrb[0].mxu0
      %v3233 = vadd.f32 %v3119, %v3232
      %v3234 = vpop.f32.mrb[0].mxu0
      %3235 = vmatprep.mubr.bf16.mxu0 0
      %3236 = vmatmul.mubr.bf16.gmra.mrb[0].mxu0 %v2861
      %v3237 = vpop.f32.mrb[0].mxu0
      %v3238 = vadd.f32 %v3120, %v3237
      %v3239 = vpop.f32.mrb[0].mxu0
      %v3240 = vpop.f32.mrb[0].mxu0
      %v3241 = vadd.f32 %v3121, %v3240
      %v3242 = vpop.f32.mrb[0].mxu0
      %3243 = vmatprep.mubr.bf16.mxu0 0
      %3244 = vmatmul.mubr.bf16.gmra.mrb[0].mxu0 %v2862
      %v3245 = vpop.f32.mrb[0].mxu0
      %v3246 = vadd.f32 %v3122, %v3245
      %v3247 = vpop.f32.mrb[0].mxu0
      %v3248 = vpop.f32.mrb[0].mxu0
      %v3249 = vadd.f32 %v3123, %v3248
      %v3250 = vpop.f32.mrb[0].mxu0
      %3251 = vmatprep.mubr.bf16.mxu0 0
      %3252 = vmatmul.mubr.bf16.gmra.mrb[0].mxu0 %v2863
      %v3253 = vpop.f32.mrb[0].mxu0
      %v3254 = vadd.f32 %v3124, %v3253
      %v3255 = vpop.f32.mrb[0].mxu0
      %v3256 = vpop.f32.mrb[0].mxu0
      %v3257 = vadd.f32 %v3125, %v3256
      %v3258 = vpop.f32.mrb[0].mxu0
      %3259 = vmatprep.mubr.bf16.mxu0 0
      %3260 = vmatmul.mubr.bf16.gmra.mrb[0].mxu0 %v2864
      %v3261 = vpop.f32.mrb[0].mxu0
      %v3262 = vadd.f32 %v3126, %v3261
      %v3263 = vpop.f32.mrb[0].mxu0
      %v3264 = vpop.f32.mrb[0].mxu0
      %v3265 = vadd.f32 %v3127, %v3264
      %v3266 = vpop.f32.mrb[0].mxu0
      %3267 = vmatprep.mubr.bf16.mxu0 0
      %3268 = vmatmul.mubr.bf16.gmra.mrb[0].mxu0 %v2865
      %v3269 = vpop.f32.mrb[0].mxu0
      %v3270 = vadd.f32 %v3128, %v3269
      %v3271 = vpop.f32.mrb[0].mxu0
      %v3272 = vpop.f32.mrb[0].mxu0
      %v3273 = vadd.f32 %v3129, %v3272
      %v3274 = vpop.f32.mrb[0].mxu0
      %3275 = vmatprep.mubr.bf16.mxu0 0
      %3276 = vmatmul.mubr.bf16.gmra.mrb[0].mxu0 %v2866
      %v3277 = vpop.f32.mrb[0].mxu0
      %v3278 = vadd.f32 %v3130, %v3277
      %v3279 = vpop.f32.mrb[0].mxu0
      %v3280 = vpop.f32.mrb[0].mxu0
      %v3281 = vpop.f32.mrb[0].mxu0
      %3282 = vdwg.mxu0
      %v3283 = vld [vmem:[%s8] sm:$0x1]
      %v3285 = vlaneseq
      %v3286 = vshrl.u32 %v3285, 7
      %v3287 = vsub.s32 0, %v3286
      %v3288 = vrot.slane %v3283, %v3287
      %v3290 = vadd.f32 %v3214, %v3288
      %v3291 = vadd.f32 %v3217, %v3288
      %v3292 = vadd.f32 %v3222, %v3288
      %v3293 = vadd.f32 %v3225, %v3288
      %v3294 = vadd.f32 %v3230, %v3288
      %v3295 = vadd.f32 %v3233, %v3288
      %v3296 = vadd.f32 %v3238, %v3288
      %v3297 = vadd.f32 %v3241, %v3288
      %v3298 = vadd.f32 %v3246, %v3288
      %v3299 = vadd.f32 %v3249, %v3288
      %v3300 = vadd.f32 %v3254, %v3288
      %v3301 = vadd.f32 %v3257, %v3288
      %v3302 = vadd.f32 %v3262, %v3288
      %v3303 = vadd.f32 %v3265, %v3288
      %v3304 = vadd.f32 %v3270, %v3288
      %v3305 = vadd.f32 %v3273, %v3288
      %v3306 = vadd.f32 %v3278, %v3288
      %v3307 = vtanh.pop %v3290
      %v3308 = vtanh.pop %v3291
      %v3309 = vtanh.pop %v3292
      %v3310 = vtanh.pop %v3293
      %v3311 = vtanh.pop %v3294
      %v3312 = vtanh.pop %v3295
      %v3313 = vtanh.pop %v3296
      %v3314 = vtanh.pop %v3297
      %v3315 = vtanh.pop %v3298
      %v3316 = vtanh.pop %v3299
      %v3317 = vtanh.pop %v3300
      %v3318 = vtanh.pop %v3301
      %v3319 = vtanh.pop %v3302
      %v3320 = vtanh.pop %v3303
      %v3321 = vtanh.pop %v3304
      %v3322 = vtanh.pop %v3305
      %v3323 = vtanh.pop %v3306
      %v3324 = vxor.u32 %v3290, 2147483648
      %v3325 = vxor.u32 %v3291, 2147483648
      %v3326 = vxor.u32 %v3292, 2147483648
      %v3327 = vxor.u32 %v3293, 2147483648
      %v3328 = vxor.u32 %v3294, 2147483648
      %v3329 = vxor.u32 %v3295, 2147483648
      %v3330 = vxor.u32 %v3296, 2147483648
      %v3331 = vxor.u32 %v3297, 2147483648
      %v3332 = vxor.u32 %v3298, 2147483648
      %v3333 = vxor.u32 %v3299, 2147483648
      %v3334 = vxor.u32 %v3300, 2147483648
      %v3335 = vxor.u32 %v3301, 2147483648
      %v3336 = vxor.u32 %v3302, 2147483648
      %v3337 = vxor.u32 %v3303, 2147483648
      %v3338 = vxor.u32 %v3304, 2147483648
      %v3339 = vxor.u32 %v3305, 2147483648
      %v3340 = vxor.u32 %v3306, 2147483648
      %v3341 = vmul.f32 %v3324, 1.442695
      %v3342 = vpow.pop %v3341
      %v3343 = vmul.f32 %v3325, 1.442695
      %v3344 = vpow.pop %v3343
      %v3345 = vmul.f32 %v3326, 1.442695
      %v3346 = vpow.pop %v3345
      %v3347 = vmul.f32 %v3327, 1.442695
      %v3348 = vpow.pop %v3347
      %v3349 = vmul.f32 %v3328, 1.442695
      %v3350 = vpow.pop %v3349
      %v3351 = vmul.f32 %v3329, 1.442695
      %v3352 = vpow.pop %v3351
      %v3353 = vmul.f32 %v3330, 1.442695
      %v3354 = vpow.pop %v3353
      %v3355 = vmul.f32 %v3331, 1.442695
      %v3356 = vpow.pop %v3355
      %v3357 = vmul.f32 %v3332, 1.442695
      %v3358 = vpow.pop %v3357
      %v3359 = vmul.f32 %v3333, 1.442695
      %v3360 = vpow.pop %v3359
      %v3361 = vmul.f32 %v3334, 1.442695
      %v3362 = vpow.pop %v3361
      %v3363 = vmul.f32 %v3335, 1.442695
      %v3364 = vpow.pop %v3363
      %v3365 = vmul.f32 %v3336, 1.442695
      %v3366 = vpow.pop %v3365
      %v3367 = vmul.f32 %v3337, 1.442695
      %v3368 = vpow.pop %v3367
      %v3369 = vmul.f32 %v3338, 1.442695
      %v3370 = vpow.pop %v3369
      %v3371 = vmul.f32 %v3339, 1.442695
      %v3372 = vpow.pop %v3371
      %v3373 = vmul.f32 %v3340, 1.442695
      %v3374 = vpow.pop %v3373
      %v3375 = vadd.f32 %v3342, 1.0
      %v3376 = vadd.f32 %v3344, 1.0
      %v3377 = vadd.f32 %v3346, 1.0
      %v3378 = vadd.f32 %v3348, 1.0
      %v3379 = vadd.f32 %v3350, 1.0
      %v3380 = vadd.f32 %v3352, 1.0
      %v3381 = vadd.f32 %v3354, 1.0
      %v3382 = vadd.f32 %v3356, 1.0
      %v3383 = vadd.f32 %v3358, 1.0
      %v3384 = vadd.f32 %v3360, 1.0
      %v3385 = vadd.f32 %v3362, 1.0
      %v3386 = vadd.f32 %v3364, 1.0
      %v3387 = vadd.f32 %v3366, 1.0
      %v3388 = vadd.f32 %v3368, 1.0
      %v3389 = vadd.f32 %v3370, 1.0
      %v3390 = vadd.f32 %v3372, 1.0
      %v3391 = vadd.f32 %v3374, 1.0
      %v3392 = vrcp.pop %v3375
      %v3393 = vmul.f32 1.0, %v3392
      %v3394 = vrcp.pop %v3376
      %v3395 = vmul.f32 1.0, %v3394
      %v3396 = vrcp.pop %v3377
      %v3397 = vmul.f32 1.0, %v3396
      %v3398 = vrcp.pop %v3378
      %v3399 = vmul.f32 1.0, %v3398
      %v3400 = vrcp.pop %v3379
      %v3401 = vmul.f32 1.0, %v3400
      %v3402 = vrcp.pop %v3380
      %v3403 = vmul.f32 1.0, %v3402
      %v3404 = vrcp.pop %v3381
      %v3405 = vmul.f32 1.0, %v3404
      %v3406 = vrcp.pop %v3382
      %v3407 = vmul.f32 1.0, %v3406
      %v3408 = vrcp.pop %v3383
      %v3409 = vmul.f32 1.0, %v3408
      %v3410 = vrcp.pop %v3384
      %v3411 = vmul.f32 1.0, %v3410
      %v3412 = vrcp.pop %v3385
      %v3413 = vmul.f32 1.0, %v3412
      %v3414 = vrcp.pop %v3386
      %v3415 = vmul.f32 1.0, %v3414
      %v3416 = vrcp.pop %v3387
      %v3417 = vmul.f32 1.0, %v3416
      %v3418 = vrcp.pop %v3388
      %v3419 = vmul.f32 1.0, %v3418
      %v3420 = vrcp.pop %v3389
      %v3421 = vmul.f32 1.0, %v3420
      %v3422 = vrcp.pop %v3390
      %v3423 = vmul.f32 1.0, %v3422
      %v3424 = vrcp.pop %v3391
      %v3425 = vmul.f32 1.0, %v3424
      %3443 = vrot.lane.b32.xlu0 %v3393, 120
      %v3444 = vpop.permute.xlu0 %3443
      %3445 = vrot.lane.b32.xlu0 %v3395, 120
      %v3446 = vpop.permute.xlu0 %3445
      %3447 = vrot.lane.b32.xlu0 %v3397, 120
      %v3448 = vpop.permute.xlu0 %3447
      %3449 = vrot.lane.b32.xlu0 %v3399, 120
      %v3450 = vpop.permute.xlu0 %3449
      %3451 = vrot.lane.b32.xlu0 %v3401, 120
      %v3452 = vpop.permute.xlu0 %3451
      %3453 = vrot.lane.b32.xlu0 %v3403, 120
      %v3454 = vpop.permute.xlu0 %3453
      %3455 = vrot.lane.b32.xlu0 %v3405, 120
      %v3456 = vpop.permute.xlu0 %3455
      %3457 = vrot.lane.b32.xlu0 %v3407, 120
      %v3458 = vpop.permute.xlu0 %3457
      %3459 = vrot.lane.b32.xlu0 %v3409, 120
      %v3460 = vpop.permute.xlu0 %3459
      %3461 = vrot.lane.b32.xlu0 %v3411, 120
      %v3462 = vpop.permute.xlu0 %3461
      %3463 = vrot.lane.b32.xlu0 %v3413, 120
      %v3464 = vpop.permute.xlu0 %3463
      %3465 = vrot.lane.b32.xlu0 %v3415, 120
      %v3466 = vpop.permute.xlu0 %3465
      %3467 = vrot.lane.b32.xlu0 %v3417, 120
      %v3468 = vpop.permute.xlu0 %3467
      %3469 = vrot.lane.b32.xlu0 %v3419, 120
      %v3470 = vpop.permute.xlu0 %3469
      %3471 = vrot.lane.b32.xlu0 %v3421, 120
      %v3472 = vpop.permute.xlu0 %3471
      %3473 = vrot.lane.b32.xlu0 %v3423, 120
      %v3474 = vpop.permute.xlu0 %3473
      %3475 = vrot.lane.b32.xlu0 %v3425, 120
      %v3476 = vpop.permute.xlu0 %3475
      %v3494 = vmul.f32 %v3307, %v3444
      %v3495 = vmul.f32 %v3308, %v3446
      %v3496 = vmul.f32 %v3309, %v3448
      %v3497 = vmul.f32 %v3310, %v3450
      %v3498 = vmul.f32 %v3311, %v3452
      %v3499 = vmul.f32 %v3312, %v3454
      %v3500 = vmul.f32 %v3313, %v3456
      %v3501 = vmul.f32 %v3314, %v3458
      %v3502 = vmul.f32 %v3315, %v3460
      %v3503 = vmul.f32 %v3316, %v3462
      %v3504 = vmul.f32 %v3317, %v3464
      %v3505 = vmul.f32 %v3318, %v3466
      %v3506 = vmul.f32 %v3319, %v3468
      %v3507 = vmul.f32 %v3320, %v3470
      %v3508 = vmul.f32 %v3321, %v3472
      %v3509 = vmul.f32 %v3322, %v3474
      %v3510 = vmul.f32 %v3323, %v3476
      %v3511 = vpack.c.bf16 %v3495, %v3494
      %v3512 = vpack.c.bf16 %v3497, %v3496
      %v3513 = vpack.c.bf16 %v3499, %v3498
      %v3514 = vpack.c.bf16 %v3501, %v3500
      %v3515 = vpack.c.bf16 %v3503, %v3502
      %v3516 = vpack.c.bf16 %v3505, %v3504
      %v3517 = vpack.c.bf16 %v3507, %v3506
      %v3518 = vpack.c.bf16 %v3509, %v3508
      %v3519 = vpack.c.bf16 %v3510, %v3510
      %v3529 = vunpack.c.l.b16 %v3511
      %v3530 = vunpack.c.h.b16 %v3511
      %v3531 = vunpack.c.l.b16 %v3512
      %v3532 = vunpack.c.h.b16 %v3512
      %v3533 = vunpack.c.l.b16 %v3513
      %v3534 = vunpack.c.h.b16 %v3513
      %v3535 = vunpack.c.l.b16 %v3514
      %v3536 = vunpack.c.h.b16 %v3514
      %v3537 = vunpack.c.l.b16 %v3515
      %v3538 = vunpack.c.h.b16 %v3515
      %v3539 = vunpack.c.l.b16 %v3516
      %v3540 = vunpack.c.h.b16 %v3516
      %v3541 = vunpack.c.l.b16 %v3517
      %v3542 = vunpack.c.h.b16 %v3517
      %v3543 = vunpack.c.l.b16 %v3518
      %v3544 = vunpack.c.h.b16 %v3518
      %v3545 = vunpack.c.l.b16 %v3519
      %v3546 = vpack.c.b16 %v3529, %v3529
      %v3547 = vpack.c.b16 %v3530, %v3530
      %v3548 = vpack.c.b16 %v3531, %v3531
      %v3549 = vpack.c.b16 %v3532, %v3532
      %v3550 = vpack.c.b16 %v3533, %v3533
      %v3551 = vpack.c.b16 %v3534, %v3534
      %v3552 = vpack.c.b16 %v3535, %v3535
      %v3553 = vpack.c.b16 %v3536, %v3536
      %v3554 = vpack.c.b16 %v3537, %v3537
      %v3555 = vpack.c.b16 %v3538, %v3538
      %v3556 = vpack.c.b16 %v3539, %v3539
      %v3557 = vpack.c.b16 %v3540, %v3540
      %v3558 = vpack.c.b16 %v3541, %v3541
      %v3559 = vpack.c.b16 %v3542, %v3542
      %v3560 = vpack.c.b16 %v3543, %v3543
      %v3561 = vpack.c.b16 %v3544, %v3544
      %v3562 = vpack.c.b16 %v3545, %v3545
      %3563 = vrot.lane.b32.xlu0 %v3546, 52
      %v3564 = vpop.permute.xlu0 %3563
      %3565 = vrot.lane.b32.xlu0 %v3547, 52
      %v3566 = vpop.permute.xlu0 %3565
      %3567 = vrot.lane.b32.xlu0 %v3548, 52
      %v3568 = vpop.permute.xlu0 %3567
      %3569 = vrot.lane.b32.xlu0 %v3549, 52
      %v3570 = vpop.permute.xlu0 %3569
      %3571 = vrot.lane.b32.xlu0 %v3550, 52
      %v3572 = vpop.permute.xlu0 %3571
      %3573 = vrot.lane.b32.xlu0 %v3551, 52
      %v3574 = vpop.permute.xlu0 %3573
      %3575 = vrot.lane.b32.xlu0 %v3552, 52
      %v3576 = vpop.permute.xlu0 %3575
      %3577 = vrot.lane.b32.xlu0 %v3553, 52
      %v3578 = vpop.permute.xlu0 %3577
      %3579 = vrot.lane.b32.xlu0 %v3554, 52
      %v3580 = vpop.permute.xlu0 %3579
      %3581 = vrot.lane.b32.xlu0 %v3555, 52
      %v3582 = vpop.permute.xlu0 %3581
      %3583 = vrot.lane.b32.xlu0 %v3556, 52
      %v3584 = vpop.permute.xlu0 %3583
      %3585 = vrot.lane.b32.xlu0 %v3557, 52
      %v3586 = vpop.permute.xlu0 %3585
      %3587 = vrot.lane.b32.xlu0 %v3558, 52
      %v3588 = vpop.permute.xlu0 %3587
      %3589 = vrot.lane.b32.xlu0 %v3559, 52
      %v3590 = vpop.permute.xlu0 %3589
      %3591 = vrot.lane.b32.xlu0 %v3560, 52
      %v3592 = vpop.permute.xlu0 %3591
      %3593 = vrot.lane.b32.xlu0 %v3561, 52
      %v3594 = vpop.permute.xlu0 %3593
      %3595 = vrot.lane.b32.xlu0 %v3562, 52
      %v3596 = vpop.permute.xlu0 %3595
      %vm3614 = vcmask 486816
      %3615 = vst.msk [vmem:[#allocation2] sm:$0xf] %vm3614, %v3564
      %3616 = vst.msk [vmem:[#allocation2 + $0x4] sm:$0xf] %vm3614, %v3566
      %3617 = vst.msk [vmem:[#allocation2 + $0x8] sm:$0xf] %vm3614, %v3568
      %3618 = vst.msk [vmem:[#allocation2 + $0xc] sm:$0xf] %vm3614, %v3570
      %3619 = vst.msk [vmem:[#allocation2 + $0x10] sm:$0xf] %vm3614, %v3572
      %3620 = vst.msk [vmem:[#allocation2 + $0x14] sm:$0xf] %vm3614, %v3574
      %3621 = vst.msk [vmem:[#allocation2 + $0x18] sm:$0xf] %vm3614, %v3576
      %3622 = vst.msk [vmem:[#allocation2 + $0x1c] sm:$0xf] %vm3614, %v3578
      %3623 = vst.msk [vmem:[#allocation2 + $0x20] sm:$0xf] %vm3614, %v3580
      %3624 = vst.msk [vmem:[#allocation2 + $0x24] sm:$0xf] %vm3614, %v3582
      %3625 = vst.msk [vmem:[#allocation2 + $0x28] sm:$0xf] %vm3614, %v3584
      %3626 = vst.msk [vmem:[#allocation2 + $0x2c] sm:$0xf] %vm3614, %v3586
      %3627 = vst.msk [vmem:[#allocation2 + $0x30] sm:$0xf] %vm3614, %v3588
      %3628 = vst.msk [vmem:[#allocation2 + $0x34] sm:$0xf] %vm3614, %v3590
      %3629 = vst.msk [vmem:[#allocation2 + $0x38] sm:$0xf] %vm3614, %v3592
      %3630 = vst.msk [vmem:[#allocation2 + $0x3c] sm:$0xf] %vm3614, %v3594
      %3631 = vst.msk [vmem:[#allocation2 + $0x40] sm:$0xf] %vm3614, %v3596
      %v3632 = vld [vmem:[#allocation2] sm:$0xf]
      %v3633 = vld [vmem:[#allocation2 + $0x4] sm:$0xf]
      %v3634 = vld [vmem:[#allocation2 + $0x8] sm:$0xf]
      %v3635 = vld [vmem:[#allocation2 + $0xc] sm:$0xf]
      %v3636 = vld [vmem:[#allocation2 + $0x10] sm:$0xf]
      %v3637 = vld [vmem:[#allocation2 + $0x14] sm:$0xf]
      %v3638 = vld [vmem:[#allocation2 + $0x18] sm:$0xf]
      %v3639 = vld [vmem:[#allocation2 + $0x1c] sm:$0xf]
      %v3640 = vld [vmem:[#allocation2 + $0x20] sm:$0xf]
      %v3641 = vld [vmem:[#allocation2 + $0x24] sm:$0xf]
      %v3642 = vld [vmem:[#allocation2 + $0x28] sm:$0xf]
      %v3643 = vld [vmem:[#allocation2 + $0x2c] sm:$0xf]
      %v3644 = vld [vmem:[#allocation2 + $0x30] sm:$0xf]
      %v3645 = vld [vmem:[#allocation2 + $0x34] sm:$0xf]
      %v3646 = vld [vmem:[#allocation2 + $0x38] sm:$0xf]
      %v3647 = vld [vmem:[#allocation2 + $0x3c] sm:$0xf]
      %v3648 = vld [vmem:[#allocation2 + $0x40] sm:$0xf]
      %v3649 = vld [vmem:[%s9] sm:$0xf]
      %v3650 = vld [vmem:[%s9 + $0x4] sm:$0xf]
      %v3651 = vld [vmem:[%s9 + $0x8] sm:$0xf]
      %v3652 = vld [vmem:[%s9 + $0xc] sm:$0xf]
      %v3653 = vld [vmem:[%s9 + $0x10] sm:$0xf]
      %v3654 = vld [vmem:[%s9 + $0x14] sm:$0xf]
      %v3655 = vld [vmem:[%s9 + $0x18] sm:$0xf]
      %v3656 = vld [vmem:[%s9 + $0x1c] sm:$0xf]
      %v3657 = vld [vmem:[%s9 + $0x20] sm:$0xf]
      %v3658 = vld [vmem:[%s9 + $0x24] sm:$0xf]
      %v3659 = vld [vmem:[%s9 + $0x28] sm:$0xf]
      %v3660 = vld [vmem:[%s9 + $0x2c] sm:$0xf]
      %v3661 = vld [vmem:[%s9 + $0x30] sm:$0xf]
      %v3662 = vld [vmem:[%s9 + $0x34] sm:$0xf]
      %v3663 = vld [vmem:[%s9 + $0x38] sm:$0xf]
      %v3664 = vld [vmem:[%s9 + $0x3c] sm:$0xf]
      %v3665 = vld [vmem:[%s10] sm:$0xf]
      %v3666 = vld [vmem:[%s10 + $0x4] sm:$0xf]
      %v3667 = vld [vmem:[%s10 + $0x8] sm:$0xf]
      %v3668 = vld [vmem:[%s10 + $0xc] sm:$0xf]
      %v3669 = vld [vmem:[%s10 + $0x10] sm:$0xf]
      %v3670 = vld [vmem:[%s10 + $0x14] sm:$0xf]
      %v3671 = vld [vmem:[%s10 + $0x18] sm:$0xf]
      %v3672 = vld [vmem:[%s10 + $0x1c] sm:$0xf]
      %v3673 = vld [vmem:[%s10 + $0x20] sm:$0xf]
      %v3674 = vld [vmem:[%s10 + $0x24] sm:$0xf]
      %v3675 = vld [vmem:[%s10 + $0x28] sm:$0xf]
      %v3676 = vld [vmem:[%s10 + $0x2c] sm:$0xf]
      %v3677 = vld [vmem:[%s10 + $0x30] sm:$0xf]
      %v3678 = vld [vmem:[%s10 + $0x34] sm:$0xf]
      %v3679 = vld [vmem:[%s10 + $0x38] sm:$0xf]
      %v3680 = vld [vmem:[%s10 + $0x3c] sm:$0xf]
      %v3698 = vunpack.c.l.b16 %v3632
      %v3699 = vunpack.c.l.b16 %v3633
      %v3700 = vunpack.c.l.b16 %v3634
      %v3701 = vunpack.c.l.b16 %v3635
      %v3702 = vunpack.c.l.b16 %v3636
      %v3703 = vunpack.c.l.b16 %v3637
      %v3704 = vunpack.c.l.b16 %v3638
      %v3705 = vunpack.c.l.b16 %v3639
      %v3706 = vunpack.c.l.b16 %v3640
      %v3707 = vunpack.c.l.b16 %v3641
      %v3708 = vunpack.c.l.b16 %v3642
      %v3709 = vunpack.c.l.b16 %v3643
      %v3710 = vunpack.c.l.b16 %v3644
      %v3711 = vunpack.c.l.b16 %v3645
      %v3712 = vunpack.c.l.b16 %v3646
      %v3713 = vunpack.c.l.b16 %v3647
      %v3714 = vunpack.c.l.b16 %v3648
      %v3715 = vpack.c.b16 %v3699, %v3698
      %v3716 = vpack.c.b16 %v3701, %v3700
      %v3717 = vpack.c.b16 %v3703, %v3702
      %v3718 = vpack.c.b16 %v3705, %v3704
      %v3719 = vpack.c.b16 %v3707, %v3706
      %v3720 = vpack.c.b16 %v3709, %v3708
      %v3721 = vpack.c.b16 %v3711, %v3710
      %v3722 = vpack.c.b16 %v3713, %v3712
      %v3723 = vpack.c.b16 %v3714, %v3714
      %v3749 = vunpack.c.l.b16 %v3665
      %v3750 = vunpack.c.l.b16 %v3666
      %v3751 = vunpack.c.l.b16 %v3667
      %v3752 = vunpack.c.l.b16 %v3668
      %v3753 = vunpack.c.l.b16 %v3669
      %v3754 = vunpack.c.l.b16 %v3670
      %v3755 = vunpack.c.l.b16 %v3671
      %v3756 = vunpack.c.l.b16 %v3672
      %v3757 = vunpack.c.l.b16 %v3673
      %v3758 = vunpack.c.l.b16 %v3674
      %v3759 = vunpack.c.l.b16 %v3675
      %v3760 = vunpack.c.l.b16 %v3676
      %v3761 = vunpack.c.l.b16 %v3677
      %v3762 = vunpack.c.l.b16 %v3678
      %v3763 = vunpack.c.l.b16 %v3679
      %v3764 = vunpack.c.l.b16 %v3680
      %v3765 = vpack.c.b16 %v3750, %v3749
      %v3766 = vpack.c.b16 %v3752, %v3751
      %v3767 = vpack.c.b16 %v3754, %v3753
      %v3768 = vpack.c.b16 %v3756, %v3755
      %v3769 = vpack.c.b16 %v3758, %v3757
      %v3770 = vpack.c.b16 %v3760, %v3759
      %v3771 = vpack.c.b16 %v3762, %v3761
      %v3772 = vpack.c.b16 %v3764, %v3763
      %3781 = vmatprep.subr.bf16.mxu0 0
      %3782 = vmatpush1.bf16.msra.mxu0 %v3765
      %3783 = vmatprep.subr.bf16.mxu0 0
      %3784 = vmatpush1.bf16.msra.mxu0 %v3766
      %3785 = vmatprep.subr.bf16.mxu0 0
      %3786 = vmatpush1.bf16.msra.mxu0 %v3767
      %3787 = vmatprep.subr.bf16.mxu0 0
      %3788 = vmatpush1.bf16.msra.mxu0 %v3768
      %3789 = vmatprep.subr.bf16.mxu0 0
      %3790 = vmatpush1.bf16.msra.mxu0 %v3769
      %3791 = vmatprep.subr.bf16.mxu0 0
      %3792 = vmatpush1.bf16.msra.mxu0 %v3770
      %3793 = vmatprep.subr.bf16.mxu0 0
      %3794 = vmatpush1.bf16.msra.mxu0 %v3771
      %3795 = vmatprep.subr.bf16.mxu0 0
      %3796 = vmatpush1.bf16.msra.mxu0 %v3772
      %3797 = vmatprep.subr.bf16.mxu0 0
      %3798 = vmatpush1.bf16.msra.mxu0 0
      %3799 = vmatprep.subr.bf16.mxu0 0
      %3800 = vmatpush1.bf16.msra.mxu0 0
      %3801 = vmatprep.subr.bf16.mxu0 0
      %3802 = vmatpush1.bf16.msra.mxu0 0
      %3803 = vmatprep.subr.bf16.mxu0 0
      %3804 = vmatpush1.bf16.msra.mxu0 0
      %3805 = vmatprep.subr.bf16.mxu0 0
      %3806 = vmatpush1.bf16.msra.mxu0 0
      %3807 = vmatprep.subr.bf16.mxu0 0
      %3808 = vmatpush1.bf16.msra.mxu0 0
      %3809 = vmatprep.subr.bf16.mxu0 0
      %3810 = vmatpush1.bf16.msra.mxu0 0
      %3811 = vmatprep.subr.bf16.mxu0 0
      %3812 = vmatpush1.bf16.msra.mxu0 0
      %3813 = vmatprep.mubr.bf16.mxu0 0
      %3814 = vmatmul.mubr.bf16.gmra.mrb[0].mxu0 %v3715
      %v3815 = vpop.f32.mrb[0].mxu0
      %v3816 = vadd.f32 0.0, %v3815
      %v3817 = vpop.f32.mrb[0].mxu0
      %v3818 = vpop.f32.mrb[0].mxu0
      %v3819 = vadd.f32 0.0, %v3818
      %v3820 = vpop.f32.mrb[0].mxu0
      %3821 = vmatprep.mubr.bf16.mxu0 0
      %3822 = vmatmul.mubr.bf16.gmra.mrb[0].mxu0 %v3716
      %v3823 = vpop.f32.mrb[0].mxu0
      %v3824 = vadd.f32 0.0, %v3823
      %v3825 = vpop.f32.mrb[0].mxu0
      %v3826 = vpop.f32.mrb[0].mxu0
      %v3827 = vadd.f32 0.0, %v3826
      %v3828 = vpop.f32.mrb[0].mxu0
      %3829 = vmatprep.mubr.bf16.mxu0 0
      %3830 = vmatmul.mubr.bf16.gmra.mrb[0].mxu0 %v3717
      %v3831 = vpop.f32.mrb[0].mxu0
      %v3832 = vadd.f32 0.0, %v3831
      %v3833 = vpop.f32.mrb[0].mxu0
      %v3834 = vpop.f32.mrb[0].mxu0
      %v3835 = vadd.f32 0.0, %v3834
      %v3836 = vpop.f32.mrb[0].mxu0
      %3837 = vmatprep.mubr.bf16.mxu0 0
      %3838 = vmatmul.mubr.bf16.gmra.mrb[0].mxu0 %v3718
      %v3839 = vpop.f32.mrb[0].mxu0
      %v3840 = vadd.f32 0.0, %v3839
      %v3841 = vpop.f32.mrb[0].mxu0
      %v3842 = vpop.f32.mrb[0].mxu0
      %v3843 = vadd.f32 0.0, %v3842
      %v3844 = vpop.f32.mrb[0].mxu0
      %3845 = vmatprep.mubr.bf16.mxu0 0
      %3846 = vmatmul.mubr.bf16.gmra.mrb[0].mxu0 %v3719
      %v3847 = vpop.f32.mrb[0].mxu0
      %v3848 = vadd.f32 0.0, %v3847
      %v3849 = vpop.f32.mrb[0].mxu0
      %v3850 = vpop.f32.mrb[0].mxu0
      %v3851 = vadd.f32 0.0, %v3850
      %v3852 = vpop.f32.mrb[0].mxu0
      %3853 = vmatprep.mubr.bf16.mxu0 0
      %3854 = vmatmul.mubr.bf16.gmra.mrb[0].mxu0 %v3720
      %v3855 = vpop.f32.mrb[0].mxu0
      %v3856 = vadd.f32 0.0, %v3855
      %v3857 = vpop.f32.mrb[0].mxu0
      %v3858 = vpop.f32.mrb[0].mxu0
      %v3859 = vadd.f32 0.0, %v3858
      %v3860 = vpop.f32.mrb[0].mxu0
      %3861 = vmatprep.mubr.bf16.mxu0 0
      %3862 = vmatmul.mubr.bf16.gmra.mrb[0].mxu0 %v3721
      %v3863 = vpop.f32.mrb[0].mxu0
      %v3864 = vadd.f32 0.0, %v3863
      %v3865 = vpop.f32.mrb[0].mxu0
      %v3866 = vpop.f32.mrb[0].mxu0
      %v3867 = vadd.f32 0.0, %v3866
      %v3868 = vpop.f32.mrb[0].mxu0
      %3869 = vmatprep.mubr.bf16.mxu0 0
      %3870 = vmatmul.mubr.bf16.gmra.mrb[0].mxu0 %v3722
      %v3871 = vpop.f32.mrb[0].mxu0
      %v3872 = vadd.f32 0.0, %v3871
      %v3873 = vpop.f32.mrb[0].mxu0
      %v3874 = vpop.f32.mrb[0].mxu0
      %v3875 = vadd.f32 0.0, %v3874
      %v3876 = vpop.f32.mrb[0].mxu0
      %3877 = vmatprep.mubr.bf16.mxu0 0
      %3878 = vmatmul.mubr.bf16.gmra.mrb[0].mxu0 %v3723
      %v3879 = vpop.f32.mrb[0].mxu0
      %v3880 = vadd.f32 0.0, %v3879
      %v3881 = vpop.f32.mrb[0].mxu0
      %v3882 = vpop.f32.mrb[0].mxu0
      %v3883 = vpop.f32.mrb[0].mxu0
      %3884 = vdwg.mxu0
      %v3885 = vrot.slane %v3816, 6
      %v3886 = vrot.slane %v3819, 6
      %v3887 = vrot.slane %v3824, 6
      %v3888 = vrot.slane %v3827, 6
      %v3889 = vrot.slane %v3832, 6
      %v3890 = vrot.slane %v3835, 6
      %v3891 = vrot.slane %v3840, 6
      %v3892 = vrot.slane %v3843, 6
      %v3893 = vrot.slane %v3848, 6
      %v3894 = vrot.slane %v3851, 6
      %v3895 = vrot.slane %v3856, 6
      %v3896 = vrot.slane %v3859, 6
      %v3897 = vrot.slane %v3864, 6
      %v3898 = vrot.slane %v3867, 6
      %v3899 = vrot.slane %v3872, 6
      %v3900 = vrot.slane %v3875, 6
      %v3901 = vrot.slane %v3880, 6
      %vm3902 = vcmp.lt.s32.totalorder %v650, 2
      %v3903 = vsel %vm3902, %v3900, %v3901
      %v3904 = vsel %vm3902, %v3899, %v3900
      %v3905 = vsel %vm3902, %v3898, %v3899
      %v3906 = vsel %vm3902, %v3897, %v3898
      %v3907 = vsel %vm3902, %v3896, %v3897
      %v3908 = vsel %vm3902, %v3895, %v3896
      %v3909 = vsel %vm3902, %v3894, %v3895
      %v3910 = vsel %vm3902, %v3893, %v3894
      %v3911 = vsel %vm3902, %v3892, %v3893
      %v3912 = vsel %vm3902, %v3891, %v3892
      %v3913 = vsel %vm3902, %v3890, %v3891
      %v3914 = vsel %vm3902, %v3889, %v3890
      %v3915 = vsel %vm3902, %v3888, %v3889
      %v3916 = vsel %vm3902, %v3887, %v3888
      %v3917 = vsel %vm3902, %v3886, %v3887
      %v3918 = vsel %vm3902, %v3885, %v3886
      %v3919 = vsel %vm3902, %v3901, %v3885
      %vm3920 = vcmp.lt.s32.totalorder %v667, 2
      %vm3921 = vcmp.lt.s32.totalorder %v668, 2
      %vm3922 = vcmp.lt.s32.totalorder %v669, 2
      %vm3923 = vcmp.lt.s32.totalorder %v670, 2
      %vm3924 = vcmp.lt.s32.totalorder %v671, 2
      %vm3925 = vcmp.lt.s32.totalorder %v672, 2
      %vm3926 = vcmp.lt.s32.totalorder %v673, 2
      %vm3927 = vcmp.lt.s32.totalorder %v674, 2
      %vm3928 = vcmp.lt.s32.totalorder %v675, 2
      %vm3929 = vcmp.lt.s32.totalorder %v676, 2
      %vm3930 = vcmp.lt.s32.totalorder %v677, 2
      %vm3931 = vcmp.lt.s32.totalorder %v678, 2
      %vm3932 = vcmp.lt.s32.totalorder %v679, 2
      %vm3933 = vcmp.lt.s32.totalorder %v680, 2
      %vm3934 = vcmp.lt.s32.totalorder %v681, 2
      %vm3935 = vcmp.lt.s32.totalorder %v682, 2
      %vm3936 = vcmp.lt.s32.totalorder %v683, 2
      %v3937 = vsel %vm3920, 1, 0
      %v3938 = vsel %vm3921, 1, 0
      %v3939 = vsel %vm3922, 1, 0
      %v3940 = vsel %vm3923, 1, 0
      %v3941 = vsel %vm3924, 1, 0
      %v3942 = vsel %vm3925, 1, 0
      %v3943 = vsel %vm3926, 1, 0
      %v3944 = vsel %vm3927, 1, 0
      %v3945 = vsel %vm3928, 1, 0
      %v3946 = vsel %vm3929, 1, 0
      %v3947 = vsel %vm3930, 1, 0
      %v3948 = vsel %vm3931, 1, 0
      %v3949 = vsel %vm3932, 1, 0
      %v3950 = vsel %vm3933, 1, 0
      %v3951 = vsel %vm3934, 1, 0
      %v3952 = vsel %vm3935, 1, 0
      %v3953 = vsel %vm3936, 1, 0
      %vm3954 = vcmp.eq.s32.totalorder %v3937, 1
      %vm3955 = vcmp.eq.s32.totalorder %v3938, 1
      %vm3956 = vcmp.eq.s32.totalorder %v3939, 1
      %vm3957 = vcmp.eq.s32.totalorder %v3940, 1
      %vm3958 = vcmp.eq.s32.totalorder %v3941, 1
      %vm3959 = vcmp.eq.s32.totalorder %v3942, 1
      %vm3960 = vcmp.eq.s32.totalorder %v3943, 1
      %vm3961 = vcmp.eq.s32.totalorder %v3944, 1
      %vm3962 = vcmp.eq.s32.totalorder %v3945, 1
      %vm3963 = vcmp.eq.s32.totalorder %v3946, 1
      %vm3964 = vcmp.eq.s32.totalorder %v3947, 1
      %vm3965 = vcmp.eq.s32.totalorder %v3948, 1
      %vm3966 = vcmp.eq.s32.totalorder %v3949, 1
      %vm3967 = vcmp.eq.s32.totalorder %v3950, 1
      %vm3968 = vcmp.eq.s32.totalorder %v3951, 1
      %vm3969 = vcmp.eq.s32.totalorder %v3952, 1
      %vm3970 = vcmp.eq.s32.totalorder %v3953, 1
      %v3971 = vsel %vm3954, 0.0, %v3919
      %v3972 = vsel %vm3955, 0.0, %v3918
      %v3973 = vsel %vm3956, 0.0, %v3917
      %v3974 = vsel %vm3957, 0.0, %v3916
      %v3975 = vsel %vm3958, 0.0, %v3915
      %v3976 = vsel %vm3959, 0.0, %v3914
      %v3977 = vsel %vm3960, 0.0, %v3913
      %v3978 = vsel %vm3961, 0.0, %v3912
      %v3979 = vsel %vm3962, 0.0, %v3911
      %v3980 = vsel %vm3963, 0.0, %v3910
      %v3981 = vsel %vm3964, 0.0, %v3909
      %v3982 = vsel %vm3965, 0.0, %v3908
      %v3983 = vsel %vm3966, 0.0, %v3907
      %v3984 = vsel %vm3967, 0.0, %v3906
      %v3985 = vsel %vm3968, 0.0, %v3905
      %v3986 = vsel %vm3969, 0.0, %v3904
      %v3987 = vsel %vm3970, 0.0, %v3903
      %v4004 = vunpack.c.l.b16 %v3649
      %v4005 = vunpack.c.l.b16 %v3650
      %v4006 = vunpack.c.l.b16 %v3651
      %v4007 = vunpack.c.l.b16 %v3652
      %v4008 = vunpack.c.l.b16 %v3653
      %v4009 = vunpack.c.l.b16 %v3654
      %v4010 = vunpack.c.l.b16 %v3655
      %v4011 = vunpack.c.l.b16 %v3656
      %v4012 = vunpack.c.l.b16 %v3657
      %v4013 = vunpack.c.l.b16 %v3658
      %v4014 = vunpack.c.l.b16 %v3659
      %v4015 = vunpack.c.l.b16 %v3660
      %v4016 = vunpack.c.l.b16 %v3661
      %v4017 = vunpack.c.l.b16 %v3662
      %v4018 = vunpack.c.l.b16 %v3663
      %v4019 = vunpack.c.l.b16 %v3664
      %v4020 = vpack.c.b16 %v4005, %v4004
      %v4021 = vpack.c.b16 %v4007, %v4006
      %v4022 = vpack.c.b16 %v4009, %v4008
      %v4023 = vpack.c.b16 %v4011, %v4010
      %v4024 = vpack.c.b16 %v4013, %v4012
      %v4025 = vpack.c.b16 %v4015, %v4014
      %v4026 = vpack.c.b16 %v4017, %v4016
      %v4027 = vpack.c.b16 %v4019, %v4018
      %4036 = vmatprep.subr.bf16.mxu0 0
      %4037 = vmatpush1.bf16.msra.mxu0 %v4020
      %4038 = vmatprep.subr.bf16.mxu0 0
      %4039 = vmatpush1.bf16.msra.mxu0 %v4021
      %4040 = vmatprep.subr.bf16.mxu0 0
      %4041 = vmatpush1.bf16.msra.mxu0 %v4022
      %4042 = vmatprep.subr.bf16.mxu0 0
      %4043 = vmatpush1.bf16.msra.mxu0 %v4023
      %4044 = vmatprep.subr.bf16.mxu0 0
      %4045 = vmatpush1.bf16.msra.mxu0 %v4024
      %4046 = vmatprep.subr.bf16.mxu0 0
      %4047 = vmatpush1.bf16.msra.mxu0 %v4025
      %4048 = vmatprep.subr.bf16.mxu0 0
      %4049 = vmatpush1.bf16.msra.mxu0 %v4026
      %4050 = vmatprep.subr.bf16.mxu0 0
      %4051 = vmatpush1.bf16.msra.mxu0 %v4027
      %4052 = vmatprep.subr.bf16.mxu0 0
      %4053 = vmatpush1.bf16.msra.mxu0 0
      %4054 = vmatprep.subr.bf16.mxu0 0
      %4055 = vmatpush1.bf16.msra.mxu0 0
      %4056 = vmatprep.subr.bf16.mxu0 0
      %4057 = vmatpush1.bf16.msra.mxu0 0
      %4058 = vmatprep.subr.bf16.mxu0 0
      %4059 = vmatpush1.bf16.msra.mxu0 0
      %4060 = vmatprep.subr.bf16.mxu0 0
      %4061 = vmatpush1.bf16.msra.mxu0 0
      %4062 = vmatprep.subr.bf16.mxu0 0
      %4063 = vmatpush1.bf16.msra.mxu0 0
      %4064 = vmatprep.subr.bf16.mxu0 0
      %4065 = vmatpush1.bf16.msra.mxu0 0
      %4066 = vmatprep.subr.bf16.mxu0 0
      %4067 = vmatpush1.bf16.msra.mxu0 0
      %4068 = vmatprep.mubr.bf16.mxu0 0
      %4069 = vmatmul.mubr.bf16.gmra.mrb[0].mxu0 %v3715
      %v4070 = vpop.f32.mrb[0].mxu0
      %v4071 = vadd.f32 %v3971, %v4070
      %v4072 = vpop.f32.mrb[0].mxu0
      %v4073 = vpop.f32.mrb[0].mxu0
      %v4074 = vadd.f32 %v3972, %v4073
      %v4075 = vpop.f32.mrb[0].mxu0
      %4076 = vmatprep.mubr.bf16.mxu0 0
      %4077 = vmatmul.mubr.bf16.gmra.mrb[0].mxu0 %v3716
      %v4078 = vpop.f32.mrb[0].mxu0
      %v4079 = vadd.f32 %v3973, %v4078
      %v4080 = vpop.f32.mrb[0].mxu0
      %v4081 = vpop.f32.mrb[0].mxu0
      %v4082 = vadd.f32 %v3974, %v4081
      %v4083 = vpop.f32.mrb[0].mxu0
      %4084 = vmatprep.mubr.bf16.mxu0 0
      %4085 = vmatmul.mubr.bf16.gmra.mrb[0].mxu0 %v3717
      %v4086 = vpop.f32.mrb[0].mxu0
      %v4087 = vadd.f32 %v3975, %v4086
      %v4088 = vpop.f32.mrb[0].mxu0
      %v4089 = vpop.f32.mrb[0].mxu0
      %v4090 = vadd.f32 %v3976, %v4089
      %v4091 = vpop.f32.mrb[0].mxu0
      %4092 = vmatprep.mubr.bf16.mxu0 0
      %4093 = vmatmul.mubr.bf16.gmra.mrb[0].mxu0 %v3718
      %v4094 = vpop.f32.mrb[0].mxu0
      %v4095 = vadd.f32 %v3977, %v4094
      %v4096 = vpop.f32.mrb[0].mxu0
      %v4097 = vpop.f32.mrb[0].mxu0
      %v4098 = vadd.f32 %v3978, %v4097
      %v4099 = vpop.f32.mrb[0].mxu0
      %4100 = vmatprep.mubr.bf16.mxu0 0
      %4101 = vmatmul.mubr.bf16.gmra.mrb[0].mxu0 %v3719
      %v4102 = vpop.f32.mrb[0].mxu0
      %v4103 = vadd.f32 %v3979, %v4102
      %v4104 = vpop.f32.mrb[0].mxu0
      %v4105 = vpop.f32.mrb[0].mxu0
      %v4106 = vadd.f32 %v3980, %v4105
      %v4107 = vpop.f32.mrb[0].mxu0
      %4108 = vmatprep.mubr.bf16.mxu0 0
      %4109 = vmatmul.mubr.bf16.gmra.mrb[0].mxu0 %v3720
      %v4110 = vpop.f32.mrb[0].mxu0
      %v4111 = vadd.f32 %v3981, %v4110
      %v4112 = vpop.f32.mrb[0].mxu0
      %v4113 = vpop.f32.mrb[0].mxu0
      %v4114 = vadd.f32 %v3982, %v4113
      %v4115 = vpop.f32.mrb[0].mxu0
      %4116 = vmatprep.mubr.bf16.mxu0 0
      %4117 = vmatmul.mubr.bf16.gmra.mrb[0].mxu0 %v3721
      %v4118 = vpop.f32.mrb[0].mxu0
      %v4119 = vadd.f32 %v3983, %v4118
      %v4120 = vpop.f32.mrb[0].mxu0
      %v4121 = vpop.f32.mrb[0].mxu0
      %v4122 = vadd.f32 %v3984, %v4121
      %v4123 = vpop.f32.mrb[0].mxu0
      %4124 = vmatprep.mubr.bf16.mxu0 0
      %4125 = vmatmul.mubr.bf16.gmra.mrb[0].mxu0 %v3722
      %v4126 = vpop.f32.mrb[0].mxu0
      %v4127 = vadd.f32 %v3985, %v4126
      %v4128 = vpop.f32.mrb[0].mxu0
      %v4129 = vpop.f32.mrb[0].mxu0
      %v4130 = vadd.f32 %v3986, %v4129
      %v4131 = vpop.f32.mrb[0].mxu0
      %4132 = vmatprep.mubr.bf16.mxu0 0
      %4133 = vmatmul.mubr.bf16.gmra.mrb[0].mxu0 %v3723
      %v4134 = vpop.f32.mrb[0].mxu0
      %v4135 = vadd.f32 %v3987, %v4134
      %v4136 = vpop.f32.mrb[0].mxu0
      %v4137 = vpop.f32.mrb[0].mxu0
      %v4138 = vpop.f32.mrb[0].mxu0
      %4139 = vdwg.mxu0
      %v4140 = vld [vmem:[%s11] sm:$0x1]
      %v4142 = vlaneseq
      %v4143 = vshrl.u32 %v4142, 7
      %v4144 = vsub.s32 0, %v4143
      %v4145 = vrot.slane %v4140, %v4144
      %v4147 = vadd.f32 %v4071, %v4145
      %v4148 = vadd.f32 %v4074, %v4145
      %v4149 = vadd.f32 %v4079, %v4145
      %v4150 = vadd.f32 %v4082, %v4145
      %v4151 = vadd.f32 %v4087, %v4145
      %v4152 = vadd.f32 %v4090, %v4145
      %v4153 = vadd.f32 %v4095, %v4145
      %v4154 = vadd.f32 %v4098, %v4145
      %v4155 = vadd.f32 %v4103, %v4145
      %v4156 = vadd.f32 %v4106, %v4145
      %v4157 = vadd.f32 %v4111, %v4145
      %v4158 = vadd.f32 %v4114, %v4145
      %v4159 = vadd.f32 %v4119, %v4145
      %v4160 = vadd.f32 %v4122, %v4145
      %v4161 = vadd.f32 %v4127, %v4145
      %v4162 = vadd.f32 %v4130, %v4145
      %v4163 = vadd.f32 %v4135, %v4145
      %v4164 = vtanh.pop %v4147
      %v4165 = vtanh.pop %v4148
      %v4166 = vtanh.pop %v4149
      %v4167 = vtanh.pop %v4150
      %v4168 = vtanh.pop %v4151
      %v4169 = vtanh.pop %v4152
      %v4170 = vtanh.pop %v4153
      %v4171 = vtanh.pop %v4154
      %v4172 = vtanh.pop %v4155
      %v4173 = vtanh.pop %v4156
      %v4174 = vtanh.pop %v4157
      %v4175 = vtanh.pop %v4158
      %v4176 = vtanh.pop %v4159
      %v4177 = vtanh.pop %v4160
      %v4178 = vtanh.pop %v4161
      %v4179 = vtanh.pop %v4162
      %v4180 = vtanh.pop %v4163
      %v4181 = vxor.u32 %v4147, 2147483648
      %v4182 = vxor.u32 %v4148, 2147483648
      %v4183 = vxor.u32 %v4149, 2147483648
      %v4184 = vxor.u32 %v4150, 2147483648
      %v4185 = vxor.u32 %v4151, 2147483648
      %v4186 = vxor.u32 %v4152, 2147483648
      %v4187 = vxor.u32 %v4153, 2147483648
      %v4188 = vxor.u32 %v4154, 2147483648
      %v4189 = vxor.u32 %v4155, 2147483648
      %v4190 = vxor.u32 %v4156, 2147483648
      %v4191 = vxor.u32 %v4157, 2147483648
      %v4192 = vxor.u32 %v4158, 2147483648
      %v4193 = vxor.u32 %v4159, 2147483648
      %v4194 = vxor.u32 %v4160, 2147483648
      %v4195 = vxor.u32 %v4161, 2147483648
      %v4196 = vxor.u32 %v4162, 2147483648
      %v4197 = vxor.u32 %v4163, 2147483648
      %v4198 = vmul.f32 %v4181, 1.442695
      %v4199 = vpow.pop %v4198
      %v4200 = vmul.f32 %v4182, 1.442695
      %v4201 = vpow.pop %v4200
      %v4202 = vmul.f32 %v4183, 1.442695
      %v4203 = vpow.pop %v4202
      %v4204 = vmul.f32 %v4184, 1.442695
      %v4205 = vpow.pop %v4204
      %v4206 = vmul.f32 %v4185, 1.442695
      %v4207 = vpow.pop %v4206
      %v4208 = vmul.f32 %v4186, 1.442695
      %v4209 = vpow.pop %v4208
      %v4210 = vmul.f32 %v4187, 1.442695
      %v4211 = vpow.pop %v4210
      %v4212 = vmul.f32 %v4188, 1.442695
      %v4213 = vpow.pop %v4212
      %v4214 = vmul.f32 %v4189, 1.442695
      %v4215 = vpow.pop %v4214
      %v4216 = vmul.f32 %v4190, 1.442695
      %v4217 = vpow.pop %v4216
      %v4218 = vmul.f32 %v4191, 1.442695
      %v4219 = vpow.pop %v4218
      %v4220 = vmul.f32 %v4192, 1.442695
      %v4221 = vpow.pop %v4220
      %v4222 = vmul.f32 %v4193, 1.442695
      %v4223 = vpow.pop %v4222
      %v4224 = vmul.f32 %v4194, 1.442695
      %v4225 = vpow.pop %v4224
      %v4226 = vmul.f32 %v4195, 1.442695
      %v4227 = vpow.pop %v4226
      %v4228 = vmul.f32 %v4196, 1.442695
      %v4229 = vpow.pop %v4228
      %v4230 = vmul.f32 %v4197, 1.442695
      %v4231 = vpow.pop %v4230
      %v4232 = vadd.f32 %v4199, 1.0
      %v4233 = vadd.f32 %v4201, 1.0
      %v4234 = vadd.f32 %v4203, 1.0
      %v4235 = vadd.f32 %v4205, 1.0
      %v4236 = vadd.f32 %v4207, 1.0
      %v4237 = vadd.f32 %v4209, 1.0
      %v4238 = vadd.f32 %v4211, 1.0
      %v4239 = vadd.f32 %v4213, 1.0
      %v4240 = vadd.f32 %v4215, 1.0
      %v4241 = vadd.f32 %v4217, 1.0
      %v4242 = vadd.f32 %v4219, 1.0
      %v4243 = vadd.f32 %v4221, 1.0
      %v4244 = vadd.f32 %v4223, 1.0
      %v4245 = vadd.f32 %v4225, 1.0
      %v4246 = vadd.f32 %v4227, 1.0
      %v4247 = vadd.f32 %v4229, 1.0
      %v4248 = vadd.f32 %v4231, 1.0
      %v4249 = vrcp.pop %v4232
      %v4250 = vmul.f32 1.0, %v4249
      %v4251 = vrcp.pop %v4233
      %v4252 = vmul.f32 1.0, %v4251
      %v4253 = vrcp.pop %v4234
      %v4254 = vmul.f32 1.0, %v4253
      %v4255 = vrcp.pop %v4235
      %v4256 = vmul.f32 1.0, %v4255
      %v4257 = vrcp.pop %v4236
      %v4258 = vmul.f32 1.0, %v4257
      %v4259 = vrcp.pop %v4237
      %v4260 = vmul.f32 1.0, %v4259
      %v4261 = vrcp.pop %v4238
      %v4262 = vmul.f32 1.0, %v4261
      %v4263 = vrcp.pop %v4239
      %v4264 = vmul.f32 1.0, %v4263
      %v4265 = vrcp.pop %v4240
      %v4266 = vmul.f32 1.0, %v4265
      %v4267 = vrcp.pop %v4241
      %v4268 = vmul.f32 1.0, %v4267
      %v4269 = vrcp.pop %v4242
      %v4270 = vmul.f32 1.0, %v4269
      %v4271 = vrcp.pop %v4243
      %v4272 = vmul.f32 1.0, %v4271
      %v4273 = vrcp.pop %v4244
      %v4274 = vmul.f32 1.0, %v4273
      %v4275 = vrcp.pop %v4245
      %v4276 = vmul.f32 1.0, %v4275
      %v4277 = vrcp.pop %v4246
      %v4278 = vmul.f32 1.0, %v4277
      %v4279 = vrcp.pop %v4247
      %v4280 = vmul.f32 1.0, %v4279
      %v4281 = vrcp.pop %v4248
      %v4282 = vmul.f32 1.0, %v4281
      %4300 = vrot.lane.b32.xlu0 %v4250, 120
      %v4301 = vpop.permute.xlu0 %4300
      %4302 = vrot.lane.b32.xlu0 %v4252, 120
      %v4303 = vpop.permute.xlu0 %4302
      %4304 = vrot.lane.b32.xlu0 %v4254, 120
      %v4305 = vpop.permute.xlu0 %4304
      %4306 = vrot.lane.b32.xlu0 %v4256, 120
      %v4307 = vpop.permute.xlu0 %4306
      %4308 = vrot.lane.b32.xlu0 %v4258, 120
      %v4309 = vpop.permute.xlu0 %4308
      %4310 = vrot.lane.b32.xlu0 %v4260, 120
      %v4311 = vpop.permute.xlu0 %4310
      %4312 = vrot.lane.b32.xlu0 %v4262, 120
      %v4313 = vpop.permute.xlu0 %4312
      %4314 = vrot.lane.b32.xlu0 %v4264, 120
      %v4315 = vpop.permute.xlu0 %4314
      %4316 = vrot.lane.b32.xlu0 %v4266, 120
      %v4317 = vpop.permute.xlu0 %4316
      %4318 = vrot.lane.b32.xlu0 %v4268, 120
      %v4319 = vpop.permute.xlu0 %4318
      %4320 = vrot.lane.b32.xlu0 %v4270, 120
      %v4321 = vpop.permute.xlu0 %4320
      %4322 = vrot.lane.b32.xlu0 %v4272, 120
      %v4323 = vpop.permute.xlu0 %4322
      %4324 = vrot.lane.b32.xlu0 %v4274, 120
      %v4325 = vpop.permute.xlu0 %4324
      %4326 = vrot.lane.b32.xlu0 %v4276, 120
      %v4327 = vpop.permute.xlu0 %4326
      %4328 = vrot.lane.b32.xlu0 %v4278, 120
      %v4329 = vpop.permute.xlu0 %4328
      %4330 = vrot.lane.b32.xlu0 %v4280, 120
      %v4331 = vpop.permute.xlu0 %4330
      %4332 = vrot.lane.b32.xlu0 %v4282, 120
      %v4333 = vpop.permute.xlu0 %4332
      %v4351 = vmul.f32 %v4164, %v4301
      %v4352 = vmul.f32 %v4165, %v4303
      %v4353 = vmul.f32 %v4166, %v4305
      %v4354 = vmul.f32 %v4167, %v4307
      %v4355 = vmul.f32 %v4168, %v4309
      %v4356 = vmul.f32 %v4169, %v4311
      %v4357 = vmul.f32 %v4170, %v4313
      %v4358 = vmul.f32 %v4171, %v4315
      %v4359 = vmul.f32 %v4172, %v4317
      %v4360 = vmul.f32 %v4173, %v4319
      %v4361 = vmul.f32 %v4174, %v4321
      %v4362 = vmul.f32 %v4175, %v4323
      %v4363 = vmul.f32 %v4176, %v4325
      %v4364 = vmul.f32 %v4177, %v4327
      %v4365 = vmul.f32 %v4178, %v4329
      %v4366 = vmul.f32 %v4179, %v4331
      %v4367 = vmul.f32 %v4180, %v4333
      %v4368 = vpack.c.bf16 %v4352, %v4351
      %v4369 = vpack.c.bf16 %v4354, %v4353
      %v4370 = vpack.c.bf16 %v4356, %v4355
      %v4371 = vpack.c.bf16 %v4358, %v4357
      %v4372 = vpack.c.bf16 %v4360, %v4359
      %v4373 = vpack.c.bf16 %v4362, %v4361
      %v4374 = vpack.c.bf16 %v4364, %v4363
      %v4375 = vpack.c.bf16 %v4366, %v4365
      %v4376 = vpack.c.bf16 %v4367, %v4367
      %v4386 = vunpack.c.l.b16 %v4368
      %v4387 = vunpack.c.h.b16 %v4368
      %v4388 = vunpack.c.l.b16 %v4369
      %v4389 = vunpack.c.h.b16 %v4369
      %v4390 = vunpack.c.l.b16 %v4370
      %v4391 = vunpack.c.h.b16 %v4370
      %v4392 = vunpack.c.l.b16 %v4371
      %v4393 = vunpack.c.h.b16 %v4371
      %v4394 = vunpack.c.l.b16 %v4372
      %v4395 = vunpack.c.h.b16 %v4372
      %v4396 = vunpack.c.l.b16 %v4373
      %v4397 = vunpack.c.h.b16 %v4373
      %v4398 = vunpack.c.l.b16 %v4374
      %v4399 = vunpack.c.h.b16 %v4374
      %v4400 = vunpack.c.l.b16 %v4375
      %v4401 = vunpack.c.h.b16 %v4375
      %v4402 = vunpack.c.l.b16 %v4376
      %v4403 = vpack.c.b16 %v4386, %v4386
      %v4404 = vpack.c.b16 %v4387, %v4387
      %v4405 = vpack.c.b16 %v4388, %v4388
      %v4406 = vpack.c.b16 %v4389, %v4389
      %v4407 = vpack.c.b16 %v4390, %v4390
      %v4408 = vpack.c.b16 %v4391, %v4391
      %v4409 = vpack.c.b16 %v4392, %v4392
      %v4410 = vpack.c.b16 %v4393, %v4393
      %v4411 = vpack.c.b16 %v4394, %v4394
      %v4412 = vpack.c.b16 %v4395, %v4395
      %v4413 = vpack.c.b16 %v4396, %v4396
      %v4414 = vpack.c.b16 %v4397, %v4397
      %v4415 = vpack.c.b16 %v4398, %v4398
      %v4416 = vpack.c.b16 %v4399, %v4399
      %v4417 = vpack.c.b16 %v4400, %v4400
      %v4418 = vpack.c.b16 %v4401, %v4401
      %v4419 = vpack.c.b16 %v4402, %v4402
      %4420 = vrot.lane.b32.xlu0 %v4403, 60
      %v4421 = vpop.permute.xlu0 %4420
      %4422 = vrot.lane.b32.xlu0 %v4404, 60
      %v4423 = vpop.permute.xlu0 %4422
      %4424 = vrot.lane.b32.xlu0 %v4405, 60
      %v4425 = vpop.permute.xlu0 %4424
      %4426 = vrot.lane.b32.xlu0 %v4406, 60
      %v4427 = vpop.permute.xlu0 %4426
      %4428 = vrot.lane.b32.xlu0 %v4407, 60
      %v4429 = vpop.permute.xlu0 %4428
      %4430 = vrot.lane.b32.xlu0 %v4408, 60
      %v4431 = vpop.permute.xlu0 %4430
      %4432 = vrot.lane.b32.xlu0 %v4409, 60
      %v4433 = vpop.permute.xlu0 %4432
      %4434 = vrot.lane.b32.xlu0 %v4410, 60
      %v4435 = vpop.permute.xlu0 %4434
      %4436 = vrot.lane.b32.xlu0 %v4411, 60
      %v4437 = vpop.permute.xlu0 %4436
      %4438 = vrot.lane.b32.xlu0 %v4412, 60
      %v4439 = vpop.permute.xlu0 %4438
      %4440 = vrot.lane.b32.xlu0 %v4413, 60
      %v4441 = vpop.permute.xlu0 %4440
      %4442 = vrot.lane.b32.xlu0 %v4414, 60
      %v4443 = vpop.permute.xlu0 %4442
      %4444 = vrot.lane.b32.xlu0 %v4415, 60
      %v4445 = vpop.permute.xlu0 %4444
      %4446 = vrot.lane.b32.xlu0 %v4416, 60
      %v4447 = vpop.permute.xlu0 %4446
      %4448 = vrot.lane.b32.xlu0 %v4417, 60
      %v4449 = vpop.permute.xlu0 %4448
      %4450 = vrot.lane.b32.xlu0 %v4418, 60
      %v4451 = vpop.permute.xlu0 %4450
      %4452 = vrot.lane.b32.xlu0 %v4419, 60
      %v4453 = vpop.permute.xlu0 %4452
      %vm4471 = vcmask 552416
      %4472 = vst.msk [vmem:[#allocation2] sm:$0xf] %vm4471, %v4421
      %4473 = vst.msk [vmem:[#allocation2 + $0x4] sm:$0xf] %vm4471, %v4423
      %4474 = vst.msk [vmem:[#allocation2 + $0x8] sm:$0xf] %vm4471, %v4425
      %4475 = vst.msk [vmem:[#allocation2 + $0xc] sm:$0xf] %vm4471, %v4427
      %4476 = vst.msk [vmem:[#allocation2 + $0x10] sm:$0xf] %vm4471, %v4429
      %4477 = vst.msk [vmem:[#allocation2 + $0x14] sm:$0xf] %vm4471, %v4431
      %4478 = vst.msk [vmem:[#allocation2 + $0x18] sm:$0xf] %vm4471, %v4433
      %4479 = vst.msk [vmem:[#allocation2 + $0x1c] sm:$0xf] %vm4471, %v4435
      %4480 = vst.msk [vmem:[#allocation2 + $0x20] sm:$0xf] %vm4471, %v4437
      %4481 = vst.msk [vmem:[#allocation2 + $0x24] sm:$0xf] %vm4471, %v4439
      %4482 = vst.msk [vmem:[#allocation2 + $0x28] sm:$0xf] %vm4471, %v4441
      %4483 = vst.msk [vmem:[#allocation2 + $0x2c] sm:$0xf] %vm4471, %v4443
      %4484 = vst.msk [vmem:[#allocation2 + $0x30] sm:$0xf] %vm4471, %v4445
      %4485 = vst.msk [vmem:[#allocation2 + $0x34] sm:$0xf] %vm4471, %v4447
      %4486 = vst.msk [vmem:[#allocation2 + $0x38] sm:$0xf] %vm4471, %v4449
      %4487 = vst.msk [vmem:[#allocation2 + $0x3c] sm:$0xf] %vm4471, %v4451
      %4488 = vst.msk [vmem:[#allocation2 + $0x40] sm:$0xf] %vm4471, %v4453
      %v4489 = vld [vmem:[#allocation2] sm:$0xf]
      %v4490 = vld [vmem:[#allocation2 + $0x4] sm:$0xf]
      %v4491 = vld [vmem:[#allocation2 + $0x8] sm:$0xf]
      %v4492 = vld [vmem:[#allocation2 + $0xc] sm:$0xf]
      %v4493 = vld [vmem:[#allocation2 + $0x10] sm:$0xf]
      %v4494 = vld [vmem:[#allocation2 + $0x14] sm:$0xf]
      %v4495 = vld [vmem:[#allocation2 + $0x18] sm:$0xf]
      %v4496 = vld [vmem:[#allocation2 + $0x1c] sm:$0xf]
      %v4497 = vld [vmem:[#allocation2 + $0x20] sm:$0xf]
      %v4498 = vld [vmem:[#allocation2 + $0x24] sm:$0xf]
      %v4499 = vld [vmem:[#allocation2 + $0x28] sm:$0xf]
      %v4500 = vld [vmem:[#allocation2 + $0x2c] sm:$0xf]
      %v4501 = vld [vmem:[#allocation2 + $0x30] sm:$0xf]
      %v4502 = vld [vmem:[#allocation2 + $0x34] sm:$0xf]
      %v4503 = vld [vmem:[#allocation2 + $0x38] sm:$0xf]
      %v4504 = vld [vmem:[#allocation2 + $0x3c] sm:$0xf]
      %v4505 = vld [vmem:[#allocation2 + $0x40] sm:$0xf]
      %v4506 = vld [vmem:[%s12] sm:$0xf]
      %v4507 = vld [vmem:[%s12 + $0x4] sm:$0xf]
      %v4508 = vld [vmem:[%s12 + $0x8] sm:$0xf]
      %v4509 = vld [vmem:[%s12 + $0xc] sm:$0xf]
      %v4510 = vld [vmem:[%s12 + $0x10] sm:$0xf]
      %v4511 = vld [vmem:[%s12 + $0x14] sm:$0xf]
      %v4512 = vld [vmem:[%s12 + $0x18] sm:$0xf]
      %v4513 = vld [vmem:[%s12 + $0x1c] sm:$0xf]
      %v4514 = vld [vmem:[%s12 + $0x20] sm:$0xf]
      %v4515 = vld [vmem:[%s12 + $0x24] sm:$0xf]
      %v4516 = vld [vmem:[%s12 + $0x28] sm:$0xf]
      %v4517 = vld [vmem:[%s12 + $0x2c] sm:$0xf]
      %v4518 = vld [vmem:[%s12 + $0x30] sm:$0xf]
      %v4519 = vld [vmem:[%s12 + $0x34] sm:$0xf]
      %v4520 = vld [vmem:[%s12 + $0x38] sm:$0xf]
      %v4521 = vld [vmem:[%s12 + $0x3c] sm:$0xf]
      %v4522 = vld [vmem:[%s13] sm:$0xf]
      %v4523 = vld [vmem:[%s13 + $0x4] sm:$0xf]
      %v4524 = vld [vmem:[%s13 + $0x8] sm:$0xf]
      %v4525 = vld [vmem:[%s13 + $0xc] sm:$0xf]
      %v4526 = vld [vmem:[%s13 + $0x10] sm:$0xf]
      %v4527 = vld [vmem:[%s13 + $0x14] sm:$0xf]
      %v4528 = vld [vmem:[%s13 + $0x18] sm:$0xf]
      %v4529 = vld [vmem:[%s13 + $0x1c] sm:$0xf]
      %v4530 = vld [vmem:[%s13 + $0x20] sm:$0xf]
      %v4531 = vld [vmem:[%s13 + $0x24] sm:$0xf]
      %v4532 = vld [vmem:[%s13 + $0x28] sm:$0xf]
      %v4533 = vld [vmem:[%s13 + $0x2c] sm:$0xf]
      %v4534 = vld [vmem:[%s13 + $0x30] sm:$0xf]
      %v4535 = vld [vmem:[%s13 + $0x34] sm:$0xf]
      %v4536 = vld [vmem:[%s13 + $0x38] sm:$0xf]
      %v4537 = vld [vmem:[%s13 + $0x3c] sm:$0xf]
      %v4555 = vunpack.c.l.b16 %v4489
      %v4556 = vunpack.c.l.b16 %v4490
      %v4557 = vunpack.c.l.b16 %v4491
      %v4558 = vunpack.c.l.b16 %v4492
      %v4559 = vunpack.c.l.b16 %v4493
      %v4560 = vunpack.c.l.b16 %v4494
      %v4561 = vunpack.c.l.b16 %v4495
      %v4562 = vunpack.c.l.b16 %v4496
      %v4563 = vunpack.c.l.b16 %v4497
      %v4564 = vunpack.c.l.b16 %v4498
      %v4565 = vunpack.c.l.b16 %v4499
      %v4566 = vunpack.c.l.b16 %v4500
      %v4567 = vunpack.c.l.b16 %v4501
      %v4568 = vunpack.c.l.b16 %v4502
      %v4569 = vunpack.c.l.b16 %v4503
      %v4570 = vunpack.c.l.b16 %v4504
      %v4571 = vunpack.c.l.b16 %v4505
      %v4572 = vpack.c.b16 %v4556, %v4555
      %v4573 = vpack.c.b16 %v4558, %v4557
      %v4574 = vpack.c.b16 %v4560, %v4559
      %v4575 = vpack.c.b16 %v4562, %v4561
      %v4576 = vpack.c.b16 %v4564, %v4563
      %v4577 = vpack.c.b16 %v4566, %v4565
      %v4578 = vpack.c.b16 %v4568, %v4567
      %v4579 = vpack.c.b16 %v4570, %v4569
      %v4580 = vpack.c.b16 %v4571, %v4571
      %v4606 = vunpack.c.l.b16 %v4522
      %v4607 = vunpack.c.l.b16 %v4523
      %v4608 = vunpack.c.l.b16 %v4524
      %v4609 = vunpack.c.l.b16 %v4525
      %v4610 = vunpack.c.l.b16 %v4526
      %v4611 = vunpack.c.l.b16 %v4527
      %v4612 = vunpack.c.l.b16 %v4528
      %v4613 = vunpack.c.l.b16 %v4529
      %v4614 = vunpack.c.l.b16 %v4530
      %v4615 = vunpack.c.l.b16 %v4531
      %v4616 = vunpack.c.l.b16 %v4532
      %v4617 = vunpack.c.l.b16 %v4533
      %v4618 = vunpack.c.l.b16 %v4534
      %v4619 = vunpack.c.l.b16 %v4535
      %v4620 = vunpack.c.l.b16 %v4536
      %v4621 = vunpack.c.l.b16 %v4537
      %v4622 = vpack.c.b16 %v4607, %v4606
      %v4623 = vpack.c.b16 %v4609, %v4608
      %v4624 = vpack.c.b16 %v4611, %v4610
      %v4625 = vpack.c.b16 %v4613, %v4612
      %v4626 = vpack.c.b16 %v4615, %v4614
      %v4627 = vpack.c.b16 %v4617, %v4616
      %v4628 = vpack.c.b16 %v4619, %v4618
      %v4629 = vpack.c.b16 %v4621, %v4620
      %4638 = vmatprep.subr.bf16.mxu0 0
      %4639 = vmatpush1.bf16.msra.mxu0 %v4622
      %4640 = vmatprep.subr.bf16.mxu0 0
      %4641 = vmatpush1.bf16.msra.mxu0 %v4623
      %4642 = vmatprep.subr.bf16.mxu0 0
      %4643 = vmatpush1.bf16.msra.mxu0 %v4624
      %4644 = vmatprep.subr.bf16.mxu0 0
      %4645 = vmatpush1.bf16.msra.mxu0 %v4625
      %4646 = vmatprep.subr.bf16.mxu0 0
      %4647 = vmatpush1.bf16.msra.mxu0 %v4626
      %4648 = vmatprep.subr.bf16.mxu0 0
      %4649 = vmatpush1.bf16.msra.mxu0 %v4627
      %4650 = vmatprep.subr.bf16.mxu0 0
      %4651 = vmatpush1.bf16.msra.mxu0 %v4628
      %4652 = vmatprep.subr.bf16.mxu0 0
      %4653 = vmatpush1.bf16.msra.mxu0 %v4629
      %4654 = vmatprep.subr.bf16.mxu0 0
      %4655 = vmatpush1.bf16.msra.mxu0 0
      %4656 = vmatprep.subr.bf16.mxu0 0
      %4657 = vmatpush1.bf16.msra.mxu0 0
      %4658 = vmatprep.subr.bf16.mxu0 0
      %4659 = vmatpush1.bf16.msra.mxu0 0
      %4660 = vmatprep.subr.bf16.mxu0 0
      %4661 = vmatpush1.bf16.msra.mxu0 0
      %4662 = vmatprep.subr.bf16.mxu0 0
      %4663 = vmatpush1.bf16.msra.mxu0 0
      %4664 = vmatprep.subr.bf16.mxu0 0
      %4665 = vmatpush1.bf16.msra.mxu0 0
      %4666 = vmatprep.subr.bf16.mxu0 0
      %4667 = vmatpush1.bf16.msra.mxu0 0
      %4668 = vmatprep.subr.bf16.mxu0 0
      %4669 = vmatpush1.bf16.msra.mxu0 0
      %4670 = vmatprep.mubr.bf16.mxu0 0
      %4671 = vmatmul.mubr.bf16.gmra.mrb[0].mxu0 %v4572
      %v4672 = vpop.f32.mrb[0].mxu0
      %v4673 = vadd.f32 0.0, %v4672
      %v4674 = vpop.f32.mrb[0].mxu0
      %v4675 = vpop.f32.mrb[0].mxu0
      %v4676 = vadd.f32 0.0, %v4675
      %v4677 = vpop.f32.mrb[0].mxu0
      %4678 = vmatprep.mubr.bf16.mxu0 0
      %4679 = vmatmul.mubr.bf16.gmra.mrb[0].mxu0 %v4573
      %v4680 = vpop.f32.mrb[0].mxu0
      %v4681 = vadd.f32 0.0, %v4680
      %v4682 = vpop.f32.mrb[0].mxu0
      %v4683 = vpop.f32.mrb[0].mxu0
      %v4684 = vadd.f32 0.0, %v4683
      %v4685 = vpop.f32.mrb[0].mxu0
      %4686 = vmatprep.mubr.bf16.mxu0 0
      %4687 = vmatmul.mubr.bf16.gmra.mrb[0].mxu0 %v4574
      %v4688 = vpop.f32.mrb[0].mxu0
      %v4689 = vadd.f32 0.0, %v4688
      %v4690 = vpop.f32.mrb[0].mxu0
      %v4691 = vpop.f32.mrb[0].mxu0
      %v4692 = vadd.f32 0.0, %v4691
      %v4693 = vpop.f32.mrb[0].mxu0
      %4694 = vmatprep.mubr.bf16.mxu0 0
      %4695 = vmatmul.mubr.bf16.gmra.mrb[0].mxu0 %v4575
      %v4696 = vpop.f32.mrb[0].mxu0
      %v4697 = vadd.f32 0.0, %v4696
      %v4698 = vpop.f32.mrb[0].mxu0
      %v4699 = vpop.f32.mrb[0].mxu0
      %v4700 = vadd.f32 0.0, %v4699
      %v4701 = vpop.f32.mrb[0].mxu0
      %4702 = vmatprep.mubr.bf16.mxu0 0
      %4703 = vmatmul.mubr.bf16.gmra.mrb[0].mxu0 %v4576
      %v4704 = vpop.f32.mrb[0].mxu0
      %v4705 = vadd.f32 0.0, %v4704
      %v4706 = vpop.f32.mrb[0].mxu0
      %v4707 = vpop.f32.mrb[0].mxu0
      %v4708 = vadd.f32 0.0, %v4707
      %v4709 = vpop.f32.mrb[0].mxu0
      %4710 = vmatprep.mubr.bf16.mxu0 0
      %4711 = vmatmul.mubr.bf16.gmra.mrb[0].mxu0 %v4577
      %v4712 = vpop.f32.mrb[0].mxu0
      %v4713 = vadd.f32 0.0, %v4712
      %v4714 = vpop.f32.mrb[0].mxu0
      %v4715 = vpop.f32.mrb[0].mxu0
      %v4716 = vadd.f32 0.0, %v4715
      %v4717 = vpop.f32.mrb[0].mxu0
      %4718 = vmatprep.mubr.bf16.mxu0 0
      %4719 = vmatmul.mubr.bf16.gmra.mrb[0].mxu0 %v4578
      %v4720 = vpop.f32.mrb[0].mxu0
      %v4721 = vadd.f32 0.0, %v4720
      %v4722 = vpop.f32.mrb[0].mxu0
      %v4723 = vpop.f32.mrb[0].mxu0
      %v4724 = vadd.f32 0.0, %v4723
      %v4725 = vpop.f32.mrb[0].mxu0
      %4726 = vmatprep.mubr.bf16.mxu0 0
      %4727 = vmatmul.mubr.bf16.gmra.mrb[0].mxu0 %v4579
      %v4728 = vpop.f32.mrb[0].mxu0
      %v4729 = vadd.f32 0.0, %v4728
      %v4730 = vpop.f32.mrb[0].mxu0
      %v4731 = vpop.f32.mrb[0].mxu0
      %v4732 = vadd.f32 0.0, %v4731
      %v4733 = vpop.f32.mrb[0].mxu0
      %4734 = vmatprep.mubr.bf16.mxu0 0
      %4735 = vmatmul.mubr.bf16.gmra.mrb[0].mxu0 %v4580
      %v4736 = vpop.f32.mrb[0].mxu0
      %v4737 = vadd.f32 0.0, %v4736
      %v4738 = vpop.f32.mrb[0].mxu0
      %v4739 = vpop.f32.mrb[0].mxu0
      %v4740 = vpop.f32.mrb[0].mxu0
      %4741 = vdwg.mxu0
      %v4742 = vrot.slane %v4673, 4
      %v4743 = vrot.slane %v4676, 4
      %v4744 = vrot.slane %v4681, 4
      %v4745 = vrot.slane %v4684, 4
      %v4746 = vrot.slane %v4689, 4
      %v4747 = vrot.slane %v4692, 4
      %v4748 = vrot.slane %v4697, 4
      %v4749 = vrot.slane %v4700, 4
      %v4750 = vrot.slane %v4705, 4
      %v4751 = vrot.slane %v4708, 4
      %v4752 = vrot.slane %v4713, 4
      %v4753 = vrot.slane %v4716, 4
      %v4754 = vrot.slane %v4721, 4
      %v4755 = vrot.slane %v4724, 4
      %v4756 = vrot.slane %v4729, 4
      %v4757 = vrot.slane %v4732, 4
      %v4758 = vrot.slane %v4737, 4
      %vm4759 = vcmp.lt.s32.totalorder %v650, 4
      %v4760 = vsel %vm4759, %v4757, %v4758
      %v4761 = vsel %vm4759, %v4756, %v4757
      %v4762 = vsel %vm4759, %v4755, %v4756
      %v4763 = vsel %vm4759, %v4754, %v4755
      %v4764 = vsel %vm4759, %v4753, %v4754
      %v4765 = vsel %vm4759, %v4752, %v4753
      %v4766 = vsel %vm4759, %v4751, %v4752
      %v4767 = vsel %vm4759, %v4750, %v4751
      %v4768 = vsel %vm4759, %v4749, %v4750
      %v4769 = vsel %vm4759, %v4748, %v4749
      %v4770 = vsel %vm4759, %v4747, %v4748
      %v4771 = vsel %vm4759, %v4746, %v4747
      %v4772 = vsel %vm4759, %v4745, %v4746
      %v4773 = vsel %vm4759, %v4744, %v4745
      %v4774 = vsel %vm4759, %v4743, %v4744
      %v4775 = vsel %vm4759, %v4742, %v4743
      %v4776 = vsel %vm4759, %v4758, %v4742
      %vm4777 = vcmp.lt.s32.totalorder %v667, 4
      %vm4778 = vcmp.lt.s32.totalorder %v668, 4
      %vm4779 = vcmp.lt.s32.totalorder %v669, 4
      %vm4780 = vcmp.lt.s32.totalorder %v670, 4
      %vm4781 = vcmp.lt.s32.totalorder %v671, 4
      %vm4782 = vcmp.lt.s32.totalorder %v672, 4
      %vm4783 = vcmp.lt.s32.totalorder %v673, 4
      %vm4784 = vcmp.lt.s32.totalorder %v674, 4
      %vm4785 = vcmp.lt.s32.totalorder %v675, 4
      %vm4786 = vcmp.lt.s32.totalorder %v676, 4
      %vm4787 = vcmp.lt.s32.totalorder %v677, 4
      %vm4788 = vcmp.lt.s32.totalorder %v678, 4
      %vm4789 = vcmp.lt.s32.totalorder %v679, 4
      %vm4790 = vcmp.lt.s32.totalorder %v680, 4
      %vm4791 = vcmp.lt.s32.totalorder %v681, 4
      %vm4792 = vcmp.lt.s32.totalorder %v682, 4
      %vm4793 = vcmp.lt.s32.totalorder %v683, 4
      %v4794 = vsel %vm4777, 1, 0
      %v4795 = vsel %vm4778, 1, 0
      %v4796 = vsel %vm4779, 1, 0
      %v4797 = vsel %vm4780, 1, 0
      %v4798 = vsel %vm4781, 1, 0
      %v4799 = vsel %vm4782, 1, 0
      %v4800 = vsel %vm4783, 1, 0
      %v4801 = vsel %vm4784, 1, 0
      %v4802 = vsel %vm4785, 1, 0
      %v4803 = vsel %vm4786, 1, 0
      %v4804 = vsel %vm4787, 1, 0
      %v4805 = vsel %vm4788, 1, 0
      %v4806 = vsel %vm4789, 1, 0
      %v4807 = vsel %vm4790, 1, 0
      %v4808 = vsel %vm4791, 1, 0
      %v4809 = vsel %vm4792, 1, 0
      %v4810 = vsel %vm4793, 1, 0
      %vm4811 = vcmp.eq.s32.totalorder %v4794, 1
      %vm4812 = vcmp.eq.s32.totalorder %v4795, 1
      %vm4813 = vcmp.eq.s32.totalorder %v4796, 1
      %vm4814 = vcmp.eq.s32.totalorder %v4797, 1
      %vm4815 = vcmp.eq.s32.totalorder %v4798, 1
      %vm4816 = vcmp.eq.s32.totalorder %v4799, 1
      %vm4817 = vcmp.eq.s32.totalorder %v4800, 1
      %vm4818 = vcmp.eq.s32.totalorder %v4801, 1
      %vm4819 = vcmp.eq.s32.totalorder %v4802, 1
      %vm4820 = vcmp.eq.s32.totalorder %v4803, 1
      %vm4821 = vcmp.eq.s32.totalorder %v4804, 1
      %vm4822 = vcmp.eq.s32.totalorder %v4805, 1
      %vm4823 = vcmp.eq.s32.totalorder %v4806, 1
      %vm4824 = vcmp.eq.s32.totalorder %v4807, 1
      %vm4825 = vcmp.eq.s32.totalorder %v4808, 1
      %vm4826 = vcmp.eq.s32.totalorder %v4809, 1
      %vm4827 = vcmp.eq.s32.totalorder %v4810, 1
      %v4828 = vsel %vm4811, 0.0, %v4776
      %v4829 = vsel %vm4812, 0.0, %v4775
      %v4830 = vsel %vm4813, 0.0, %v4774
      %v4831 = vsel %vm4814, 0.0, %v4773
      %v4832 = vsel %vm4815, 0.0, %v4772
      %v4833 = vsel %vm4816, 0.0, %v4771
      %v4834 = vsel %vm4817, 0.0, %v4770
      %v4835 = vsel %vm4818, 0.0, %v4769
      %v4836 = vsel %vm4819, 0.0, %v4768
      %v4837 = vsel %vm4820, 0.0, %v4767
      %v4838 = vsel %vm4821, 0.0, %v4766
      %v4839 = vsel %vm4822, 0.0, %v4765
      %v4840 = vsel %vm4823, 0.0, %v4764
      %v4841 = vsel %vm4824, 0.0, %v4763
      %v4842 = vsel %vm4825, 0.0, %v4762
      %v4843 = vsel %vm4826, 0.0, %v4761
      %v4844 = vsel %vm4827, 0.0, %v4760
      %v4861 = vunpack.c.l.b16 %v4506
      %v4862 = vunpack.c.l.b16 %v4507
      %v4863 = vunpack.c.l.b16 %v4508
      %v4864 = vunpack.c.l.b16 %v4509
      %v4865 = vunpack.c.l.b16 %v4510
      %v4866 = vunpack.c.l.b16 %v4511
      %v4867 = vunpack.c.l.b16 %v4512
      %v4868 = vunpack.c.l.b16 %v4513
      %v4869 = vunpack.c.l.b16 %v4514
      %v4870 = vunpack.c.l.b16 %v4515
      %v4871 = vunpack.c.l.b16 %v4516
      %v4872 = vunpack.c.l.b16 %v4517
      %v4873 = vunpack.c.l.b16 %v4518
      %v4874 = vunpack.c.l.b16 %v4519
      %v4875 = vunpack.c.l.b16 %v4520
      %v4876 = vunpack.c.l.b16 %v4521
      %v4877 = vpack.c.b16 %v4862, %v4861
      %v4878 = vpack.c.b16 %v4864, %v4863
      %v4879 = vpack.c.b16 %v4866, %v4865
      %v4880 = vpack.c.b16 %v4868, %v4867
      %v4881 = vpack.c.b16 %v4870, %v4869
      %v4882 = vpack.c.b16 %v4872, %v4871
      %v4883 = vpack.c.b16 %v4874, %v4873
      %v4884 = vpack.c.b16 %v4876, %v4875
      %4893 = vmatprep.subr.bf16.mxu0 0
      %4894 = vmatpush1.bf16.msra.mxu0 %v4877
      %4895 = vmatprep.subr.bf16.mxu0 0
      %4896 = vmatpush1.bf16.msra.mxu0 %v4878
      %4897 = vmatprep.subr.bf16.mxu0 0
      %4898 = vmatpush1.bf16.msra.mxu0 %v4879
      %4899 = vmatprep.subr.bf16.mxu0 0
      %4900 = vmatpush1.bf16.msra.mxu0 %v4880
      %4901 = vmatprep.subr.bf16.mxu0 0
      %4902 = vmatpush1.bf16.msra.mxu0 %v4881
      %4903 = vmatprep.subr.bf16.mxu0 0
      %4904 = vmatpush1.bf16.msra.mxu0 %v4882
      %4905 = vmatprep.subr.bf16.mxu0 0
      %4906 = vmatpush1.bf16.msra.mxu0 %v4883
      %4907 = vmatprep.subr.bf16.mxu0 0
      %4908 = vmatpush1.bf16.msra.mxu0 %v4884
      %4909 = vmatprep.subr.bf16.mxu0 0
      %4910 = vmatpush1.bf16.msra.mxu0 0
      %4911 = vmatprep.subr.bf16.mxu0 0
      %4912 = vmatpush1.bf16.msra.mxu0 0
      %4913 = vmatprep.subr.bf16.mxu0 0
      %4914 = vmatpush1.bf16.msra.mxu0 0
      %4915 = vmatprep.subr.bf16.mxu0 0
      %4916 = vmatpush1.bf16.msra.mxu0 0
      %4917 = vmatprep.subr.bf16.mxu0 0
      %4918 = vmatpush1.bf16.msra.mxu0 0
      %4919 = vmatprep.subr.bf16.mxu0 0
      %4920 = vmatpush1.bf16.msra.mxu0 0
      %4921 = vmatprep.subr.bf16.mxu0 0
      %4922 = vmatpush1.bf16.msra.mxu0 0
      %4923 = vmatprep.subr.bf16.mxu0 0
      %4924 = vmatpush1.bf16.msra.mxu0 0
      %4925 = vmatprep.mubr.bf16.mxu0 0
      %4926 = vmatmul.mubr.bf16.gmra.mrb[0].mxu0 %v4572
      %v4927 = vpop.f32.mrb[0].mxu0
      %v4928 = vadd.f32 %v4828, %v4927
      %v4929 = vpop.f32.mrb[0].mxu0
      %v4930 = vpop.f32.mrb[0].mxu0
      %v4931 = vadd.f32 %v4829, %v4930
      %v4932 = vpop.f32.mrb[0].mxu0
      %4933 = vmatprep.mubr.bf16.mxu0 0
      %4934 = vmatmul.mubr.bf16.gmra.mrb[0].mxu0 %v4573
      %v4935 = vpop.f32.mrb[0].mxu0
      %v4936 = vadd.f32 %v4830, %v4935
      %v4937 = vpop.f32.mrb[0].mxu0
      %v4938 = vpop.f32.mrb[0].mxu0
      %v4939 = vadd.f32 %v4831, %v4938
      %v4940 = vpop.f32.mrb[0].mxu0
      %4941 = vmatprep.mubr.bf16.mxu0 0
      %4942 = vmatmul.mubr.bf16.gmra.mrb[0].mxu0 %v4574
      %v4943 = vpop.f32.mrb[0].mxu0
      %v4944 = vadd.f32 %v4832, %v4943
      %v4945 = vpop.f32.mrb[0].mxu0
      %v4946 = vpop.f32.mrb[0].mxu0
      %v4947 = vadd.f32 %v4833, %v4946
      %v4948 = vpop.f32.mrb[0].mxu0
      %4949 = vmatprep.mubr.bf16.mxu0 0
      %4950 = vmatmul.mubr.bf16.gmra.mrb[0].mxu0 %v4575
      %v4951 = vpop.f32.mrb[0].mxu0
      %v4952 = vadd.f32 %v4834, %v4951
      %v4953 = vpop.f32.mrb[0].mxu0
      %v4954 = vpop.f32.mrb[0].mxu0
      %v4955 = vadd.f32 %v4835, %v4954
      %v4956 = vpop.f32.mrb[0].mxu0
      %4957 = vmatprep.mubr.bf16.mxu0 0
      %4958 = vmatmul.mubr.bf16.gmra.mrb[0].mxu0 %v4576
      %v4959 = vpop.f32.mrb[0].mxu0
      %v4960 = vadd.f32 %v4836, %v4959
      %v4961 = vpop.f32.mrb[0].mxu0
      %v4962 = vpop.f32.mrb[0].mxu0
      %v4963 = vadd.f32 %v4837, %v4962
      %v4964 = vpop.f32.mrb[0].mxu0
      %4965 = vmatprep.mubr.bf16.mxu0 0
      %4966 = vmatmul.mubr.bf16.gmra.mrb[0].mxu0 %v4577
      %v4967 = vpop.f32.mrb[0].mxu0
      %v4968 = vadd.f32 %v4838, %v4967
      %v4969 = vpop.f32.mrb[0].mxu0
      %v4970 = vpop.f32.mrb[0].mxu0
      %v4971 = vadd.f32 %v4839, %v4970
      %v4972 = vpop.f32.mrb[0].mxu0
      %4973 = vmatprep.mubr.bf16.mxu0 0
      %4974 = vmatmul.mubr.bf16.gmra.mrb[0].mxu0 %v4578
      %v4975 = vpop.f32.mrb[0].mxu0
      %v4976 = vadd.f32 %v4840, %v4975
      %v4977 = vpop.f32.mrb[0].mxu0
      %v4978 = vpop.f32.mrb[0].mxu0
      %v4979 = vadd.f32 %v4841, %v4978
      %v4980 = vpop.f32.mrb[0].mxu0
      %4981 = vmatprep.mubr.bf16.mxu0 0
      %4982 = vmatmul.mubr.bf16.gmra.mrb[0].mxu0 %v4579
      %v4983 = vpop.f32.mrb[0].mxu0
      %v4984 = vadd.f32 %v4842, %v4983
      %v4985 = vpop.f32.mrb[0].mxu0
      %v4986 = vpop.f32.mrb[0].mxu0
      %v4987 = vadd.f32 %v4843, %v4986
      %v4988 = vpop.f32.mrb[0].mxu0
      %4989 = vmatprep.mubr.bf16.mxu0 0
      %4990 = vmatmul.mubr.bf16.gmra.mrb[0].mxu0 %v4580
      %v4991 = vpop.f32.mrb[0].mxu0
      %v4992 = vadd.f32 %v4844, %v4991
      %v4993 = vpop.f32.mrb[0].mxu0
      %v4994 = vpop.f32.mrb[0].mxu0
      %v4995 = vpop.f32.mrb[0].mxu0
      %4996 = vdwg.mxu0
      %v4997 = vld [vmem:[%s14] sm:$0x1]
      %v4999 = vlaneseq
      %v5000 = vshrl.u32 %v4999, 7
      %v5001 = vsub.s32 0, %v5000
      %v5002 = vrot.slane %v4997, %v5001
      %v5004 = vadd.f32 %v4928, %v5002
      %v5005 = vadd.f32 %v4931, %v5002
      %v5006 = vadd.f32 %v4936, %v5002
      %v5007 = vadd.f32 %v4939, %v5002
      %v5008 = vadd.f32 %v4944, %v5002
      %v5009 = vadd.f32 %v4947, %v5002
      %v5010 = vadd.f32 %v4952, %v5002
      %v5011 = vadd.f32 %v4955, %v5002
      %v5012 = vadd.f32 %v4960, %v5002
      %v5013 = vadd.f32 %v4963, %v5002
      %v5014 = vadd.f32 %v4968, %v5002
      %v5015 = vadd.f32 %v4971, %v5002
      %v5016 = vadd.f32 %v4976, %v5002
      %v5017 = vadd.f32 %v4979, %v5002
      %v5018 = vadd.f32 %v4984, %v5002
      %v5019 = vadd.f32 %v4987, %v5002
      %v5020 = vadd.f32 %v4992, %v5002
      %v5021 = vtanh.pop %v5004
      %v5022 = vtanh.pop %v5005
      %v5023 = vtanh.pop %v5006
      %v5024 = vtanh.pop %v5007
      %v5025 = vtanh.pop %v5008
      %v5026 = vtanh.pop %v5009
      %v5027 = vtanh.pop %v5010
      %v5028 = vtanh.pop %v5011
      %v5029 = vtanh.pop %v5012
      %v5030 = vtanh.pop %v5013
      %v5031 = vtanh.pop %v5014
      %v5032 = vtanh.pop %v5015
      %v5033 = vtanh.pop %v5016
      %v5034 = vtanh.pop %v5017
      %v5035 = vtanh.pop %v5018
      %v5036 = vtanh.pop %v5019
      %v5037 = vtanh.pop %v5020
      %v5038 = vxor.u32 %v5004, 2147483648
      %v5039 = vxor.u32 %v5005, 2147483648
      %v5040 = vxor.u32 %v5006, 2147483648
      %v5041 = vxor.u32 %v5007, 2147483648
      %v5042 = vxor.u32 %v5008, 2147483648
      %v5043 = vxor.u32 %v5009, 2147483648
      %v5044 = vxor.u32 %v5010, 2147483648
      %v5045 = vxor.u32 %v5011, 2147483648
      %v5046 = vxor.u32 %v5012, 2147483648
      %v5047 = vxor.u32 %v5013, 2147483648
      %v5048 = vxor.u32 %v5014, 2147483648
      %v5049 = vxor.u32 %v5015, 2147483648
      %v5050 = vxor.u32 %v5016, 2147483648
      %v5051 = vxor.u32 %v5017, 2147483648
      %v5052 = vxor.u32 %v5018, 2147483648
      %v5053 = vxor.u32 %v5019, 2147483648
      %v5054 = vxor.u32 %v5020, 2147483648
      %v5055 = vmul.f32 %v5038, 1.442695
      %v5056 = vpow.pop %v5055
      %v5057 = vmul.f32 %v5039, 1.442695
      %v5058 = vpow.pop %v5057
      %v5059 = vmul.f32 %v5040, 1.442695
      %v5060 = vpow.pop %v5059
      %v5061 = vmul.f32 %v5041, 1.442695
      %v5062 = vpow.pop %v5061
      %v5063 = vmul.f32 %v5042, 1.442695
      %v5064 = vpow.pop %v5063
      %v5065 = vmul.f32 %v5043, 1.442695
      %v5066 = vpow.pop %v5065
      %v5067 = vmul.f32 %v5044, 1.442695
      %v5068 = vpow.pop %v5067
      %v5069 = vmul.f32 %v5045, 1.442695
      %v5070 = vpow.pop %v5069
      %v5071 = vmul.f32 %v5046, 1.442695
      %v5072 = vpow.pop %v5071
      %v5073 = vmul.f32 %v5047, 1.442695
      %v5074 = vpow.pop %v5073
      %v5075 = vmul.f32 %v5048, 1.442695
      %v5076 = vpow.pop %v5075
      %v5077 = vmul.f32 %v5049, 1.442695
      %v5078 = vpow.pop %v5077
      %v5079 = vmul.f32 %v5050, 1.442695
      %v5080 = vpow.pop %v5079
      %v5081 = vmul.f32 %v5051, 1.442695
      %v5082 = vpow.pop %v5081
      %v5083 = vmul.f32 %v5052, 1.442695
      %v5084 = vpow.pop %v5083
      %v5085 = vmul.f32 %v5053, 1.442695
      %v5086 = vpow.pop %v5085
      %v5087 = vmul.f32 %v5054, 1.442695
      %v5088 = vpow.pop %v5087
      %v5089 = vadd.f32 %v5056, 1.0
      %v5090 = vadd.f32 %v5058, 1.0
      %v5091 = vadd.f32 %v5060, 1.0
      %v5092 = vadd.f32 %v5062, 1.0
      %v5093 = vadd.f32 %v5064, 1.0
      %v5094 = vadd.f32 %v5066, 1.0
      %v5095 = vadd.f32 %v5068, 1.0
      %v5096 = vadd.f32 %v5070, 1.0
      %v5097 = vadd.f32 %v5072, 1.0
      %v5098 = vadd.f32 %v5074, 1.0
      %v5099 = vadd.f32 %v5076, 1.0
      %v5100 = vadd.f32 %v5078, 1.0
      %v5101 = vadd.f32 %v5080, 1.0
      %v5102 = vadd.f32 %v5082, 1.0
      %v5103 = vadd.f32 %v5084, 1.0
      %v5104 = vadd.f32 %v5086, 1.0
      %v5105 = vadd.f32 %v5088, 1.0
      %v5106 = vrcp.pop %v5089
      %v5107 = vmul.f32 1.0, %v5106
      %v5108 = vrcp.pop %v5090
      %v5109 = vmul.f32 1.0, %v5108
      %v5110 = vrcp.pop %v5091
      %v5111 = vmul.f32 1.0, %v5110
      %v5112 = vrcp.pop %v5092
      %v5113 = vmul.f32 1.0, %v5112
      %v5114 = vrcp.pop %v5093
      %v5115 = vmul.f32 1.0, %v5114
      %v5116 = vrcp.pop %v5094
      %v5117 = vmul.f32 1.0, %v5116
      %v5118 = vrcp.pop %v5095
      %v5119 = vmul.f32 1.0, %v5118
      %v5120 = vrcp.pop %v5096
      %v5121 = vmul.f32 1.0, %v5120
      %v5122 = vrcp.pop %v5097
      %v5123 = vmul.f32 1.0, %v5122
      %v5124 = vrcp.pop %v5098
      %v5125 = vmul.f32 1.0, %v5124
      %v5126 = vrcp.pop %v5099
      %v5127 = vmul.f32 1.0, %v5126
      %v5128 = vrcp.pop %v5100
      %v5129 = vmul.f32 1.0, %v5128
      %v5130 = vrcp.pop %v5101
      %v5131 = vmul.f32 1.0, %v5130
      %v5132 = vrcp.pop %v5102
      %v5133 = vmul.f32 1.0, %v5132
      %v5134 = vrcp.pop %v5103
      %v5135 = vmul.f32 1.0, %v5134
      %v5136 = vrcp.pop %v5104
      %v5137 = vmul.f32 1.0, %v5136
      %v5138 = vrcp.pop %v5105
      %v5139 = vmul.f32 1.0, %v5138
      %5157 = vrot.lane.b32.xlu0 %v5107, 120
      %v5158 = vpop.permute.xlu0 %5157
      %5159 = vrot.lane.b32.xlu0 %v5109, 120
      %v5160 = vpop.permute.xlu0 %5159
      %5161 = vrot.lane.b32.xlu0 %v5111, 120
      %v5162 = vpop.permute.xlu0 %5161
      %5163 = vrot.lane.b32.xlu0 %v5113, 120
      %v5164 = vpop.permute.xlu0 %5163
      %5165 = vrot.lane.b32.xlu0 %v5115, 120
      %v5166 = vpop.permute.xlu0 %5165
      %5167 = vrot.lane.b32.xlu0 %v5117, 120
      %v5168 = vpop.permute.xlu0 %5167
      %5169 = vrot.lane.b32.xlu0 %v5119, 120
      %v5170 = vpop.permute.xlu0 %5169
      %5171 = vrot.lane.b32.xlu0 %v5121, 120
      %v5172 = vpop.permute.xlu0 %5171
      %5173 = vrot.lane.b32.xlu0 %v5123, 120
      %v5174 = vpop.permute.xlu0 %5173
      %5175 = vrot.lane.b32.xlu0 %v5125, 120
      %v5176 = vpop.permute.xlu0 %5175
      %5177 = vrot.lane.b32.xlu0 %v5127, 120
      %v5178 = vpop.permute.xlu0 %5177
      %5179 = vrot.lane.b32.xlu0 %v5129, 120
      %v5180 = vpop.permute.xlu0 %5179
      %5181 = vrot.lane.b32.xlu0 %v5131, 120
      %v5182 = vpop.permute.xlu0 %5181
      %5183 = vrot.lane.b32.xlu0 %v5133, 120
      %v5184 = vpop.permute.xlu0 %5183
      %5185 = vrot.lane.b32.xlu0 %v5135, 120
      %v5186 = vpop.permute.xlu0 %5185
      %5187 = vrot.lane.b32.xlu0 %v5137, 120
      %v5188 = vpop.permute.xlu0 %5187
      %5189 = vrot.lane.b32.xlu0 %v5139, 120
      %v5190 = vpop.permute.xlu0 %5189
      %v5208 = vmul.f32 %v5021, %v5158
      %v5209 = vmul.f32 %v5022, %v5160
      %v5210 = vmul.f32 %v5023, %v5162
      %v5211 = vmul.f32 %v5024, %v5164
      %v5212 = vmul.f32 %v5025, %v5166
      %v5213 = vmul.f32 %v5026, %v5168
      %v5214 = vmul.f32 %v5027, %v5170
      %v5215 = vmul.f32 %v5028, %v5172
      %v5216 = vmul.f32 %v5029, %v5174
      %v5217 = vmul.f32 %v5030, %v5176
      %v5218 = vmul.f32 %v5031, %v5178
      %v5219 = vmul.f32 %v5032, %v5180
      %v5220 = vmul.f32 %v5033, %v5182
      %v5221 = vmul.f32 %v5034, %v5184
      %v5222 = vmul.f32 %v5035, %v5186
      %v5223 = vmul.f32 %v5036, %v5188
      %v5224 = vmul.f32 %v5037, %v5190
      %v5225 = vpack.c.bf16 %v5209, %v5208
      %v5226 = vpack.c.bf16 %v5211, %v5210
      %v5227 = vpack.c.bf16 %v5213, %v5212
      %v5228 = vpack.c.bf16 %v5215, %v5214
      %v5229 = vpack.c.bf16 %v5217, %v5216
      %v5230 = vpack.c.bf16 %v5219, %v5218
      %v5231 = vpack.c.bf16 %v5221, %v5220
      %v5232 = vpack.c.bf16 %v5223, %v5222
      %v5233 = vpack.c.bf16 %v5224, %v5224
      %v5243 = vunpack.c.l.b16 %v5225
      %v5244 = vunpack.c.h.b16 %v5225
      %v5245 = vunpack.c.l.b16 %v5226
      %v5246 = vunpack.c.h.b16 %v5226
      %v5247 = vunpack.c.l.b16 %v5227
      %v5248 = vunpack.c.h.b16 %v5227
      %v5249 = vunpack.c.l.b16 %v5228
      %v5250 = vunpack.c.h.b16 %v5228
      %v5251 = vunpack.c.l.b16 %v5229
      %v5252 = vunpack.c.h.b16 %v5229
      %v5253 = vunpack.c.l.b16 %v5230
      %v5254 = vunpack.c.h.b16 %v5230
      %v5255 = vunpack.c.l.b16 %v5231
      %v5256 = vunpack.c.h.b16 %v5231
      %v5257 = vunpack.c.l.b16 %v5232
      %v5258 = vunpack.c.h.b16 %v5232
      %v5259 = vunpack.c.l.b16 %v5233
      %v5260 = vpack.c.b16 %v5243, %v5243
      %v5261 = vpack.c.b16 %v5244, %v5244
      %v5262 = vpack.c.b16 %v5245, %v5245
      %v5263 = vpack.c.b16 %v5246, %v5246
      %v5264 = vpack.c.b16 %v5247, %v5247
      %v5265 = vpack.c.b16 %v5248, %v5248
      %v5266 = vpack.c.b16 %v5249, %v5249
      %v5267 = vpack.c.b16 %v5250, %v5250
      %v5268 = vpack.c.b16 %v5251, %v5251
      %v5269 = vpack.c.b16 %v5252, %v5252
      %v5270 = vpack.c.b16 %v5253, %v5253
      %v5271 = vpack.c.b16 %v5254, %v5254
      %v5272 = vpack.c.b16 %v5255, %v5255
      %v5273 = vpack.c.b16 %v5256, %v5256
      %v5274 = vpack.c.b16 %v5257, %v5257
      %v5275 = vpack.c.b16 %v5258, %v5258
      %v5276 = vpack.c.b16 %v5259, %v5259
      %5277 = vrot.lane.b32.xlu0 %v5260, 68
      %v5278 = vpop.permute.xlu0 %5277
      %5279 = vrot.lane.b32.xlu0 %v5261, 68
      %v5280 = vpop.permute.xlu0 %5279
      %5281 = vrot.lane.b32.xlu0 %v5262, 68
      %v5282 = vpop.permute.xlu0 %5281
      %5283 = vrot.lane.b32.xlu0 %v5263, 68
      %v5284 = vpop.permute.xlu0 %5283
      %5285 = vrot.lane.b32.xlu0 %v5264, 68
      %v5286 = vpop.permute.xlu0 %5285
      %5287 = vrot.lane.b32.xlu0 %v5265, 68
      %v5288 = vpop.permute.xlu0 %5287
      %5289 = vrot.lane.b32.xlu0 %v5266, 68
      %v5290 = vpop.permute.xlu0 %5289
      %5291 = vrot.lane.b32.xlu0 %v5267, 68
      %v5292 = vpop.permute.xlu0 %5291
      %5293 = vrot.lane.b32.xlu0 %v5268, 68
      %v5294 = vpop.permute.xlu0 %5293
      %5295 = vrot.lane.b32.xlu0 %v5269, 68
      %v5296 = vpop.permute.xlu0 %5295
      %5297 = vrot.lane.b32.xlu0 %v5270, 68
      %v5298 = vpop.permute.xlu0 %5297
      %5299 = vrot.lane.b32.xlu0 %v5271, 68
      %v5300 = vpop.permute.xlu0 %5299
      %5301 = vrot.lane.b32.xlu0 %v5272, 68
      %v5302 = vpop.permute.xlu0 %5301
      %5303 = vrot.lane.b32.xlu0 %v5273, 68
      %v5304 = vpop.permute.xlu0 %5303
      %5305 = vrot.lane.b32.xlu0 %v5274, 68
      %v5306 = vpop.permute.xlu0 %5305
      %5307 = vrot.lane.b32.xlu0 %v5275, 68
      %v5308 = vpop.permute.xlu0 %5307
      %5309 = vrot.lane.b32.xlu0 %v5276, 68
      %v5310 = vpop.permute.xlu0 %5309
      %vm5328 = vcmask 618016
      %5329 = vst.msk [vmem:[#allocation2] sm:$0xf] %vm5328, %v5278
      %5330 = vst.msk [vmem:[#allocation2 + $0x4] sm:$0xf] %vm5328, %v5280
      %5331 = vst.msk [vmem:[#allocation2 + $0x8] sm:$0xf] %vm5328, %v5282
      %5332 = vst.msk [vmem:[#allocation2 + $0xc] sm:$0xf] %vm5328, %v5284
      %5333 = vst.msk [vmem:[#allocation2 + $0x10] sm:$0xf] %vm5328, %v5286
      %5334 = vst.msk [vmem:[#allocation2 + $0x14] sm:$0xf] %vm5328, %v5288
      %5335 = vst.msk [vmem:[#allocation2 + $0x18] sm:$0xf] %vm5328, %v5290
      %5336 = vst.msk [vmem:[#allocation2 + $0x1c] sm:$0xf] %vm5328, %v5292
      %5337 = vst.msk [vmem:[#allocation2 + $0x20] sm:$0xf] %vm5328, %v5294
      %5338 = vst.msk [vmem:[#allocation2 + $0x24] sm:$0xf] %vm5328, %v5296
      %5339 = vst.msk [vmem:[#allocation2 + $0x28] sm:$0xf] %vm5328, %v5298
      %5340 = vst.msk [vmem:[#allocation2 + $0x2c] sm:$0xf] %vm5328, %v5300
      %5341 = vst.msk [vmem:[#allocation2 + $0x30] sm:$0xf] %vm5328, %v5302
      %5342 = vst.msk [vmem:[#allocation2 + $0x34] sm:$0xf] %vm5328, %v5304
      %5343 = vst.msk [vmem:[#allocation2 + $0x38] sm:$0xf] %vm5328, %v5306
      %5344 = vst.msk [vmem:[#allocation2 + $0x3c] sm:$0xf] %vm5328, %v5308
      %5345 = vst.msk [vmem:[#allocation2 + $0x40] sm:$0xf] %vm5328, %v5310
      %v5346 = vld [vmem:[#allocation2] sm:$0xf]
      %v5347 = vld [vmem:[#allocation2 + $0x4] sm:$0xf]
      %v5348 = vld [vmem:[#allocation2 + $0x8] sm:$0xf]
      %v5349 = vld [vmem:[#allocation2 + $0xc] sm:$0xf]
      %v5350 = vld [vmem:[#allocation2 + $0x10] sm:$0xf]
      %v5351 = vld [vmem:[#allocation2 + $0x14] sm:$0xf]
      %v5352 = vld [vmem:[#allocation2 + $0x18] sm:$0xf]
      %v5353 = vld [vmem:[#allocation2 + $0x1c] sm:$0xf]
      %v5354 = vld [vmem:[#allocation2 + $0x20] sm:$0xf]
      %v5355 = vld [vmem:[#allocation2 + $0x24] sm:$0xf]
      %v5356 = vld [vmem:[#allocation2 + $0x28] sm:$0xf]
      %v5357 = vld [vmem:[#allocation2 + $0x2c] sm:$0xf]
      %v5358 = vld [vmem:[#allocation2 + $0x30] sm:$0xf]
      %v5359 = vld [vmem:[#allocation2 + $0x34] sm:$0xf]
      %v5360 = vld [vmem:[#allocation2 + $0x38] sm:$0xf]
      %v5361 = vld [vmem:[#allocation2 + $0x3c] sm:$0xf]
      %v5362 = vld [vmem:[#allocation2 + $0x40] sm:$0xf]
      %v5363 = vld [vmem:[%s15] sm:$0xf]
      %v5364 = vld [vmem:[%s15 + $0x4] sm:$0xf]
      %v5365 = vld [vmem:[%s15 + $0x8] sm:$0xf]
      %v5366 = vld [vmem:[%s15 + $0xc] sm:$0xf]
      %v5367 = vld [vmem:[%s15 + $0x10] sm:$0xf]
      %v5368 = vld [vmem:[%s15 + $0x14] sm:$0xf]
      %v5369 = vld [vmem:[%s15 + $0x18] sm:$0xf]
      %v5370 = vld [vmem:[%s15 + $0x1c] sm:$0xf]
      %v5371 = vld [vmem:[%s15 + $0x20] sm:$0xf]
      %v5372 = vld [vmem:[%s15 + $0x24] sm:$0xf]
      %v5373 = vld [vmem:[%s15 + $0x28] sm:$0xf]
      %v5374 = vld [vmem:[%s15 + $0x2c] sm:$0xf]
      %v5375 = vld [vmem:[%s15 + $0x30] sm:$0xf]
      %v5376 = vld [vmem:[%s15 + $0x34] sm:$0xf]
      %v5377 = vld [vmem:[%s15 + $0x38] sm:$0xf]
      %v5378 = vld [vmem:[%s15 + $0x3c] sm:$0xf]
      %v5379 = vld [vmem:[%s16] sm:$0x1]
      %v5381 = vlaneseq
      %v5382 = vshrl.u32 %v5381, 7
      %v5383 = vsub.s32 0, %v5382
      %v5384 = vrot.slane %v5379, %v5383
      %v5403 = vunpack.c.l.b16 %v5346
      %v5404 = vunpack.c.l.b16 %v5347
      %v5405 = vunpack.c.l.b16 %v5348
      %v5406 = vunpack.c.l.b16 %v5349
      %v5407 = vunpack.c.l.b16 %v5350
      %v5408 = vunpack.c.l.b16 %v5351
      %v5409 = vunpack.c.l.b16 %v5352
      %v5410 = vunpack.c.l.b16 %v5353
      %v5411 = vunpack.c.l.b16 %v5354
      %v5412 = vunpack.c.l.b16 %v5355
      %v5413 = vunpack.c.l.b16 %v5356
      %v5414 = vunpack.c.l.b16 %v5357
      %v5415 = vunpack.c.l.b16 %v5358
      %v5416 = vunpack.c.l.b16 %v5359
      %v5417 = vunpack.c.l.b16 %v5360
      %v5418 = vunpack.c.l.b16 %v5361
      %v5419 = vunpack.c.l.b16 %v5362
      %v5420 = vpack.c.b16 %v5404, %v5403
      %v5421 = vpack.c.b16 %v5406, %v5405
      %v5422 = vpack.c.b16 %v5408, %v5407
      %v5423 = vpack.c.b16 %v5410, %v5409
      %v5424 = vpack.c.b16 %v5412, %v5411
      %v5425 = vpack.c.b16 %v5414, %v5413
      %v5426 = vpack.c.b16 %v5416, %v5415
      %v5427 = vpack.c.b16 %v5418, %v5417
      %v5428 = vpack.c.b16 %v5419, %v5419
      %v5454 = vunpack.c.l.b16 %v5363
      %v5455 = vunpack.c.l.b16 %v5364
      %v5456 = vunpack.c.l.b16 %v5365
      %v5457 = vunpack.c.l.b16 %v5366
      %v5458 = vunpack.c.l.b16 %v5367
      %v5459 = vunpack.c.l.b16 %v5368
      %v5460 = vunpack.c.l.b16 %v5369
      %v5461 = vunpack.c.l.b16 %v5370
      %v5462 = vunpack.c.l.b16 %v5371
      %v5463 = vunpack.c.l.b16 %v5372
      %v5464 = vunpack.c.l.b16 %v5373
      %v5465 = vunpack.c.l.b16 %v5374
      %v5466 = vunpack.c.l.b16 %v5375
      %v5467 = vunpack.c.l.b16 %v5376
      %v5468 = vunpack.c.l.b16 %v5377
      %v5469 = vunpack.c.l.b16 %v5378
      %v5470 = vpack.c.b16 %v5455, %v5454
      %v5471 = vpack.c.b16 %v5457, %v5456
      %v5472 = vpack.c.b16 %v5459, %v5458
      %v5473 = vpack.c.b16 %v5461, %v5460
      %v5474 = vpack.c.b16 %v5463, %v5462
      %v5475 = vpack.c.b16 %v5465, %v5464
      %v5476 = vpack.c.b16 %v5467, %v5466
      %v5477 = vpack.c.b16 %v5469, %v5468
      %5486 = vmatprep.subr.bf16.mxu0 0
      %5487 = vmatpush1.bf16.msra.mxu0 %v5470
      %5488 = vmatprep.subr.bf16.mxu0 0
      %5489 = vmatpush1.bf16.msra.mxu0 %v5471
      %5490 = vmatprep.subr.bf16.mxu0 0
      %5491 = vmatpush1.bf16.msra.mxu0 %v5472
      %5492 = vmatprep.subr.bf16.mxu0 0
      %5493 = vmatpush1.bf16.msra.mxu0 %v5473
      %5494 = vmatprep.subr.bf16.mxu0 0
      %5495 = vmatpush1.bf16.msra.mxu0 %v5474
      %5496 = vmatprep.subr.bf16.mxu0 0
      %5497 = vmatpush1.bf16.msra.mxu0 %v5475
      %5498 = vmatprep.subr.bf16.mxu0 0
      %5499 = vmatpush1.bf16.msra.mxu0 %v5476
      %5500 = vmatprep.subr.bf16.mxu0 0
      %5501 = vmatpush1.bf16.msra.mxu0 %v5477
      %5502 = vmatprep.subr.bf16.mxu0 0
      %5503 = vmatpush1.bf16.msra.mxu0 0
      %5504 = vmatprep.subr.bf16.mxu0 0
      %5505 = vmatpush1.bf16.msra.mxu0 0
      %5506 = vmatprep.subr.bf16.mxu0 0
      %5507 = vmatpush1.bf16.msra.mxu0 0
      %5508 = vmatprep.subr.bf16.mxu0 0
      %5509 = vmatpush1.bf16.msra.mxu0 0
      %5510 = vmatprep.subr.bf16.mxu0 0
      %5511 = vmatpush1.bf16.msra.mxu0 0
      %5512 = vmatprep.subr.bf16.mxu0 0
      %5513 = vmatpush1.bf16.msra.mxu0 0
      %5514 = vmatprep.subr.bf16.mxu0 0
      %5515 = vmatpush1.bf16.msra.mxu0 0
      %5516 = vmatprep.subr.bf16.mxu0 0
      %5517 = vmatpush1.bf16.msra.mxu0 0
      %5518 = vmatprep.mubr.bf16.mxu0 0
      %5519 = vmatmul.mubr.bf16.gmra.mrb[0].mxu0 %v5420
      %v5520 = vpop.f32.mrb[0].mxu0
      %v5521 = vadd.f32 %v5384, %v5520
      %v5522 = vpop.f32.mrb[0].mxu0
      %v5523 = vpop.f32.mrb[0].mxu0
      %v5524 = vadd.f32 %v5384, %v5523
      %v5525 = vpop.f32.mrb[0].mxu0
      %5526 = vmatprep.mubr.bf16.mxu0 0
      %5527 = vmatmul.mubr.bf16.gmra.mrb[0].mxu0 %v5421
      %v5528 = vpop.f32.mrb[0].mxu0
      %v5529 = vadd.f32 %v5384, %v5528
      %v5530 = vpop.f32.mrb[0].mxu0
      %v5531 = vpop.f32.mrb[0].mxu0
      %v5532 = vadd.f32 %v5384, %v5531
      %v5533 = vpop.f32.mrb[0].mxu0
      %5534 = vmatprep.mubr.bf16.mxu0 0
      %5535 = vmatmul.mubr.bf16.gmra.mrb[0].mxu0 %v5422
      %v5536 = vpop.f32.mrb[0].mxu0
      %v5537 = vadd.f32 %v5384, %v5536
      %v5538 = vpop.f32.mrb[0].mxu0
      %v5539 = vpop.f32.mrb[0].mxu0
      %v5540 = vadd.f32 %v5384, %v5539
      %v5541 = vpop.f32.mrb[0].mxu0
      %5542 = vmatprep.mubr.bf16.mxu0 0
      %5543 = vmatmul.mubr.bf16.gmra.mrb[0].mxu0 %v5423
      %v5544 = vpop.f32.mrb[0].mxu0
      %v5545 = vadd.f32 %v5384, %v5544
      %v5546 = vpop.f32.mrb[0].mxu0
      %v5547 = vpop.f32.mrb[0].mxu0
      %v5548 = vadd.f32 %v5384, %v5547
      %v5549 = vpop.f32.mrb[0].mxu0
      %5550 = vmatprep.mubr.bf16.mxu0 0
      %5551 = vmatmul.mubr.bf16.gmra.mrb[0].mxu0 %v5424
      %v5552 = vpop.f32.mrb[0].mxu0
      %v5553 = vadd.f32 %v5384, %v5552
      %v5554 = vpop.f32.mrb[0].mxu0
      %v5555 = vpop.f32.mrb[0].mxu0
      %v5556 = vadd.f32 %v5384, %v5555
      %v5557 = vpop.f32.mrb[0].mxu0
      %5558 = vmatprep.mubr.bf16.mxu0 0
      %5559 = vmatmul.mubr.bf16.gmra.mrb[0].mxu0 %v5425
      %v5560 = vpop.f32.mrb[0].mxu0
      %v5561 = vadd.f32 %v5384, %v5560
      %v5562 = vpop.f32.mrb[0].mxu0
      %v5563 = vpop.f32.mrb[0].mxu0
      %v5564 = vadd.f32 %v5384, %v5563
      %v5565 = vpop.f32.mrb[0].mxu0
      %5566 = vmatprep.mubr.bf16.mxu0 0
      %5567 = vmatmul.mubr.bf16.gmra.mrb[0].mxu0 %v5426
      %v5568 = vpop.f32.mrb[0].mxu0
      %v5569 = vadd.f32 %v5384, %v5568
      %v5570 = vpop.f32.mrb[0].mxu0
      %v5571 = vpop.f32.mrb[0].mxu0
      %v5572 = vadd.f32 %v5384, %v5571
      %v5573 = vpop.f32.mrb[0].mxu0
      %5574 = vmatprep.mubr.bf16.mxu0 0
      %5575 = vmatmul.mubr.bf16.gmra.mrb[0].mxu0 %v5427
      %v5576 = vpop.f32.mrb[0].mxu0
      %v5577 = vadd.f32 %v5384, %v5576
      %v5578 = vpop.f32.mrb[0].mxu0
      %v5579 = vpop.f32.mrb[0].mxu0
      %v5580 = vadd.f32 %v5384, %v5579
      %v5581 = vpop.f32.mrb[0].mxu0
      %5582 = vmatprep.mubr.bf16.mxu0 0
      %5583 = vmatmul.mubr.bf16.gmra.mrb[0].mxu0 %v5428
      %v5584 = vpop.f32.mrb[0].mxu0
      %v5585 = vadd.f32 %v5384, %v5584
      %v5586 = vpop.f32.mrb[0].mxu0
      %v5587 = vpop.f32.mrb[0].mxu0
      %v5588 = vpop.f32.mrb[0].mxu0
      %5589 = vdwg.mxu0
      %5607 = vrot.lane.b32.xlu0 %v5521, 96
      %v5608 = vpop.permute.xlu0 %5607
      %5609 = vrot.lane.b32.xlu0 %v5524, 96
      %v5610 = vpop.permute.xlu0 %5609
      %5611 = vrot.lane.b32.xlu0 %v5529, 96
      %v5612 = vpop.permute.xlu0 %5611
      %5613 = vrot.lane.b32.xlu0 %v5532, 96
      %v5614 = vpop.permute.xlu0 %5613
      %5615 = vrot.lane.b32.xlu0 %v5537, 96
      %v5616 = vpop.permute.xlu0 %5615
      %5617 = vrot.lane.b32.xlu0 %v5540, 96
      %v5618 = vpop.permute.xlu0 %5617
      %5619 = vrot.lane.b32.xlu0 %v5545, 96
      %v5620 = vpop.permute.xlu0 %5619
      %5621 = vrot.lane.b32.xlu0 %v5548, 96
      %v5622 = vpop.permute.xlu0 %5621
      %5623 = vrot.lane.b32.xlu0 %v5553, 96
      %v5624 = vpop.permute.xlu0 %5623
      %5625 = vrot.lane.b32.xlu0 %v5556, 96
      %v5626 = vpop.permute.xlu0 %5625
      %5627 = vrot.lane.b32.xlu0 %v5561, 96
      %v5628 = vpop.permute.xlu0 %5627
      %5629 = vrot.lane.b32.xlu0 %v5564, 96
      %v5630 = vpop.permute.xlu0 %5629
      %5631 = vrot.lane.b32.xlu0 %v5569, 96
      %v5632 = vpop.permute.xlu0 %5631
      %5633 = vrot.lane.b32.xlu0 %v5572, 96
      %v5634 = vpop.permute.xlu0 %5633
      %5635 = vrot.lane.b32.xlu0 %v5577, 96
      %v5636 = vpop.permute.xlu0 %5635
      %5637 = vrot.lane.b32.xlu0 %v5580, 96
      %v5638 = vpop.permute.xlu0 %5637
      %5639 = vrot.lane.b32.xlu0 %v5585, 96
      %v5640 = vpop.permute.xlu0 %5639
      %vm5641 = vcmask 261120
      %v5642 = vsel %vm5641, %v5521, 0
      %v5644 = vsel %vm5641, %v5524, 0
      %v5646 = vsel %vm5641, %v5529, 0
      %v5648 = vsel %vm5641, %v5532, 0
      %v5650 = vsel %vm5641, %v5537, 0
      %v5652 = vsel %vm5641, %v5540, 0
      %v5654 = vsel %vm5641, %v5545, 0
      %v5656 = vsel %vm5641, %v5548, 0
      %v5658 = vsel %vm5641, %v5553, 0
      %v5660 = vsel %vm5641, %v5556, 0
      %v5662 = vsel %vm5641, %v5561, 0
      %v5664 = vsel %vm5641, %v5564, 0
      %v5666 = vsel %vm5641, %v5569, 0
      %v5668 = vsel %vm5641, %v5572, 0
      %v5670 = vsel %vm5641, %v5577, 0
      %v5672 = vsel %vm5641, %v5580, 0
      %v5674 = vsel %vm5641, %v5585, 0
      %v5676 = vsel %vm5641, %v5608, 0
      %v5678 = vsel %vm5641, %v5610, 0
      %v5680 = vsel %vm5641, %v5612, 0
      %v5682 = vsel %vm5641, %v5614, 0
      %v5684 = vsel %vm5641, %v5616, 0
      %v5686 = vsel %vm5641, %v5618, 0
      %v5688 = vsel %vm5641, %v5620, 0
      %v5690 = vsel %vm5641, %v5622, 0
      %v5692 = vsel %vm5641, %v5624, 0
      %v5694 = vsel %vm5641, %v5626, 0
      %v5696 = vsel %vm5641, %v5628, 0
      %v5698 = vsel %vm5641, %v5630, 0
      %v5700 = vsel %vm5641, %v5632, 0
      %v5702 = vsel %vm5641, %v5634, 0
      %v5704 = vsel %vm5641, %v5636, 0
      %v5706 = vsel %vm5641, %v5638, 0
      %v5708 = vsel %vm5641, %v5640, 0
      %5710 = vmatprep.subr.mxu0 0.0
      %5711 = vmatpush1.xpose.msra.mxu0 %v5676
      %5712 = vmatprep.subr.mxu0 0.0
      %5713 = vmatpush1.xpose.msra.mxu0 %v5678
      %5714 = vmatprep.subr.mxu0 0.0
      %5715 = vmatpush1.xpose.msra.mxu0 %v5680
      %5716 = vmatprep.subr.mxu0 0.0
      %5717 = vmatpush1.xpose.msra.mxu0 %v5682
      %5718 = vmatprep.subr.mxu0 0.0
      %5719 = vmatpush1.xpose.msra.mxu0 %v5684
      %5720 = vmatprep.subr.mxu0 0.0
      %5721 = vmatpush1.xpose.msra.mxu0 %v5686
      %5722 = vmatprep.subr.mxu0 0.0
      %5723 = vmatpush1.xpose.msra.mxu0 %v5688
      %5724 = vmatprep.subr.mxu0 0.0
      %5725 = vmatpush1.xpose.msra.mxu0 %v5690
      %5726 = vmatprep.subr.mxu0 0.0
      %5727 = vmatpush1.xpose.msra.mxu0 %v5692
      %5728 = vmatprep.subr.mxu0 0.0
      %5729 = vmatpush1.xpose.msra.mxu0 %v5694
      %5730 = vmatprep.subr.mxu0 0.0
      %5731 = vmatpush1.xpose.msra.mxu0 %v5696
      %5732 = vmatprep.subr.mxu0 0.0
      %5733 = vmatpush1.xpose.msra.mxu0 %v5698
      %5734 = vmatprep.subr.mxu0 0.0
      %5735 = vmatpush1.xpose.msra.mxu0 %v5700
      %5736 = vmatprep.subr.mxu0 0.0
      %5737 = vmatpush1.xpose.msra.mxu0 %v5702
      %5738 = vmatprep.subr.mxu0 0.0
      %5739 = vmatpush1.xpose.msra.mxu0 %v5704
      %5740 = vmatprep.subr.mxu0 0.0
      %5741 = vmatpush1.xpose.msra.mxu0 %v5706
      %5742 = vmatprep.subr.mxu0 0.0
      %5743 = vmatpush1.xpose.msra.mxu0 %v5708
      %5744 = vmatprep.subr.mxu0 0.0
      %5745 = vmatpush1.xpose.msra.mxu0 0.0
      %5746 = vmatprep.subr.mxu0 0.0
      %5747 = vmatpush1.xpose.msra.mxu0 0.0
      %5748 = vmatprep.subr.mxu0 0.0
      %5749 = vmatpush1.xpose.msra.mxu0 0.0
      %5750 = vmatprep.subr.mxu0 0.0
      %5751 = vmatpush1.xpose.msra.mxu0 0.0
      %5752 = vmatprep.subr.mxu0 0.0
      %5753 = vmatpush1.xpose.msra.mxu0 0.0
      %5754 = vmatprep.subr.mxu0 0.0
      %5755 = vmatpush1.xpose.msra.mxu0 0.0
      %5756 = vmatprep.subr.mxu0 0.0
      %5757 = vmatpush1.xpose.msra.mxu0 0.0
      %5758 = vmatprep.subr.mxu0 0.0
      %5759 = vmatpush1.xpose.msra.mxu0 0.0
      %5760 = vmatprep.subr.mxu0 0.0
      %5761 = vmatpush1.xpose.msra.mxu0 0.0
      %5762 = vmatprep.subr.mxu0 0.0
      %5763 = vmatpush1.xpose.msra.mxu0 0.0
      %5764 = vmatprep.subr.mxu0 0.0
      %5765 = vmatpush1.xpose.msra.mxu0 0.0
      %5766 = vmatprep.subr.mxu0 0.0
      %5767 = vmatpush1.xpose.msra.mxu0 0.0
      %5768 = vmatprep.subr.mxu0 0.0
      %5769 = vmatpush1.xpose.msra.mxu0 0.0
      %5770 = vmatprep.subr.mxu0 0.0
      %5771 = vmatpush1.xpose.msra.mxu0 0.0
      %5772 = vmatprep.subr.mxu0 0.0
      %5773 = vmatpush1.xpose.msra.mxu0 0.0
      %5774 = vmatprep.mubr.f32.mxu0 0.0
      %5775 = vmatmul.mubr.f32.gmra.mrb[0].mxu0 %v5642
      %v5776 = vpop.f32.mrb[0].mxu0
      %v5777 = vadd.f32 0.0, %v5776
      %v5778 = vpop.f32.mrb[0].mxu0
      %v5779 = vadd.f32 0.0, %v5778
      %5780 = vmatprep.mubr.f32.mxu0 0.0
      %5781 = vmatmul.mubr.f32.gmra.mrb[0].mxu0 %v5644
      %v5782 = vpop.f32.mrb[0].mxu0
      %v5783 = vadd.f32 0.0, %v5782
      %v5784 = vpop.f32.mrb[0].mxu0
      %v5785 = vadd.f32 0.0, %v5784
      %5786 = vmatprep.mubr.f32.mxu0 0.0
      %5787 = vmatmul.mubr.f32.gmra.mrb[0].mxu0 %v5646
      %v5788 = vpop.f32.mrb[0].mxu0
      %v5789 = vadd.f32 0.0, %v5788
      %v5790 = vpop.f32.mrb[0].mxu0
      %v5791 = vadd.f32 0.0, %v5790
      %5792 = vmatprep.mubr.f32.mxu0 0.0
      %5793 = vmatmul.mubr.f32.gmra.mrb[0].mxu0 %v5648
      %v5794 = vpop.f32.mrb[0].mxu0
      %v5795 = vadd.f32 0.0, %v5794
      %v5796 = vpop.f32.mrb[0].mxu0
      %v5797 = vadd.f32 0.0, %v5796
      %5798 = vmatprep.mubr.f32.mxu0 0.0
      %5799 = vmatmul.mubr.f32.gmra.mrb[0].mxu0 %v5650
      %v5800 = vpop.f32.mrb[0].mxu0
      %v5801 = vadd.f32 0.0, %v5800
      %v5802 = vpop.f32.mrb[0].mxu0
      %v5803 = vadd.f32 0.0, %v5802
      %5804 = vmatprep.mubr.f32.mxu0 0.0
      %5805 = vmatmul.mubr.f32.gmra.mrb[0].mxu0 %v5652
      %v5806 = vpop.f32.mrb[0].mxu0
      %v5807 = vadd.f32 0.0, %v5806
      %v5808 = vpop.f32.mrb[0].mxu0
      %v5809 = vadd.f32 0.0, %v5808
      %5810 = vmatprep.mubr.f32.mxu0 0.0
      %5811 = vmatmul.mubr.f32.gmra.mrb[0].mxu0 %v5654
      %v5812 = vpop.f32.mrb[0].mxu0
      %v5813 = vadd.f32 0.0, %v5812
      %v5814 = vpop.f32.mrb[0].mxu0
      %v5815 = vadd.f32 0.0, %v5814
      %5816 = vmatprep.mubr.f32.mxu0 0.0
      %5817 = vmatmul.mubr.f32.gmra.mrb[0].mxu0 %v5656
      %v5818 = vpop.f32.mrb[0].mxu0
      %v5819 = vadd.f32 0.0, %v5818
      %v5820 = vpop.f32.mrb[0].mxu0
      %v5821 = vadd.f32 0.0, %v5820
      %5822 = vmatprep.mubr.f32.mxu0 0.0
      %5823 = vmatmul.mubr.f32.gmra.mrb[0].mxu0 %v5658
      %v5824 = vpop.f32.mrb[0].mxu0
      %v5825 = vadd.f32 0.0, %v5824
      %v5826 = vpop.f32.mrb[0].mxu0
      %v5827 = vadd.f32 0.0, %v5826
      %5828 = vmatprep.mubr.f32.mxu0 0.0
      %5829 = vmatmul.mubr.f32.gmra.mrb[0].mxu0 %v5660
      %v5830 = vpop.f32.mrb[0].mxu0
      %v5831 = vadd.f32 0.0, %v5830
      %v5832 = vpop.f32.mrb[0].mxu0
      %v5833 = vadd.f32 0.0, %v5832
      %5834 = vmatprep.mubr.f32.mxu0 0.0
      %5835 = vmatmul.mubr.f32.gmra.mrb[0].mxu0 %v5662
      %v5836 = vpop.f32.mrb[0].mxu0
      %v5837 = vadd.f32 0.0, %v5836
      %v5838 = vpop.f32.mrb[0].mxu0
      %v5839 = vadd.f32 0.0, %v5838
      %5840 = vmatprep.mubr.f32.mxu0 0.0
      %5841 = vmatmul.mubr.f32.gmra.mrb[0].mxu0 %v5664
      %v5842 = vpop.f32.mrb[0].mxu0
      %v5843 = vadd.f32 0.0, %v5842
      %v5844 = vpop.f32.mrb[0].mxu0
      %v5845 = vadd.f32 0.0, %v5844
      %5846 = vmatprep.mubr.f32.mxu0 0.0
      %5847 = vmatmul.mubr.f32.gmra.mrb[0].mxu0 %v5666
      %v5848 = vpop.f32.mrb[0].mxu0
      %v5849 = vadd.f32 0.0, %v5848
      %v5850 = vpop.f32.mrb[0].mxu0
      %v5851 = vadd.f32 0.0, %v5850
      %5852 = vmatprep.mubr.f32.mxu0 0.0
      %5853 = vmatmul.mubr.f32.gmra.mrb[0].mxu0 %v5668
      %v5854 = vpop.f32.mrb[0].mxu0
      %v5855 = vadd.f32 0.0, %v5854
      %v5856 = vpop.f32.mrb[0].mxu0
      %v5857 = vadd.f32 0.0, %v5856
      %5858 = vmatprep.mubr.f32.mxu0 0.0
      %5859 = vmatmul.mubr.f32.gmra.mrb[0].mxu0 %v5670
      %v5860 = vpop.f32.mrb[0].mxu0
      %v5861 = vadd.f32 0.0, %v5860
      %v5862 = vpop.f32.mrb[0].mxu0
      %v5863 = vadd.f32 0.0, %v5862
      %5864 = vmatprep.mubr.f32.mxu0 0.0
      %5865 = vmatmul.mubr.f32.gmra.mrb[0].mxu0 %v5672
      %v5866 = vpop.f32.mrb[0].mxu0
      %v5867 = vadd.f32 0.0, %v5866
      %v5868 = vpop.f32.mrb[0].mxu0
      %v5869 = vadd.f32 0.0, %v5868
      %5870 = vmatprep.mubr.f32.mxu0 0.0
      %5871 = vmatmul.mubr.f32.gmra.mrb[0].mxu0 %v5674
      %v5872 = vpop.f32.mrb[0].mxu0
      %v5873 = vadd.f32 0.0, %v5872
      %v5874 = vpop.f32.mrb[0].mxu0
      %v5875 = vadd.f32 0.0, %v5874
      %5876 = vdwg.mxu0
      %v5877 = vmul.f32 %v5777, 0.17677669
      %v5878 = vmul.f32 %v5779, 0.17677669
      %v5879 = vmul.f32 %v5783, 0.17677669
      %v5880 = vmul.f32 %v5785, 0.17677669
      %v5881 = vmul.f32 %v5789, 0.17677669
      %v5882 = vmul.f32 %v5791, 0.17677669
      %v5883 = vmul.f32 %v5795, 0.17677669
      %v5884 = vmul.f32 %v5797, 0.17677669
      %v5885 = vmul.f32 %v5801, 0.17677669
      %v5886 = vmul.f32 %v5803, 0.17677669
      %v5887 = vmul.f32 %v5807, 0.17677669
      %v5888 = vmul.f32 %v5809, 0.17677669
      %v5889 = vmul.f32 %v5813, 0.17677669
      %v5890 = vmul.f32 %v5815, 0.17677669
      %v5891 = vmul.f32 %v5819, 0.17677669
      %v5892 = vmul.f32 %v5821, 0.17677669
      %v5893 = vmul.f32 %v5825, 0.17677669
      %v5894 = vmul.f32 %v5827, 0.17677669
      %v5895 = vmul.f32 %v5831, 0.17677669
      %v5896 = vmul.f32 %v5833, 0.17677669
      %v5897 = vmul.f32 %v5837, 0.17677669
      %v5898 = vmul.f32 %v5839, 0.17677669
      %v5899 = vmul.f32 %v5843, 0.17677669
      %v5900 = vmul.f32 %v5845, 0.17677669
      %v5901 = vmul.f32 %v5849, 0.17677669
      %v5902 = vmul.f32 %v5851, 0.17677669
      %v5903 = vmul.f32 %v5855, 0.17677669
      %v5904 = vmul.f32 %v5857, 0.17677669
      %v5905 = vmul.f32 %v5861, 0.17677669
      %v5906 = vmul.f32 %v5863, 0.17677669
      %v5907 = vmul.f32 %v5867, 0.17677669
      %v5908 = vmul.f32 %v5869, 0.17677669
      %v5909 = vmul.f32 %v5873, 0.17677669
      %v5910 = vmul.f32 %v5875, 0.17677669
      %v5911 = vsel %vm1479, -1e+30, %v5877
      %v5912 = vsel %vm1480, -1e+30, %v5878
      %v5913 = vsel %vm1481, -1e+30, %v5879
      %v5914 = vsel %vm1482, -1e+30, %v5880
      %v5915 = vsel %vm1483, -1e+30, %v5881
      %v5916 = vsel %vm1484, -1e+30, %v5882
      %v5917 = vsel %vm1485, -1e+30, %v5883
      %v5918 = vsel %vm1486, -1e+30, %v5884
      %v5919 = vsel %vm1487, -1e+30, %v5885
      %v5920 = vsel %vm1488, -1e+30, %v5886
      %v5921 = vsel %vm1489, -1e+30, %v5887
      %v5922 = vsel %vm1490, -1e+30, %v5888
      %v5923 = vsel %vm1491, -1e+30, %v5889
      %v5924 = vsel %vm1492, -1e+30, %v5890
      %v5925 = vsel %vm1493, -1e+30, %v5891
      %v5926 = vsel %vm1494, -1e+30, %v5892
      %v5927 = vsel %vm1495, -1e+30, %v5893
      %v5928 = vsel %vm1496, -1e+30, %v5894
      %v5929 = vsel %vm1497, -1e+30, %v5895
      %v5930 = vsel %vm1498, -1e+30, %v5896
      %v5931 = vsel %vm1499, -1e+30, %v5897
      %v5932 = vsel %vm1500, -1e+30, %v5898
      %v5933 = vsel %vm1501, -1e+30, %v5899
      %v5934 = vsel %vm1502, -1e+30, %v5900
      %v5935 = vsel %vm1503, -1e+30, %v5901
      %v5936 = vsel %vm1504, -1e+30, %v5902
      %v5937 = vsel %vm1505, -1e+30, %v5903
      %v5938 = vsel %vm1506, -1e+30, %v5904
      %v5939 = vsel %vm1507, -1e+30, %v5905
      %v5940 = vsel %vm1508, -1e+30, %v5906
      %v5941 = vsel %vm1509, -1e+30, %v5907
      %v5942 = vsel %vm1510, -1e+30, %v5908
      %v5943 = vsel %vm1511, -1e+30, %v5909
      %v5944 = vsel %vm1512, -1e+30, %v5910
      %v5945 = vsel %vm2112, %v5912, -inf
      %v5946 = vmax.f32 %v5911, %v5945
      %5947 = vmax.xlane.f32.xlu0 %v5946
      %v5948 = vpop.xlane.xlu0 %5947
      %v5949 = vsel %vm2112, %v5914, -inf
      %v5950 = vmax.f32 %v5913, %v5949
      %5951 = vmax.xlane.f32.xlu0 %v5950
      %v5952 = vpop.xlane.xlu0 %5951
      %v5953 = vsel %vm2112, %v5916, -inf
      %v5954 = vmax.f32 %v5915, %v5953
      %5955 = vmax.xlane.f32.xlu0 %v5954
      %v5956 = vpop.xlane.xlu0 %5955
      %v5957 = vsel %vm2112, %v5918, -inf
      %v5958 = vmax.f32 %v5917, %v5957
      %5959 = vmax.xlane.f32.xlu0 %v5958
      %v5960 = vpop.xlane.xlu0 %5959
      %v5961 = vsel %vm2112, %v5920, -inf
      %v5962 = vmax.f32 %v5919, %v5961
      %5963 = vmax.xlane.f32.xlu0 %v5962
      %v5964 = vpop.xlane.xlu0 %5963
      %v5965 = vsel %vm2112, %v5922, -inf
      %v5966 = vmax.f32 %v5921, %v5965
      %5967 = vmax.xlane.f32.xlu0 %v5966
      %v5968 = vpop.xlane.xlu0 %5967
      %v5969 = vsel %vm2112, %v5924, -inf
      %v5970 = vmax.f32 %v5923, %v5969
      %5971 = vmax.xlane.f32.xlu0 %v5970
      %v5972 = vpop.xlane.xlu0 %5971
      %v5973 = vsel %vm2112, %v5926, -inf
      %v5974 = vmax.f32 %v5925, %v5973
      %5975 = vmax.xlane.f32.xlu0 %v5974
      %v5976 = vpop.xlane.xlu0 %5975
      %v5977 = vsel %vm2112, %v5928, -inf
      %v5978 = vmax.f32 %v5927, %v5977
      %5979 = vmax.xlane.f32.xlu0 %v5978
      %v5980 = vpop.xlane.xlu0 %5979
      %v5981 = vsel %vm2112, %v5930, -inf
      %v5982 = vmax.f32 %v5929, %v5981
      %5983 = vmax.xlane.f32.xlu0 %v5982
      %v5984 = vpop.xlane.xlu0 %5983
      %v5985 = vsel %vm2112, %v5932, -inf
      %v5986 = vmax.f32 %v5931, %v5985
      %5987 = vmax.xlane.f32.xlu0 %v5986
      %v5988 = vpop.xlane.xlu0 %5987
      %v5989 = vsel %vm2112, %v5934, -inf
      %v5990 = vmax.f32 %v5933, %v5989
      %5991 = vmax.xlane.f32.xlu0 %v5990
      %v5992 = vpop.xlane.xlu0 %5991
      %v5993 = vsel %vm2112, %v5936, -inf
      %v5994 = vmax.f32 %v5935, %v5993
      %5995 = vmax.xlane.f32.xlu0 %v5994
      %v5996 = vpop.xlane.xlu0 %5995
      %v5997 = vsel %vm2112, %v5938, -inf
      %v5998 = vmax.f32 %v5937, %v5997
      %5999 = vmax.xlane.f32.xlu0 %v5998
      %v6000 = vpop.xlane.xlu0 %5999
      %v6001 = vsel %vm2112, %v5940, -inf
      %v6002 = vmax.f32 %v5939, %v6001
      %6003 = vmax.xlane.f32.xlu0 %v6002
      %v6004 = vpop.xlane.xlu0 %6003
      %v6005 = vsel %vm2112, %v5942, -inf
      %v6006 = vmax.f32 %v5941, %v6005
      %6007 = vmax.xlane.f32.xlu0 %v6006
      %v6008 = vpop.xlane.xlu0 %6007
      %v6009 = vsel %vm2112, %v5944, -inf
      %v6010 = vmax.f32 %v5943, %v6009
      %6011 = vmax.xlane.f32.xlu0 %v6010
      %v6012 = vpop.xlane.xlu0 %6011
      %v6013 = vsub.f32 %v5911, %v5948
      %v6014 = vsub.f32 %v5912, %v5948
      %v6015 = vsub.f32 %v5913, %v5952
      %v6016 = vsub.f32 %v5914, %v5952
      %v6017 = vsub.f32 %v5915, %v5956
      %v6018 = vsub.f32 %v5916, %v5956
      %v6019 = vsub.f32 %v5917, %v5960
      %v6020 = vsub.f32 %v5918, %v5960
      %v6021 = vsub.f32 %v5919, %v5964
      %v6022 = vsub.f32 %v5920, %v5964
      %v6023 = vsub.f32 %v5921, %v5968
      %v6024 = vsub.f32 %v5922, %v5968
      %v6025 = vsub.f32 %v5923, %v5972
      %v6026 = vsub.f32 %v5924, %v5972
      %v6027 = vsub.f32 %v5925, %v5976
      %v6028 = vsub.f32 %v5926, %v5976
      %v6029 = vsub.f32 %v5927, %v5980
      %v6030 = vsub.f32 %v5928, %v5980
      %v6031 = vsub.f32 %v5929, %v5984
      %v6032 = vsub.f32 %v5930, %v5984
      %v6033 = vsub.f32 %v5931, %v5988
      %v6034 = vsub.f32 %v5932, %v5988
      %v6035 = vsub.f32 %v5933, %v5992
      %v6036 = vsub.f32 %v5934, %v5992
      %v6037 = vsub.f32 %v5935, %v5996
      %v6038 = vsub.f32 %v5936, %v5996
      %v6039 = vsub.f32 %v5937, %v6000
      %v6040 = vsub.f32 %v5938, %v6000
      %v6041 = vsub.f32 %v5939, %v6004
      %v6042 = vsub.f32 %v5940, %v6004
      %v6043 = vsub.f32 %v5941, %v6008
      %v6044 = vsub.f32 %v5942, %v6008
      %v6045 = vsub.f32 %v5943, %v6012
      %v6046 = vsub.f32 %v5944, %v6012
      %v6047 = vmul.f32 %v6013, 1.442695
      %v6048 = vpow.pop %v6047
      %v6049 = vmul.f32 %v6014, 1.442695
      %v6050 = vpow.pop %v6049
      %v6051 = vmul.f32 %v6015, 1.442695
      %v6052 = vpow.pop %v6051
      %v6053 = vmul.f32 %v6016, 1.442695
      %v6054 = vpow.pop %v6053
      %v6055 = vmul.f32 %v6017, 1.442695
      %v6056 = vpow.pop %v6055
      %v6057 = vmul.f32 %v6018, 1.442695
      %v6058 = vpow.pop %v6057
      %v6059 = vmul.f32 %v6019, 1.442695
      %v6060 = vpow.pop %v6059
      %v6061 = vmul.f32 %v6020, 1.442695
      %v6062 = vpow.pop %v6061
      %v6063 = vmul.f32 %v6021, 1.442695
      %v6064 = vpow.pop %v6063
      %v6065 = vmul.f32 %v6022, 1.442695
      %v6066 = vpow.pop %v6065
      %v6067 = vmul.f32 %v6023, 1.442695
      %v6068 = vpow.pop %v6067
      %v6069 = vmul.f32 %v6024, 1.442695
      %v6070 = vpow.pop %v6069
      %v6071 = vmul.f32 %v6025, 1.442695
      %v6072 = vpow.pop %v6071
      %v6073 = vmul.f32 %v6026, 1.442695
      %v6074 = vpow.pop %v6073
      %v6075 = vmul.f32 %v6027, 1.442695
      %v6076 = vpow.pop %v6075
      %v6077 = vmul.f32 %v6028, 1.442695
      %v6078 = vpow.pop %v6077
      %v6079 = vmul.f32 %v6029, 1.442695
      %v6080 = vpow.pop %v6079
      %v6081 = vmul.f32 %v6030, 1.442695
      %v6082 = vpow.pop %v6081
      %v6083 = vmul.f32 %v6031, 1.442695
      %v6084 = vpow.pop %v6083
      %v6085 = vmul.f32 %v6032, 1.442695
      %v6086 = vpow.pop %v6085
      %v6087 = vmul.f32 %v6033, 1.442695
      %v6088 = vpow.pop %v6087
      %v6089 = vmul.f32 %v6034, 1.442695
      %v6090 = vpow.pop %v6089
      %v6091 = vmul.f32 %v6035, 1.442695
      %v6092 = vpow.pop %v6091
      %v6093 = vmul.f32 %v6036, 1.442695
      %v6094 = vpow.pop %v6093
      %v6095 = vmul.f32 %v6037, 1.442695
      %v6096 = vpow.pop %v6095
      %v6097 = vmul.f32 %v6038, 1.442695
      %v6098 = vpow.pop %v6097
      %v6099 = vmul.f32 %v6039, 1.442695
      %v6100 = vpow.pop %v6099
      %v6101 = vmul.f32 %v6040, 1.442695
      %v6102 = vpow.pop %v6101
      %v6103 = vmul.f32 %v6041, 1.442695
      %v6104 = vpow.pop %v6103
      %v6105 = vmul.f32 %v6042, 1.442695
      %v6106 = vpow.pop %v6105
      %v6107 = vmul.f32 %v6043, 1.442695
      %v6108 = vpow.pop %v6107
      %v6109 = vmul.f32 %v6044, 1.442695
      %v6110 = vpow.pop %v6109
      %v6111 = vmul.f32 %v6045, 1.442695
      %v6112 = vpow.pop %v6111
      %v6113 = vmul.f32 %v6046, 1.442695
      %v6114 = vpow.pop %v6113
      %v6115 = vsel %vm2112, %v6050, 0.0
      %v6116 = vadd.f32 %v6048, %v6115
      %6117 = vadd.xlane.f32.xlu0 %v6116
      %v6118 = vpop.xlane.xlu0 %6117
      %v6119 = vsel %vm2112, %v6054, 0.0
      %v6120 = vadd.f32 %v6052, %v6119
      %6121 = vadd.xlane.f32.xlu0 %v6120
      %v6122 = vpop.xlane.xlu0 %6121
      %v6123 = vsel %vm2112, %v6058, 0.0
      %v6124 = vadd.f32 %v6056, %v6123
      %6125 = vadd.xlane.f32.xlu0 %v6124
      %v6126 = vpop.xlane.xlu0 %6125
      %v6127 = vsel %vm2112, %v6062, 0.0
      %v6128 = vadd.f32 %v6060, %v6127
      %6129 = vadd.xlane.f32.xlu0 %v6128
      %v6130 = vpop.xlane.xlu0 %6129
      %v6131 = vsel %vm2112, %v6066, 0.0
      %v6132 = vadd.f32 %v6064, %v6131
      %6133 = vadd.xlane.f32.xlu0 %v6132
      %v6134 = vpop.xlane.xlu0 %6133
      %v6135 = vsel %vm2112, %v6070, 0.0
      %v6136 = vadd.f32 %v6068, %v6135
      %6137 = vadd.xlane.f32.xlu0 %v6136
      %v6138 = vpop.xlane.xlu0 %6137
      %v6139 = vsel %vm2112, %v6074, 0.0
      %v6140 = vadd.f32 %v6072, %v6139
      %6141 = vadd.xlane.f32.xlu0 %v6140
      %v6142 = vpop.xlane.xlu0 %6141
      %v6143 = vsel %vm2112, %v6078, 0.0
      %v6144 = vadd.f32 %v6076, %v6143
      %6145 = vadd.xlane.f32.xlu0 %v6144
      %v6146 = vpop.xlane.xlu0 %6145
      %v6147 = vsel %vm2112, %v6082, 0.0
      %v6148 = vadd.f32 %v6080, %v6147
      %6149 = vadd.xlane.f32.xlu0 %v6148
      %v6150 = vpop.xlane.xlu0 %6149
      %v6151 = vsel %vm2112, %v6086, 0.0
      %v6152 = vadd.f32 %v6084, %v6151
      %6153 = vadd.xlane.f32.xlu0 %v6152
      %v6154 = vpop.xlane.xlu0 %6153
      %v6155 = vsel %vm2112, %v6090, 0.0
      %v6156 = vadd.f32 %v6088, %v6155
      %6157 = vadd.xlane.f32.xlu0 %v6156
      %v6158 = vpop.xlane.xlu0 %6157
      %v6159 = vsel %vm2112, %v6094, 0.0
      %v6160 = vadd.f32 %v6092, %v6159
      %6161 = vadd.xlane.f32.xlu0 %v6160
      %v6162 = vpop.xlane.xlu0 %6161
      %v6163 = vsel %vm2112, %v6098, 0.0
      %v6164 = vadd.f32 %v6096, %v6163
      %6165 = vadd.xlane.f32.xlu0 %v6164
      %v6166 = vpop.xlane.xlu0 %6165
      %v6167 = vsel %vm2112, %v6102, 0.0
      %v6168 = vadd.f32 %v6100, %v6167
      %6169 = vadd.xlane.f32.xlu0 %v6168
      %v6170 = vpop.xlane.xlu0 %6169
      %v6171 = vsel %vm2112, %v6106, 0.0
      %v6172 = vadd.f32 %v6104, %v6171
      %6173 = vadd.xlane.f32.xlu0 %v6172
      %v6174 = vpop.xlane.xlu0 %6173
      %v6175 = vsel %vm2112, %v6110, 0.0
      %v6176 = vadd.f32 %v6108, %v6175
      %6177 = vadd.xlane.f32.xlu0 %v6176
      %v6178 = vpop.xlane.xlu0 %6177
      %v6179 = vsel %vm2112, %v6114, 0.0
      %v6180 = vadd.f32 %v6112, %v6179
      %6181 = vadd.xlane.f32.xlu0 %v6180
      %v6182 = vpop.xlane.xlu0 %6181
      %v6183 = vrcp.pop %v6118
      %v6184 = vrcp.pop %v6122
      %v6185 = vrcp.pop %v6126
      %v6186 = vrcp.pop %v6130
      %v6187 = vrcp.pop %v6134
      %v6188 = vrcp.pop %v6138
      %v6189 = vrcp.pop %v6142
      %v6190 = vrcp.pop %v6146
      %v6191 = vrcp.pop %v6150
      %v6192 = vrcp.pop %v6154
      %v6193 = vrcp.pop %v6158
      %v6194 = vrcp.pop %v6162
      %v6195 = vrcp.pop %v6166
      %v6196 = vrcp.pop %v6170
      %v6197 = vrcp.pop %v6174
      %v6198 = vrcp.pop %v6178
      %v6199 = vrcp.pop %v6182
      %v6200 = vmul.f32 %v6048, %v6183
      %v6201 = vmul.f32 %v6050, %v6183
      %v6202 = vmul.f32 %v6052, %v6184
      %v6203 = vmul.f32 %v6054, %v6184
      %v6204 = vmul.f32 %v6056, %v6185
      %v6205 = vmul.f32 %v6058, %v6185
      %v6206 = vmul.f32 %v6060, %v6186
      %v6207 = vmul.f32 %v6062, %v6186
      %v6208 = vmul.f32 %v6064, %v6187
      %v6209 = vmul.f32 %v6066, %v6187
      %v6210 = vmul.f32 %v6068, %v6188
      %v6211 = vmul.f32 %v6070, %v6188
      %v6212 = vmul.f32 %v6072, %v6189
      %v6213 = vmul.f32 %v6074, %v6189
      %v6214 = vmul.f32 %v6076, %v6190
      %v6215 = vmul.f32 %v6078, %v6190
      %v6216 = vmul.f32 %v6080, %v6191
      %v6217 = vmul.f32 %v6082, %v6191
      %v6218 = vmul.f32 %v6084, %v6192
      %v6219 = vmul.f32 %v6086, %v6192
      %v6220 = vmul.f32 %v6088, %v6193
      %v6221 = vmul.f32 %v6090, %v6193
      %v6222 = vmul.f32 %v6092, %v6194
      %v6223 = vmul.f32 %v6094, %v6194
      %v6224 = vmul.f32 %v6096, %v6195
      %v6225 = vmul.f32 %v6098, %v6195
      %v6226 = vmul.f32 %v6100, %v6196
      %v6227 = vmul.f32 %v6102, %v6196
      %v6228 = vmul.f32 %v6104, %v6197
      %v6229 = vmul.f32 %v6106, %v6197
      %v6230 = vmul.f32 %v6108, %v6198
      %v6231 = vmul.f32 %v6110, %v6198
      %v6232 = vmul.f32 %v6112, %v6199
      %v6233 = vmul.f32 %v6114, %v6199
      %6234 = vrot.lane.b32.xlu0 %v5521, 64
      %v6235 = vpop.permute.xlu0 %6234
      %6236 = vrot.lane.b32.xlu0 %v5524, 64
      %v6237 = vpop.permute.xlu0 %6236
      %6238 = vrot.lane.b32.xlu0 %v5529, 64
      %v6239 = vpop.permute.xlu0 %6238
      %6240 = vrot.lane.b32.xlu0 %v5532, 64
      %v6241 = vpop.permute.xlu0 %6240
      %6242 = vrot.lane.b32.xlu0 %v5537, 64
      %v6243 = vpop.permute.xlu0 %6242
      %6244 = vrot.lane.b32.xlu0 %v5540, 64
      %v6245 = vpop.permute.xlu0 %6244
      %6246 = vrot.lane.b32.xlu0 %v5545, 64
      %v6247 = vpop.permute.xlu0 %6246
      %6248 = vrot.lane.b32.xlu0 %v5548, 64
      %v6249 = vpop.permute.xlu0 %6248
      %6250 = vrot.lane.b32.xlu0 %v5553, 64
      %v6251 = vpop.permute.xlu0 %6250
      %6252 = vrot.lane.b32.xlu0 %v5556, 64
      %v6253 = vpop.permute.xlu0 %6252
      %6254 = vrot.lane.b32.xlu0 %v5561, 64
      %v6255 = vpop.permute.xlu0 %6254
      %6256 = vrot.lane.b32.xlu0 %v5564, 64
      %v6257 = vpop.permute.xlu0 %6256
      %6258 = vrot.lane.b32.xlu0 %v5569, 64
      %v6259 = vpop.permute.xlu0 %6258
      %6260 = vrot.lane.b32.xlu0 %v5572, 64
      %v6261 = vpop.permute.xlu0 %6260
      %6262 = vrot.lane.b32.xlu0 %v5577, 64
      %v6263 = vpop.permute.xlu0 %6262
      %6264 = vrot.lane.b32.xlu0 %v5580, 64
      %v6265 = vpop.permute.xlu0 %6264
      %6266 = vrot.lane.b32.xlu0 %v5585, 64
      %v6267 = vpop.permute.xlu0 %6266
      %v6286 = vsel %vm2112, %v6201, 0
      %v6289 = vsel %vm2112, %v6203, 0
      %v6292 = vsel %vm2112, %v6205, 0
      %v6295 = vsel %vm2112, %v6207, 0
      %v6298 = vsel %vm2112, %v6209, 0
      %v6301 = vsel %vm2112, %v6211, 0
      %v6304 = vsel %vm2112, %v6213, 0
      %v6307 = vsel %vm2112, %v6215, 0
      %v6310 = vsel %vm2112, %v6217, 0
      %v6313 = vsel %vm2112, %v6219, 0
      %v6316 = vsel %vm2112, %v6221, 0
      %v6319 = vsel %vm2112, %v6223, 0
      %v6322 = vsel %vm2112, %v6225, 0
      %v6325 = vsel %vm2112, %v6227, 0
      %v6328 = vsel %vm2112, %v6229, 0
      %v6331 = vsel %vm2112, %v6231, 0
      %v6334 = vsel %vm2112, %v6233, 0
      %6336 = vmatprep.subr.mxu0 0.0
      %6337 = vmatpush1.msra.mxu0 %v6235
      %6338 = vmatprep.subr.mxu0 0.0
      %6339 = vmatpush1.msra.mxu0 %v6237
      %6340 = vmatprep.subr.mxu0 0.0
      %6341 = vmatpush1.msra.mxu0 %v6239
      %6342 = vmatprep.subr.mxu0 0.0
      %6343 = vmatpush1.msra.mxu0 %v6241
      %6344 = vmatprep.subr.mxu0 0.0
      %6345 = vmatpush1.msra.mxu0 %v6243
      %6346 = vmatprep.subr.mxu0 0.0
      %6347 = vmatpush1.msra.mxu0 %v6245
      %6348 = vmatprep.subr.mxu0 0.0
      %6349 = vmatpush1.msra.mxu0 %v6247
      %6350 = vmatprep.subr.mxu0 0.0
      %6351 = vmatpush1.msra.mxu0 %v6249
      %6352 = vmatprep.subr.mxu0 0.0
      %6353 = vmatpush1.msra.mxu0 %v6251
      %6354 = vmatprep.subr.mxu0 0.0
      %6355 = vmatpush1.msra.mxu0 %v6253
      %6356 = vmatprep.subr.mxu0 0.0
      %6357 = vmatpush1.msra.mxu0 %v6255
      %6358 = vmatprep.subr.mxu0 0.0
      %6359 = vmatpush1.msra.mxu0 %v6257
      %6360 = vmatprep.subr.mxu0 0.0
      %6361 = vmatpush1.msra.mxu0 %v6259
      %6362 = vmatprep.subr.mxu0 0.0
      %6363 = vmatpush1.msra.mxu0 %v6261
      %6364 = vmatprep.subr.mxu0 0.0
      %6365 = vmatpush1.msra.mxu0 %v6263
      %6366 = vmatprep.subr.mxu0 0.0
      %6367 = vmatpush1.msra.mxu0 %v6265
      %6368 = vmatprep.subr.mxu0 0.0
      %6369 = vmatpush1.msra.mxu0 %v6267
      %6370 = vmatprep.subr.mxu0 0.0
      %6371 = vmatpush1.msra.mxu0 0.0
      %6372 = vmatprep.subr.mxu0 0.0
      %6373 = vmatpush1.msra.mxu0 0.0
      %6374 = vmatprep.subr.mxu0 0.0
      %6375 = vmatpush1.msra.mxu0 0.0
      %6376 = vmatprep.subr.mxu0 0.0
      %6377 = vmatpush1.msra.mxu0 0.0
      %6378 = vmatprep.subr.mxu0 0.0
      %6379 = vmatpush1.msra.mxu0 0.0
      %6380 = vmatprep.subr.mxu0 0.0
      %6381 = vmatpush1.msra.mxu0 0.0
      %6382 = vmatprep.subr.mxu0 0.0
      %6383 = vmatpush1.msra.mxu0 0.0
      %6384 = vmatprep.subr.mxu0 0.0
      %6385 = vmatpush1.msra.mxu0 0.0
      %6386 = vmatprep.subr.mxu0 0.0
      %6387 = vmatpush1.msra.mxu0 0.0
      %6388 = vmatprep.subr.mxu0 0.0
      %6389 = vmatpush1.msra.mxu0 0.0
      %6390 = vmatprep.subr.mxu0 0.0
      %6391 = vmatpush1.msra.mxu0 0.0
      %6392 = vmatprep.subr.mxu0 0.0
      %6393 = vmatpush1.msra.mxu0 0.0
      %6394 = vmatprep.subr.mxu0 0.0
      %6395 = vmatpush1.msra.mxu0 0.0
      %6396 = vmatprep.subr.mxu0 0.0
      %6397 = vmatpush1.msra.mxu0 0.0
      %6398 = vmatprep.subr.mxu0 0.0
      %6399 = vmatpush1.msra.mxu0 0.0
      %6400 = vmatprep.mubr.f32.mxu0 %v6286
      %6401 = vmatmul.mubr.f32.gmra.mrb[0].mxu0 %v6200
      %v6402 = vpop.f32.mrb[0].mxu0
      %v6403 = vadd.f32 0.0, %v6402
      %v6404 = vpop.f32.mrb[0].mxu0
      %6405 = vmatprep.mubr.f32.mxu0 %v6289
      %6406 = vmatmul.mubr.f32.gmra.mrb[0].mxu0 %v6202
      %v6407 = vpop.f32.mrb[0].mxu0
      %v6408 = vadd.f32 0.0, %v6407
      %v6409 = vpop.f32.mrb[0].mxu0
      %6410 = vmatprep.mubr.f32.mxu0 %v6292
      %6411 = vmatmul.mubr.f32.gmra.mrb[0].mxu0 %v6204
      %v6412 = vpop.f32.mrb[0].mxu0
      %v6413 = vadd.f32 0.0, %v6412
      %v6414 = vpop.f32.mrb[0].mxu0
      %6415 = vmatprep.mubr.f32.mxu0 %v6295
      %6416 = vmatmul.mubr.f32.gmra.mrb[0].mxu0 %v6206
      %v6417 = vpop.f32.mrb[0].mxu0
      %v6418 = vadd.f32 0.0, %v6417
      %v6419 = vpop.f32.mrb[0].mxu0
      %6420 = vmatprep.mubr.f32.mxu0 %v6298
      %6421 = vmatmul.mubr.f32.gmra.mrb[0].mxu0 %v6208
      %v6422 = vpop.f32.mrb[0].mxu0
      %v6423 = vadd.f32 0.0, %v6422
      %v6424 = vpop.f32.mrb[0].mxu0
      %6425 = vmatprep.mubr.f32.mxu0 %v6301
      %6426 = vmatmul.mubr.f32.gmra.mrb[0].mxu0 %v6210
      %v6427 = vpop.f32.mrb[0].mxu0
      %v6428 = vadd.f32 0.0, %v6427
      %v6429 = vpop.f32.mrb[0].mxu0
      %6430 = vmatprep.mubr.f32.mxu0 %v6304
      %6431 = vmatmul.mubr.f32.gmra.mrb[0].mxu0 %v6212
      %v6432 = vpop.f32.mrb[0].mxu0
      %v6433 = vadd.f32 0.0, %v6432
      %v6434 = vpop.f32.mrb[0].mxu0
      %6435 = vmatprep.mubr.f32.mxu0 %v6307
      %6436 = vmatmul.mubr.f32.gmra.mrb[0].mxu0 %v6214
      %v6437 = vpop.f32.mrb[0].mxu0
      %v6438 = vadd.f32 0.0, %v6437
      %v6439 = vpop.f32.mrb[0].mxu0
      %6440 = vmatprep.mubr.f32.mxu0 %v6310
      %6441 = vmatmul.mubr.f32.gmra.mrb[0].mxu0 %v6216
      %v6442 = vpop.f32.mrb[0].mxu0
      %v6443 = vadd.f32 0.0, %v6442
      %v6444 = vpop.f32.mrb[0].mxu0
      %6445 = vmatprep.mubr.f32.mxu0 %v6313
      %6446 = vmatmul.mubr.f32.gmra.mrb[0].mxu0 %v6218
      %v6447 = vpop.f32.mrb[0].mxu0
      %v6448 = vadd.f32 0.0, %v6447
      %v6449 = vpop.f32.mrb[0].mxu0
      %6450 = vmatprep.mubr.f32.mxu0 %v6316
      %6451 = vmatmul.mubr.f32.gmra.mrb[0].mxu0 %v6220
      %v6452 = vpop.f32.mrb[0].mxu0
      %v6453 = vadd.f32 0.0, %v6452
      %v6454 = vpop.f32.mrb[0].mxu0
      %6455 = vmatprep.mubr.f32.mxu0 %v6319
      %6456 = vmatmul.mubr.f32.gmra.mrb[0].mxu0 %v6222
      %v6457 = vpop.f32.mrb[0].mxu0
      %v6458 = vadd.f32 0.0, %v6457
      %v6459 = vpop.f32.mrb[0].mxu0
      %6460 = vmatprep.mubr.f32.mxu0 %v6322
      %6461 = vmatmul.mubr.f32.gmra.mrb[0].mxu0 %v6224
      %v6462 = vpop.f32.mrb[0].mxu0
      %v6463 = vadd.f32 0.0, %v6462
      %v6464 = vpop.f32.mrb[0].mxu0
      %6465 = vmatprep.mubr.f32.mxu0 %v6325
      %6466 = vmatmul.mubr.f32.gmra.mrb[0].mxu0 %v6226
      %v6467 = vpop.f32.mrb[0].mxu0
      %v6468 = vadd.f32 0.0, %v6467
      %v6469 = vpop.f32.mrb[0].mxu0
      %6470 = vmatprep.mubr.f32.mxu0 %v6328
      %6471 = vmatmul.mubr.f32.gmra.mrb[0].mxu0 %v6228
      %v6472 = vpop.f32.mrb[0].mxu0
      %v6473 = vadd.f32 0.0, %v6472
      %v6474 = vpop.f32.mrb[0].mxu0
      %6475 = vmatprep.mubr.f32.mxu0 %v6331
      %6476 = vmatmul.mubr.f32.gmra.mrb[0].mxu0 %v6230
      %v6477 = vpop.f32.mrb[0].mxu0
      %v6478 = vadd.f32 0.0, %v6477
      %v6479 = vpop.f32.mrb[0].mxu0
      %6480 = vmatprep.mubr.f32.mxu0 %v6334
      %6481 = vmatmul.mubr.f32.gmra.mrb[0].mxu0 %v6232
      %v6482 = vpop.f32.mrb[0].mxu0
      %v6483 = vadd.f32 0.0, %v6482
      %v6484 = vpop.f32.mrb[0].mxu0
      %6485 = vdwg.mxu0
      %v6486 = vpack.c.bf16 %v6408, %v6403
      %v6487 = vpack.c.bf16 %v6418, %v6413
      %v6488 = vpack.c.bf16 %v6428, %v6423
      %v6489 = vpack.c.bf16 %v6438, %v6433
      %v6490 = vpack.c.bf16 %v6448, %v6443
      %v6491 = vpack.c.bf16 %v6458, %v6453
      %v6492 = vpack.c.bf16 %v6468, %v6463
      %v6493 = vpack.c.bf16 %v6478, %v6473
      %v6494 = vpack.c.bf16 %v6483, %v6483
      %v6504 = vunpack.c.l.b16 %v6486
      %v6505 = vunpack.c.h.b16 %v6486
      %v6506 = vunpack.c.l.b16 %v6487
      %v6507 = vunpack.c.h.b16 %v6487
      %v6508 = vunpack.c.l.b16 %v6488
      %v6509 = vunpack.c.h.b16 %v6488
      %v6510 = vunpack.c.l.b16 %v6489
      %v6511 = vunpack.c.h.b16 %v6489
      %v6512 = vunpack.c.l.b16 %v6490
      %v6513 = vunpack.c.h.b16 %v6490
      %v6514 = vunpack.c.l.b16 %v6491
      %v6515 = vunpack.c.h.b16 %v6491
      %v6516 = vunpack.c.l.b16 %v6492
      %v6517 = vunpack.c.h.b16 %v6492
      %v6518 = vunpack.c.l.b16 %v6493
      %v6519 = vunpack.c.h.b16 %v6493
      %v6520 = vunpack.c.l.b16 %v6494
      %v6521 = vpack.c.b16 %v6504, %v6504
      %v6522 = vpack.c.b16 %v6505, %v6505
      %v6523 = vpack.c.b16 %v6506, %v6506
      %v6524 = vpack.c.b16 %v6507, %v6507
      %v6525 = vpack.c.b16 %v6508, %v6508
      %v6526 = vpack.c.b16 %v6509, %v6509
      %v6527 = vpack.c.b16 %v6510, %v6510
      %v6528 = vpack.c.b16 %v6511, %v6511
      %v6529 = vpack.c.b16 %v6512, %v6512
      %v6530 = vpack.c.b16 %v6513, %v6513
      %v6531 = vpack.c.b16 %v6514, %v6514
      %v6532 = vpack.c.b16 %v6515, %v6515
      %v6533 = vpack.c.b16 %v6516, %v6516
      %v6534 = vpack.c.b16 %v6517, %v6517
      %v6535 = vpack.c.b16 %v6518, %v6518
      %v6536 = vpack.c.b16 %v6519, %v6519
      %v6537 = vpack.c.b16 %v6520, %v6520
      %6538 = vrot.lane.b32.xlu0 %v6521, 76
      %v6539 = vpop.permute.xlu0 %6538
      %6540 = vrot.lane.b32.xlu0 %v6522, 76
      %v6541 = vpop.permute.xlu0 %6540
      %6542 = vrot.lane.b32.xlu0 %v6523, 76
      %v6543 = vpop.permute.xlu0 %6542
      %6544 = vrot.lane.b32.xlu0 %v6524, 76
      %v6545 = vpop.permute.xlu0 %6544
      %6546 = vrot.lane.b32.xlu0 %v6525, 76
      %v6547 = vpop.permute.xlu0 %6546
      %6548 = vrot.lane.b32.xlu0 %v6526, 76
      %v6549 = vpop.permute.xlu0 %6548
      %6550 = vrot.lane.b32.xlu0 %v6527, 76
      %v6551 = vpop.permute.xlu0 %6550
      %6552 = vrot.lane.b32.xlu0 %v6528, 76
      %v6553 = vpop.permute.xlu0 %6552
      %6554 = vrot.lane.b32.xlu0 %v6529, 76
      %v6555 = vpop.permute.xlu0 %6554
      %6556 = vrot.lane.b32.xlu0 %v6530, 76
      %v6557 = vpop.permute.xlu0 %6556
      %6558 = vrot.lane.b32.xlu0 %v6531, 76
      %v6559 = vpop.permute.xlu0 %6558
      %6560 = vrot.lane.b32.xlu0 %v6532, 76
      %v6561 = vpop.permute.xlu0 %6560
      %6562 = vrot.lane.b32.xlu0 %v6533, 76
      %v6563 = vpop.permute.xlu0 %6562
      %6564 = vrot.lane.b32.xlu0 %v6534, 76
      %v6565 = vpop.permute.xlu0 %6564
      %6566 = vrot.lane.b32.xlu0 %v6535, 76
      %v6567 = vpop.permute.xlu0 %6566
      %6568 = vrot.lane.b32.xlu0 %v6536, 76
      %v6569 = vpop.permute.xlu0 %6568
      %6570 = vrot.lane.b32.xlu0 %v6537, 76
      %v6571 = vpop.permute.xlu0 %6570
      %vm6589 = vcmask 880224
      %6590 = vst.msk [vmem:[#allocation2] sm:$0xf] %vm6589, %v6539
      %6591 = vst.msk [vmem:[#allocation2 + $0x4] sm:$0xf] %vm6589, %v6541
      %6592 = vst.msk [vmem:[#allocation2 + $0x8] sm:$0xf] %vm6589, %v6543
      %6593 = vst.msk [vmem:[#allocation2 + $0xc] sm:$0xf] %vm6589, %v6545
      %6594 = vst.msk [vmem:[#allocation2 + $0x10] sm:$0xf] %vm6589, %v6547
      %6595 = vst.msk [vmem:[#allocation2 + $0x14] sm:$0xf] %vm6589, %v6549
      %6596 = vst.msk [vmem:[#allocation2 + $0x18] sm:$0xf] %vm6589, %v6551
      %6597 = vst.msk [vmem:[#allocation2 + $0x1c] sm:$0xf] %vm6589, %v6553
      %6598 = vst.msk [vmem:[#allocation2 + $0x20] sm:$0xf] %vm6589, %v6555
      %6599 = vst.msk [vmem:[#allocation2 + $0x24] sm:$0xf] %vm6589, %v6557
      %6600 = vst.msk [vmem:[#allocation2 + $0x28] sm:$0xf] %vm6589, %v6559
      %6601 = vst.msk [vmem:[#allocation2 + $0x2c] sm:$0xf] %vm6589, %v6561
      %6602 = vst.msk [vmem:[#allocation2 + $0x30] sm:$0xf] %vm6589, %v6563
      %6603 = vst.msk [vmem:[#allocation2 + $0x34] sm:$0xf] %vm6589, %v6565
      %6604 = vst.msk [vmem:[#allocation2 + $0x38] sm:$0xf] %vm6589, %v6567
      %6605 = vst.msk [vmem:[#allocation2 + $0x3c] sm:$0xf] %vm6589, %v6569
      %6606 = vst.msk [vmem:[#allocation2 + $0x40] sm:$0xf] %vm6589, %v6571
      %v6607 = vld [vmem:[#allocation2] sm:$0xf]
      %v6608 = vld [vmem:[#allocation2 + $0x4] sm:$0xf]
      %v6609 = vld [vmem:[#allocation2 + $0x8] sm:$0xf]
      %v6610 = vld [vmem:[#allocation2 + $0xc] sm:$0xf]
      %v6611 = vld [vmem:[#allocation2 + $0x10] sm:$0xf]
      %v6612 = vld [vmem:[#allocation2 + $0x14] sm:$0xf]
      %v6613 = vld [vmem:[#allocation2 + $0x18] sm:$0xf]
      %v6614 = vld [vmem:[#allocation2 + $0x1c] sm:$0xf]
      %v6615 = vld [vmem:[#allocation2 + $0x20] sm:$0xf]
      %v6616 = vld [vmem:[#allocation2 + $0x24] sm:$0xf]
      %v6617 = vld [vmem:[#allocation2 + $0x28] sm:$0xf]
      %v6618 = vld [vmem:[#allocation2 + $0x2c] sm:$0xf]
      %v6619 = vld [vmem:[#allocation2 + $0x30] sm:$0xf]
      %v6620 = vld [vmem:[#allocation2 + $0x34] sm:$0xf]
      %v6621 = vld [vmem:[#allocation2 + $0x38] sm:$0xf]
      %v6622 = vld [vmem:[#allocation2 + $0x3c] sm:$0xf]
      %v6623 = vld [vmem:[#allocation2 + $0x40] sm:$0xf]
      %v6624 = vld [vmem:[%s17] sm:$0xf]
      %v6625 = vld [vmem:[%s17 + $0x4] sm:$0xf]
      %v6626 = vld [vmem:[%s17 + $0x8] sm:$0xf]
      %v6627 = vld [vmem:[%s17 + $0xc] sm:$0xf]
      %v6628 = vld [vmem:[%s17 + $0x10] sm:$0xf]
      %v6629 = vld [vmem:[%s17 + $0x14] sm:$0xf]
      %v6630 = vld [vmem:[%s17 + $0x18] sm:$0xf]
      %v6631 = vld [vmem:[%s17 + $0x1c] sm:$0xf]
      %v6632 = vld [vmem:[%s17 + $0x20] sm:$0xf]
      %v6633 = vld [vmem:[%s17 + $0x24] sm:$0xf]
      %v6634 = vld [vmem:[%s17 + $0x28] sm:$0xf]
      %v6635 = vld [vmem:[%s17 + $0x2c] sm:$0xf]
      %v6636 = vld [vmem:[%s17 + $0x30] sm:$0xf]
      %v6637 = vld [vmem:[%s17 + $0x34] sm:$0xf]
      %v6638 = vld [vmem:[%s17 + $0x38] sm:$0xf]
      %v6639 = vld [vmem:[%s17 + $0x3c] sm:$0xf]
      %v6640 = vld [vmem:[%s18] sm:$0x1]
      %v6642 = vlaneseq
      %v6643 = vshrl.u32 %v6642, 7
      %v6644 = vsub.s32 0, %v6643
      %v6645 = vrot.slane %v6640, %v6644
      %v6664 = vunpack.c.l.b16 %v6607
      %v6665 = vunpack.c.l.b16 %v6608
      %v6666 = vunpack.c.l.b16 %v6609
      %v6667 = vunpack.c.l.b16 %v6610
      %v6668 = vunpack.c.l.b16 %v6611
      %v6669 = vunpack.c.l.b16 %v6612
      %v6670 = vunpack.c.l.b16 %v6613
      %v6671 = vunpack.c.l.b16 %v6614
      %v6672 = vunpack.c.l.b16 %v6615
      %v6673 = vunpack.c.l.b16 %v6616
      %v6674 = vunpack.c.l.b16 %v6617
      %v6675 = vunpack.c.l.b16 %v6618
      %v6676 = vunpack.c.l.b16 %v6619
      %v6677 = vunpack.c.l.b16 %v6620
      %v6678 = vunpack.c.l.b16 %v6621
      %v6679 = vunpack.c.l.b16 %v6622
      %v6680 = vunpack.c.l.b16 %v6623
      %v6681 = vpack.c.b16 %v6665, %v6664
      %v6682 = vpack.c.b16 %v6667, %v6666
      %v6683 = vpack.c.b16 %v6669, %v6668
      %v6684 = vpack.c.b16 %v6671, %v6670
      %v6685 = vpack.c.b16 %v6673, %v6672
      %v6686 = vpack.c.b16 %v6675, %v6674
      %v6687 = vpack.c.b16 %v6677, %v6676
      %v6688 = vpack.c.b16 %v6679, %v6678
      %v6689 = vpack.c.b16 %v6680, %v6680
      %v6715 = vunpack.c.l.b16 %v6624
      %v6716 = vunpack.c.l.b16 %v6625
      %v6717 = vunpack.c.l.b16 %v6626
      %v6718 = vunpack.c.l.b16 %v6627
      %v6719 = vunpack.c.l.b16 %v6628
      %v6720 = vunpack.c.l.b16 %v6629
      %v6721 = vunpack.c.l.b16 %v6630
      %v6722 = vunpack.c.l.b16 %v6631
      %v6723 = vunpack.c.l.b16 %v6632
      %v6724 = vunpack.c.l.b16 %v6633
      %v6725 = vunpack.c.l.b16 %v6634
      %v6726 = vunpack.c.l.b16 %v6635
      %v6727 = vunpack.c.l.b16 %v6636
      %v6728 = vunpack.c.l.b16 %v6637
      %v6729 = vunpack.c.l.b16 %v6638
      %v6730 = vunpack.c.l.b16 %v6639
      %v6731 = vpack.c.b16 %v6716, %v6715
      %v6732 = vpack.c.b16 %v6718, %v6717
      %v6733 = vpack.c.b16 %v6720, %v6719
      %v6734 = vpack.c.b16 %v6722, %v6721
      %v6735 = vpack.c.b16 %v6724, %v6723
      %v6736 = vpack.c.b16 %v6726, %v6725
      %v6737 = vpack.c.b16 %v6728, %v6727
      %v6738 = vpack.c.b16 %v6730, %v6729
      %6747 = vmatprep.subr.bf16.mxu0 0
      %6748 = vmatpush1.bf16.msra.mxu0 %v6731
      %6749 = vmatprep.subr.bf16.mxu0 0
      %6750 = vmatpush1.bf16.msra.mxu0 %v6732
      %6751 = vmatprep.subr.bf16.mxu0 0
      %6752 = vmatpush1.bf16.msra.mxu0 %v6733
      %6753 = vmatprep.subr.bf16.mxu0 0
      %6754 = vmatpush1.bf16.msra.mxu0 %v6734
      %6755 = vmatprep.subr.bf16.mxu0 0
      %6756 = vmatpush1.bf16.msra.mxu0 %v6735
      %6757 = vmatprep.subr.bf16.mxu0 0
      %6758 = vmatpush1.bf16.msra.mxu0 %v6736
      %6759 = vmatprep.subr.bf16.mxu0 0
      %6760 = vmatpush1.bf16.msra.mxu0 %v6737
      %6761 = vmatprep.subr.bf16.mxu0 0
      %6762 = vmatpush1.bf16.msra.mxu0 %v6738
      %6763 = vmatprep.subr.bf16.mxu0 0
      %6764 = vmatpush1.bf16.msra.mxu0 0
      %6765 = vmatprep.subr.bf16.mxu0 0
      %6766 = vmatpush1.bf16.msra.mxu0 0
      %6767 = vmatprep.subr.bf16.mxu0 0
      %6768 = vmatpush1.bf16.msra.mxu0 0
      %6769 = vmatprep.subr.bf16.mxu0 0
      %6770 = vmatpush1.bf16.msra.mxu0 0
      %6771 = vmatprep.subr.bf16.mxu0 0
      %6772 = vmatpush1.bf16.msra.mxu0 0
      %6773 = vmatprep.subr.bf16.mxu0 0
      %6774 = vmatpush1.bf16.msra.mxu0 0
      %6775 = vmatprep.subr.bf16.mxu0 0
      %6776 = vmatpush1.bf16.msra.mxu0 0
      %6777 = vmatprep.subr.bf16.mxu0 0
      %6778 = vmatpush1.bf16.msra.mxu0 0
      %6779 = vmatprep.mubr.bf16.mxu0 0
      %6780 = vmatmul.mubr.bf16.gmra.mrb[0].mxu0 %v6681
      %v6781 = vpop.f32.mrb[0].mxu0
      %v6782 = vadd.f32 %v6645, %v6781
      %v6783 = vpop.f32.mrb[0].mxu0
      %v6784 = vpop.f32.mrb[0].mxu0
      %v6785 = vadd.f32 %v6645, %v6784
      %v6786 = vpop.f32.mrb[0].mxu0
      %6787 = vmatprep.mubr.bf16.mxu0 0
      %6788 = vmatmul.mubr.bf16.gmra.mrb[0].mxu0 %v6682
      %v6789 = vpop.f32.mrb[0].mxu0
      %v6790 = vadd.f32 %v6645, %v6789
      %v6791 = vpop.f32.mrb[0].mxu0
      %v6792 = vpop.f32.mrb[0].mxu0
      %v6793 = vadd.f32 %v6645, %v6792
      %v6794 = vpop.f32.mrb[0].mxu0
      %6795 = vmatprep.mubr.bf16.mxu0 0
      %6796 = vmatmul.mubr.bf16.gmra.mrb[0].mxu0 %v6683
      %v6797 = vpop.f32.mrb[0].mxu0
      %v6798 = vadd.f32 %v6645, %v6797
      %v6799 = vpop.f32.mrb[0].mxu0
      %v6800 = vpop.f32.mrb[0].mxu0
      %v6801 = vadd.f32 %v6645, %v6800
      %v6802 = vpop.f32.mrb[0].mxu0
      %6803 = vmatprep.mubr.bf16.mxu0 0
      %6804 = vmatmul.mubr.bf16.gmra.mrb[0].mxu0 %v6684
      %v6805 = vpop.f32.mrb[0].mxu0
      %v6806 = vadd.f32 %v6645, %v6805
      %v6807 = vpop.f32.mrb[0].mxu0
      %v6808 = vpop.f32.mrb[0].mxu0
      %v6809 = vadd.f32 %v6645, %v6808
      %v6810 = vpop.f32.mrb[0].mxu0
      %6811 = vmatprep.mubr.bf16.mxu0 0
      %6812 = vmatmul.mubr.bf16.gmra.mrb[0].mxu0 %v6685
      %v6813 = vpop.f32.mrb[0].mxu0
      %v6814 = vadd.f32 %v6645, %v6813
      %v6815 = vpop.f32.mrb[0].mxu0
      %v6816 = vpop.f32.mrb[0].mxu0
      %v6817 = vadd.f32 %v6645, %v6816
      %v6818 = vpop.f32.mrb[0].mxu0
      %6819 = vmatprep.mubr.bf16.mxu0 0
      %6820 = vmatmul.mubr.bf16.gmra.mrb[0].mxu0 %v6686
      %v6821 = vpop.f32.mrb[0].mxu0
      %v6822 = vadd.f32 %v6645, %v6821
      %v6823 = vpop.f32.mrb[0].mxu0
      %v6824 = vpop.f32.mrb[0].mxu0
      %v6825 = vadd.f32 %v6645, %v6824
      %v6826 = vpop.f32.mrb[0].mxu0
      %6827 = vmatprep.mubr.bf16.mxu0 0
      %6828 = vmatmul.mubr.bf16.gmra.mrb[0].mxu0 %v6687
      %v6829 = vpop.f32.mrb[0].mxu0
      %v6830 = vadd.f32 %v6645, %v6829
      %v6831 = vpop.f32.mrb[0].mxu0
      %v6832 = vpop.f32.mrb[0].mxu0
      %v6833 = vadd.f32 %v6645, %v6832
      %v6834 = vpop.f32.mrb[0].mxu0
      %6835 = vmatprep.mubr.bf16.mxu0 0
      %6836 = vmatmul.mubr.bf16.gmra.mrb[0].mxu0 %v6688
      %v6837 = vpop.f32.mrb[0].mxu0
      %v6838 = vadd.f32 %v6645, %v6837
      %v6839 = vpop.f32.mrb[0].mxu0
      %v6840 = vpop.f32.mrb[0].mxu0
      %v6841 = vadd.f32 %v6645, %v6840
      %v6842 = vpop.f32.mrb[0].mxu0
      %6843 = vmatprep.mubr.bf16.mxu0 0
      %6844 = vmatmul.mubr.bf16.gmra.mrb[0].mxu0 %v6689
      %v6845 = vpop.f32.mrb[0].mxu0
      %v6846 = vadd.f32 %v6645, %v6845
      %v6847 = vpop.f32.mrb[0].mxu0
      %v6848 = vpop.f32.mrb[0].mxu0
      %v6849 = vpop.f32.mrb[0].mxu0
      %6850 = vdwg.mxu0
      %6851 = vst [vmem:[%s629] sm:$0xff] %v6782
      %6852 = vst [vmem:[%s629 + $0x8] sm:$0xff] %v6785
      %6853 = vst [vmem:[%s629 + $0x10] sm:$0xff] %v6790
      %6854 = vst [vmem:[%s629 + $0x18] sm:$0xff] %v6793
      %6855 = vst [vmem:[%s629 + $0x20] sm:$0xff] %v6798
      %6856 = vst [vmem:[%s629 + $0x28] sm:$0xff] %v6801
      %6857 = vst [vmem:[%s629 + $0x30] sm:$0xff] %v6806
      %6858 = vst [vmem:[%s629 + $0x38] sm:$0xff] %v6809
      %6859 = vst [vmem:[%s629 + $0x40] sm:$0xff] %v6814
      %6860 = vst [vmem:[%s629 + $0x48] sm:$0xff] %v6817
      %6861 = vst [vmem:[%s629 + $0x50] sm:$0xff] %v6822
      %6862 = vst [vmem:[%s629 + $0x58] sm:$0xff] %v6825
      %6863 = vst [vmem:[%s629 + $0x60] sm:$0xff] %v6830
      %6864 = vst [vmem:[%s629 + $0x68] sm:$0xff] %v6833
      %6865 = vst [vmem:[%s629 + $0x70] sm:$0xff] %v6838
      %6866 = vst [vmem:[%s629 + $0x78] sm:$0xff] %v6841
      %6867 = vst [vmem:[%s629 + $0x80] sm:$0xff] %v6846
      %s6868 = smul.u32 17, %s30
      %p6869 = scmp.lt.s32.totalorder %s6868, 33
      %s6870 = scalar_select %p6869, %s6868, 33
      %s6871 = smul.addr %s6870, 8
      %s6872 = scalar_lea.vmem %s19, %s6871
      // Predicated region
      $region97: #{forward.1} parent=95 // pred_check
        %p6873 = pneg %p457
      $region98: #{forward.1} parent=95 // pred_check_branch
        %6875 = sbr.rel (%p6873) target = $region100
      $region99: #{forward.1} parent=95 // pred_region
        %s6876 = smul.u32 17, %s30
      $region100: #{forward.1} parent=95 // pred_fallthru
        _
    $region96: #{forward.1} parent=5 // pred_fallthru
      _
    %p6877 = scmp.le.s32.totalorder 2, %s25
    // Predicated region
    $region101: #{forward.1} parent=5 // pred_check
      %p6878 = pneg %p6877
    $region102: #{forward.1} parent=5 // pred_check_branch
      %6880 = sbr.rel (%p6878) target = $region104
    $region103: #{forward.1} parent=5 // pred_region
      %s6881 = ssub.s32 %s25, 2
      // Predicated region
      $region105: #{forward.1} parent=103 // pred_check
        %p6882 = pneg %p463
      $region106: #{forward.1} parent=103 // pred_check_branch
        %6884 = sbr.rel (%p6882) target = $region108
      $region107: #{forward.1} parent=103 // pred_region
        %s6885 = smul.u32 17, %s31
        %p6886 = scmp.lt.s32.totalorder %s6885, 33
        %s6887 = scalar_select %p6886, %s6885, 33
        %s6888 = smul.addr %s6887, 8
        %s6889 = scalar_lea.vmem %s19, %s6888
      $region108: #{forward.1} parent=103 // pred_fallthru
        _
    $region104: #{forward.1} parent=5 // pred_fallthru
      _
  $region6: #{forward.1} parent=0 // loop_footer
    %s29 = sadd.s32 1, %s25
  $region7: #{forward.1} parent=0 // loop_footer_branch
    %24 = sbr.rel target = $region3
  $region8: #{forward.1} parent=0 // loop_exit
    _

</llo_original>
